<compile_context>
chip_gen: v7x
topology: tpu7x:2x2x1
jax: 0.10.0
libtpu: 0.0.40
codegen_flags: <defaults>
</compile_context>

<pallas_src>
import functools

import numpy as np
import jax
import jax.numpy as jnp
from jax.experimental import pallas as pl
from jax.experimental.pallas import tpu as pltpu


def _relu6(a):
    return jnp.minimum(jnp.maximum(a, 0.0), 6.0)


# ---------------------------------------------------------------------------
# host-side parameter packing (done once, outside jit)
# ---------------------------------------------------------------------------

def pack_rnn_cell_params(wih_params, whh_params, bh_params):
    """Pack every hyper-net Linear layer of the three models into 4 stacked,
    zero-padded arrays.  Returns (packed dict of 4 arrays, static meta)."""
    models = (wih_params, whh_params, bh_params)

    Sm = 0   # common padded size for all s_model layers (feature dim)
    Cm = 0   # common padded size for all c_model layers (channel dim)
    for m in models:
        for W, _ in m["s"]:
            Sm = max(Sm, W.shape[0], W.shape[1])
        for W, _ in m["c"]:
            Cm = max(Cm, W.shape[0], W.shape[1])

    sW, sB, cW, cB, meta = [], [], [], [], []
    s_off = c_off = 0
    for m in models:
        n_s, n_c = len(m["s"]), len(m["c"])
        for W, b in m["s"]:                        # torch layout (dout, din)
            dout, din = W.shape
            wp = np.zeros((Sm, Sm), np.float32)
            wp[:din, :dout] = np.asarray(W, np.float32).T   # pre-transposed
            bp = np.zeros((1, Sm), np.float32)
            bp[0, :dout] = np.asarray(b, np.float32)        # row bias
            sW.append(wp)
            sB.append(bp)
        for W, b in m["c"]:                        # torch layout (cout, cin)
            cout, cin = W.shape
            wp = np.zeros((Cm, Cm), np.float32)
            wp[:cout, :cin] = np.asarray(W, np.float32)
            bp = np.zeros((Cm, 1), np.float32)
            bp[:cout, 0] = np.asarray(b, np.float32)        # column bias
            cW.append(wp)
            cB.append(bp)
        meta.append((s_off, n_s, c_off, n_c,
                     m["c"][-1][0].shape[0],       # real output channels
                     m["s"][-1][0].shape[0]))      # real output features
        s_off += n_s
        c_off += n_c

    packed = dict(sW=jnp.asarray(np.stack(sW)), sB=jnp.asarray(np.stack(sB)),
                  cW=jnp.asarray(np.stack(cW)), cB=jnp.asarray(np.stack(cB)))
    return packed, tuple(meta)


# ---------------------------------------------------------------------------
# fused kernel: hyper-networks (set_weight) + RNN recurrence (forward)
# ---------------------------------------------------------------------------

def _make_fused_kernel(meta, z_ch, in_dim, T, reverse):
    """One grid step == one batch element."""

    def kernel(z_ref, x_ref, h0_ref, sW_ref, sB_ref, cW_ref, cB_ref,
               o_ref, wxb_ref):
        z = z_ref[...]                                     # (z_ch, in_dim)

        # ---- the three hyper-networks (WeightModel x2 + BiasModel) ----------
        gen = []
        for s_off, n_s, c_off, n_c, cout, sout in meta:
            a = z
            # s_model: Linear(+ReLU6) chain over the feature dim -> right-mult.
            for j in range(n_s):
                w = sW_ref[s_off + j]                      # (Sm, Sm), pre-transposed
                if j == 0:
                    w = w[:in_dim, :]                      # real fan-in of layer 0
                a = jnp.dot(a, w, preferred_element_type=jnp.float32)
                a = a + sB_ref[s_off + j]                  # (1, Sm) row bias
                if j < n_s - 1:
                    a = _relu6(a)
            # permute(0,2,1) + c_model + permute(0,2,1) == chain of
            # left-multiplications over the channel dim: both permutes are free.
            for j in range(n_c):
                w = cW_ref[c_off + j]                      # (Cm, Cm), torch layout
                if j == 0:
                    w = w[:, :z_ch]                        # real fan-in of layer 0
                a = jnp.dot(w, a, preferred_element_type=jnp.float32)
                a = a + cB_ref[c_off + j]                  # (Cm, 1) column bias
                if j < n_c - 1:
                    a = _relu6(a)
            gen.append(a[:cout, :sout])                    # strip zero padding
        W_ih, W_hh, b_h = gen              # (in_ch, H), (H, H), (1, H)

        # ---- recurrence: h_t = tanh(x_t @ W_ih + h_{t-1} @ W_hh + b_h) ------
        # Input projection (+ bias) for ALL T steps hoisted into one matmul.
        wxb_ref[...] = jnp.dot(x_ref[...], W_ih,
                               preferred_element_type=jnp.float32) + b_h  # (T, H)
        h = h0_ref[...]                                    # (1, H)
        for i in range(T):                                 # static, fully unrolled
            t = (T - 1 - i) if reverse else i
            wh = jnp.dot(h, W_hh, preferred_element_type=jnp.float32)
            h = jnp.tanh(wxb_ref[pl.ds(t, 1), :] + wh)
            o_ref[pl.ds(t, 1), :] = h.astype(o_ref.dtype)  # VMEM block write

    return kernel


@functools.partial(jax.jit, static_argnames=("meta", "reverse"))
def _rnn_cell_forward(x, h0, z, sW, sB, cW, cB, meta, reverse):
    B, in_ch, T = x.shape
    _, z_ch, in_dim = z.shape
    H = h0.shape[-1]
    x_t = jnp.transpose(x, (0, 2, 1))                      # (B, T, in_ch)

    out = pl.pallas_call(
        _make_fused_kernel(meta, z_ch=z_ch, in_dim=in_dim, T=T, reverse=reverse),
        out_shape=jax.ShapeDtypeStruct((B, T, H), jnp.float32),
        grid=(B,),
        in_specs=[
            pl.BlockSpec((None, z_ch, in_dim), lambda b: (b, 0, 0)),   # z
            pl.BlockSpec((None, T, in_ch), lambda b: (b, 0, 0)),       # x
            pl.BlockSpec((None, 1, H), lambda b: (b, 0, 0)),           # h0
            # Packed parameters: same block at every grid step -> fetched once.
            pl.BlockSpec(sW.shape, lambda b: (0, 0, 0)),
            pl.BlockSpec(sB.shape, lambda b: (0, 0, 0)),
            pl.BlockSpec(cW.shape, lambda b: (0, 0, 0)),
            pl.BlockSpec(cB.shape, lambda b: (0, 0, 0)),
        ],
        out_specs=pl.BlockSpec((None, T, H), lambda b: (b, 0, 0)),
        scratch_shapes=[pltpu.VMEM((T, H), jnp.float32)],              # wx + b_h
        compiler_params=pltpu.CompilerParams(
            dimension_semantics=("parallel",),
            vmem_limit_bytes=32 * 1024 * 1024),
    )(z, x_t, h0, sW, sB, cW, cB)

    return jnp.transpose(out, (0, 2, 1))                   # (B, H, T), torch layout


def rnn_cell_forward(x, h, z, packed, meta, reverse=False):
    """Fused RNNCell.set_weight(z) + RNNCell.forward(x, h)."""
    return _rnn_cell_forward(x, h, z, packed["sW"], packed["sB"],
                             packed["cW"], packed["cB"], meta, reverse)


# ---------------------------------------------------------------------------
# pure-JAX reference (mirrors the PyTorch ops exactly)
# ---------------------------------------------------------------------------

def _hyper_model_ref(z, mp):
    hi = jax.lax.Precision.HIGHEST
    a = z
    s, c = mp["s"], mp["c"]
    for j, (W, bias) in enumerate(s):
        a = jnp.einsum("bcd,od->bco", a, W, precision=hi) + bias
        if j < len(s) - 1:
            a = _relu6(a)
    a = jnp.transpose(a, (0, 2, 1))
    for j, (W, bias) in enumerate(c):
        a = jnp.einsum("bdc,oc->bdo", a, W, precision=hi) + bias
        if j < len(c) - 1:
            a = _relu6(a)
    return jnp.transpose(a, (0, 2, 1))


def rnn_cell_reference(x, h, z, wih_params, whh_params, bh_params, reverse=False):
    hi = jax.lax.Precision.HIGHEST
    W_ih = _hyper_model_ref(z, wih_params)
    W_hh = _hyper_model_ref(z, whh_params)
    b_h = _hyper_model_ref(z, bh_params)
    B, in_ch, T = x.shape
    xs = jnp.transpose(x, (0, 2, 1))
    order = range(T - 1, -1, -1) if reverse else range(T)
    hs = []
    for t in order:
        Wx = jnp.einsum("bic,bch->bih", xs[:, t:t + 1, :], W_ih, precision=hi)
        Wh = jnp.einsum("bih,bhk->bik", h, W_hh, precision=hi)
        h = jnp.tanh(Wx + Wh + b_h)
        hs.append(h)
    out = jnp.transpose(jnp.concatenate(hs, axis=1), (0, 2, 1))
    if reverse:
        out = jnp.flip(out, axis=-1)
    return out


# ---------------------------------------------------------------------------
# parameter construction
# ---------------------------------------------------------------------------

def _init_linear(key, din, dout):
    # NOTE: the PyTorch module uses N(0, 0.01/0.02); through 8-layer chains that
    # collapses everything to ~0 and makes the numeric check vacuous, so the
    # test uses a fan-in-scaled init (forward-pass semantics are unchanged).
    kw, kb = jax.random.split(key)
    std = 1.0 / np.sqrt(din)
    W = std * jax.random.normal(kw, (dout, din), jnp.float32)   # torch (out, in)
    b = std * jax.random.normal(kb, (dout,), jnp.float32)
    return W, b


def _init_chain(key, dims):
    keys = jax.random.split(key, len(dims) - 1)
    return [_init_linear(keys[i], dims[i], dims[i + 1]) for i in range(len(dims) - 1)]


def make_weight_model_params(key, in_ch, out_ch, in_dim, out_dim, hidden_size):
    ks, kc = jax.random.split(key)
    return {
        "s": _init_chain(ks, [in_dim] + [hidden_size] * 7 + [out_dim]),   # 8 Linears
        "c": _init_chain(kc, [in_ch] + [2 * in_ch] * 7 + [out_ch]),       # 8 Linears
    }


def make_bias_model_params(key, in_ch, out_ch, in_dim, out_dim, hidden_size):
    ks, kc = jax.random.split(key)
    return {
        "s": _init_chain(ks, [in_dim] + [hidden_size] * 2 + [out_dim]),   # 3 Linears
        "c": _init_chain(kc, [in_ch] + [2 * in_ch] * 2 + [out_ch]),       # 3 Linears
    }


def make_rnn_cell_params(key, input_size, hidden_size, in_ch, hidden_ch, z_ch,
                         layer_num=0):
    k1, k2, k3 = jax.random.split(key, 3)
    wih = make_weight_model_params(
        k1, in_ch=z_ch, out_ch=in_ch if layer_num == 0 else hidden_ch,
        in_dim=input_size, out_dim=hidden_ch, hidden_size=hidden_size)
    whh = make_weight_model_params(
        k2, in_ch=z_ch, out_ch=hidden_ch,
        in_dim=input_size, out_dim=hidden_ch, hidden_size=hidden_size)
    bh = make_bias_model_params(
        k3, in_ch=z_ch, out_ch=1,
        in_dim=input_size, out_dim=hidden_ch, hidden_size=hidden_size)
    return wih, whh, bh


# ------------------------------------ main ------------------------------------

if __name__ == "__main__":
    # RNNCell hyper-parameters (the `out_ch` ctor arg of RNNCell is unused).
    B = 2             # batch
    in_ch = 4         # input channels of x
    hidden_ch = 16    # RNN hidden state size H
    z_ch = 4          # channels of the weight-generating variable z
    input_size = 8    # last dim of z (in_dim of the hyper-networks)
    hidden_size = 32  # hidden width of the hyper-network s_models
    T = 16            # sequence length

    key = jax.random.PRNGKey(0)
    kp, kx, kz, kh = jax.random.split(key, 4)
    wih_p, whh_p, bh_p = make_rnn_cell_params(
        kp, input_size, hidden_size, in_ch, hidden_ch, z_ch, layer_num=0)
    packed, meta = pack_rnn_cell_params(wih_p, whh_p, bh_p)

    x = jax.random.normal(kx, (B, in_ch, T), jnp.float32)
    z = jax.random.normal(kz, (B, z_ch, input_size), jnp.float32)
    h0 = 0.1 * jax.random.normal(kh, (B, 1, hidden_ch), jnp.float32)

    for reverse in (False, True):
        y = rnn_cell_forward(x, h0, z, packed, meta, reverse=reverse)
        y = jax.block_until_ready(y)
        assert y.shape == (B, hidden_ch, T), y.shape
        y_ref = rnn_cell_reference(x, h0, z, wih_p, whh_p, bh_p, reverse=reverse)
        y_ref = jax.block_until_ready(y_ref)
        np.testing.assert_allclose(np.asarray(y), np.asarray(y_ref),
                                   rtol=5e-4, atol=5e-4)

    print("KERNEL_OK")
</pallas_src>

<mosaic_0001>
module attributes {stable_mosaic.version = 11 : i64} {
  func.func @kernel(%arg0: i32, %arg1: memref<1x4x8xf32, #tpu.memory_space<vmem>>, %arg2: memref<1x16x4xf32, #tpu.memory_space<vmem>>, %arg3: memref<1x1x16xf32, #tpu.memory_space<vmem>>, %arg4: memref<19x32x32xf32, #tpu.memory_space<vmem>>, %arg5: memref<19x1x32xf32, #tpu.memory_space<vmem>>, %arg6: memref<19x16x16xf32, #tpu.memory_space<vmem>>, %arg7: memref<19x16x1xf32, #tpu.memory_space<vmem>>, %arg8: memref<1x16x16xf32, #tpu.memory_space<vmem>>, %arg9: memref<16x16xf32, #tpu.memory_space<vmem>>) attributes {dimension_semantics = [#tpu.dimension_semantics<parallel>], iteration_bounds = array<i64: 2>, scalar_prefetch = 0 : i64, scratch_operands = 1 : i64, tpu.core_type = #tpu.core_type<tc>, window_params = [{transform_indices = @transform_0, window_bounds = array<i64: 1, 4, 8>}, {transform_indices = @transform_1, window_bounds = array<i64: 1, 16, 4>}, {transform_indices = @transform_2, window_bounds = array<i64: 1, 1, 16>}, {pipeline_mode = #tpu.pipeline_mode<synchronous>, transform_indices = @transform_3, window_bounds = array<i64: 19, 32, 32>}, {pipeline_mode = #tpu.pipeline_mode<synchronous>, transform_indices = @transform_4, window_bounds = array<i64: 19, 1, 32>}, {pipeline_mode = #tpu.pipeline_mode<synchronous>, transform_indices = @transform_5, window_bounds = array<i64: 19, 16, 16>}, {pipeline_mode = #tpu.pipeline_mode<synchronous>, transform_indices = @transform_6, window_bounds = array<i64: 19, 16, 1>}, {transform_indices = @transform_7, window_bounds = array<i64: 1, 16, 16>}]} {
    %c0 = arith.constant 0 : index
    %c0_0 = arith.constant 0 : index
    %c0_1 = arith.constant 0 : index
    %0 = vector.load %arg1[%c0, %c0_0, %c0_1] : memref<1x4x8xf32, #tpu.memory_space<vmem>>, vector<1x4x8xf32>
    %1 = vector.shape_cast %0 : vector<1x4x8xf32> to vector<4x8xf32>
    %c0_2 = arith.constant 0 : index
    %c0_3 = arith.constant 0 : index
    %c0_4 = arith.constant 0 : index
    %2 = vector.load %arg4[%c0_2, %c0_3, %c0_4] : memref<19x32x32xf32, #tpu.memory_space<vmem>>, vector<1x32x32xf32>
    %3 = vector.shape_cast %2 : vector<1x32x32xf32> to vector<32x32xf32>
    %4 = vector.extract_strided_slice %3 {offsets = [0, 0], sizes = [8, 32], strides = [1, 1]} : vector<32x32xf32> to vector<8x32xf32>
    %cst = arith.constant dense<0.000000e+00> : vector<4x32xf32>
    %5 = tpu.matmul %1, %4, %cst {dimension_numbers = #tpu.dot_dimension_numbers<[1], [0], [0], [1], [0, 0, 1, 1], [], []>} : vector<4x8xf32>, vector<8x32xf32>, vector<4x32xf32> -> vector<4x32xf32>
    %c0_5 = arith.constant 0 : index
    %c0_6 = arith.constant 0 : index
    %c0_7 = arith.constant 0 : index
    %6 = vector.load %arg5[%c0_5, %c0_6, %c0_7] : memref<19x1x32xf32, #tpu.memory_space<vmem>>, vector<1x1x32xf32>
    %7 = vector.shape_cast %6 : vector<1x1x32xf32> to vector<1x32xf32>
    %8 = vector.broadcast %7 : vector<1x32xf32> to vector<4x32xf32>
    %9 = arith.addf %5, %8 : vector<4x32xf32>
    %cst_8 = arith.constant 0.000000e+00 : f32
    %10 = vector.broadcast %cst_8 : f32 to vector<4x32xf32>
    %11 = arith.maximumf %9, %10 : vector<4x32xf32>
    %cst_9 = arith.constant 6.000000e+00 : f32
    %12 = vector.broadcast %cst_9 : f32 to vector<4x32xf32>
    %13 = arith.minimumf %11, %12 : vector<4x32xf32>
    %c1 = arith.constant 1 : index
    %c0_10 = arith.constant 0 : index
    %c0_11 = arith.constant 0 : index
    %14 = vector.load %arg4[%c1, %c0_10, %c0_11] : memref<19x32x32xf32, #tpu.memory_space<vmem>>, vector<1x32x32xf32>
    %15 = vector.shape_cast %14 : vector<1x32x32xf32> to vector<32x32xf32>
    %cst_12 = arith.constant dense<0.000000e+00> : vector<4x32xf32>
    %16 = tpu.matmul %13, %15, %cst_12 {dimension_numbers = #tpu.dot_dimension_numbers<[1], [0], [0], [1], [0, 0, 1, 1], [], []>} : vector<4x32xf32>, vector<32x32xf32>, vector<4x32xf32> -> vector<4x32xf32>
    %c1_13 = arith.constant 1 : index
    %c0_14 = arith.constant 0 : index
    %c0_15 = arith.constant 0 : index
    %17 = vector.load %arg5[%c1_13, %c0_14, %c0_15] : memref<19x1x32xf32, #tpu.memory_space<vmem>>, vector<1x1x32xf32>
    %18 = vector.shape_cast %17 : vector<1x1x32xf32> to vector<1x32xf32>
    %19 = vector.broadcast %18 : vector<1x32xf32> to vector<4x32xf32>
    %20 = arith.addf %16, %19 : vector<4x32xf32>
    %cst_16 = arith.constant 0.000000e+00 : f32
    %21 = vector.broadcast %cst_16 : f32 to vector<4x32xf32>
    %22 = arith.maximumf %20, %21 : vector<4x32xf32>
    %cst_17 = arith.constant 6.000000e+00 : f32
    %23 = vector.broadcast %cst_17 : f32 to vector<4x32xf32>
    %24 = arith.minimumf %22, %23 : vector<4x32xf32>
    %c2 = arith.constant 2 : index
    %c0_18 = arith.constant 0 : index
    %c0_19 = arith.constant 0 : index
    %25 = vector.load %arg4[%c2, %c0_18, %c0_19] : memref<19x32x32xf32, #tpu.memory_space<vmem>>, vector<1x32x32xf32>
    %26 = vector.shape_cast %25 : vector<1x32x32xf32> to vector<32x32xf32>
    %cst_20 = arith.constant dense<0.000000e+00> : vector<4x32xf32>
    %27 = tpu.matmul %24, %26, %cst_20 {dimension_numbers = #tpu.dot_dimension_numbers<[1], [0], [0], [1], [0, 0, 1, 1], [], []>} : vector<4x32xf32>, vector<32x32xf32>, vector<4x32xf32> -> vector<4x32xf32>
    %c2_21 = arith.constant 2 : index
    %c0_22 = arith.constant 0 : index
    %c0_23 = arith.constant 0 : index
    %28 = vector.load %arg5[%c2_21, %c0_22, %c0_23] : memref<19x1x32xf32, #tpu.memory_space<vmem>>, vector<1x1x32xf32>
    %29 = vector.shape_cast %28 : vector<1x1x32xf32> to vector<1x32xf32>
    %30 = vector.broadcast %29 : vector<1x32xf32> to vector<4x32xf32>
    %31 = arith.addf %27, %30 : vector<4x32xf32>
    %cst_24 = arith.constant 0.000000e+00 : f32
    %32 = vector.broadcast %cst_24 : f32 to vector<4x32xf32>
    %33 = arith.maximumf %31, %32 : vector<4x32xf32>
    %cst_25 = arith.constant 6.000000e+00 : f32
    %34 = vector.broadcast %cst_25 : f32 to vector<4x32xf32>
    %35 = arith.minimumf %33, %34 : vector<4x32xf32>
    %c3 = arith.constant 3 : index
    %c0_26 = arith.constant 0 : index
    %c0_27 = arith.constant 0 : index
    %36 = vector.load %arg4[%c3, %c0_26, %c0_27] : memref<19x32x32xf32, #tpu.memory_space<vmem>>, vector<1x32x32xf32>
    %37 = vector.shape_cast %36 : vector<1x32x32xf32> to vector<32x32xf32>
    %cst_28 = arith.constant dense<0.000000e+00> : vector<4x32xf32>
    %38 = tpu.matmul %35, %37, %cst_28 {dimension_numbers = #tpu.dot_dimension_numbers<[1], [0], [0], [1], [0, 0, 1, 1], [], []>} : vector<4x32xf32>, vector<32x32xf32>, vector<4x32xf32> -> vector<4x32xf32>
    %c3_29 = arith.constant 3 : index
    %c0_30 = arith.constant 0 : index
    %c0_31 = arith.constant 0 : index
    %39 = vector.load %arg5[%c3_29, %c0_30, %c0_31] : memref<19x1x32xf32, #tpu.memory_space<vmem>>, vector<1x1x32xf32>
    %40 = vector.shape_cast %39 : vector<1x1x32xf32> to vector<1x32xf32>
    %41 = vector.broadcast %40 : vector<1x32xf32> to vector<4x32xf32>
    %42 = arith.addf %38, %41 : vector<4x32xf32>
    %cst_32 = arith.constant 0.000000e+00 : f32
    %43 = vector.broadcast %cst_32 : f32 to vector<4x32xf32>
    %44 = arith.maximumf %42, %43 : vector<4x32xf32>
    %cst_33 = arith.constant 6.000000e+00 : f32
    %45 = vector.broadcast %cst_33 : f32 to vector<4x32xf32>
    %46 = arith.minimumf %44, %45 : vector<4x32xf32>
    %c4 = arith.constant 4 : index
    %c0_34 = arith.constant 0 : index
    %c0_35 = arith.constant 0 : index
    %47 = vector.load %arg4[%c4, %c0_34, %c0_35] : memref<19x32x32xf32, #tpu.memory_space<vmem>>, vector<1x32x32xf32>
    %48 = vector.shape_cast %47 : vector<1x32x32xf32> to vector<32x32xf32>
    %cst_36 = arith.constant dense<0.000000e+00> : vector<4x32xf32>
    %49 = tpu.matmul %46, %48, %cst_36 {dimension_numbers = #tpu.dot_dimension_numbers<[1], [0], [0], [1], [0, 0, 1, 1], [], []>} : vector<4x32xf32>, vector<32x32xf32>, vector<4x32xf32> -> vector<4x32xf32>
    %c4_37 = arith.constant 4 : index
    %c0_38 = arith.constant 0 : index
    %c0_39 = arith.constant 0 : index
    %50 = vector.load %arg5[%c4_37, %c0_38, %c0_39] : memref<19x1x32xf32, #tpu.memory_space<vmem>>, vector<1x1x32xf32>
    %51 = vector.shape_cast %50 : vector<1x1x32xf32> to vector<1x32xf32>
    %52 = vector.broadcast %51 : vector<1x32xf32> to vector<4x32xf32>
    %53 = arith.addf %49, %52 : vector<4x32xf32>
    %cst_40 = arith.constant 0.000000e+00 : f32
    %54 = vector.broadcast %cst_40 : f32 to vector<4x32xf32>
    %55 = arith.maximumf %53, %54 : vector<4x32xf32>
    %cst_41 = arith.constant 6.000000e+00 : f32
    %56 = vector.broadcast %cst_41 : f32 to vector<4x32xf32>
    %57 = arith.minimumf %55, %56 : vector<4x32xf32>
    %c5 = arith.constant 5 : index
    %c0_42 = arith.constant 0 : index
    %c0_43 = arith.constant 0 : index
    %58 = vector.load %arg4[%c5, %c0_42, %c0_43] : memref<19x32x32xf32, #tpu.memory_space<vmem>>, vector<1x32x32xf32>
    %59 = vector.shape_cast %58 : vector<1x32x32xf32> to vector<32x32xf32>
    %cst_44 = arith.constant dense<0.000000e+00> : vector<4x32xf32>
    %60 = tpu.matmul %57, %59, %cst_44 {dimension_numbers = #tpu.dot_dimension_numbers<[1], [0], [0], [1], [0, 0, 1, 1], [], []>} : vector<4x32xf32>, vector<32x32xf32>, vector<4x32xf32> -> vector<4x32xf32>
    %c5_45 = arith.constant 5 : index
    %c0_46 = arith.constant 0 : index
    %c0_47 = arith.constant 0 : index
    %61 = vector.load %arg5[%c5_45, %c0_46, %c0_47] : memref<19x1x32xf32, #tpu.memory_space<vmem>>, vector<1x1x32xf32>
    %62 = vector.shape_cast %61 : vector<1x1x32xf32> to vector<1x32xf32>
    %63 = vector.broadcast %62 : vector<1x32xf32> to vector<4x32xf32>
    %64 = arith.addf %60, %63 : vector<4x32xf32>
    %cst_48 = arith.constant 0.000000e+00 : f32
    %65 = vector.broadcast %cst_48 : f32 to vector<4x32xf32>
    %66 = arith.maximumf %64, %65 : vector<4x32xf32>
    %cst_49 = arith.constant 6.000000e+00 : f32
    %67 = vector.broadcast %cst_49 : f32 to vector<4x32xf32>
    %68 = arith.minimumf %66, %67 : vector<4x32xf32>
    %c6 = arith.constant 6 : index
    %c0_50 = arith.constant 0 : index
    %c0_51 = arith.constant 0 : index
    %69 = vector.load %arg4[%c6, %c0_50, %c0_51] : memref<19x32x32xf32, #tpu.memory_space<vmem>>, vector<1x32x32xf32>
    %70 = vector.shape_cast %69 : vector<1x32x32xf32> to vector<32x32xf32>
    %cst_52 = arith.constant dense<0.000000e+00> : vector<4x32xf32>
    %71 = tpu.matmul %68, %70, %cst_52 {dimension_numbers = #tpu.dot_dimension_numbers<[1], [0], [0], [1], [0, 0, 1, 1], [], []>} : vector<4x32xf32>, vector<32x32xf32>, vector<4x32xf32> -> vector<4x32xf32>
    %c6_53 = arith.constant 6 : index
    %c0_54 = arith.constant 0 : index
    %c0_55 = arith.constant 0 : index
    %72 = vector.load %arg5[%c6_53, %c0_54, %c0_55] : memref<19x1x32xf32, #tpu.memory_space<vmem>>, vector<1x1x32xf32>
    %73 = vector.shape_cast %72 : vector<1x1x32xf32> to vector<1x32xf32>
    %74 = vector.broadcast %73 : vector<1x32xf32> to vector<4x32xf32>
    %75 = arith.addf %71, %74 : vector<4x32xf32>
    %cst_56 = arith.constant 0.000000e+00 : f32
    %76 = vector.broadcast %cst_56 : f32 to vector<4x32xf32>
    %77 = arith.maximumf %75, %76 : vector<4x32xf32>
    %cst_57 = arith.constant 6.000000e+00 : f32
    %78 = vector.broadcast %cst_57 : f32 to vector<4x32xf32>
    %79 = arith.minimumf %77, %78 : vector<4x32xf32>
    %c7 = arith.constant 7 : index
    %c0_58 = arith.constant 0 : index
    %c0_59 = arith.constant 0 : index
    %80 = vector.load %arg4[%c7, %c0_58, %c0_59] : memref<19x32x32xf32, #tpu.memory_space<vmem>>, vector<1x32x32xf32>
    %81 = vector.shape_cast %80 : vector<1x32x32xf32> to vector<32x32xf32>
    %cst_60 = arith.constant dense<0.000000e+00> : vector<4x32xf32>
    %82 = tpu.matmul %79, %81, %cst_60 {dimension_numbers = #tpu.dot_dimension_numbers<[1], [0], [0], [1], [0, 0, 1, 1], [], []>} : vector<4x32xf32>, vector<32x32xf32>, vector<4x32xf32> -> vector<4x32xf32>
    %c7_61 = arith.constant 7 : index
    %c0_62 = arith.constant 0 : index
    %c0_63 = arith.constant 0 : index
    %83 = vector.load %arg5[%c7_61, %c0_62, %c0_63] : memref<19x1x32xf32, #tpu.memory_space<vmem>>, vector<1x1x32xf32>
    %84 = vector.shape_cast %83 : vector<1x1x32xf32> to vector<1x32xf32>
    %85 = vector.broadcast %84 : vector<1x32xf32> to vector<4x32xf32>
    %86 = arith.addf %82, %85 : vector<4x32xf32>
    %c0_64 = arith.constant 0 : index
    %c0_65 = arith.constant 0 : index
    %c0_66 = arith.constant 0 : index
    %87 = vector.load %arg6[%c0_64, %c0_65, %c0_66] : memref<19x16x16xf32, #tpu.memory_space<vmem>>, vector<1x16x16xf32>
    %88 = vector.shape_cast %87 : vector<1x16x16xf32> to vector<16x16xf32>
    %89 = vector.extract_strided_slice %88 {offsets = [0, 0], sizes = [16, 4], strides = [1, 1]} : vector<16x16xf32> to vector<16x4xf32>
    %cst_67 = arith.constant dense<0.000000e+00> : vector<16x32xf32>
    %90 = tpu.matmul %89, %86, %cst_67 {dimension_numbers = #tpu.dot_dimension_numbers<[1], [0], [0], [1], [0, 0, 1, 1], [], []>} : vector<16x4xf32>, vector<4x32xf32>, vector<16x32xf32> -> vector<16x32xf32>
    %c0_68 = arith.constant 0 : index
    %c0_69 = arith.constant 0 : index
    %c0_70 = arith.constant 0 : index
    %91 = vector.load %arg7[%c0_68, %c0_69, %c0_70] : memref<19x16x1xf32, #tpu.memory_space<vmem>>, vector<1x16x1xf32>
    %92 = vector.shape_cast %91 : vector<1x16x1xf32> to vector<16x1xf32>
    %93 = vector.broadcast %92 : vector<16x1xf32> to vector<16x32xf32>
    %94 = arith.addf %90, %93 : vector<16x32xf32>
    %cst_71 = arith.constant 0.000000e+00 : f32
    %95 = vector.broadcast %cst_71 : f32 to vector<16x32xf32>
    %96 = arith.maximumf %94, %95 : vector<16x32xf32>
    %cst_72 = arith.constant 6.000000e+00 : f32
    %97 = vector.broadcast %cst_72 : f32 to vector<16x32xf32>
    %98 = arith.minimumf %96, %97 : vector<16x32xf32>
    %c1_73 = arith.constant 1 : index
    %c0_74 = arith.constant 0 : index
    %c0_75 = arith.constant 0 : index
    %99 = vector.load %arg6[%c1_73, %c0_74, %c0_75] : memref<19x16x16xf32, #tpu.memory_space<vmem>>, vector<1x16x16xf32>
    %100 = vector.shape_cast %99 : vector<1x16x16xf32> to vector<16x16xf32>
    %cst_76 = arith.constant dense<0.000000e+00> : vector<16x32xf32>
    %101 = tpu.matmul %100, %98, %cst_76 {dimension_numbers = #tpu.dot_dimension_numbers<[1], [0], [0], [1], [0, 0, 1, 1], [], []>} : vector<16x16xf32>, vector<16x32xf32>, vector<16x32xf32> -> vector<16x32xf32>
    %c1_77 = arith.constant 1 : index
    %c0_78 = arith.constant 0 : index
    %c0_79 = arith.constant 0 : index
    %102 = vector.load %arg7[%c1_77, %c0_78, %c0_79] : memref<19x16x1xf32, #tpu.memory_space<vmem>>, vector<1x16x1xf32>
    %103 = vector.shape_cast %102 : vector<1x16x1xf32> to vector<16x1xf32>
    %104 = vector.broadcast %103 : vector<16x1xf32> to vector<16x32xf32>
    %105 = arith.addf %101, %104 : vector<16x32xf32>
    %cst_80 = arith.constant 0.000000e+00 : f32
    %106 = vector.broadcast %cst_80 : f32 to vector<16x32xf32>
    %107 = arith.maximumf %105, %106 : vector<16x32xf32>
    %cst_81 = arith.constant 6.000000e+00 : f32
    %108 = vector.broadcast %cst_81 : f32 to vector<16x32xf32>
    %109 = arith.minimumf %107, %108 : vector<16x32xf32>
    %c2_82 = arith.constant 2 : index
    %c0_83 = arith.constant 0 : index
    %c0_84 = arith.constant 0 : index
    %110 = vector.load %arg6[%c2_82, %c0_83, %c0_84] : memref<19x16x16xf32, #tpu.memory_space<vmem>>, vector<1x16x16xf32>
    %111 = vector.shape_cast %110 : vector<1x16x16xf32> to vector<16x16xf32>
    %cst_85 = arith.constant dense<0.000000e+00> : vector<16x32xf32>
    %112 = tpu.matmul %111, %109, %cst_85 {dimension_numbers = #tpu.dot_dimension_numbers<[1], [0], [0], [1], [0, 0, 1, 1], [], []>} : vector<16x16xf32>, vector<16x32xf32>, vector<16x32xf32> -> vector<16x32xf32>
    %c2_86 = arith.constant 2 : index
    %c0_87 = arith.constant 0 : index
    %c0_88 = arith.constant 0 : index
    %113 = vector.load %arg7[%c2_86, %c0_87, %c0_88] : memref<19x16x1xf32, #tpu.memory_space<vmem>>, vector<1x16x1xf32>
    %114 = vector.shape_cast %113 : vector<1x16x1xf32> to vector<16x1xf32>
    %115 = vector.broadcast %114 : vector<16x1xf32> to vector<16x32xf32>
    %116 = arith.addf %112, %115 : vector<16x32xf32>
    %cst_89 = arith.constant 0.000000e+00 : f32
    %117 = vector.broadcast %cst_89 : f32 to vector<16x32xf32>
    %118 = arith.maximumf %116, %117 : vector<16x32xf32>
    %cst_90 = arith.constant 6.000000e+00 : f32
    %119 = vector.broadcast %cst_90 : f32 to vector<16x32xf32>
    %120 = arith.minimumf %118, %119 : vector<16x32xf32>
    %c3_91 = arith.constant 3 : index
    %c0_92 = arith.constant 0 : index
    %c0_93 = arith.constant 0 : index
    %121 = vector.load %arg6[%c3_91, %c0_92, %c0_93] : memref<19x16x16xf32, #tpu.memory_space<vmem>>, vector<1x16x16xf32>
    %122 = vector.shape_cast %121 : vector<1x16x16xf32> to vector<16x16xf32>
    %cst_94 = arith.constant dense<0.000000e+00> : vector<16x32xf32>
    %123 = tpu.matmul %122, %120, %cst_94 {dimension_numbers = #tpu.dot_dimension_numbers<[1], [0], [0], [1], [0, 0, 1, 1], [], []>} : vector<16x16xf32>, vector<16x32xf32>, vector<16x32xf32> -> vector<16x32xf32>
    %c3_95 = arith.constant 3 : index
    %c0_96 = arith.constant 0 : index
    %c0_97 = arith.constant 0 : index
    %124 = vector.load %arg7[%c3_95, %c0_96, %c0_97] : memref<19x16x1xf32, #tpu.memory_space<vmem>>, vector<1x16x1xf32>
    %125 = vector.shape_cast %124 : vector<1x16x1xf32> to vector<16x1xf32>
    %126 = vector.broadcast %125 : vector<16x1xf32> to vector<16x32xf32>
    %127 = arith.addf %123, %126 : vector<16x32xf32>
    %cst_98 = arith.constant 0.000000e+00 : f32
    %128 = vector.broadcast %cst_98 : f32 to vector<16x32xf32>
    %129 = arith.maximumf %127, %128 : vector<16x32xf32>
    %cst_99 = arith.constant 6.000000e+00 : f32
    %130 = vector.broadcast %cst_99 : f32 to vector<16x32xf32>
    %131 = arith.minimumf %129, %130 : vector<16x32xf32>
    %c4_100 = arith.constant 4 : index
    %c0_101 = arith.constant 0 : index
    %c0_102 = arith.constant 0 : index
    %132 = vector.load %arg6[%c4_100, %c0_101, %c0_102] : memref<19x16x16xf32, #tpu.memory_space<vmem>>, vector<1x16x16xf32>
    %133 = vector.shape_cast %132 : vector<1x16x16xf32> to vector<16x16xf32>
    %cst_103 = arith.constant dense<0.000000e+00> : vector<16x32xf32>
    %134 = tpu.matmul %133, %131, %cst_103 {dimension_numbers = #tpu.dot_dimension_numbers<[1], [0], [0], [1], [0, 0, 1, 1], [], []>} : vector<16x16xf32>, vector<16x32xf32>, vector<16x32xf32> -> vector<16x32xf32>
    %c4_104 = arith.constant 4 : index
    %c0_105 = arith.constant 0 : index
    %c0_106 = arith.constant 0 : index
    %135 = vector.load %arg7[%c4_104, %c0_105, %c0_106] : memref<19x16x1xf32, #tpu.memory_space<vmem>>, vector<1x16x1xf32>
    %136 = vector.shape_cast %135 : vector<1x16x1xf32> to vector<16x1xf32>
    %137 = vector.broadcast %136 : vector<16x1xf32> to vector<16x32xf32>
    %138 = arith.addf %134, %137 : vector<16x32xf32>
    %cst_107 = arith.constant 0.000000e+00 : f32
    %139 = vector.broadcast %cst_107 : f32 to vector<16x32xf32>
    %140 = arith.maximumf %138, %139 : vector<16x32xf32>
    %cst_108 = arith.constant 6.000000e+00 : f32
    %141 = vector.broadcast %cst_108 : f32 to vector<16x32xf32>
    %142 = arith.minimumf %140, %141 : vector<16x32xf32>
    %c5_109 = arith.constant 5 : index
    %c0_110 = arith.constant 0 : index
    %c0_111 = arith.constant 0 : index
    %143 = vector.load %arg6[%c5_109, %c0_110, %c0_111] : memref<19x16x16xf32, #tpu.memory_space<vmem>>, vector<1x16x16xf32>
    %144 = vector.shape_cast %143 : vector<1x16x16xf32> to vector<16x16xf32>
    %cst_112 = arith.constant dense<0.000000e+00> : vector<16x32xf32>
    %145 = tpu.matmul %144, %142, %cst_112 {dimension_numbers = #tpu.dot_dimension_numbers<[1], [0], [0], [1], [0, 0, 1, 1], [], []>} : vector<16x16xf32>, vector<16x32xf32>, vector<16x32xf32> -> vector<16x32xf32>
    %c5_113 = arith.constant 5 : index
    %c0_114 = arith.constant 0 : index
    %c0_115 = arith.constant 0 : index
    %146 = vector.load %arg7[%c5_113, %c0_114, %c0_115] : memref<19x16x1xf32, #tpu.memory_space<vmem>>, vector<1x16x1xf32>
    %147 = vector.shape_cast %146 : vector<1x16x1xf32> to vector<16x1xf32>
    %148 = vector.broadcast %147 : vector<16x1xf32> to vector<16x32xf32>
    %149 = arith.addf %145, %148 : vector<16x32xf32>
    %cst_116 = arith.constant 0.000000e+00 : f32
    %150 = vector.broadcast %cst_116 : f32 to vector<16x32xf32>
    %151 = arith.maximumf %149, %150 : vector<16x32xf32>
    %cst_117 = arith.constant 6.000000e+00 : f32
    %152 = vector.broadcast %cst_117 : f32 to vector<16x32xf32>
    %153 = arith.minimumf %151, %152 : vector<16x32xf32>
    %c6_118 = arith.constant 6 : index
    %c0_119 = arith.constant 0 : index
    %c0_120 = arith.constant 0 : index
    %154 = vector.load %arg6[%c6_118, %c0_119, %c0_120] : memref<19x16x16xf32, #tpu.memory_space<vmem>>, vector<1x16x16xf32>
    %155 = vector.shape_cast %154 : vector<1x16x16xf32> to vector<16x16xf32>
    %cst_121 = arith.constant dense<0.000000e+00> : vector<16x32xf32>
    %156 = tpu.matmul %155, %153, %cst_121 {dimension_numbers = #tpu.dot_dimension_numbers<[1], [0], [0], [1], [0, 0, 1, 1], [], []>} : vector<16x16xf32>, vector<16x32xf32>, vector<16x32xf32> -> vector<16x32xf32>
    %c6_122 = arith.constant 6 : index
    %c0_123 = arith.constant 0 : index
    %c0_124 = arith.constant 0 : index
    %157 = vector.load %arg7[%c6_122, %c0_123, %c0_124] : memref<19x16x1xf32, #tpu.memory_space<vmem>>, vector<1x16x1xf32>
    %158 = vector.shape_cast %157 : vector<1x16x1xf32> to vector<16x1xf32>
    %159 = vector.broadcast %158 : vector<16x1xf32> to vector<16x32xf32>
    %160 = arith.addf %156, %159 : vector<16x32xf32>
    %cst_125 = arith.constant 0.000000e+00 : f32
    %161 = vector.broadcast %cst_125 : f32 to vector<16x32xf32>
    %162 = arith.maximumf %160, %161 : vector<16x32xf32>
    %cst_126 = arith.constant 6.000000e+00 : f32
    %163 = vector.broadcast %cst_126 : f32 to vector<16x32xf32>
    %164 = arith.minimumf %162, %163 : vector<16x32xf32>
    %c7_127 = arith.constant 7 : index
    %c0_128 = arith.constant 0 : index
    %c0_129 = arith.constant 0 : index
    %165 = vector.load %arg6[%c7_127, %c0_128, %c0_129] : memref<19x16x16xf32, #tpu.memory_space<vmem>>, vector<1x16x16xf32>
    %166 = vector.shape_cast %165 : vector<1x16x16xf32> to vector<16x16xf32>
    %cst_130 = arith.constant dense<0.000000e+00> : vector<16x32xf32>
    %167 = tpu.matmul %166, %164, %cst_130 {dimension_numbers = #tpu.dot_dimension_numbers<[1], [0], [0], [1], [0, 0, 1, 1], [], []>} : vector<16x16xf32>, vector<16x32xf32>, vector<16x32xf32> -> vector<16x32xf32>
    %c7_131 = arith.constant 7 : index
    %c0_132 = arith.constant 0 : index
    %c0_133 = arith.constant 0 : index
    %168 = vector.load %arg7[%c7_131, %c0_132, %c0_133] : memref<19x16x1xf32, #tpu.memory_space<vmem>>, vector<1x16x1xf32>
    %169 = vector.shape_cast %168 : vector<1x16x1xf32> to vector<16x1xf32>
    %170 = vector.broadcast %169 : vector<16x1xf32> to vector<16x32xf32>
    %171 = arith.addf %167, %170 : vector<16x32xf32>
    %172 = vector.extract_strided_slice %171 {offsets = [0, 0], sizes = [4, 16], strides = [1, 1]} : vector<16x32xf32> to vector<4x16xf32>
    %c8 = arith.constant 8 : index
    %c0_134 = arith.constant 0 : index
    %c0_135 = arith.constant 0 : index
    %173 = vector.load %arg4[%c8, %c0_134, %c0_135] : memref<19x32x32xf32, #tpu.memory_space<vmem>>, vector<1x32x32xf32>
    %174 = vector.shape_cast %173 : vector<1x32x32xf32> to vector<32x32xf32>
    %175 = vector.extract_strided_slice %174 {offsets = [0, 0], sizes = [8, 32], strides = [1, 1]} : vector<32x32xf32> to vector<8x32xf32>
    %cst_136 = arith.constant dense<0.000000e+00> : vector<4x32xf32>
    %176 = tpu.matmul %1, %175, %cst_136 {dimension_numbers = #tpu.dot_dimension_numbers<[1], [0], [0], [1], [0, 0, 1, 1], [], []>} : vector<4x8xf32>, vector<8x32xf32>, vector<4x32xf32> -> vector<4x32xf32>
    %c8_137 = arith.constant 8 : index
    %c0_138 = arith.constant 0 : index
    %c0_139 = arith.constant 0 : index
    %177 = vector.load %arg5[%c8_137, %c0_138, %c0_139] : memref<19x1x32xf32, #tpu.memory_space<vmem>>, vector<1x1x32xf32>
    %178 = vector.shape_cast %177 : vector<1x1x32xf32> to vector<1x32xf32>
    %179 = vector.broadcast %178 : vector<1x32xf32> to vector<4x32xf32>
    %180 = arith.addf %176, %179 : vector<4x32xf32>
    %cst_140 = arith.constant 0.000000e+00 : f32
    %181 = vector.broadcast %cst_140 : f32 to vector<4x32xf32>
    %182 = arith.maximumf %180, %181 : vector<4x32xf32>
    %cst_141 = arith.constant 6.000000e+00 : f32
    %183 = vector.broadcast %cst_141 : f32 to vector<4x32xf32>
    %184 = arith.minimumf %182, %183 : vector<4x32xf32>
    %c9 = arith.constant 9 : index
    %c0_142 = arith.constant 0 : index
    %c0_143 = arith.constant 0 : index
    %185 = vector.load %arg4[%c9, %c0_142, %c0_143] : memref<19x32x32xf32, #tpu.memory_space<vmem>>, vector<1x32x32xf32>
    %186 = vector.shape_cast %185 : vector<1x32x32xf32> to vector<32x32xf32>
    %cst_144 = arith.constant dense<0.000000e+00> : vector<4x32xf32>
    %187 = tpu.matmul %184, %186, %cst_144 {dimension_numbers = #tpu.dot_dimension_numbers<[1], [0], [0], [1], [0, 0, 1, 1], [], []>} : vector<4x32xf32>, vector<32x32xf32>, vector<4x32xf32> -> vector<4x32xf32>
    %c9_145 = arith.constant 9 : index
    %c0_146 = arith.constant 0 : index
    %c0_147 = arith.constant 0 : index
    %188 = vector.load %arg5[%c9_145, %c0_146, %c0_147] : memref<19x1x32xf32, #tpu.memory_space<vmem>>, vector<1x1x32xf32>
    %189 = vector.shape_cast %188 : vector<1x1x32xf32> to vector<1x32xf32>
    %190 = vector.broadcast %189 : vector<1x32xf32> to vector<4x32xf32>
    %191 = arith.addf %187, %190 : vector<4x32xf32>
    %cst_148 = arith.constant 0.000000e+00 : f32
    %192 = vector.broadcast %cst_148 : f32 to vector<4x32xf32>
    %193 = arith.maximumf %191, %192 : vector<4x32xf32>
    %cst_149 = arith.constant 6.000000e+00 : f32
    %194 = vector.broadcast %cst_149 : f32 to vector<4x32xf32>
    %195 = arith.minimumf %193, %194 : vector<4x32xf32>
    %c10 = arith.constant 10 : index
    %c0_150 = arith.constant 0 : index
    %c0_151 = arith.constant 0 : index
    %196 = vector.load %arg4[%c10, %c0_150, %c0_151] : memref<19x32x32xf32, #tpu.memory_space<vmem>>, vector<1x32x32xf32>
    %197 = vector.shape_cast %196 : vector<1x32x32xf32> to vector<32x32xf32>
    %cst_152 = arith.constant dense<0.000000e+00> : vector<4x32xf32>
    %198 = tpu.matmul %195, %197, %cst_152 {dimension_numbers = #tpu.dot_dimension_numbers<[1], [0], [0], [1], [0, 0, 1, 1], [], []>} : vector<4x32xf32>, vector<32x32xf32>, vector<4x32xf32> -> vector<4x32xf32>
    %c10_153 = arith.constant 10 : index
    %c0_154 = arith.constant 0 : index
    %c0_155 = arith.constant 0 : index
    %199 = vector.load %arg5[%c10_153, %c0_154, %c0_155] : memref<19x1x32xf32, #tpu.memory_space<vmem>>, vector<1x1x32xf32>
    %200 = vector.shape_cast %199 : vector<1x1x32xf32> to vector<1x32xf32>
    %201 = vector.broadcast %200 : vector<1x32xf32> to vector<4x32xf32>
    %202 = arith.addf %198, %201 : vector<4x32xf32>
    %cst_156 = arith.constant 0.000000e+00 : f32
    %203 = vector.broadcast %cst_156 : f32 to vector<4x32xf32>
    %204 = arith.maximumf %202, %203 : vector<4x32xf32>
    %cst_157 = arith.constant 6.000000e+00 : f32
    %205 = vector.broadcast %cst_157 : f32 to vector<4x32xf32>
    %206 = arith.minimumf %204, %205 : vector<4x32xf32>
    %c11 = arith.constant 11 : index
    %c0_158 = arith.constant 0 : index
    %c0_159 = arith.constant 0 : index
    %207 = vector.load %arg4[%c11, %c0_158, %c0_159] : memref<19x32x32xf32, #tpu.memory_space<vmem>>, vector<1x32x32xf32>
    %208 = vector.shape_cast %207 : vector<1x32x32xf32> to vector<32x32xf32>
    %cst_160 = arith.constant dense<0.000000e+00> : vector<4x32xf32>
    %209 = tpu.matmul %206, %208, %cst_160 {dimension_numbers = #tpu.dot_dimension_numbers<[1], [0], [0], [1], [0, 0, 1, 1], [], []>} : vector<4x32xf32>, vector<32x32xf32>, vector<4x32xf32> -> vector<4x32xf32>
    %c11_161 = arith.constant 11 : index
    %c0_162 = arith.constant 0 : index
    %c0_163 = arith.constant 0 : index
    %210 = vector.load %arg5[%c11_161, %c0_162, %c0_163] : memref<19x1x32xf32, #tpu.memory_space<vmem>>, vector<1x1x32xf32>
    %211 = vector.shape_cast %210 : vector<1x1x32xf32> to vector<1x32xf32>
    %212 = vector.broadcast %211 : vector<1x32xf32> to vector<4x32xf32>
    %213 = arith.addf %209, %212 : vector<4x32xf32>
    %cst_164 = arith.constant 0.000000e+00 : f32
    %214 = vector.broadcast %cst_164 : f32 to vector<4x32xf32>
    %215 = arith.maximumf %213, %214 : vector<4x32xf32>
    %cst_165 = arith.constant 6.000000e+00 : f32
    %216 = vector.broadcast %cst_165 : f32 to vector<4x32xf32>
    %217 = arith.minimumf %215, %216 : vector<4x32xf32>
    %c12 = arith.constant 12 : index
    %c0_166 = arith.constant 0 : index
    %c0_167 = arith.constant 0 : index
    %218 = vector.load %arg4[%c12, %c0_166, %c0_167] : memref<19x32x32xf32, #tpu.memory_space<vmem>>, vector<1x32x32xf32>
    %219 = vector.shape_cast %218 : vector<1x32x32xf32> to vector<32x32xf32>
    %cst_168 = arith.constant dense<0.000000e+00> : vector<4x32xf32>
    %220 = tpu.matmul %217, %219, %cst_168 {dimension_numbers = #tpu.dot_dimension_numbers<[1], [0], [0], [1], [0, 0, 1, 1], [], []>} : vector<4x32xf32>, vector<32x32xf32>, vector<4x32xf32> -> vector<4x32xf32>
    %c12_169 = arith.constant 12 : index
    %c0_170 = arith.constant 0 : index
    %c0_171 = arith.constant 0 : index
    %221 = vector.load %arg5[%c12_169, %c0_170, %c0_171] : memref<19x1x32xf32, #tpu.memory_space<vmem>>, vector<1x1x32xf32>
    %222 = vector.shape_cast %221 : vector<1x1x32xf32> to vector<1x32xf32>
    %223 = vector.broadcast %222 : vector<1x32xf32> to vector<4x32xf32>
    %224 = arith.addf %220, %223 : vector<4x32xf32>
    %cst_172 = arith.constant 0.000000e+00 : f32
    %225 = vector.broadcast %cst_172 : f32 to vector<4x32xf32>
    %226 = arith.maximumf %224, %225 : vector<4x32xf32>
    %cst_173 = arith.constant 6.000000e+00 : f32
    %227 = vector.broadcast %cst_173 : f32 to vector<4x32xf32>
    %228 = arith.minimumf %226, %227 : vector<4x32xf32>
    %c13 = arith.constant 13 : index
    %c0_174 = arith.constant 0 : index
    %c0_175 = arith.constant 0 : index
    %229 = vector.load %arg4[%c13, %c0_174, %c0_175] : memref<19x32x32xf32, #tpu.memory_space<vmem>>, vector<1x32x32xf32>
    %230 = vector.shape_cast %229 : vector<1x32x32xf32> to vector<32x32xf32>
    %cst_176 = arith.constant dense<0.000000e+00> : vector<4x32xf32>
    %231 = tpu.matmul %228, %230, %cst_176 {dimension_numbers = #tpu.dot_dimension_numbers<[1], [0], [0], [1], [0, 0, 1, 1], [], []>} : vector<4x32xf32>, vector<32x32xf32>, vector<4x32xf32> -> vector<4x32xf32>
    %c13_177 = arith.constant 13 : index
    %c0_178 = arith.constant 0 : index
    %c0_179 = arith.constant 0 : index
    %232 = vector.load %arg5[%c13_177, %c0_178, %c0_179] : memref<19x1x32xf32, #tpu.memory_space<vmem>>, vector<1x1x32xf32>
    %233 = vector.shape_cast %232 : vector<1x1x32xf32> to vector<1x32xf32>
    %234 = vector.broadcast %233 : vector<1x32xf32> to vector<4x32xf32>
    %235 = arith.addf %231, %234 : vector<4x32xf32>
    %cst_180 = arith.constant 0.000000e+00 : f32
    %236 = vector.broadcast %cst_180 : f32 to vector<4x32xf32>
    %237 = arith.maximumf %235, %236 : vector<4x32xf32>
    %cst_181 = arith.constant 6.000000e+00 : f32
    %238 = vector.broadcast %cst_181 : f32 to vector<4x32xf32>
    %239 = arith.minimumf %237, %238 : vector<4x32xf32>
    %c14 = arith.constant 14 : index
    %c0_182 = arith.constant 0 : index
    %c0_183 = arith.constant 0 : index
    %240 = vector.load %arg4[%c14, %c0_182, %c0_183] : memref<19x32x32xf32, #tpu.memory_space<vmem>>, vector<1x32x32xf32>
    %241 = vector.shape_cast %240 : vector<1x32x32xf32> to vector<32x32xf32>
    %cst_184 = arith.constant dense<0.000000e+00> : vector<4x32xf32>
    %242 = tpu.matmul %239, %241, %cst_184 {dimension_numbers = #tpu.dot_dimension_numbers<[1], [0], [0], [1], [0, 0, 1, 1], [], []>} : vector<4x32xf32>, vector<32x32xf32>, vector<4x32xf32> -> vector<4x32xf32>
    %c14_185 = arith.constant 14 : index
    %c0_186 = arith.constant 0 : index
    %c0_187 = arith.constant 0 : index
    %243 = vector.load %arg5[%c14_185, %c0_186, %c0_187] : memref<19x1x32xf32, #tpu.memory_space<vmem>>, vector<1x1x32xf32>
    %244 = vector.shape_cast %243 : vector<1x1x32xf32> to vector<1x32xf32>
    %245 = vector.broadcast %244 : vector<1x32xf32> to vector<4x32xf32>
    %246 = arith.addf %242, %245 : vector<4x32xf32>
    %cst_188 = arith.constant 0.000000e+00 : f32
    %247 = vector.broadcast %cst_188 : f32 to vector<4x32xf32>
    %248 = arith.maximumf %246, %247 : vector<4x32xf32>
    %cst_189 = arith.constant 6.000000e+00 : f32
    %249 = vector.broadcast %cst_189 : f32 to vector<4x32xf32>
    %250 = arith.minimumf %248, %249 : vector<4x32xf32>
    %c15 = arith.constant 15 : index
    %c0_190 = arith.constant 0 : index
    %c0_191 = arith.constant 0 : index
    %251 = vector.load %arg4[%c15, %c0_190, %c0_191] : memref<19x32x32xf32, #tpu.memory_space<vmem>>, vector<1x32x32xf32>
    %252 = vector.shape_cast %251 : vector<1x32x32xf32> to vector<32x32xf32>
    %cst_192 = arith.constant dense<0.000000e+00> : vector<4x32xf32>
    %253 = tpu.matmul %250, %252, %cst_192 {dimension_numbers = #tpu.dot_dimension_numbers<[1], [0], [0], [1], [0, 0, 1, 1], [], []>} : vector<4x32xf32>, vector<32x32xf32>, vector<4x32xf32> -> vector<4x32xf32>
    %c15_193 = arith.constant 15 : index
    %c0_194 = arith.constant 0 : index
    %c0_195 = arith.constant 0 : index
    %254 = vector.load %arg5[%c15_193, %c0_194, %c0_195] : memref<19x1x32xf32, #tpu.memory_space<vmem>>, vector<1x1x32xf32>
    %255 = vector.shape_cast %254 : vector<1x1x32xf32> to vector<1x32xf32>
    %256 = vector.broadcast %255 : vector<1x32xf32> to vector<4x32xf32>
    %257 = arith.addf %253, %256 : vector<4x32xf32>
    %c8_196 = arith.constant 8 : index
    %c0_197 = arith.constant 0 : index
    %c0_198 = arith.constant 0 : index
    %258 = vector.load %arg6[%c8_196, %c0_197, %c0_198] : memref<19x16x16xf32, #tpu.memory_space<vmem>>, vector<1x16x16xf32>
    %259 = vector.shape_cast %258 : vector<1x16x16xf32> to vector<16x16xf32>
    %260 = vector.extract_strided_slice %259 {offsets = [0, 0], sizes = [16, 4], strides = [1, 1]} : vector<16x16xf32> to vector<16x4xf32>
    %cst_199 = arith.constant dense<0.000000e+00> : vector<16x32xf32>
    %261 = tpu.matmul %260, %257, %cst_199 {dimension_numbers = #tpu.dot_dimension_numbers<[1], [0], [0], [1], [0, 0, 1, 1], [], []>} : vector<16x4xf32>, vector<4x32xf32>, vector<16x32xf32> -> vector<16x32xf32>
    %c8_200 = arith.constant 8 : index
    %c0_201 = arith.constant 0 : index
    %c0_202 = arith.constant 0 : index
    %262 = vector.load %arg7[%c8_200, %c0_201, %c0_202] : memref<19x16x1xf32, #tpu.memory_space<vmem>>, vector<1x16x1xf32>
    %263 = vector.shape_cast %262 : vector<1x16x1xf32> to vector<16x1xf32>
    %264 = vector.broadcast %263 : vector<16x1xf32> to vector<16x32xf32>
    %265 = arith.addf %261, %264 : vector<16x32xf32>
    %cst_203 = arith.constant 0.000000e+00 : f32
    %266 = vector.broadcast %cst_203 : f32 to vector<16x32xf32>
    %267 = arith.maximumf %265, %266 : vector<16x32xf32>
    %cst_204 = arith.constant 6.000000e+00 : f32
    %268 = vector.broadcast %cst_204 : f32 to vector<16x32xf32>
    %269 = arith.minimumf %267, %268 : vector<16x32xf32>
    %c9_205 = arith.constant 9 : index
    %c0_206 = arith.constant 0 : index
    %c0_207 = arith.constant 0 : index
    %270 = vector.load %arg6[%c9_205, %c0_206, %c0_207] : memref<19x16x16xf32, #tpu.memory_space<vmem>>, vector<1x16x16xf32>
    %271 = vector.shape_cast %270 : vector<1x16x16xf32> to vector<16x16xf32>
    %cst_208 = arith.constant dense<0.000000e+00> : vector<16x32xf32>
    %272 = tpu.matmul %271, %269, %cst_208 {dimension_numbers = #tpu.dot_dimension_numbers<[1], [0], [0], [1], [0, 0, 1, 1], [], []>} : vector<16x16xf32>, vector<16x32xf32>, vector<16x32xf32> -> vector<16x32xf32>
    %c9_209 = arith.constant 9 : index
    %c0_210 = arith.constant 0 : index
    %c0_211 = arith.constant 0 : index
    %273 = vector.load %arg7[%c9_209, %c0_210, %c0_211] : memref<19x16x1xf32, #tpu.memory_space<vmem>>, vector<1x16x1xf32>
    %274 = vector.shape_cast %273 : vector<1x16x1xf32> to vector<16x1xf32>
    %275 = vector.broadcast %274 : vector<16x1xf32> to vector<16x32xf32>
    %276 = arith.addf %272, %275 : vector<16x32xf32>
    %cst_212 = arith.constant 0.000000e+00 : f32
    %277 = vector.broadcast %cst_212 : f32 to vector<16x32xf32>
    %278 = arith.maximumf %276, %277 : vector<16x32xf32>
    %cst_213 = arith.constant 6.000000e+00 : f32
    %279 = vector.broadcast %cst_213 : f32 to vector<16x32xf32>
    %280 = arith.minimumf %278, %279 : vector<16x32xf32>
    %c10_214 = arith.constant 10 : index
    %c0_215 = arith.constant 0 : index
    %c0_216 = arith.constant 0 : index
    %281 = vector.load %arg6[%c10_214, %c0_215, %c0_216] : memref<19x16x16xf32, #tpu.memory_space<vmem>>, vector<1x16x16xf32>
    %282 = vector.shape_cast %281 : vector<1x16x16xf32> to vector<16x16xf32>
    %cst_217 = arith.constant dense<0.000000e+00> : vector<16x32xf32>
    %283 = tpu.matmul %282, %280, %cst_217 {dimension_numbers = #tpu.dot_dimension_numbers<[1], [0], [0], [1], [0, 0, 1, 1], [], []>} : vector<16x16xf32>, vector<16x32xf32>, vector<16x32xf32> -> vector<16x32xf32>
    %c10_218 = arith.constant 10 : index
    %c0_219 = arith.constant 0 : index
    %c0_220 = arith.constant 0 : index
    %284 = vector.load %arg7[%c10_218, %c0_219, %c0_220] : memref<19x16x1xf32, #tpu.memory_space<vmem>>, vector<1x16x1xf32>
    %285 = vector.shape_cast %284 : vector<1x16x1xf32> to vector<16x1xf32>
    %286 = vector.broadcast %285 : vector<16x1xf32> to vector<16x32xf32>
    %287 = arith.addf %283, %286 : vector<16x32xf32>
    %cst_221 = arith.constant 0.000000e+00 : f32
    %288 = vector.broadcast %cst_221 : f32 to vector<16x32xf32>
    %289 = arith.maximumf %287, %288 : vector<16x32xf32>
    %cst_222 = arith.constant 6.000000e+00 : f32
    %290 = vector.broadcast %cst_222 : f32 to vector<16x32xf32>
    %291 = arith.minimumf %289, %290 : vector<16x32xf32>
    %c11_223 = arith.constant 11 : index
    %c0_224 = arith.constant 0 : index
    %c0_225 = arith.constant 0 : index
    %292 = vector.load %arg6[%c11_223, %c0_224, %c0_225] : memref<19x16x16xf32, #tpu.memory_space<vmem>>, vector<1x16x16xf32>
    %293 = vector.shape_cast %292 : vector<1x16x16xf32> to vector<16x16xf32>
    %cst_226 = arith.constant dense<0.000000e+00> : vector<16x32xf32>
    %294 = tpu.matmul %293, %291, %cst_226 {dimension_numbers = #tpu.dot_dimension_numbers<[1], [0], [0], [1], [0, 0, 1, 1], [], []>} : vector<16x16xf32>, vector<16x32xf32>, vector<16x32xf32> -> vector<16x32xf32>
    %c11_227 = arith.constant 11 : index
    %c0_228 = arith.constant 0 : index
    %c0_229 = arith.constant 0 : index
    %295 = vector.load %arg7[%c11_227, %c0_228, %c0_229] : memref<19x16x1xf32, #tpu.memory_space<vmem>>, vector<1x16x1xf32>
    %296 = vector.shape_cast %295 : vector<1x16x1xf32> to vector<16x1xf32>
    %297 = vector.broadcast %296 : vector<16x1xf32> to vector<16x32xf32>
    %298 = arith.addf %294, %297 : vector<16x32xf32>
    %cst_230 = arith.constant 0.000000e+00 : f32
    %299 = vector.broadcast %cst_230 : f32 to vector<16x32xf32>
    %300 = arith.maximumf %298, %299 : vector<16x32xf32>
    %cst_231 = arith.constant 6.000000e+00 : f32
    %301 = vector.broadcast %cst_231 : f32 to vector<16x32xf32>
    %302 = arith.minimumf %300, %301 : vector<16x32xf32>
    %c12_232 = arith.constant 12 : index
    %c0_233 = arith.constant 0 : index
    %c0_234 = arith.constant 0 : index
    %303 = vector.load %arg6[%c12_232, %c0_233, %c0_234] : memref<19x16x16xf32, #tpu.memory_space<vmem>>, vector<1x16x16xf32>
    %304 = vector.shape_cast %303 : vector<1x16x16xf32> to vector<16x16xf32>
    %cst_235 = arith.constant dense<0.000000e+00> : vector<16x32xf32>
    %305 = tpu.matmul %304, %302, %cst_235 {dimension_numbers = #tpu.dot_dimension_numbers<[1], [0], [0], [1], [0, 0, 1, 1], [], []>} : vector<16x16xf32>, vector<16x32xf32>, vector<16x32xf32> -> vector<16x32xf32>
    %c12_236 = arith.constant 12 : index
    %c0_237 = arith.constant 0 : index
    %c0_238 = arith.constant 0 : index
    %306 = vector.load %arg7[%c12_236, %c0_237, %c0_238] : memref<19x16x1xf32, #tpu.memory_space<vmem>>, vector<1x16x1xf32>
    %307 = vector.shape_cast %306 : vector<1x16x1xf32> to vector<16x1xf32>
    %308 = vector.broadcast %307 : vector<16x1xf32> to vector<16x32xf32>
    %309 = arith.addf %305, %308 : vector<16x32xf32>
    %cst_239 = arith.constant 0.000000e+00 : f32
    %310 = vector.broadcast %cst_239 : f32 to vector<16x32xf32>
    %311 = arith.maximumf %309, %310 : vector<16x32xf32>
    %cst_240 = arith.constant 6.000000e+00 : f32
    %312 = vector.broadcast %cst_240 : f32 to vector<16x32xf32>
    %313 = arith.minimumf %311, %312 : vector<16x32xf32>
    %c13_241 = arith.constant 13 : index
    %c0_242 = arith.constant 0 : index
    %c0_243 = arith.constant 0 : index
    %314 = vector.load %arg6[%c13_241, %c0_242, %c0_243] : memref<19x16x16xf32, #tpu.memory_space<vmem>>, vector<1x16x16xf32>
    %315 = vector.shape_cast %314 : vector<1x16x16xf32> to vector<16x16xf32>
    %cst_244 = arith.constant dense<0.000000e+00> : vector<16x32xf32>
    %316 = tpu.matmul %315, %313, %cst_244 {dimension_numbers = #tpu.dot_dimension_numbers<[1], [0], [0], [1], [0, 0, 1, 1], [], []>} : vector<16x16xf32>, vector<16x32xf32>, vector<16x32xf32> -> vector<16x32xf32>
    %c13_245 = arith.constant 13 : index
    %c0_246 = arith.constant 0 : index
    %c0_247 = arith.constant 0 : index
    %317 = vector.load %arg7[%c13_245, %c0_246, %c0_247] : memref<19x16x1xf32, #tpu.memory_space<vmem>>, vector<1x16x1xf32>
    %318 = vector.shape_cast %317 : vector<1x16x1xf32> to vector<16x1xf32>
    %319 = vector.broadcast %318 : vector<16x1xf32> to vector<16x32xf32>
    %320 = arith.addf %316, %319 : vector<16x32xf32>
    %cst_248 = arith.constant 0.000000e+00 : f32
    %321 = vector.broadcast %cst_248 : f32 to vector<16x32xf32>
    %322 = arith.maximumf %320, %321 : vector<16x32xf32>
    %cst_249 = arith.constant 6.000000e+00 : f32
    %323 = vector.broadcast %cst_249 : f32 to vector<16x32xf32>
    %324 = arith.minimumf %322, %323 : vector<16x32xf32>
    %c14_250 = arith.constant 14 : index
    %c0_251 = arith.constant 0 : index
    %c0_252 = arith.constant 0 : index
    %325 = vector.load %arg6[%c14_250, %c0_251, %c0_252] : memref<19x16x16xf32, #tpu.memory_space<vmem>>, vector<1x16x16xf32>
    %326 = vector.shape_cast %325 : vector<1x16x16xf32> to vector<16x16xf32>
    %cst_253 = arith.constant dense<0.000000e+00> : vector<16x32xf32>
    %327 = tpu.matmul %326, %324, %cst_253 {dimension_numbers = #tpu.dot_dimension_numbers<[1], [0], [0], [1], [0, 0, 1, 1], [], []>} : vector<16x16xf32>, vector<16x32xf32>, vector<16x32xf32> -> vector<16x32xf32>
    %c14_254 = arith.constant 14 : index
    %c0_255 = arith.constant 0 : index
    %c0_256 = arith.constant 0 : index
    %328 = vector.load %arg7[%c14_254, %c0_255, %c0_256] : memref<19x16x1xf32, #tpu.memory_space<vmem>>, vector<1x16x1xf32>
    %329 = vector.shape_cast %328 : vector<1x16x1xf32> to vector<16x1xf32>
    %330 = vector.broadcast %329 : vector<16x1xf32> to vector<16x32xf32>
    %331 = arith.addf %327, %330 : vector<16x32xf32>
    %cst_257 = arith.constant 0.000000e+00 : f32
    %332 = vector.broadcast %cst_257 : f32 to vector<16x32xf32>
    %333 = arith.maximumf %331, %332 : vector<16x32xf32>
    %cst_258 = arith.constant 6.000000e+00 : f32
    %334 = vector.broadcast %cst_258 : f32 to vector<16x32xf32>
    %335 = arith.minimumf %333, %334 : vector<16x32xf32>
    %c15_259 = arith.constant 15 : index
    %c0_260 = arith.constant 0 : index
    %c0_261 = arith.constant 0 : index
    %336 = vector.load %arg6[%c15_259, %c0_260, %c0_261] : memref<19x16x16xf32, #tpu.memory_space<vmem>>, vector<1x16x16xf32>
    %337 = vector.shape_cast %336 : vector<1x16x16xf32> to vector<16x16xf32>
    %cst_262 = arith.constant dense<0.000000e+00> : vector<16x32xf32>
    %338 = tpu.matmul %337, %335, %cst_262 {dimension_numbers = #tpu.dot_dimension_numbers<[1], [0], [0], [1], [0, 0, 1, 1], [], []>} : vector<16x16xf32>, vector<16x32xf32>, vector<16x32xf32> -> vector<16x32xf32>
    %c15_263 = arith.constant 15 : index
    %c0_264 = arith.constant 0 : index
    %c0_265 = arith.constant 0 : index
    %339 = vector.load %arg7[%c15_263, %c0_264, %c0_265] : memref<19x16x1xf32, #tpu.memory_space<vmem>>, vector<1x16x1xf32>
    %340 = vector.shape_cast %339 : vector<1x16x1xf32> to vector<16x1xf32>
    %341 = vector.broadcast %340 : vector<16x1xf32> to vector<16x32xf32>
    %342 = arith.addf %338, %341 : vector<16x32xf32>
    %343 = vector.extract_strided_slice %342 {offsets = [0, 0], sizes = [16, 16], strides = [1, 1]} : vector<16x32xf32> to vector<16x16xf32>
    %c16 = arith.constant 16 : index
    %c0_266 = arith.constant 0 : index
    %c0_267 = arith.constant 0 : index
    %344 = vector.load %arg4[%c16, %c0_266, %c0_267] : memref<19x32x32xf32, #tpu.memory_space<vmem>>, vector<1x32x32xf32>
    %345 = vector.shape_cast %344 : vector<1x32x32xf32> to vector<32x32xf32>
    %346 = vector.extract_strided_slice %345 {offsets = [0, 0], sizes = [8, 32], strides = [1, 1]} : vector<32x32xf32> to vector<8x32xf32>
    %cst_268 = arith.constant dense<0.000000e+00> : vector<4x32xf32>
    %347 = tpu.matmul %1, %346, %cst_268 {dimension_numbers = #tpu.dot_dimension_numbers<[1], [0], [0], [1], [0, 0, 1, 1], [], []>} : vector<4x8xf32>, vector<8x32xf32>, vector<4x32xf32> -> vector<4x32xf32>
    %c16_269 = arith.constant 16 : index
    %c0_270 = arith.constant 0 : index
    %c0_271 = arith.constant 0 : index
    %348 = vector.load %arg5[%c16_269, %c0_270, %c0_271] : memref<19x1x32xf32, #tpu.memory_space<vmem>>, vector<1x1x32xf32>
    %349 = vector.shape_cast %348 : vector<1x1x32xf32> to vector<1x32xf32>
    %350 = vector.broadcast %349 : vector<1x32xf32> to vector<4x32xf32>
    %351 = arith.addf %347, %350 : vector<4x32xf32>
    %cst_272 = arith.constant 0.000000e+00 : f32
    %352 = vector.broadcast %cst_272 : f32 to vector<4x32xf32>
    %353 = arith.maximumf %351, %352 : vector<4x32xf32>
    %cst_273 = arith.constant 6.000000e+00 : f32
    %354 = vector.broadcast %cst_273 : f32 to vector<4x32xf32>
    %355 = arith.minimumf %353, %354 : vector<4x32xf32>
    %c17 = arith.constant 17 : index
    %c0_274 = arith.constant 0 : index
    %c0_275 = arith.constant 0 : index
    %356 = vector.load %arg4[%c17, %c0_274, %c0_275] : memref<19x32x32xf32, #tpu.memory_space<vmem>>, vector<1x32x32xf32>
    %357 = vector.shape_cast %356 : vector<1x32x32xf32> to vector<32x32xf32>
    %cst_276 = arith.constant dense<0.000000e+00> : vector<4x32xf32>
    %358 = tpu.matmul %355, %357, %cst_276 {dimension_numbers = #tpu.dot_dimension_numbers<[1], [0], [0], [1], [0, 0, 1, 1], [], []>} : vector<4x32xf32>, vector<32x32xf32>, vector<4x32xf32> -> vector<4x32xf32>
    %c17_277 = arith.constant 17 : index
    %c0_278 = arith.constant 0 : index
    %c0_279 = arith.constant 0 : index
    %359 = vector.load %arg5[%c17_277, %c0_278, %c0_279] : memref<19x1x32xf32, #tpu.memory_space<vmem>>, vector<1x1x32xf32>
    %360 = vector.shape_cast %359 : vector<1x1x32xf32> to vector<1x32xf32>
    %361 = vector.broadcast %360 : vector<1x32xf32> to vector<4x32xf32>
    %362 = arith.addf %358, %361 : vector<4x32xf32>
    %cst_280 = arith.constant 0.000000e+00 : f32
    %363 = vector.broadcast %cst_280 : f32 to vector<4x32xf32>
    %364 = arith.maximumf %362, %363 : vector<4x32xf32>
    %cst_281 = arith.constant 6.000000e+00 : f32
    %365 = vector.broadcast %cst_281 : f32 to vector<4x32xf32>
    %366 = arith.minimumf %364, %365 : vector<4x32xf32>
    %c18 = arith.constant 18 : index
    %c0_282 = arith.constant 0 : index
    %c0_283 = arith.constant 0 : index
    %367 = vector.load %arg4[%c18, %c0_282, %c0_283] : memref<19x32x32xf32, #tpu.memory_space<vmem>>, vector<1x32x32xf32>
    %368 = vector.shape_cast %367 : vector<1x32x32xf32> to vector<32x32xf32>
    %cst_284 = arith.constant dense<0.000000e+00> : vector<4x32xf32>
    %369 = tpu.matmul %366, %368, %cst_284 {dimension_numbers = #tpu.dot_dimension_numbers<[1], [0], [0], [1], [0, 0, 1, 1], [], []>} : vector<4x32xf32>, vector<32x32xf32>, vector<4x32xf32> -> vector<4x32xf32>
    %c18_285 = arith.constant 18 : index
    %c0_286 = arith.constant 0 : index
    %c0_287 = arith.constant 0 : index
    %370 = vector.load %arg5[%c18_285, %c0_286, %c0_287] : memref<19x1x32xf32, #tpu.memory_space<vmem>>, vector<1x1x32xf32>
    %371 = vector.shape_cast %370 : vector<1x1x32xf32> to vector<1x32xf32>
    %372 = vector.broadcast %371 : vector<1x32xf32> to vector<4x32xf32>
    %373 = arith.addf %369, %372 : vector<4x32xf32>
    %c16_288 = arith.constant 16 : index
    %c0_289 = arith.constant 0 : index
    %c0_290 = arith.constant 0 : index
    %374 = vector.load %arg6[%c16_288, %c0_289, %c0_290] : memref<19x16x16xf32, #tpu.memory_space<vmem>>, vector<1x16x16xf32>
    %375 = vector.shape_cast %374 : vector<1x16x16xf32> to vector<16x16xf32>
    %376 = vector.extract_strided_slice %375 {offsets = [0, 0], sizes = [16, 4], strides = [1, 1]} : vector<16x16xf32> to vector<16x4xf32>
    %cst_291 = arith.constant dense<0.000000e+00> : vector<16x32xf32>
    %377 = tpu.matmul %376, %373, %cst_291 {dimension_numbers = #tpu.dot_dimension_numbers<[1], [0], [0], [1], [0, 0, 1, 1], [], []>} : vector<16x4xf32>, vector<4x32xf32>, vector<16x32xf32> -> vector<16x32xf32>
    %c16_292 = arith.constant 16 : index
    %c0_293 = arith.constant 0 : index
    %c0_294 = arith.constant 0 : index
    %378 = vector.load %arg7[%c16_292, %c0_293, %c0_294] : memref<19x16x1xf32, #tpu.memory_space<vmem>>, vector<1x16x1xf32>
    %379 = vector.shape_cast %378 : vector<1x16x1xf32> to vector<16x1xf32>
    %380 = vector.broadcast %379 : vector<16x1xf32> to vector<16x32xf32>
    %381 = arith.addf %377, %380 : vector<16x32xf32>
    %cst_295 = arith.constant 0.000000e+00 : f32
    %382 = vector.broadcast %cst_295 : f32 to vector<16x32xf32>
    %383 = arith.maximumf %381, %382 : vector<16x32xf32>
    %cst_296 = arith.constant 6.000000e+00 : f32
    %384 = vector.broadcast %cst_296 : f32 to vector<16x32xf32>
    %385 = arith.minimumf %383, %384 : vector<16x32xf32>
    %c17_297 = arith.constant 17 : index
    %c0_298 = arith.constant 0 : index
    %c0_299 = arith.constant 0 : index
    %386 = vector.load %arg6[%c17_297, %c0_298, %c0_299] : memref<19x16x16xf32, #tpu.memory_space<vmem>>, vector<1x16x16xf32>
    %387 = vector.shape_cast %386 : vector<1x16x16xf32> to vector<16x16xf32>
    %cst_300 = arith.constant dense<0.000000e+00> : vector<16x32xf32>
    %388 = tpu.matmul %387, %385, %cst_300 {dimension_numbers = #tpu.dot_dimension_numbers<[1], [0], [0], [1], [0, 0, 1, 1], [], []>} : vector<16x16xf32>, vector<16x32xf32>, vector<16x32xf32> -> vector<16x32xf32>
    %c17_301 = arith.constant 17 : index
    %c0_302 = arith.constant 0 : index
    %c0_303 = arith.constant 0 : index
    %389 = vector.load %arg7[%c17_301, %c0_302, %c0_303] : memref<19x16x1xf32, #tpu.memory_space<vmem>>, vector<1x16x1xf32>
    %390 = vector.shape_cast %389 : vector<1x16x1xf32> to vector<16x1xf32>
    %391 = vector.broadcast %390 : vector<16x1xf32> to vector<16x32xf32>
    %392 = arith.addf %388, %391 : vector<16x32xf32>
    %cst_304 = arith.constant 0.000000e+00 : f32
    %393 = vector.broadcast %cst_304 : f32 to vector<16x32xf32>
    %394 = arith.maximumf %392, %393 : vector<16x32xf32>
    %cst_305 = arith.constant 6.000000e+00 : f32
    %395 = vector.broadcast %cst_305 : f32 to vector<16x32xf32>
    %396 = arith.minimumf %394, %395 : vector<16x32xf32>
    %c18_306 = arith.constant 18 : index
    %c0_307 = arith.constant 0 : index
    %c0_308 = arith.constant 0 : index
    %397 = vector.load %arg6[%c18_306, %c0_307, %c0_308] : memref<19x16x16xf32, #tpu.memory_space<vmem>>, vector<1x16x16xf32>
    %398 = vector.shape_cast %397 : vector<1x16x16xf32> to vector<16x16xf32>
    %cst_309 = arith.constant dense<0.000000e+00> : vector<16x32xf32>
    %399 = tpu.matmul %398, %396, %cst_309 {dimension_numbers = #tpu.dot_dimension_numbers<[1], [0], [0], [1], [0, 0, 1, 1], [], []>} : vector<16x16xf32>, vector<16x32xf32>, vector<16x32xf32> -> vector<16x32xf32>
    %c18_310 = arith.constant 18 : index
    %c0_311 = arith.constant 0 : index
    %c0_312 = arith.constant 0 : index
    %400 = vector.load %arg7[%c18_310, %c0_311, %c0_312] : memref<19x16x1xf32, #tpu.memory_space<vmem>>, vector<1x16x1xf32>
    %401 = vector.shape_cast %400 : vector<1x16x1xf32> to vector<16x1xf32>
    %402 = vector.broadcast %401 : vector<16x1xf32> to vector<16x32xf32>
    %403 = arith.addf %399, %402 : vector<16x32xf32>
    %404 = vector.extract_strided_slice %403 {offsets = [0, 0], sizes = [1, 16], strides = [1, 1]} : vector<16x32xf32> to vector<1x16xf32>
    %c0_313 = arith.constant 0 : index
    %c0_314 = arith.constant 0 : index
    %c0_315 = arith.constant 0 : index
    %405 = vector.load %arg2[%c0_313, %c0_314, %c0_315] : memref<1x16x4xf32, #tpu.memory_space<vmem>>, vector<1x16x4xf32>
    %406 = vector.shape_cast %405 : vector<1x16x4xf32> to vector<16x4xf32>
    %cst_316 = arith.constant dense<0.000000e+00> : vector<16x16xf32>
    %407 = tpu.matmul %406, %172, %cst_316 {dimension_numbers = #tpu.dot_dimension_numbers<[1], [0], [0], [1], [0, 0, 1, 1], [], []>} : vector<16x4xf32>, vector<4x16xf32>, vector<16x16xf32> -> vector<16x16xf32>
    %408 = vector.broadcast %404 : vector<1x16xf32> to vector<16x16xf32>
    %409 = arith.addf %407, %408 : vector<16x16xf32>
    %c0_317 = arith.constant 0 : index
    %c0_318 = arith.constant 0 : index
    %410 = vector.load %arg9[%c0_317, %c0_318] : memref<16x16xf32, #tpu.memory_space<vmem>>, vector<16x16xf32>
    tpu.vector_store %arg9[%c0_317, %c0_318], %409 {strides = array<i32>} : memref<16x16xf32, #tpu.memory_space<vmem>>, vector<16x16xf32>,
    %c0_319 = arith.constant 0 : index
    %c0_320 = arith.constant 0 : index
    %c0_321 = arith.constant 0 : index
    %411 = vector.load %arg3[%c0_319, %c0_320, %c0_321] : memref<1x1x16xf32, #tpu.memory_space<vmem>>, vector<1x1x16xf32>
    %412 = vector.shape_cast %411 : vector<1x1x16xf32> to vector<1x16xf32>
    %cst_322 = arith.constant dense<0.000000e+00> : vector<1x16xf32>
    %413 = tpu.matmul %412, %343, %cst_322 {dimension_numbers = #tpu.dot_dimension_numbers<[1], [0], [0], [1], [0, 0, 1, 1], [], []>} : vector<1x16xf32>, vector<16x16xf32>, vector<1x16xf32> -> vector<1x16xf32>
    %c0_323 = arith.constant 0 : index
    %c0_324 = arith.constant 0 : index
    %414 = vector.load %arg9[%c0_323, %c0_324] : memref<16x16xf32, #tpu.memory_space<vmem>>, vector<1x16xf32>
    %415 = arith.addf %414, %413 : vector<1x16xf32>
    %416 = math.tanh %415 : vector<1x16xf32>
    %c0_325 = arith.constant 0 : index
    %c0_326 = arith.constant 0 : index
    %c0_327 = arith.constant 0 : index
    %417 = vector.load %arg8[%c0_325, %c0_326, %c0_327] : memref<1x16x16xf32, #tpu.memory_space<vmem>>, vector<1x1x16xf32>
    %418 = vector.shape_cast %417 : vector<1x1x16xf32> to vector<1x16xf32>
    %419 = vector.shape_cast %416 : vector<1x16xf32> to vector<1x1x16xf32>
    tpu.vector_store %arg8[%c0_325, %c0_326, %c0_327], %419 {strides = array<i32>} : memref<1x16x16xf32, #tpu.memory_space<vmem>>, vector<1x1x16xf32>,
    %cst_328 = arith.constant dense<0.000000e+00> : vector<1x16xf32>
    %420 = tpu.matmul %416, %343, %cst_328 {dimension_numbers = #tpu.dot_dimension_numbers<[1], [0], [0], [1], [0, 0, 1, 1], [], []>} : vector<1x16xf32>, vector<16x16xf32>, vector<1x16xf32> -> vector<1x16xf32>
    %c1_329 = arith.constant 1 : index
    %c0_330 = arith.constant 0 : index
    %421 = vector.load %arg9[%c1_329, %c0_330] : memref<16x16xf32, #tpu.memory_space<vmem>>, vector<1x16xf32>
    %422 = arith.addf %421, %420 : vector<1x16xf32>
    %423 = math.tanh %422 : vector<1x16xf32>
    %c0_331 = arith.constant 0 : index
    %c1_332 = arith.constant 1 : index
    %c0_333 = arith.constant 0 : index
    %424 = vector.load %arg8[%c0_331, %c1_332, %c0_333] : memref<1x16x16xf32, #tpu.memory_space<vmem>>, vector<1x1x16xf32>
    %425 = vector.shape_cast %424 : vector<1x1x16xf32> to vector<1x16xf32>
    %426 = vector.shape_cast %423 : vector<1x16xf32> to vector<1x1x16xf32>
    tpu.vector_store %arg8[%c0_331, %c1_332, %c0_333], %426 {strides = array<i32>} : memref<1x16x16xf32, #tpu.memory_space<vmem>>, vector<1x1x16xf32>,
    %cst_334 = arith.constant dense<0.000000e+00> : vector<1x16xf32>
    %427 = tpu.matmul %423, %343, %cst_334 {dimension_numbers = #tpu.dot_dimension_numbers<[1], [0], [0], [1], [0, 0, 1, 1], [], []>} : vector<1x16xf32>, vector<16x16xf32>, vector<1x16xf32> -> vector<1x16xf32>
    %c2_335 = arith.constant 2 : index
    %c0_336 = arith.constant 0 : index
    %428 = vector.load %arg9[%c2_335, %c0_336] : memref<16x16xf32, #tpu.memory_space<vmem>>, vector<1x16xf32>
    %429 = arith.addf %428, %427 : vector<1x16xf32>
    %430 = math.tanh %429 : vector<1x16xf32>
    %c0_337 = arith.constant 0 : index
    %c2_338 = arith.constant 2 : index
    %c0_339 = arith.constant 0 : index
    %431 = vector.load %arg8[%c0_337, %c2_338, %c0_339] : memref<1x16x16xf32, #tpu.memory_space<vmem>>, vector<1x1x16xf32>
    %432 = vector.shape_cast %431 : vector<1x1x16xf32> to vector<1x16xf32>
    %433 = vector.shape_cast %430 : vector<1x16xf32> to vector<1x1x16xf32>
    tpu.vector_store %arg8[%c0_337, %c2_338, %c0_339], %433 {strides = array<i32>} : memref<1x16x16xf32, #tpu.memory_space<vmem>>, vector<1x1x16xf32>,
    %cst_340 = arith.constant dense<0.000000e+00> : vector<1x16xf32>
    %434 = tpu.matmul %430, %343, %cst_340 {dimension_numbers = #tpu.dot_dimension_numbers<[1], [0], [0], [1], [0, 0, 1, 1], [], []>} : vector<1x16xf32>, vector<16x16xf32>, vector<1x16xf32> -> vector<1x16xf32>
    %c3_341 = arith.constant 3 : index
    %c0_342 = arith.constant 0 : index
    %435 = vector.load %arg9[%c3_341, %c0_342] : memref<16x16xf32, #tpu.memory_space<vmem>>, vector<1x16xf32>
    %436 = arith.addf %435, %434 : vector<1x16xf32>
    %437 = math.tanh %436 : vector<1x16xf32>
    %c0_343 = arith.constant 0 : index
    %c3_344 = arith.constant 3 : index
    %c0_345 = arith.constant 0 : index
    %438 = vector.load %arg8[%c0_343, %c3_344, %c0_345] : memref<1x16x16xf32, #tpu.memory_space<vmem>>, vector<1x1x16xf32>
    %439 = vector.shape_cast %438 : vector<1x1x16xf32> to vector<1x16xf32>
    %440 = vector.shape_cast %437 : vector<1x16xf32> to vector<1x1x16xf32>
    tpu.vector_store %arg8[%c0_343, %c3_344, %c0_345], %440 {strides = array<i32>} : memref<1x16x16xf32, #tpu.memory_space<vmem>>, vector<1x1x16xf32>,
    %cst_346 = arith.constant dense<0.000000e+00> : vector<1x16xf32>
    %441 = tpu.matmul %437, %343, %cst_346 {dimension_numbers = #tpu.dot_dimension_numbers<[1], [0], [0], [1], [0, 0, 1, 1], [], []>} : vector<1x16xf32>, vector<16x16xf32>, vector<1x16xf32> -> vector<1x16xf32>
    %c4_347 = arith.constant 4 : index
    %c0_348 = arith.constant 0 : index
    %442 = vector.load %arg9[%c4_347, %c0_348] : memref<16x16xf32, #tpu.memory_space<vmem>>, vector<1x16xf32>
    %443 = arith.addf %442, %441 : vector<1x16xf32>
    %444 = math.tanh %443 : vector<1x16xf32>
    %c0_349 = arith.constant 0 : index
    %c4_350 = arith.constant 4 : index
    %c0_351 = arith.constant 0 : index
    %445 = vector.load %arg8[%c0_349, %c4_350, %c0_351] : memref<1x16x16xf32, #tpu.memory_space<vmem>>, vector<1x1x16xf32>
    %446 = vector.shape_cast %445 : vector<1x1x16xf32> to vector<1x16xf32>
    %447 = vector.shape_cast %444 : vector<1x16xf32> to vector<1x1x16xf32>
    tpu.vector_store %arg8[%c0_349, %c4_350, %c0_351], %447 {strides = array<i32>} : memref<1x16x16xf32, #tpu.memory_space<vmem>>, vector<1x1x16xf32>,
    %cst_352 = arith.constant dense<0.000000e+00> : vector<1x16xf32>
    %448 = tpu.matmul %444, %343, %cst_352 {dimension_numbers = #tpu.dot_dimension_numbers<[1], [0], [0], [1], [0, 0, 1, 1], [], []>} : vector<1x16xf32>, vector<16x16xf32>, vector<1x16xf32> -> vector<1x16xf32>
    %c5_353 = arith.constant 5 : index
    %c0_354 = arith.constant 0 : index
    %449 = vector.load %arg9[%c5_353, %c0_354] : memref<16x16xf32, #tpu.memory_space<vmem>>, vector<1x16xf32>
    %450 = arith.addf %449, %448 : vector<1x16xf32>
    %451 = math.tanh %450 : vector<1x16xf32>
    %c0_355 = arith.constant 0 : index
    %c5_356 = arith.constant 5 : index
    %c0_357 = arith.constant 0 : index
    %452 = vector.load %arg8[%c0_355, %c5_356, %c0_357] : memref<1x16x16xf32, #tpu.memory_space<vmem>>, vector<1x1x16xf32>
    %453 = vector.shape_cast %452 : vector<1x1x16xf32> to vector<1x16xf32>
    %454 = vector.shape_cast %451 : vector<1x16xf32> to vector<1x1x16xf32>
    tpu.vector_store %arg8[%c0_355, %c5_356, %c0_357], %454 {strides = array<i32>} : memref<1x16x16xf32, #tpu.memory_space<vmem>>, vector<1x1x16xf32>,
    %cst_358 = arith.constant dense<0.000000e+00> : vector<1x16xf32>
    %455 = tpu.matmul %451, %343, %cst_358 {dimension_numbers = #tpu.dot_dimension_numbers<[1], [0], [0], [1], [0, 0, 1, 1], [], []>} : vector<1x16xf32>, vector<16x16xf32>, vector<1x16xf32> -> vector<1x16xf32>
    %c6_359 = arith.constant 6 : index
    %c0_360 = arith.constant 0 : index
    %456 = vector.load %arg9[%c6_359, %c0_360] : memref<16x16xf32, #tpu.memory_space<vmem>>, vector<1x16xf32>
    %457 = arith.addf %456, %455 : vector<1x16xf32>
    %458 = math.tanh %457 : vector<1x16xf32>
    %c0_361 = arith.constant 0 : index
    %c6_362 = arith.constant 6 : index
    %c0_363 = arith.constant 0 : index
    %459 = vector.load %arg8[%c0_361, %c6_362, %c0_363] : memref<1x16x16xf32, #tpu.memory_space<vmem>>, vector<1x1x16xf32>
    %460 = vector.shape_cast %459 : vector<1x1x16xf32> to vector<1x16xf32>
    %461 = vector.shape_cast %458 : vector<1x16xf32> to vector<1x1x16xf32>
    tpu.vector_store %arg8[%c0_361, %c6_362, %c0_363], %461 {strides = array<i32>} : memref<1x16x16xf32, #tpu.memory_space<vmem>>, vector<1x1x16xf32>,
    %cst_364 = arith.constant dense<0.000000e+00> : vector<1x16xf32>
    %462 = tpu.matmul %458, %343, %cst_364 {dimension_numbers = #tpu.dot_dimension_numbers<[1], [0], [0], [1], [0, 0, 1, 1], [], []>} : vector<1x16xf32>, vector<16x16xf32>, vector<1x16xf32> -> vector<1x16xf32>
    %c7_365 = arith.constant 7 : index
    %c0_366 = arith.constant 0 : index
    %463 = vector.load %arg9[%c7_365, %c0_366] : memref<16x16xf32, #tpu.memory_space<vmem>>, vector<1x16xf32>
    %464 = arith.addf %463, %462 : vector<1x16xf32>
    %465 = math.tanh %464 : vector<1x16xf32>
    %c0_367 = arith.constant 0 : index
    %c7_368 = arith.constant 7 : index
    %c0_369 = arith.constant 0 : index
    %466 = vector.load %arg8[%c0_367, %c7_368, %c0_369] : memref<1x16x16xf32, #tpu.memory_space<vmem>>, vector<1x1x16xf32>
    %467 = vector.shape_cast %466 : vector<1x1x16xf32> to vector<1x16xf32>
    %468 = vector.shape_cast %465 : vector<1x16xf32> to vector<1x1x16xf32>
    tpu.vector_store %arg8[%c0_367, %c7_368, %c0_369], %468 {strides = array<i32>} : memref<1x16x16xf32, #tpu.memory_space<vmem>>, vector<1x1x16xf32>,
    %cst_370 = arith.constant dense<0.000000e+00> : vector<1x16xf32>
    %469 = tpu.matmul %465, %343, %cst_370 {dimension_numbers = #tpu.dot_dimension_numbers<[1], [0], [0], [1], [0, 0, 1, 1], [], []>} : vector<1x16xf32>, vector<16x16xf32>, vector<1x16xf32> -> vector<1x16xf32>
    %c8_371 = arith.constant 8 : index
    %c0_372 = arith.constant 0 : index
    %470 = vector.load %arg9[%c8_371, %c0_372] : memref<16x16xf32, #tpu.memory_space<vmem>>, vector<1x16xf32>
    %471 = arith.addf %470, %469 : vector<1x16xf32>
    %472 = math.tanh %471 : vector<1x16xf32>
    %c0_373 = arith.constant 0 : index
    %c8_374 = arith.constant 8 : index
    %c0_375 = arith.constant 0 : index
    %473 = vector.load %arg8[%c0_373, %c8_374, %c0_375] : memref<1x16x16xf32, #tpu.memory_space<vmem>>, vector<1x1x16xf32>
    %474 = vector.shape_cast %473 : vector<1x1x16xf32> to vector<1x16xf32>
    %475 = vector.shape_cast %472 : vector<1x16xf32> to vector<1x1x16xf32>
    tpu.vector_store %arg8[%c0_373, %c8_374, %c0_375], %475 {strides = array<i32>} : memref<1x16x16xf32, #tpu.memory_space<vmem>>, vector<1x1x16xf32>,
    %cst_376 = arith.constant dense<0.000000e+00> : vector<1x16xf32>
    %476 = tpu.matmul %472, %343, %cst_376 {dimension_numbers = #tpu.dot_dimension_numbers<[1], [0], [0], [1], [0, 0, 1, 1], [], []>} : vector<1x16xf32>, vector<16x16xf32>, vector<1x16xf32> -> vector<1x16xf32>
    %c9_377 = arith.constant 9 : index
    %c0_378 = arith.constant 0 : index
    %477 = vector.load %arg9[%c9_377, %c0_378] : memref<16x16xf32, #tpu.memory_space<vmem>>, vector<1x16xf32>
    %478 = arith.addf %477, %476 : vector<1x16xf32>
    %479 = math.tanh %478 : vector<1x16xf32>
    %c0_379 = arith.constant 0 : index
    %c9_380 = arith.constant 9 : index
    %c0_381 = arith.constant 0 : index
    %480 = vector.load %arg8[%c0_379, %c9_380, %c0_381] : memref<1x16x16xf32, #tpu.memory_space<vmem>>, vector<1x1x16xf32>
    %481 = vector.shape_cast %480 : vector<1x1x16xf32> to vector<1x16xf32>
    %482 = vector.shape_cast %479 : vector<1x16xf32> to vector<1x1x16xf32>
    tpu.vector_store %arg8[%c0_379, %c9_380, %c0_381], %482 {strides = array<i32>} : memref<1x16x16xf32, #tpu.memory_space<vmem>>, vector<1x1x16xf32>,
    %cst_382 = arith.constant dense<0.000000e+00> : vector<1x16xf32>
    %483 = tpu.matmul %479, %343, %cst_382 {dimension_numbers = #tpu.dot_dimension_numbers<[1], [0], [0], [1], [0, 0, 1, 1], [], []>} : vector<1x16xf32>, vector<16x16xf32>, vector<1x16xf32> -> vector<1x16xf32>
    %c10_383 = arith.constant 10 : index
    %c0_384 = arith.constant 0 : index
    %484 = vector.load %arg9[%c10_383, %c0_384] : memref<16x16xf32, #tpu.memory_space<vmem>>, vector<1x16xf32>
    %485 = arith.addf %484, %483 : vector<1x16xf32>
    %486 = math.tanh %485 : vector<1x16xf32>
    %c0_385 = arith.constant 0 : index
    %c10_386 = arith.constant 10 : index
    %c0_387 = arith.constant 0 : index
    %487 = vector.load %arg8[%c0_385, %c10_386, %c0_387] : memref<1x16x16xf32, #tpu.memory_space<vmem>>, vector<1x1x16xf32>
    %488 = vector.shape_cast %487 : vector<1x1x16xf32> to vector<1x16xf32>
    %489 = vector.shape_cast %486 : vector<1x16xf32> to vector<1x1x16xf32>
    tpu.vector_store %arg8[%c0_385, %c10_386, %c0_387], %489 {strides = array<i32>} : memref<1x16x16xf32, #tpu.memory_space<vmem>>, vector<1x1x16xf32>,
    %cst_388 = arith.constant dense<0.000000e+00> : vector<1x16xf32>
    %490 = tpu.matmul %486, %343, %cst_388 {dimension_numbers = #tpu.dot_dimension_numbers<[1], [0], [0], [1], [0, 0, 1, 1], [], []>} : vector<1x16xf32>, vector<16x16xf32>, vector<1x16xf32> -> vector<1x16xf32>
    %c11_389 = arith.constant 11 : index
    %c0_390 = arith.constant 0 : index
    %491 = vector.load %arg9[%c11_389, %c0_390] : memref<16x16xf32, #tpu.memory_space<vmem>>, vector<1x16xf32>
    %492 = arith.addf %491, %490 : vector<1x16xf32>
    %493 = math.tanh %492 : vector<1x16xf32>
    %c0_391 = arith.constant 0 : index
    %c11_392 = arith.constant 11 : index
    %c0_393 = arith.constant 0 : index
    %494 = vector.load %arg8[%c0_391, %c11_392, %c0_393] : memref<1x16x16xf32, #tpu.memory_space<vmem>>, vector<1x1x16xf32>
    %495 = vector.shape_cast %494 : vector<1x1x16xf32> to vector<1x16xf32>
    %496 = vector.shape_cast %493 : vector<1x16xf32> to vector<1x1x16xf32>
    tpu.vector_store %arg8[%c0_391, %c11_392, %c0_393], %496 {strides = array<i32>} : memref<1x16x16xf32, #tpu.memory_space<vmem>>, vector<1x1x16xf32>,
    %cst_394 = arith.constant dense<0.000000e+00> : vector<1x16xf32>
    %497 = tpu.matmul %493, %343, %cst_394 {dimension_numbers = #tpu.dot_dimension_numbers<[1], [0], [0], [1], [0, 0, 1, 1], [], []>} : vector<1x16xf32>, vector<16x16xf32>, vector<1x16xf32> -> vector<1x16xf32>
    %c12_395 = arith.constant 12 : index
    %c0_396 = arith.constant 0 : index
    %498 = vector.load %arg9[%c12_395, %c0_396] : memref<16x16xf32, #tpu.memory_space<vmem>>, vector<1x16xf32>
    %499 = arith.addf %498, %497 : vector<1x16xf32>
    %500 = math.tanh %499 : vector<1x16xf32>
    %c0_397 = arith.constant 0 : index
    %c12_398 = arith.constant 12 : index
    %c0_399 = arith.constant 0 : index
    %501 = vector.load %arg8[%c0_397, %c12_398, %c0_399] : memref<1x16x16xf32, #tpu.memory_space<vmem>>, vector<1x1x16xf32>
    %502 = vector.shape_cast %501 : vector<1x1x16xf32> to vector<1x16xf32>
    %503 = vector.shape_cast %500 : vector<1x16xf32> to vector<1x1x16xf32>
    tpu.vector_store %arg8[%c0_397, %c12_398, %c0_399], %503 {strides = array<i32>} : memref<1x16x16xf32, #tpu.memory_space<vmem>>, vector<1x1x16xf32>,
    %cst_400 = arith.constant dense<0.000000e+00> : vector<1x16xf32>
    %504 = tpu.matmul %500, %343, %cst_400 {dimension_numbers = #tpu.dot_dimension_numbers<[1], [0], [0], [1], [0, 0, 1, 1], [], []>} : vector<1x16xf32>, vector<16x16xf32>, vector<1x16xf32> -> vector<1x16xf32>
    %c13_401 = arith.constant 13 : index
    %c0_402 = arith.constant 0 : index
    %505 = vector.load %arg9[%c13_401, %c0_402] : memref<16x16xf32, #tpu.memory_space<vmem>>, vector<1x16xf32>
    %506 = arith.addf %505, %504 : vector<1x16xf32>
    %507 = math.tanh %506 : vector<1x16xf32>
    %c0_403 = arith.constant 0 : index
    %c13_404 = arith.constant 13 : index
    %c0_405 = arith.constant 0 : index
    %508 = vector.load %arg8[%c0_403, %c13_404, %c0_405] : memref<1x16x16xf32, #tpu.memory_space<vmem>>, vector<1x1x16xf32>
    %509 = vector.shape_cast %508 : vector<1x1x16xf32> to vector<1x16xf32>
    %510 = vector.shape_cast %507 : vector<1x16xf32> to vector<1x1x16xf32>
    tpu.vector_store %arg8[%c0_403, %c13_404, %c0_405], %510 {strides = array<i32>} : memref<1x16x16xf32, #tpu.memory_space<vmem>>, vector<1x1x16xf32>,
    %cst_406 = arith.constant dense<0.000000e+00> : vector<1x16xf32>
    %511 = tpu.matmul %507, %343, %cst_406 {dimension_numbers = #tpu.dot_dimension_numbers<[1], [0], [0], [1], [0, 0, 1, 1], [], []>} : vector<1x16xf32>, vector<16x16xf32>, vector<1x16xf32> -> vector<1x16xf32>
    %c14_407 = arith.constant 14 : index
    %c0_408 = arith.constant 0 : index
    %512 = vector.load %arg9[%c14_407, %c0_408] : memref<16x16xf32, #tpu.memory_space<vmem>>, vector<1x16xf32>
    %513 = arith.addf %512, %511 : vector<1x16xf32>
    %514 = math.tanh %513 : vector<1x16xf32>
    %c0_409 = arith.constant 0 : index
    %c14_410 = arith.constant 14 : index
    %c0_411 = arith.constant 0 : index
    %515 = vector.load %arg8[%c0_409, %c14_410, %c0_411] : memref<1x16x16xf32, #tpu.memory_space<vmem>>, vector<1x1x16xf32>
    %516 = vector.shape_cast %515 : vector<1x1x16xf32> to vector<1x16xf32>
    %517 = vector.shape_cast %514 : vector<1x16xf32> to vector<1x1x16xf32>
    tpu.vector_store %arg8[%c0_409, %c14_410, %c0_411], %517 {strides = array<i32>} : memref<1x16x16xf32, #tpu.memory_space<vmem>>, vector<1x1x16xf32>,
    %cst_412 = arith.constant dense<0.000000e+00> : vector<1x16xf32>
    %518 = tpu.matmul %514, %343, %cst_412 {dimension_numbers = #tpu.dot_dimension_numbers<[1], [0], [0], [1], [0, 0, 1, 1], [], []>} : vector<1x16xf32>, vector<16x16xf32>, vector<1x16xf32> -> vector<1x16xf32>
    %c15_413 = arith.constant 15 : index
    %c0_414 = arith.constant 0 : index
    %519 = vector.load %arg9[%c15_413, %c0_414] : memref<16x16xf32, #tpu.memory_space<vmem>>, vector<1x16xf32>
    %520 = arith.addf %519, %518 : vector<1x16xf32>
    %521 = math.tanh %520 : vector<1x16xf32>
    %c0_415 = arith.constant 0 : index
    %c15_416 = arith.constant 15 : index
    %c0_417 = arith.constant 0 : index
    %522 = vector.load %arg8[%c0_415, %c15_416, %c0_417] : memref<1x16x16xf32, #tpu.memory_space<vmem>>, vector<1x1x16xf32>
    %523 = vector.shape_cast %522 : vector<1x1x16xf32> to vector<1x16xf32>
    %524 = vector.shape_cast %521 : vector<1x16xf32> to vector<1x1x16xf32>
    tpu.vector_store %arg8[%c0_415, %c15_416, %c0_417], %524 {strides = array<i32>} : memref<1x16x16xf32, #tpu.memory_space<vmem>>, vector<1x1x16xf32>,
    return
  }
  func.func @transform_0(%arg0: i32) -> (i32, i32, i32) {
    %c0_i32 = arith.constant 0 : i32
    %c0_i32_0 = arith.constant 0 : i32
    %c0_i32_1 = arith.constant 0 : i32
    return %arg0, %c0_i32, %c0_i32_0 : i32, i32, i32
  }
  func.func @transform_1(%arg0: i32) -> (i32, i32, i32) {
    %c0_i32 = arith.constant 0 : i32
    %c0_i32_0 = arith.constant 0 : i32
    %c0_i32_1 = arith.constant 0 : i32
    return %arg0, %c0_i32, %c0_i32_0 : i32, i32, i32
  }
  func.func @transform_2(%arg0: i32) -> (i32, i32, i32) {
    %c0_i32 = arith.constant 0 : i32
    %c0_i32_0 = arith.constant 0 : i32
    %c0_i32_1 = arith.constant 0 : i32
    return %arg0, %c0_i32, %c0_i32_0 : i32, i32, i32
  }
  func.func @transform_3(%arg0: i32) -> (i32, i32, i32) {
    %c0_i32 = arith.constant 0 : i32
    %c0_i32_0 = arith.constant 0 : i32
    %c0_i32_1 = arith.constant 0 : i32
    %c0_i32_2 = arith.constant 0 : i32
    return %c0_i32, %c0_i32_0, %c0_i32_1 : i32, i32, i32
  }
  func.func @transform_4(%arg0: i32) -> (i32, i32, i32) {
    %c0_i32 = arith.constant 0 : i32
    %c0_i32_0 = arith.constant 0 : i32
    %c0_i32_1 = arith.constant 0 : i32
    %c0_i32_2 = arith.constant 0 : i32
    return %c0_i32, %c0_i32_0, %c0_i32_1 : i32, i32, i32
  }
  func.func @transform_5(%arg0: i32) -> (i32, i32, i32) {
    %c0_i32 = arith.constant 0 : i32
    %c0_i32_0 = arith.constant 0 : i32
    %c0_i32_1 = arith.constant 0 : i32
    %c0_i32_2 = arith.constant 0 : i32
    return %c0_i32, %c0_i32_0, %c0_i32_1 : i32, i32, i32
  }
  func.func @transform_6(%arg0: i32) -> (i32, i32, i32) {
    %c0_i32 = arith.constant 0 : i32
    %c0_i32_0 = arith.constant 0 : i32
    %c0_i32_1 = arith.constant 0 : i32
    %c0_i32_2 = arith.constant 0 : i32
    return %c0_i32, %c0_i32_0, %c0_i32_1 : i32, i32, i32
  }
  func.func @transform_7(%arg0: i32) -> (i32, i32, i32) {
    %c0_i32 = arith.constant 0 : i32
    %c0_i32_0 = arith.constant 0 : i32
    %c0_i32_1 = arith.constant 0 : i32
    return %arg0, %c0_i32, %c0_i32_0 : i32, i32, i32
  }
}

</mosaic_0001>

<llo_original>
// kernel: _rnn_cell_forward.1
$region0: #{_rnn_cell_forward.1}
  #allocation0 [shape = 'u32[]', space=smem, size = 0x4, offset = 0x4, fixed_abs, tag = 'smem constant byte address 0x4 - core index']
  #allocation1 [shape = 'u32[144,128]{1,0:T(1,128)}', space=vmem, size = 0x12000, scoped, tag = 'internal scratch']
  #allocation2 [shape = 'f32[16,16]{1,0:T(8,128)}', space=vmem, size = 0x2000, scoped, tag = 'scratch operand']
  %s0 = inlined_call_operand.vmem [shape: f32[2,4,8], index: 0, kind: input, shape index: {}]
  %s1 = inlined_call_operand.vmem [shape: f32[2,16,4], index: 1, kind: input, shape index: {}]
  %s2 = inlined_call_operand.vmem [shape: f32[2,1,16], index: 2, kind: input, shape index: {}]
  %s3 = inlined_call_operand.vmem [shape: f32[19,32,32], index: 3, kind: input, shape index: {}]
  %s4 = inlined_call_operand.vmem [shape: f32[19,1,32], index: 4, kind: input, shape index: {}]
  %s5 = inlined_call_operand.vmem [shape: f32[19,16,16], index: 5, kind: input, shape index: {}]
  %s6 = inlined_call_operand.vmem [shape: f32[19,16,1], index: 6, kind: input, shape index: {}]
  %s7 = inlined_call_operand.vmem [shape: f32[2,16,16], index: 7, kind: output, shape index: {}]
  %s8 = sld [smem:[#allocation0]]
  $region61: #{_rnn_cell_forward.1} parent=0
    _
  %s10 = ssub.s32 1, %s8
  %s11 = scalar_select 0, %s10, %s8
  loop: start=0, step=1, limit=4
  $region2: #{_rnn_cell_forward.1} parent=0 // loop_pre_header
    _
  $region3: #{_rnn_cell_forward.1} parent=0 // loop_header
    %s13 = sphi 0, %s17
    %p14 = scmp.ge.s32.totalorder %s13, 4
    %s23 = sphi 0, %s25
    %s26 = sphi 0, %s23
    %s27 = sphi 0, %s26
    %s43 = sphi 0, %s27
    %s49 = sphi 0, %s51
    %s52 = sphi 0, %s49
    %s53 = sphi 0, %s52
    %s69 = sphi 0, %s53
    %s75 = sphi 0, %s77
    %s78 = sphi 0, %s75
    %s79 = sphi 0, %s78
    %s95 = sphi 0, %s79
    %s99 = sphi 0, %s99
    %s101 = sphi 0, %s99
    %s102 = sphi 0, %s101
    %s116 = sphi 0, %s102
    %s120 = sphi 0, %s120
    %s122 = sphi 0, %s120
    %s123 = sphi 0, %s122
    %s137 = sphi 0, %s123
    %s141 = sphi 0, %s141
    %s143 = sphi 0, %s141
    %s144 = sphi 0, %s143
    %s158 = sphi 0, %s144
    %s162 = sphi 0, %s162
    %s164 = sphi 0, %s162
    %s165 = sphi 0, %s164
    %s179 = sphi 0, %s165
    %s185 = sphi 0, %s187
    %s188 = sphi 0, %s185
    %s189 = sphi 0, %s188
    %s205 = sphi 0, %s189
  $region4: #{_rnn_cell_forward.1} parent=0 // loop_header_branch
    %16 = sbr.rel (%p14) target = $region8
  $region5: #{_rnn_cell_forward.1} parent=0 // loop_body
    %s18 = ssub.s32 %s13, 1
    %s19 = ssub.s32 %s13, 2
    %s20 = sadd.s32 %s13, 1
    %s21 = ssub.s32 %s13, %s20
    %p22 = scmp.eq.s32.totalorder %s21, 0
    %s24 = sadd.s32 %s23, 1
    %s25 = scalar_select %p22, %s23, %s24
    %p28 = pneg %p22
    %p29 = scmp.eq.s32.totalorder %s13, 1
    %p30 = por %p28, %p29
    %p31 = scmp.ne.s32.totalorder %s23, %s26
    %p32 = scmp.eq.s32.totalorder %s13, 0
    %p33 = por %p31, %p32
    %p34 = scmp.ne.s32.totalorder %s23, %s26
    %p35 = scmp.eq.s32.totalorder %s18, 1
    %p36 = por %p34, %p35
    %p37 = scmp.ne.s32.totalorder %s26, %s27
    %p38 = scmp.eq.s32.totalorder %s18, 0
    %p39 = por %p37, %p38
    %p40 = scmp.ne.s32.totalorder %s26, %s27
    %p41 = scmp.eq.s32.totalorder %s19, 1
    %p42 = por %p40, %p41
    %p44 = scmp.ne.s32.totalorder %s27, %s43
    %p45 = scmp.eq.s32.totalorder %s19, 0
    %p46 = por %p44, %p45
    %s47 = ssub.s32 %s13, %s20
    %p48 = scmp.eq.s32.totalorder %s47, 0
    %s50 = sadd.s32 %s49, 1
    %s51 = scalar_select %p48, %s49, %s50
    %p54 = pneg %p48
    %p55 = scmp.eq.s32.totalorder %s13, 1
    %p56 = por %p54, %p55
    %p57 = scmp.ne.s32.totalorder %s49, %s52
    %p58 = scmp.eq.s32.totalorder %s13, 0
    %p59 = por %p57, %p58
    %p60 = scmp.ne.s32.totalorder %s49, %s52
    %p61 = scmp.eq.s32.totalorder %s18, 1
    %p62 = por %p60, %p61
    %p63 = scmp.ne.s32.totalorder %s52, %s53
    %p64 = scmp.eq.s32.totalorder %s18, 0
    %p65 = por %p63, %p64
    %p66 = scmp.ne.s32.totalorder %s52, %s53
    %p67 = scmp.eq.s32.totalorder %s19, 1
    %p68 = por %p66, %p67
    %p70 = scmp.ne.s32.totalorder %s53, %s69
    %p71 = scmp.eq.s32.totalorder %s19, 0
    %p72 = por %p70, %p71
    %s73 = ssub.s32 %s13, %s20
    %p74 = scmp.eq.s32.totalorder %s73, 0
    %s76 = sadd.s32 %s75, 1
    %s77 = scalar_select %p74, %s75, %s76
    %p80 = pneg %p74
    %p81 = scmp.eq.s32.totalorder %s13, 1
    %p82 = por %p80, %p81
    %p83 = scmp.ne.s32.totalorder %s75, %s78
    %p84 = scmp.eq.s32.totalorder %s13, 0
    %p85 = por %p83, %p84
    %p86 = scmp.ne.s32.totalorder %s75, %s78
    %p87 = scmp.eq.s32.totalorder %s18, 1
    %p88 = por %p86, %p87
    %p89 = scmp.ne.s32.totalorder %s78, %s79
    %p90 = scmp.eq.s32.totalorder %s18, 0
    %p91 = por %p89, %p90
    %p92 = scmp.ne.s32.totalorder %s78, %s79
    %p93 = scmp.eq.s32.totalorder %s19, 1
    %p94 = por %p92, %p93
    %p96 = scmp.ne.s32.totalorder %s79, %s95
    %p97 = scmp.eq.s32.totalorder %s19, 0
    %p98 = por %p96, %p97
    %s100 = sadd.s32 %s99, 1
    %p103 = scmp.eq.s32.totalorder %s13, 1
    %p104 = scmp.ne.s32.totalorder %s99, %s101
    %p105 = scmp.eq.s32.totalorder %s13, 0
    %p106 = por %p104, %p105
    %p107 = scmp.ne.s32.totalorder %s99, %s101
    %p108 = scmp.eq.s32.totalorder %s18, 1
    %p109 = por %p107, %p108
    %p110 = scmp.ne.s32.totalorder %s101, %s102
    %p111 = scmp.eq.s32.totalorder %s18, 0
    %p112 = por %p110, %p111
    %p113 = scmp.ne.s32.totalorder %s101, %s102
    %p114 = scmp.eq.s32.totalorder %s19, 1
    %p115 = por %p113, %p114
    %p117 = scmp.ne.s32.totalorder %s102, %s116
    %p118 = scmp.eq.s32.totalorder %s19, 0
    %p119 = por %p117, %p118
    %s121 = sadd.s32 %s120, 1
    %p124 = scmp.eq.s32.totalorder %s13, 1
    %p125 = scmp.ne.s32.totalorder %s120, %s122
    %p126 = scmp.eq.s32.totalorder %s13, 0
    %p127 = por %p125, %p126
    %p128 = scmp.ne.s32.totalorder %s120, %s122
    %p129 = scmp.eq.s32.totalorder %s18, 1
    %p130 = por %p128, %p129
    %p131 = scmp.ne.s32.totalorder %s122, %s123
    %p132 = scmp.eq.s32.totalorder %s18, 0
    %p133 = por %p131, %p132
    %p134 = scmp.ne.s32.totalorder %s122, %s123
    %p135 = scmp.eq.s32.totalorder %s19, 1
    %p136 = por %p134, %p135
    %p138 = scmp.ne.s32.totalorder %s123, %s137
    %p139 = scmp.eq.s32.totalorder %s19, 0
    %p140 = por %p138, %p139
    %s142 = sadd.s32 %s141, 1
    %p145 = scmp.eq.s32.totalorder %s13, 1
    %p146 = scmp.ne.s32.totalorder %s141, %s143
    %p147 = scmp.eq.s32.totalorder %s13, 0
    %p148 = por %p146, %p147
    %p149 = scmp.ne.s32.totalorder %s141, %s143
    %p150 = scmp.eq.s32.totalorder %s18, 1
    %p151 = por %p149, %p150
    %p152 = scmp.ne.s32.totalorder %s143, %s144
    %p153 = scmp.eq.s32.totalorder %s18, 0
    %p154 = por %p152, %p153
    %p155 = scmp.ne.s32.totalorder %s143, %s144
    %p156 = scmp.eq.s32.totalorder %s19, 1
    %p157 = por %p155, %p156
    %p159 = scmp.ne.s32.totalorder %s144, %s158
    %p160 = scmp.eq.s32.totalorder %s19, 0
    %p161 = por %p159, %p160
    %s163 = sadd.s32 %s162, 1
    %p166 = scmp.eq.s32.totalorder %s13, 1
    %p167 = scmp.ne.s32.totalorder %s162, %s164
    %p168 = scmp.eq.s32.totalorder %s13, 0
    %p169 = por %p167, %p168
    %p170 = scmp.ne.s32.totalorder %s162, %s164
    %p171 = scmp.eq.s32.totalorder %s18, 1
    %p172 = por %p170, %p171
    %p173 = scmp.ne.s32.totalorder %s164, %s165
    %p174 = scmp.eq.s32.totalorder %s18, 0
    %p175 = por %p173, %p174
    %p176 = scmp.ne.s32.totalorder %s164, %s165
    %p177 = scmp.eq.s32.totalorder %s19, 1
    %p178 = por %p176, %p177
    %p180 = scmp.ne.s32.totalorder %s165, %s179
    %p181 = scmp.eq.s32.totalorder %s19, 0
    %p182 = por %p180, %p181
    %s183 = ssub.s32 %s13, %s20
    %p184 = scmp.eq.s32.totalorder %s183, 0
    %s186 = sadd.s32 %s185, 1
    %s187 = scalar_select %p184, %s185, %s186
    %p190 = pneg %p184
    %p191 = scmp.eq.s32.totalorder %s13, 1
    %p192 = por %p190, %p191
    %p193 = scmp.ne.s32.totalorder %s185, %s188
    %p194 = scmp.eq.s32.totalorder %s13, 0
    %p195 = por %p193, %p194
    %p196 = scmp.ne.s32.totalorder %s185, %s188
    %p197 = scmp.eq.s32.totalorder %s18, 1
    %p198 = por %p196, %p197
    %p199 = scmp.ne.s32.totalorder %s188, %s189
    %p200 = scmp.eq.s32.totalorder %s18, 0
    %p201 = por %p199, %p200
    %p202 = scmp.ne.s32.totalorder %s188, %s189
    %p203 = scmp.eq.s32.totalorder %s19, 1
    %p204 = por %p202, %p203
    %p206 = scmp.ne.s32.totalorder %s189, %s205
    %p207 = scmp.eq.s32.totalorder %s19, 0
    %p208 = por %p206, %p207
    %p209 = scmp.le.s32.totalorder 1, %s13
    %p210 = scmp.lt.s32.totalorder %s13, 3
    %p211 = pnand %p209, %p210
    %p212 = pneg %p211
    // Predicated region
    $region9: #{_rnn_cell_forward.1} parent=5 // pred_check
      _
    $region10: #{_rnn_cell_forward.1} parent=5 // pred_check_branch
      %214 = sbr.rel (%p211) target = $region12
    $region11: #{_rnn_cell_forward.1} parent=5 // pred_region
      %s215 = ssub.s32 %s13, 1
      // Predicated region
      $region13: #{_rnn_cell_forward.1} parent=11 // pred_check
        %p216 = pneg %p112
      $region14: #{_rnn_cell_forward.1} parent=11 // pred_check_branch
        %218 = sbr.rel (%p216) target = $region16
      $region15: #{_rnn_cell_forward.1} parent=11 // pred_region
        _
      $region16: #{_rnn_cell_forward.1} parent=11 // pred_fallthru
        _
      // Predicated region
      $region17: #{_rnn_cell_forward.1} parent=11 // pred_check
        %p219 = pneg %p133
      $region18: #{_rnn_cell_forward.1} parent=11 // pred_check_branch
        %221 = sbr.rel (%p219) target = $region20
      $region19: #{_rnn_cell_forward.1} parent=11 // pred_region
        _
      $region20: #{_rnn_cell_forward.1} parent=11 // pred_fallthru
        _
      // Predicated region
      $region21: #{_rnn_cell_forward.1} parent=11 // pred_check
        %p222 = pneg %p154
      $region22: #{_rnn_cell_forward.1} parent=11 // pred_check_branch
        %224 = sbr.rel (%p222) target = $region24
      $region23: #{_rnn_cell_forward.1} parent=11 // pred_region
        _
      $region24: #{_rnn_cell_forward.1} parent=11 // pred_fallthru
        _
      // Predicated region
      $region25: #{_rnn_cell_forward.1} parent=11 // pred_check
        %p225 = pneg %p175
      $region26: #{_rnn_cell_forward.1} parent=11 // pred_check_branch
        %227 = sbr.rel (%p225) target = $region28
      $region27: #{_rnn_cell_forward.1} parent=11 // pred_region
        _
      $region28: #{_rnn_cell_forward.1} parent=11 // pred_fallthru
        _
    $region12: #{_rnn_cell_forward.1} parent=5 // pred_fallthru
      _
    %p228 = scmp.lt.s32.totalorder %s13, 2
    // Predicated region
    $region29: #{_rnn_cell_forward.1} parent=5 // pred_check
      %p229 = pneg %p228
    $region30: #{_rnn_cell_forward.1} parent=5 // pred_check_branch
      %231 = sbr.rel (%p229) target = $region32
    $region31: #{_rnn_cell_forward.1} parent=5 // pred_region
      // Predicated region
      $region33: #{_rnn_cell_forward.1} parent=31 // pred_check
        %p232 = pneg %p33
      $region34: #{_rnn_cell_forward.1} parent=31 // pred_check_branch
        %234 = sbr.rel (%p232) target = $region36
      $region35: #{_rnn_cell_forward.1} parent=31 // pred_region
        %p235 = scmp.lt.s32.totalorder %s13, 1
        %s236 = scalar_select %p235, %s13, 1
        %s237 = smul.addr %s236, 4
        %s238 = scalar_lea.vmem %s0, %s237
      $region36: #{_rnn_cell_forward.1} parent=31 // pred_fallthru
        _
      // Predicated region
      $region37: #{_rnn_cell_forward.1} parent=31 // pred_check
        %p239 = pneg %p59
      $region38: #{_rnn_cell_forward.1} parent=31 // pred_check_branch
        %241 = sbr.rel (%p239) target = $region40
      $region39: #{_rnn_cell_forward.1} parent=31 // pred_region
        %p242 = scmp.lt.s32.totalorder %s13, 1
        %s243 = scalar_select %p242, %s13, 1
        %s244 = smul.addr %s243, 2
        %s245 = smul.addr %s244, 8
        %s246 = scalar_lea.vmem %s1, %s245
      $region40: #{_rnn_cell_forward.1} parent=31 // pred_fallthru
        _
      // Predicated region
      $region41: #{_rnn_cell_forward.1} parent=31 // pred_check
        %p247 = pneg %p85
      $region42: #{_rnn_cell_forward.1} parent=31 // pred_check_branch
        %249 = sbr.rel (%p247) target = $region44
      $region43: #{_rnn_cell_forward.1} parent=31 // pred_region
        %p250 = scmp.lt.s32.totalorder %s13, 1
        %s251 = scalar_select %p250, %s13, 1
        %s252 = scalar_lea.vmem %s2, %s251
      $region44: #{_rnn_cell_forward.1} parent=31 // pred_fallthru
        _
    $region32: #{_rnn_cell_forward.1} parent=5 // pred_fallthru
      _
    %p253 = scmp.le.s32.totalorder 1, %s13
    %p254 = scmp.lt.s32.totalorder %s13, 3
    %p255 = pnand %p253, %p254
    %p256 = pneg %p255
    // Predicated region
    $region45: #{_rnn_cell_forward.1} parent=5 // pred_check
      _
    $region46: #{_rnn_cell_forward.1} parent=5 // pred_check_branch
      %258 = sbr.rel (%p255) target = $region48
    $region47: #{_rnn_cell_forward.1} parent=5 // pred_region
      %s259 = ssub.s32 %s13, 1
      %p260 = scmp.lt.s32.totalorder %s18, 1
      %s261 = scalar_select %p260, %s18, 1
      %s262 = smul.addr %s261, 4
      %s263 = scalar_lea.vmem %s0, %s262
      %p264 = pneg %p39
      %p265 = pneg %p36
      %p266 = scmp.lt.s32.totalorder %s18, 1
      %s267 = scalar_select %p266, %s18, 1
      %s268 = smul.addr %s267, 2
      %s269 = smul.addr %s268, 8
      %s270 = scalar_lea.vmem %s1, %s269
      %p271 = pneg %p65
      %p272 = pneg %p62
      %p273 = scmp.lt.s32.totalorder %s18, 1
      %s274 = scalar_select %p273, %s18, 1
      %s275 = scalar_lea.vmem %s2, %s274
      %p276 = pneg %p91
      %p277 = pneg %p88
      %p278 = pneg %p112
      %p279 = pneg %p109
      %p280 = pneg %p133
      %p281 = pneg %p130
      %p282 = pneg %p154
      %p283 = pneg %p151
      %p284 = pneg %p175
      %p285 = pneg %p172
      %p286 = pneg %p201
      %p287 = pneg %p198
      %p288 = scmp.lt.s32.totalorder %s18, 1
      %s289 = scalar_select %p288, %s18, 1
      %s290 = smul.addr %s289, 2
      %s291 = smul.addr %s290, 8
      %s292 = scalar_lea.vmem %s7, %s291
      %p293 = scmp.lt.s32.totalorder %s18, 1
      %s294 = scalar_select %p293, %s18, 1
      %s295 = smul.addr %s294, 4
      %s296 = scalar_lea.vmem %s0, %s295
      %p297 = scmp.lt.s32.totalorder %s18, 1
      %s298 = scalar_select %p297, %s18, 1
      %s299 = smul.addr %s298, 2
      %s300 = smul.addr %s299, 8
      %s301 = scalar_lea.vmem %s1, %s300
      %p302 = scmp.lt.s32.totalorder %s18, 1
      %s303 = scalar_select %p302, %s18, 1
      %s304 = scalar_lea.vmem %s2, %s303
      %p305 = scmp.lt.s32.totalorder %s18, 1
      %s306 = scalar_select %p305, %s18, 1
      %s307 = smul.addr %s306, 2
      %s308 = smul.addr %s307, 8
      %s309 = scalar_lea.vmem %s7, %s308
      %v310 = vld [vmem:[%s296] sm:$0xf]
      %v311 = vld [vmem:[%s3] sm:$0xff]
      %v312 = vld [vmem:[%s4] sm:$0x1]
      %v314 = vlaneseq
      %v315 = vshrl.u32 %v314, 7
      %v316 = vsub.s32 0, %v315
      %v317 = vrot.slane %v312, %v316
      %vm319 = vcmask 64512
      %v321 = vsel %vm319, %v310, 0
      %323 = vmatprep.subr.mxu0 0.0
      %324 = vmatpush1.msra.mxu0 %v311
      %325 = vmatprep.subr.mxu0 0.0
      %326 = vmatpush1.msra.mxu0 0.0
      %327 = vmatprep.subr.mxu0 0.0
      %328 = vmatpush1.msra.mxu0 0.0
      %329 = vmatprep.subr.mxu0 0.0
      %330 = vmatpush1.msra.mxu0 0.0
      %331 = vmatprep.subr.mxu0 0.0
      %332 = vmatpush1.msra.mxu0 0.0
      %333 = vmatprep.subr.mxu0 0.0
      %334 = vmatpush1.msra.mxu0 0.0
      %335 = vmatprep.subr.mxu0 0.0
      %336 = vmatpush1.msra.mxu0 0.0
      %337 = vmatprep.subr.mxu0 0.0
      %338 = vmatpush1.msra.mxu0 0.0
      %339 = vmatprep.subr.mxu0 0.0
      %340 = vmatpush1.msra.mxu0 0.0
      %341 = vmatprep.subr.mxu0 0.0
      %342 = vmatpush1.msra.mxu0 0.0
      %343 = vmatprep.subr.mxu0 0.0
      %344 = vmatpush1.msra.mxu0 0.0
      %345 = vmatprep.subr.mxu0 0.0
      %346 = vmatpush1.msra.mxu0 0.0
      %347 = vmatprep.subr.mxu0 0.0
      %348 = vmatpush1.msra.mxu0 0.0
      %349 = vmatprep.subr.mxu0 0.0
      %350 = vmatpush1.msra.mxu0 0.0
      %351 = vmatprep.subr.mxu0 0.0
      %352 = vmatpush1.msra.mxu0 0.0
      %353 = vmatprep.subr.mxu0 0.0
      %354 = vmatpush1.msra.mxu0 0.0
      %355 = vmatprep.subr.mxu0 0.0
      %356 = vmatpush1.msra.mxu0 0.0
      %357 = vmatprep.subr.mxu0 0.0
      %358 = vmatpush1.msra.mxu0 0.0
      %359 = vmatprep.subr.mxu0 0.0
      %360 = vmatpush1.msra.mxu0 0.0
      %361 = vmatprep.subr.mxu0 0.0
      %362 = vmatpush1.msra.mxu0 0.0
      %363 = vmatprep.subr.mxu0 0.0
      %364 = vmatpush1.msra.mxu0 0.0
      %365 = vmatprep.subr.mxu0 0.0
      %366 = vmatpush1.msra.mxu0 0.0
      %367 = vmatprep.subr.mxu0 0.0
      %368 = vmatpush1.msra.mxu0 0.0
      %369 = vmatprep.subr.mxu0 0.0
      %370 = vmatpush1.msra.mxu0 0.0
      %371 = vmatprep.subr.mxu0 0.0
      %372 = vmatpush1.msra.mxu0 0.0
      %373 = vmatprep.subr.mxu0 0.0
      %374 = vmatpush1.msra.mxu0 0.0
      %375 = vmatprep.subr.mxu0 0.0
      %376 = vmatpush1.msra.mxu0 0.0
      %377 = vmatprep.subr.mxu0 0.0
      %378 = vmatpush1.msra.mxu0 0.0
      %379 = vmatprep.subr.mxu0 0.0
      %380 = vmatpush1.msra.mxu0 0.0
      %381 = vmatprep.subr.mxu0 0.0
      %382 = vmatpush1.msra.mxu0 0.0
      %383 = vmatprep.subr.mxu0 0.0
      %384 = vmatpush1.msra.mxu0 0.0
      %385 = vmatprep.subr.mxu0 0.0
      %386 = vmatpush1.msra.mxu0 0.0
      %387 = vmatprep.mubr.f32.mxu0 0.0
      %388 = vmatmul.mubr.f32.gmra.mrb[0].mxu0 %v321
      %v389 = vpop.f32.mrb[0].mxu0
      %v390 = vadd.f32 %v317, %v389
      %v391 = vpop.f32.mrb[0].mxu0
      %392 = vdwg.mxu0
      %v393 = vmax.f32 %v390, 0.0
      %v394 = vmin.f32 %v393, 6.0
      %s395 = scalar_lea.vmem %s3, 32
      %v396 = vld [vmem:[%s395] sm:$0xff]
      %v397 = vld [vmem:[%s395 + $0x8] sm:$0xff]
      %v398 = vld [vmem:[%s395 + $0x10] sm:$0xff]
      %v399 = vld [vmem:[%s395 + $0x18] sm:$0xff]
      %s400 = scalar_lea.vmem %s4, 1
      %v401 = vld [vmem:[%s400] sm:$0x1]
      %v403 = vlaneseq
      %v404 = vshrl.u32 %v403, 7
      %v405 = vsub.s32 0, %v404
      %v406 = vrot.slane %v401, %v405
      %vm408 = vcmask 261120
      %v410 = vsel %vm408, %v394, 0
      %412 = vmatprep.subr.mxu0 0.0
      %413 = vmatpush1.msra.mxu0 %v396
      %414 = vmatprep.subr.mxu0 0.0
      %415 = vmatpush1.msra.mxu0 %v397
      %416 = vmatprep.subr.mxu0 0.0
      %417 = vmatpush1.msra.mxu0 %v398
      %418 = vmatprep.subr.mxu0 0.0
      %419 = vmatpush1.msra.mxu0 %v399
      %420 = vmatprep.subr.mxu0 0.0
      %421 = vmatpush1.msra.mxu0 0.0
      %422 = vmatprep.subr.mxu0 0.0
      %423 = vmatpush1.msra.mxu0 0.0
      %424 = vmatprep.subr.mxu0 0.0
      %425 = vmatpush1.msra.mxu0 0.0
      %426 = vmatprep.subr.mxu0 0.0
      %427 = vmatpush1.msra.mxu0 0.0
      %428 = vmatprep.subr.mxu0 0.0
      %429 = vmatpush1.msra.mxu0 0.0
      %430 = vmatprep.subr.mxu0 0.0
      %431 = vmatpush1.msra.mxu0 0.0
      %432 = vmatprep.subr.mxu0 0.0
      %433 = vmatpush1.msra.mxu0 0.0
      %434 = vmatprep.subr.mxu0 0.0
      %435 = vmatpush1.msra.mxu0 0.0
      %436 = vmatprep.subr.mxu0 0.0
      %437 = vmatpush1.msra.mxu0 0.0
      %438 = vmatprep.subr.mxu0 0.0
      %439 = vmatpush1.msra.mxu0 0.0
      %440 = vmatprep.subr.mxu0 0.0
      %441 = vmatpush1.msra.mxu0 0.0
      %442 = vmatprep.subr.mxu0 0.0
      %443 = vmatpush1.msra.mxu0 0.0
      %444 = vmatprep.subr.mxu0 0.0
      %445 = vmatpush1.msra.mxu0 0.0
      %446 = vmatprep.subr.mxu0 0.0
      %447 = vmatpush1.msra.mxu0 0.0
      %448 = vmatprep.subr.mxu0 0.0
      %449 = vmatpush1.msra.mxu0 0.0
      %450 = vmatprep.subr.mxu0 0.0
      %451 = vmatpush1.msra.mxu0 0.0
      %452 = vmatprep.subr.mxu0 0.0
      %453 = vmatpush1.msra.mxu0 0.0
      %454 = vmatprep.subr.mxu0 0.0
      %455 = vmatpush1.msra.mxu0 0.0
      %456 = vmatprep.subr.mxu0 0.0
      %457 = vmatpush1.msra.mxu0 0.0
      %458 = vmatprep.subr.mxu0 0.0
      %459 = vmatpush1.msra.mxu0 0.0
      %460 = vmatprep.subr.mxu0 0.0
      %461 = vmatpush1.msra.mxu0 0.0
      %462 = vmatprep.subr.mxu0 0.0
      %463 = vmatpush1.msra.mxu0 0.0
      %464 = vmatprep.subr.mxu0 0.0
      %465 = vmatpush1.msra.mxu0 0.0
      %466 = vmatprep.subr.mxu0 0.0
      %467 = vmatpush1.msra.mxu0 0.0
      %468 = vmatprep.subr.mxu0 0.0
      %469 = vmatpush1.msra.mxu0 0.0
      %470 = vmatprep.subr.mxu0 0.0
      %471 = vmatpush1.msra.mxu0 0.0
      %472 = vmatprep.subr.mxu0 0.0
      %473 = vmatpush1.msra.mxu0 0.0
      %474 = vmatprep.subr.mxu0 0.0
      %475 = vmatpush1.msra.mxu0 0.0
      %476 = vmatprep.mubr.f32.mxu0 0.0
      %477 = vmatmul.mubr.f32.gmra.mrb[0].mxu0 %v410
      %v478 = vpop.f32.mrb[0].mxu0
      %v479 = vadd.f32 %v406, %v478
      %v480 = vpop.f32.mrb[0].mxu0
      %481 = vdwg.mxu0
      %v482 = vmax.f32 %v479, 0.0
      %v483 = vmin.f32 %v482, 6.0
      %s484 = scalar_lea.vmem %s3, 64
      %v485 = vld [vmem:[%s484] sm:$0xff]
      %v486 = vld [vmem:[%s484 + $0x8] sm:$0xff]
      %v487 = vld [vmem:[%s484 + $0x10] sm:$0xff]
      %v488 = vld [vmem:[%s484 + $0x18] sm:$0xff]
      %s489 = scalar_lea.vmem %s4, 2
      %v490 = vld [vmem:[%s489] sm:$0x1]
      %v492 = vlaneseq
      %v493 = vshrl.u32 %v492, 7
      %v494 = vsub.s32 0, %v493
      %v495 = vrot.slane %v490, %v494
      %v498 = vsel %vm408, %v483, 0
      %500 = vmatprep.subr.mxu0 0.0
      %501 = vmatpush1.msra.mxu0 %v485
      %502 = vmatprep.subr.mxu0 0.0
      %503 = vmatpush1.msra.mxu0 %v486
      %504 = vmatprep.subr.mxu0 0.0
      %505 = vmatpush1.msra.mxu0 %v487
      %506 = vmatprep.subr.mxu0 0.0
      %507 = vmatpush1.msra.mxu0 %v488
      %508 = vmatprep.subr.mxu0 0.0
      %509 = vmatpush1.msra.mxu0 0.0
      %510 = vmatprep.subr.mxu0 0.0
      %511 = vmatpush1.msra.mxu0 0.0
      %512 = vmatprep.subr.mxu0 0.0
      %513 = vmatpush1.msra.mxu0 0.0
      %514 = vmatprep.subr.mxu0 0.0
      %515 = vmatpush1.msra.mxu0 0.0
      %516 = vmatprep.subr.mxu0 0.0
      %517 = vmatpush1.msra.mxu0 0.0
      %518 = vmatprep.subr.mxu0 0.0
      %519 = vmatpush1.msra.mxu0 0.0
      %520 = vmatprep.subr.mxu0 0.0
      %521 = vmatpush1.msra.mxu0 0.0
      %522 = vmatprep.subr.mxu0 0.0
      %523 = vmatpush1.msra.mxu0 0.0
      %524 = vmatprep.subr.mxu0 0.0
      %525 = vmatpush1.msra.mxu0 0.0
      %526 = vmatprep.subr.mxu0 0.0
      %527 = vmatpush1.msra.mxu0 0.0
      %528 = vmatprep.subr.mxu0 0.0
      %529 = vmatpush1.msra.mxu0 0.0
      %530 = vmatprep.subr.mxu0 0.0
      %531 = vmatpush1.msra.mxu0 0.0
      %532 = vmatprep.subr.mxu0 0.0
      %533 = vmatpush1.msra.mxu0 0.0
      %534 = vmatprep.subr.mxu0 0.0
      %535 = vmatpush1.msra.mxu0 0.0
      %536 = vmatprep.subr.mxu0 0.0
      %537 = vmatpush1.msra.mxu0 0.0
      %538 = vmatprep.subr.mxu0 0.0
      %539 = vmatpush1.msra.mxu0 0.0
      %540 = vmatprep.subr.mxu0 0.0
      %541 = vmatpush1.msra.mxu0 0.0
      %542 = vmatprep.subr.mxu0 0.0
      %543 = vmatpush1.msra.mxu0 0.0
      %544 = vmatprep.subr.mxu0 0.0
      %545 = vmatpush1.msra.mxu0 0.0
      %546 = vmatprep.subr.mxu0 0.0
      %547 = vmatpush1.msra.mxu0 0.0
      %548 = vmatprep.subr.mxu0 0.0
      %549 = vmatpush1.msra.mxu0 0.0
      %550 = vmatprep.subr.mxu0 0.0
      %551 = vmatpush1.msra.mxu0 0.0
      %552 = vmatprep.subr.mxu0 0.0
      %553 = vmatpush1.msra.mxu0 0.0
      %554 = vmatprep.subr.mxu0 0.0
      %555 = vmatpush1.msra.mxu0 0.0
      %556 = vmatprep.subr.mxu0 0.0
      %557 = vmatpush1.msra.mxu0 0.0
      %558 = vmatprep.subr.mxu0 0.0
      %559 = vmatpush1.msra.mxu0 0.0
      %560 = vmatprep.subr.mxu0 0.0
      %561 = vmatpush1.msra.mxu0 0.0
      %562 = vmatprep.subr.mxu0 0.0
      %563 = vmatpush1.msra.mxu0 0.0
      %564 = vmatprep.mubr.f32.mxu0 0.0
      %565 = vmatmul.mubr.f32.gmra.mrb[0].mxu0 %v498
      %v566 = vpop.f32.mrb[0].mxu0
      %v567 = vadd.f32 %v495, %v566
      %v568 = vpop.f32.mrb[0].mxu0
      %569 = vdwg.mxu0
      %v570 = vmax.f32 %v567, 0.0
      %v571 = vmin.f32 %v570, 6.0
      %s572 = scalar_lea.vmem %s3, 96
      %v573 = vld [vmem:[%s572] sm:$0xff]
      %v574 = vld [vmem:[%s572 + $0x8] sm:$0xff]
      %v575 = vld [vmem:[%s572 + $0x10] sm:$0xff]
      %v576 = vld [vmem:[%s572 + $0x18] sm:$0xff]
      %s577 = scalar_lea.vmem %s4, 3
      %v578 = vld [vmem:[%s577] sm:$0x1]
      %v580 = vlaneseq
      %v581 = vshrl.u32 %v580, 7
      %v582 = vsub.s32 0, %v581
      %v583 = vrot.slane %v578, %v582
      %v586 = vsel %vm408, %v571, 0
      %588 = vmatprep.subr.mxu0 0.0
      %589 = vmatpush1.msra.mxu0 %v573
      %590 = vmatprep.subr.mxu0 0.0
      %591 = vmatpush1.msra.mxu0 %v574
      %592 = vmatprep.subr.mxu0 0.0
      %593 = vmatpush1.msra.mxu0 %v575
      %594 = vmatprep.subr.mxu0 0.0
      %595 = vmatpush1.msra.mxu0 %v576
      %596 = vmatprep.subr.mxu0 0.0
      %597 = vmatpush1.msra.mxu0 0.0
      %598 = vmatprep.subr.mxu0 0.0
      %599 = vmatpush1.msra.mxu0 0.0
      %600 = vmatprep.subr.mxu0 0.0
      %601 = vmatpush1.msra.mxu0 0.0
      %602 = vmatprep.subr.mxu0 0.0
      %603 = vmatpush1.msra.mxu0 0.0
      %604 = vmatprep.subr.mxu0 0.0
      %605 = vmatpush1.msra.mxu0 0.0
      %606 = vmatprep.subr.mxu0 0.0
      %607 = vmatpush1.msra.mxu0 0.0
      %608 = vmatprep.subr.mxu0 0.0
      %609 = vmatpush1.msra.mxu0 0.0
      %610 = vmatprep.subr.mxu0 0.0
      %611 = vmatpush1.msra.mxu0 0.0
      %612 = vmatprep.subr.mxu0 0.0
      %613 = vmatpush1.msra.mxu0 0.0
      %614 = vmatprep.subr.mxu0 0.0
      %615 = vmatpush1.msra.mxu0 0.0
      %616 = vmatprep.subr.mxu0 0.0
      %617 = vmatpush1.msra.mxu0 0.0
      %618 = vmatprep.subr.mxu0 0.0
      %619 = vmatpush1.msra.mxu0 0.0
      %620 = vmatprep.subr.mxu0 0.0
      %621 = vmatpush1.msra.mxu0 0.0
      %622 = vmatprep.subr.mxu0 0.0
      %623 = vmatpush1.msra.mxu0 0.0
      %624 = vmatprep.subr.mxu0 0.0
      %625 = vmatpush1.msra.mxu0 0.0
      %626 = vmatprep.subr.mxu0 0.0
      %627 = vmatpush1.msra.mxu0 0.0
      %628 = vmatprep.subr.mxu0 0.0
      %629 = vmatpush1.msra.mxu0 0.0
      %630 = vmatprep.subr.mxu0 0.0
      %631 = vmatpush1.msra.mxu0 0.0
      %632 = vmatprep.subr.mxu0 0.0
      %633 = vmatpush1.msra.mxu0 0.0
      %634 = vmatprep.subr.mxu0 0.0
      %635 = vmatpush1.msra.mxu0 0.0
      %636 = vmatprep.subr.mxu0 0.0
      %637 = vmatpush1.msra.mxu0 0.0
      %638 = vmatprep.subr.mxu0 0.0
      %639 = vmatpush1.msra.mxu0 0.0
      %640 = vmatprep.subr.mxu0 0.0
      %641 = vmatpush1.msra.mxu0 0.0
      %642 = vmatprep.subr.mxu0 0.0
      %643 = vmatpush1.msra.mxu0 0.0
      %644 = vmatprep.subr.mxu0 0.0
      %645 = vmatpush1.msra.mxu0 0.0
      %646 = vmatprep.subr.mxu0 0.0
      %647 = vmatpush1.msra.mxu0 0.0
      %648 = vmatprep.subr.mxu0 0.0
      %649 = vmatpush1.msra.mxu0 0.0
      %650 = vmatprep.subr.mxu0 0.0
      %651 = vmatpush1.msra.mxu0 0.0
      %652 = vmatprep.mubr.f32.mxu0 0.0
      %653 = vmatmul.mubr.f32.gmra.mrb[0].mxu0 %v586
      %v654 = vpop.f32.mrb[0].mxu0
      %v655 = vadd.f32 %v583, %v654
      %v656 = vpop.f32.mrb[0].mxu0
      %657 = vdwg.mxu0
      %v658 = vmax.f32 %v655, 0.0
      %v659 = vmin.f32 %v658, 6.0
      %s660 = scalar_lea.vmem %s3, 128
      %v661 = vld [vmem:[%s660] sm:$0xff]
      %v662 = vld [vmem:[%s660 + $0x8] sm:$0xff]
      %v663 = vld [vmem:[%s660 + $0x10] sm:$0xff]
      %v664 = vld [vmem:[%s660 + $0x18] sm:$0xff]
      %s665 = scalar_lea.vmem %s4, 4
      %v666 = vld [vmem:[%s665] sm:$0x1]
      %v668 = vlaneseq
      %v669 = vshrl.u32 %v668, 7
      %v670 = vsub.s32 0, %v669
      %v671 = vrot.slane %v666, %v670
      %v674 = vsel %vm408, %v659, 0
      %676 = vmatprep.subr.mxu0 0.0
      %677 = vmatpush1.msra.mxu0 %v661
      %678 = vmatprep.subr.mxu0 0.0
      %679 = vmatpush1.msra.mxu0 %v662
      %680 = vmatprep.subr.mxu0 0.0
      %681 = vmatpush1.msra.mxu0 %v663
      %682 = vmatprep.subr.mxu0 0.0
      %683 = vmatpush1.msra.mxu0 %v664
      %684 = vmatprep.subr.mxu0 0.0
      %685 = vmatpush1.msra.mxu0 0.0
      %686 = vmatprep.subr.mxu0 0.0
      %687 = vmatpush1.msra.mxu0 0.0
      %688 = vmatprep.subr.mxu0 0.0
      %689 = vmatpush1.msra.mxu0 0.0
      %690 = vmatprep.subr.mxu0 0.0
      %691 = vmatpush1.msra.mxu0 0.0
      %692 = vmatprep.subr.mxu0 0.0
      %693 = vmatpush1.msra.mxu0 0.0
      %694 = vmatprep.subr.mxu0 0.0
      %695 = vmatpush1.msra.mxu0 0.0
      %696 = vmatprep.subr.mxu0 0.0
      %697 = vmatpush1.msra.mxu0 0.0
      %698 = vmatprep.subr.mxu0 0.0
      %699 = vmatpush1.msra.mxu0 0.0
      %700 = vmatprep.subr.mxu0 0.0
      %701 = vmatpush1.msra.mxu0 0.0
      %702 = vmatprep.subr.mxu0 0.0
      %703 = vmatpush1.msra.mxu0 0.0
      %704 = vmatprep.subr.mxu0 0.0
      %705 = vmatpush1.msra.mxu0 0.0
      %706 = vmatprep.subr.mxu0 0.0
      %707 = vmatpush1.msra.mxu0 0.0
      %708 = vmatprep.subr.mxu0 0.0
      %709 = vmatpush1.msra.mxu0 0.0
      %710 = vmatprep.subr.mxu0 0.0
      %711 = vmatpush1.msra.mxu0 0.0
      %712 = vmatprep.subr.mxu0 0.0
      %713 = vmatpush1.msra.mxu0 0.0
      %714 = vmatprep.subr.mxu0 0.0
      %715 = vmatpush1.msra.mxu0 0.0
      %716 = vmatprep.subr.mxu0 0.0
      %717 = vmatpush1.msra.mxu0 0.0
      %718 = vmatprep.subr.mxu0 0.0
      %719 = vmatpush1.msra.mxu0 0.0
      %720 = vmatprep.subr.mxu0 0.0
      %721 = vmatpush1.msra.mxu0 0.0
      %722 = vmatprep.subr.mxu0 0.0
      %723 = vmatpush1.msra.mxu0 0.0
      %724 = vmatprep.subr.mxu0 0.0
      %725 = vmatpush1.msra.mxu0 0.0
      %726 = vmatprep.subr.mxu0 0.0
      %727 = vmatpush1.msra.mxu0 0.0
      %728 = vmatprep.subr.mxu0 0.0
      %729 = vmatpush1.msra.mxu0 0.0
      %730 = vmatprep.subr.mxu0 0.0
      %731 = vmatpush1.msra.mxu0 0.0
      %732 = vmatprep.subr.mxu0 0.0
      %733 = vmatpush1.msra.mxu0 0.0
      %734 = vmatprep.subr.mxu0 0.0
      %735 = vmatpush1.msra.mxu0 0.0
      %736 = vmatprep.subr.mxu0 0.0
      %737 = vmatpush1.msra.mxu0 0.0
      %738 = vmatprep.subr.mxu0 0.0
      %739 = vmatpush1.msra.mxu0 0.0
      %740 = vmatprep.mubr.f32.mxu0 0.0
      %741 = vmatmul.mubr.f32.gmra.mrb[0].mxu0 %v674
      %v742 = vpop.f32.mrb[0].mxu0
      %v743 = vadd.f32 %v671, %v742
      %v744 = vpop.f32.mrb[0].mxu0
      %745 = vdwg.mxu0
      %v746 = vmax.f32 %v743, 0.0
      %v747 = vmin.f32 %v746, 6.0
      %s748 = scalar_lea.vmem %s3, 160
      %v749 = vld [vmem:[%s748] sm:$0xff]
      %v750 = vld [vmem:[%s748 + $0x8] sm:$0xff]
      %v751 = vld [vmem:[%s748 + $0x10] sm:$0xff]
      %v752 = vld [vmem:[%s748 + $0x18] sm:$0xff]
      %s753 = scalar_lea.vmem %s4, 5
      %v754 = vld [vmem:[%s753] sm:$0x1]
      %v756 = vlaneseq
      %v757 = vshrl.u32 %v756, 7
      %v758 = vsub.s32 0, %v757
      %v759 = vrot.slane %v754, %v758
      %v762 = vsel %vm408, %v747, 0
      %764 = vmatprep.subr.mxu0 0.0
      %765 = vmatpush1.msra.mxu0 %v749
      %766 = vmatprep.subr.mxu0 0.0
      %767 = vmatpush1.msra.mxu0 %v750
      %768 = vmatprep.subr.mxu0 0.0
      %769 = vmatpush1.msra.mxu0 %v751
      %770 = vmatprep.subr.mxu0 0.0
      %771 = vmatpush1.msra.mxu0 %v752
      %772 = vmatprep.subr.mxu0 0.0
      %773 = vmatpush1.msra.mxu0 0.0
      %774 = vmatprep.subr.mxu0 0.0
      %775 = vmatpush1.msra.mxu0 0.0
      %776 = vmatprep.subr.mxu0 0.0
      %777 = vmatpush1.msra.mxu0 0.0
      %778 = vmatprep.subr.mxu0 0.0
      %779 = vmatpush1.msra.mxu0 0.0
      %780 = vmatprep.subr.mxu0 0.0
      %781 = vmatpush1.msra.mxu0 0.0
      %782 = vmatprep.subr.mxu0 0.0
      %783 = vmatpush1.msra.mxu0 0.0
      %784 = vmatprep.subr.mxu0 0.0
      %785 = vmatpush1.msra.mxu0 0.0
      %786 = vmatprep.subr.mxu0 0.0
      %787 = vmatpush1.msra.mxu0 0.0
      %788 = vmatprep.subr.mxu0 0.0
      %789 = vmatpush1.msra.mxu0 0.0
      %790 = vmatprep.subr.mxu0 0.0
      %791 = vmatpush1.msra.mxu0 0.0
      %792 = vmatprep.subr.mxu0 0.0
      %793 = vmatpush1.msra.mxu0 0.0
      %794 = vmatprep.subr.mxu0 0.0
      %795 = vmatpush1.msra.mxu0 0.0
      %796 = vmatprep.subr.mxu0 0.0
      %797 = vmatpush1.msra.mxu0 0.0
      %798 = vmatprep.subr.mxu0 0.0
      %799 = vmatpush1.msra.mxu0 0.0
      %800 = vmatprep.subr.mxu0 0.0
      %801 = vmatpush1.msra.mxu0 0.0
      %802 = vmatprep.subr.mxu0 0.0
      %803 = vmatpush1.msra.mxu0 0.0
      %804 = vmatprep.subr.mxu0 0.0
      %805 = vmatpush1.msra.mxu0 0.0
      %806 = vmatprep.subr.mxu0 0.0
      %807 = vmatpush1.msra.mxu0 0.0
      %808 = vmatprep.subr.mxu0 0.0
      %809 = vmatpush1.msra.mxu0 0.0
      %810 = vmatprep.subr.mxu0 0.0
      %811 = vmatpush1.msra.mxu0 0.0
      %812 = vmatprep.subr.mxu0 0.0
      %813 = vmatpush1.msra.mxu0 0.0
      %814 = vmatprep.subr.mxu0 0.0
      %815 = vmatpush1.msra.mxu0 0.0
      %816 = vmatprep.subr.mxu0 0.0
      %817 = vmatpush1.msra.mxu0 0.0
      %818 = vmatprep.subr.mxu0 0.0
      %819 = vmatpush1.msra.mxu0 0.0
      %820 = vmatprep.subr.mxu0 0.0
      %821 = vmatpush1.msra.mxu0 0.0
      %822 = vmatprep.subr.mxu0 0.0
      %823 = vmatpush1.msra.mxu0 0.0
      %824 = vmatprep.subr.mxu0 0.0
      %825 = vmatpush1.msra.mxu0 0.0
      %826 = vmatprep.subr.mxu0 0.0
      %827 = vmatpush1.msra.mxu0 0.0
      %828 = vmatprep.mubr.f32.mxu0 0.0
      %829 = vmatmul.mubr.f32.gmra.mrb[0].mxu0 %v762
      %v830 = vpop.f32.mrb[0].mxu0
      %v831 = vadd.f32 %v759, %v830
      %v832 = vpop.f32.mrb[0].mxu0
      %833 = vdwg.mxu0
      %v834 = vmax.f32 %v831, 0.0
      %v835 = vmin.f32 %v834, 6.0
      %s836 = scalar_lea.vmem %s3, 192
      %v837 = vld [vmem:[%s836] sm:$0xff]
      %v838 = vld [vmem:[%s836 + $0x8] sm:$0xff]
      %v839 = vld [vmem:[%s836 + $0x10] sm:$0xff]
      %v840 = vld [vmem:[%s836 + $0x18] sm:$0xff]
      %s841 = scalar_lea.vmem %s4, 6
      %v842 = vld [vmem:[%s841] sm:$0x1]
      %v844 = vlaneseq
      %v845 = vshrl.u32 %v844, 7
      %v846 = vsub.s32 0, %v845
      %v847 = vrot.slane %v842, %v846
      %v850 = vsel %vm408, %v835, 0
      %852 = vmatprep.subr.mxu0 0.0
      %853 = vmatpush1.msra.mxu0 %v837
      %854 = vmatprep.subr.mxu0 0.0
      %855 = vmatpush1.msra.mxu0 %v838
      %856 = vmatprep.subr.mxu0 0.0
      %857 = vmatpush1.msra.mxu0 %v839
      %858 = vmatprep.subr.mxu0 0.0
      %859 = vmatpush1.msra.mxu0 %v840
      %860 = vmatprep.subr.mxu0 0.0
      %861 = vmatpush1.msra.mxu0 0.0
      %862 = vmatprep.subr.mxu0 0.0
      %863 = vmatpush1.msra.mxu0 0.0
      %864 = vmatprep.subr.mxu0 0.0
      %865 = vmatpush1.msra.mxu0 0.0
      %866 = vmatprep.subr.mxu0 0.0
      %867 = vmatpush1.msra.mxu0 0.0
      %868 = vmatprep.subr.mxu0 0.0
      %869 = vmatpush1.msra.mxu0 0.0
      %870 = vmatprep.subr.mxu0 0.0
      %871 = vmatpush1.msra.mxu0 0.0
      %872 = vmatprep.subr.mxu0 0.0
      %873 = vmatpush1.msra.mxu0 0.0
      %874 = vmatprep.subr.mxu0 0.0
      %875 = vmatpush1.msra.mxu0 0.0
      %876 = vmatprep.subr.mxu0 0.0
      %877 = vmatpush1.msra.mxu0 0.0
      %878 = vmatprep.subr.mxu0 0.0
      %879 = vmatpush1.msra.mxu0 0.0
      %880 = vmatprep.subr.mxu0 0.0
      %881 = vmatpush1.msra.mxu0 0.0
      %882 = vmatprep.subr.mxu0 0.0
      %883 = vmatpush1.msra.mxu0 0.0
      %884 = vmatprep.subr.mxu0 0.0
      %885 = vmatpush1.msra.mxu0 0.0
      %886 = vmatprep.subr.mxu0 0.0
      %887 = vmatpush1.msra.mxu0 0.0
      %888 = vmatprep.subr.mxu0 0.0
      %889 = vmatpush1.msra.mxu0 0.0
      %890 = vmatprep.subr.mxu0 0.0
      %891 = vmatpush1.msra.mxu0 0.0
      %892 = vmatprep.subr.mxu0 0.0
      %893 = vmatpush1.msra.mxu0 0.0
      %894 = vmatprep.subr.mxu0 0.0
      %895 = vmatpush1.msra.mxu0 0.0
      %896 = vmatprep.subr.mxu0 0.0
      %897 = vmatpush1.msra.mxu0 0.0
      %898 = vmatprep.subr.mxu0 0.0
      %899 = vmatpush1.msra.mxu0 0.0
      %900 = vmatprep.subr.mxu0 0.0
      %901 = vmatpush1.msra.mxu0 0.0
      %902 = vmatprep.subr.mxu0 0.0
      %903 = vmatpush1.msra.mxu0 0.0
      %904 = vmatprep.subr.mxu0 0.0
      %905 = vmatpush1.msra.mxu0 0.0
      %906 = vmatprep.subr.mxu0 0.0
      %907 = vmatpush1.msra.mxu0 0.0
      %908 = vmatprep.subr.mxu0 0.0
      %909 = vmatpush1.msra.mxu0 0.0
      %910 = vmatprep.subr.mxu0 0.0
      %911 = vmatpush1.msra.mxu0 0.0
      %912 = vmatprep.subr.mxu0 0.0
      %913 = vmatpush1.msra.mxu0 0.0
      %914 = vmatprep.subr.mxu0 0.0
      %915 = vmatpush1.msra.mxu0 0.0
      %916 = vmatprep.mubr.f32.mxu0 0.0
      %917 = vmatmul.mubr.f32.gmra.mrb[0].mxu0 %v850
      %v918 = vpop.f32.mrb[0].mxu0
      %v919 = vadd.f32 %v847, %v918
      %v920 = vpop.f32.mrb[0].mxu0
      %921 = vdwg.mxu0
      %v922 = vmax.f32 %v919, 0.0
      %v923 = vmin.f32 %v922, 6.0
      %s924 = scalar_lea.vmem %s3, 224
      %v925 = vld [vmem:[%s924] sm:$0xff]
      %v926 = vld [vmem:[%s924 + $0x8] sm:$0xff]
      %v927 = vld [vmem:[%s924 + $0x10] sm:$0xff]
      %v928 = vld [vmem:[%s924 + $0x18] sm:$0xff]
      %s929 = scalar_lea.vmem %s4, 7
      %v930 = vld [vmem:[%s929] sm:$0x1]
      %v932 = vlaneseq
      %v933 = vshrl.u32 %v932, 7
      %v934 = vsub.s32 0, %v933
      %v935 = vrot.slane %v930, %v934
      %v938 = vsel %vm408, %v923, 0
      %940 = vmatprep.subr.mxu0 0.0
      %941 = vmatpush1.msra.mxu0 %v925
      %942 = vmatprep.subr.mxu0 0.0
      %943 = vmatpush1.msra.mxu0 %v926
      %944 = vmatprep.subr.mxu0 0.0
      %945 = vmatpush1.msra.mxu0 %v927
      %946 = vmatprep.subr.mxu0 0.0
      %947 = vmatpush1.msra.mxu0 %v928
      %948 = vmatprep.subr.mxu0 0.0
      %949 = vmatpush1.msra.mxu0 0.0
      %950 = vmatprep.subr.mxu0 0.0
      %951 = vmatpush1.msra.mxu0 0.0
      %952 = vmatprep.subr.mxu0 0.0
      %953 = vmatpush1.msra.mxu0 0.0
      %954 = vmatprep.subr.mxu0 0.0
      %955 = vmatpush1.msra.mxu0 0.0
      %956 = vmatprep.subr.mxu0 0.0
      %957 = vmatpush1.msra.mxu0 0.0
      %958 = vmatprep.subr.mxu0 0.0
      %959 = vmatpush1.msra.mxu0 0.0
      %960 = vmatprep.subr.mxu0 0.0
      %961 = vmatpush1.msra.mxu0 0.0
      %962 = vmatprep.subr.mxu0 0.0
      %963 = vmatpush1.msra.mxu0 0.0
      %964 = vmatprep.subr.mxu0 0.0
      %965 = vmatpush1.msra.mxu0 0.0
      %966 = vmatprep.subr.mxu0 0.0
      %967 = vmatpush1.msra.mxu0 0.0
      %968 = vmatprep.subr.mxu0 0.0
      %969 = vmatpush1.msra.mxu0 0.0
      %970 = vmatprep.subr.mxu0 0.0
      %971 = vmatpush1.msra.mxu0 0.0
      %972 = vmatprep.subr.mxu0 0.0
      %973 = vmatpush1.msra.mxu0 0.0
      %974 = vmatprep.subr.mxu0 0.0
      %975 = vmatpush1.msra.mxu0 0.0
      %976 = vmatprep.subr.mxu0 0.0
      %977 = vmatpush1.msra.mxu0 0.0
      %978 = vmatprep.subr.mxu0 0.0
      %979 = vmatpush1.msra.mxu0 0.0
      %980 = vmatprep.subr.mxu0 0.0
      %981 = vmatpush1.msra.mxu0 0.0
      %982 = vmatprep.subr.mxu0 0.0
      %983 = vmatpush1.msra.mxu0 0.0
      %984 = vmatprep.subr.mxu0 0.0
      %985 = vmatpush1.msra.mxu0 0.0
      %986 = vmatprep.subr.mxu0 0.0
      %987 = vmatpush1.msra.mxu0 0.0
      %988 = vmatprep.subr.mxu0 0.0
      %989 = vmatpush1.msra.mxu0 0.0
      %990 = vmatprep.subr.mxu0 0.0
      %991 = vmatpush1.msra.mxu0 0.0
      %992 = vmatprep.subr.mxu0 0.0
      %993 = vmatpush1.msra.mxu0 0.0
      %994 = vmatprep.subr.mxu0 0.0
      %995 = vmatpush1.msra.mxu0 0.0
      %996 = vmatprep.subr.mxu0 0.0
      %997 = vmatpush1.msra.mxu0 0.0
      %998 = vmatprep.subr.mxu0 0.0
      %999 = vmatpush1.msra.mxu0 0.0
      %1000 = vmatprep.subr.mxu0 0.0
      %1001 = vmatpush1.msra.mxu0 0.0
      %1002 = vmatprep.subr.mxu0 0.0
      %1003 = vmatpush1.msra.mxu0 0.0
      %1004 = vmatprep.mubr.f32.mxu0 0.0
      %1005 = vmatmul.mubr.f32.gmra.mrb[0].mxu0 %v938
      %v1006 = vpop.f32.mrb[0].mxu0
      %v1007 = vadd.f32 %v935, %v1006
      %v1008 = vpop.f32.mrb[0].mxu0
      %1009 = vdwg.mxu0
      %v1010 = vld [vmem:[%s5] sm:$0xff]
      %v1011 = vld [vmem:[%s5 + $0x8] sm:$0xff]
      %v1012 = vld [vmem:[%s6] sm:$0xff]
      %v1013 = vld [vmem:[%s6 + $0x8] sm:$0xff]
      %1015 = vset.pattern.permute.xlu0 0
      %1016 = vperm.xlu0 %1015, %v1012
      %v1017 = vpop.permute.xlu0 %1016
      %1020 = vset.pattern.permute.xlu0 0
      %1021 = vperm.xlu0 %1020, %v1013
      %v1022 = vpop.permute.xlu0 %1021
      %vm1024 = vcmask 31744
      %v1026 = vsel %vm1024, %v1010, 0
      %v1029 = vsel %vm1024, %v1011, 0
      %vm1031 = vcmask 1043456
      %v1033 = vsel %vm1031, %v1007, 0
      %1035 = vmatprep.subr.mxu0 0.0
      %1036 = vmatpush1.msra.mxu0 %v1033
      %1037 = vmatprep.subr.mxu0 0.0
      %1038 = vmatpush1.msra.mxu0 0.0
      %1039 = vmatprep.subr.mxu0 0.0
      %1040 = vmatpush1.msra.mxu0 0.0
      %1041 = vmatprep.subr.mxu0 0.0
      %1042 = vmatpush1.msra.mxu0 0.0
      %1043 = vmatprep.subr.mxu0 0.0
      %1044 = vmatpush1.msra.mxu0 0.0
      %1045 = vmatprep.subr.mxu0 0.0
      %1046 = vmatpush1.msra.mxu0 0.0
      %1047 = vmatprep.subr.mxu0 0.0
      %1048 = vmatpush1.msra.mxu0 0.0
      %1049 = vmatprep.subr.mxu0 0.0
      %1050 = vmatpush1.msra.mxu0 0.0
      %1051 = vmatprep.subr.mxu0 0.0
      %1052 = vmatpush1.msra.mxu0 0.0
      %1053 = vmatprep.subr.mxu0 0.0
      %1054 = vmatpush1.msra.mxu0 0.0
      %1055 = vmatprep.subr.mxu0 0.0
      %1056 = vmatpush1.msra.mxu0 0.0
      %1057 = vmatprep.subr.mxu0 0.0
      %1058 = vmatpush1.msra.mxu0 0.0
      %1059 = vmatprep.subr.mxu0 0.0
      %1060 = vmatpush1.msra.mxu0 0.0
      %1061 = vmatprep.subr.mxu0 0.0
      %1062 = vmatpush1.msra.mxu0 0.0
      %1063 = vmatprep.subr.mxu0 0.0
      %1064 = vmatpush1.msra.mxu0 0.0
      %1065 = vmatprep.subr.mxu0 0.0
      %1066 = vmatpush1.msra.mxu0 0.0
      %1067 = vmatprep.subr.mxu0 0.0
      %1068 = vmatpush1.msra.mxu0 0.0
      %1069 = vmatprep.subr.mxu0 0.0
      %1070 = vmatpush1.msra.mxu0 0.0
      %1071 = vmatprep.subr.mxu0 0.0
      %1072 = vmatpush1.msra.mxu0 0.0
      %1073 = vmatprep.subr.mxu0 0.0
      %1074 = vmatpush1.msra.mxu0 0.0
      %1075 = vmatprep.subr.mxu0 0.0
      %1076 = vmatpush1.msra.mxu0 0.0
      %1077 = vmatprep.subr.mxu0 0.0
      %1078 = vmatpush1.msra.mxu0 0.0
      %1079 = vmatprep.subr.mxu0 0.0
      %1080 = vmatpush1.msra.mxu0 0.0
      %1081 = vmatprep.subr.mxu0 0.0
      %1082 = vmatpush1.msra.mxu0 0.0
      %1083 = vmatprep.subr.mxu0 0.0
      %1084 = vmatpush1.msra.mxu0 0.0
      %1085 = vmatprep.subr.mxu0 0.0
      %1086 = vmatpush1.msra.mxu0 0.0
      %1087 = vmatprep.subr.mxu0 0.0
      %1088 = vmatpush1.msra.mxu0 0.0
      %1089 = vmatprep.subr.mxu0 0.0
      %1090 = vmatpush1.msra.mxu0 0.0
      %1091 = vmatprep.subr.mxu0 0.0
      %1092 = vmatpush1.msra.mxu0 0.0
      %1093 = vmatprep.subr.mxu0 0.0
      %1094 = vmatpush1.msra.mxu0 0.0
      %1095 = vmatprep.subr.mxu0 0.0
      %1096 = vmatpush1.msra.mxu0 0.0
      %1097 = vmatprep.subr.mxu0 0.0
      %1098 = vmatpush1.msra.mxu0 0.0
      %1099 = vmatprep.mubr.f32.mxu0 0.0
      %1100 = vmatmul.mubr.f32.gmra.mrb[0].mxu0 %v1026
      %v1101 = vpop.f32.mrb[0].mxu0
      %v1102 = vadd.f32 %v1017, %v1101
      %v1103 = vpop.f32.mrb[0].mxu0
      %1104 = vmatprep.mubr.f32.mxu0 0.0
      %1105 = vmatmul.mubr.f32.gmra.mrb[0].mxu0 %v1029
      %v1106 = vpop.f32.mrb[0].mxu0
      %v1107 = vadd.f32 %v1022, %v1106
      %v1108 = vpop.f32.mrb[0].mxu0
      %1109 = vdwg.mxu0
      %v1110 = vmax.f32 %v1102, 0.0
      %v1111 = vmax.f32 %v1107, 0.0
      %v1112 = vmin.f32 %v1110, 6.0
      %v1113 = vmin.f32 %v1111, 6.0
      %s1114 = scalar_lea.vmem %s5, 16
      %v1115 = vld [vmem:[%s1114] sm:$0xff]
      %v1116 = vld [vmem:[%s1114 + $0x8] sm:$0xff]
      %s1117 = scalar_lea.vmem %s6, 16
      %v1118 = vld [vmem:[%s1117] sm:$0xff]
      %v1119 = vld [vmem:[%s1117 + $0x8] sm:$0xff]
      %1121 = vset.pattern.permute.xlu0 0
      %1122 = vperm.xlu0 %1121, %v1118
      %v1123 = vpop.permute.xlu0 %1122
      %1126 = vset.pattern.permute.xlu0 0
      %1127 = vperm.xlu0 %1126, %v1119
      %v1128 = vpop.permute.xlu0 %1127
      %vm1130 = vcmask 130048
      %v1132 = vsel %vm1130, %v1115, 0
      %v1135 = vsel %vm1130, %v1116, 0
      %1137 = vmatprep.subr.mxu0 0.0
      %1138 = vmatpush1.msra.mxu0 %v1112
      %1139 = vmatprep.subr.mxu0 0.0
      %1140 = vmatpush1.msra.mxu0 %v1113
      %1141 = vmatprep.subr.mxu0 0.0
      %1142 = vmatpush1.msra.mxu0 0.0
      %1143 = vmatprep.subr.mxu0 0.0
      %1144 = vmatpush1.msra.mxu0 0.0
      %1145 = vmatprep.subr.mxu0 0.0
      %1146 = vmatpush1.msra.mxu0 0.0
      %1147 = vmatprep.subr.mxu0 0.0
      %1148 = vmatpush1.msra.mxu0 0.0
      %1149 = vmatprep.subr.mxu0 0.0
      %1150 = vmatpush1.msra.mxu0 0.0
      %1151 = vmatprep.subr.mxu0 0.0
      %1152 = vmatpush1.msra.mxu0 0.0
      %1153 = vmatprep.subr.mxu0 0.0
      %1154 = vmatpush1.msra.mxu0 0.0
      %1155 = vmatprep.subr.mxu0 0.0
      %1156 = vmatpush1.msra.mxu0 0.0
      %1157 = vmatprep.subr.mxu0 0.0
      %1158 = vmatpush1.msra.mxu0 0.0
      %1159 = vmatprep.subr.mxu0 0.0
      %1160 = vmatpush1.msra.mxu0 0.0
      %1161 = vmatprep.subr.mxu0 0.0
      %1162 = vmatpush1.msra.mxu0 0.0
      %1163 = vmatprep.subr.mxu0 0.0
      %1164 = vmatpush1.msra.mxu0 0.0
      %1165 = vmatprep.subr.mxu0 0.0
      %1166 = vmatpush1.msra.mxu0 0.0
      %1167 = vmatprep.subr.mxu0 0.0
      %1168 = vmatpush1.msra.mxu0 0.0
      %1169 = vmatprep.subr.mxu0 0.0
      %1170 = vmatpush1.msra.mxu0 0.0
      %1171 = vmatprep.subr.mxu0 0.0
      %1172 = vmatpush1.msra.mxu0 0.0
      %1173 = vmatprep.subr.mxu0 0.0
      %1174 = vmatpush1.msra.mxu0 0.0
      %1175 = vmatprep.subr.mxu0 0.0
      %1176 = vmatpush1.msra.mxu0 0.0
      %1177 = vmatprep.subr.mxu0 0.0
      %1178 = vmatpush1.msra.mxu0 0.0
      %1179 = vmatprep.subr.mxu0 0.0
      %1180 = vmatpush1.msra.mxu0 0.0
      %1181 = vmatprep.subr.mxu0 0.0
      %1182 = vmatpush1.msra.mxu0 0.0
      %1183 = vmatprep.subr.mxu0 0.0
      %1184 = vmatpush1.msra.mxu0 0.0
      %1185 = vmatprep.subr.mxu0 0.0
      %1186 = vmatpush1.msra.mxu0 0.0
      %1187 = vmatprep.subr.mxu0 0.0
      %1188 = vmatpush1.msra.mxu0 0.0
      %1189 = vmatprep.subr.mxu0 0.0
      %1190 = vmatpush1.msra.mxu0 0.0
      %1191 = vmatprep.subr.mxu0 0.0
      %1192 = vmatpush1.msra.mxu0 0.0
      %1193 = vmatprep.subr.mxu0 0.0
      %1194 = vmatpush1.msra.mxu0 0.0
      %1195 = vmatprep.subr.mxu0 0.0
      %1196 = vmatpush1.msra.mxu0 0.0
      %1197 = vmatprep.subr.mxu0 0.0
      %1198 = vmatpush1.msra.mxu0 0.0
      %1199 = vmatprep.subr.mxu0 0.0
      %1200 = vmatpush1.msra.mxu0 0.0
      %1201 = vmatprep.mubr.f32.mxu0 0.0
      %1202 = vmatmul.mubr.f32.gmra.mrb[0].mxu0 %v1132
      %v1203 = vpop.f32.mrb[0].mxu0
      %v1204 = vadd.f32 %v1123, %v1203
      %v1205 = vpop.f32.mrb[0].mxu0
      %1206 = vmatprep.mubr.f32.mxu0 0.0
      %1207 = vmatmul.mubr.f32.gmra.mrb[0].mxu0 %v1135
      %v1208 = vpop.f32.mrb[0].mxu0
      %v1209 = vadd.f32 %v1128, %v1208
      %v1210 = vpop.f32.mrb[0].mxu0
      %1211 = vdwg.mxu0
      %v1212 = vmax.f32 %v1204, 0.0
      %v1213 = vmax.f32 %v1209, 0.0
      %v1214 = vmin.f32 %v1212, 6.0
      %v1215 = vmin.f32 %v1213, 6.0
      %s1216 = scalar_lea.vmem %s5, 32
      %v1217 = vld [vmem:[%s1216] sm:$0xff]
      %v1218 = vld [vmem:[%s1216 + $0x8] sm:$0xff]
      %s1219 = scalar_lea.vmem %s6, 32
      %v1220 = vld [vmem:[%s1219] sm:$0xff]
      %v1221 = vld [vmem:[%s1219 + $0x8] sm:$0xff]
      %1223 = vset.pattern.permute.xlu0 0
      %1224 = vperm.xlu0 %1223, %v1220
      %v1225 = vpop.permute.xlu0 %1224
      %1228 = vset.pattern.permute.xlu0 0
      %1229 = vperm.xlu0 %1228, %v1221
      %v1230 = vpop.permute.xlu0 %1229
      %v1233 = vsel %vm1130, %v1217, 0
      %v1236 = vsel %vm1130, %v1218, 0
      %1238 = vmatprep.subr.mxu0 0.0
      %1239 = vmatpush1.msra.mxu0 %v1214
      %1240 = vmatprep.subr.mxu0 0.0
      %1241 = vmatpush1.msra.mxu0 %v1215
      %1242 = vmatprep.subr.mxu0 0.0
      %1243 = vmatpush1.msra.mxu0 0.0
      %1244 = vmatprep.subr.mxu0 0.0
      %1245 = vmatpush1.msra.mxu0 0.0
      %1246 = vmatprep.subr.mxu0 0.0
      %1247 = vmatpush1.msra.mxu0 0.0
      %1248 = vmatprep.subr.mxu0 0.0
      %1249 = vmatpush1.msra.mxu0 0.0
      %1250 = vmatprep.subr.mxu0 0.0
      %1251 = vmatpush1.msra.mxu0 0.0
      %1252 = vmatprep.subr.mxu0 0.0
      %1253 = vmatpush1.msra.mxu0 0.0
      %1254 = vmatprep.subr.mxu0 0.0
      %1255 = vmatpush1.msra.mxu0 0.0
      %1256 = vmatprep.subr.mxu0 0.0
      %1257 = vmatpush1.msra.mxu0 0.0
      %1258 = vmatprep.subr.mxu0 0.0
      %1259 = vmatpush1.msra.mxu0 0.0
      %1260 = vmatprep.subr.mxu0 0.0
      %1261 = vmatpush1.msra.mxu0 0.0
      %1262 = vmatprep.subr.mxu0 0.0
      %1263 = vmatpush1.msra.mxu0 0.0
      %1264 = vmatprep.subr.mxu0 0.0
      %1265 = vmatpush1.msra.mxu0 0.0
      %1266 = vmatprep.subr.mxu0 0.0
      %1267 = vmatpush1.msra.mxu0 0.0
      %1268 = vmatprep.subr.mxu0 0.0
      %1269 = vmatpush1.msra.mxu0 0.0
      %1270 = vmatprep.subr.mxu0 0.0
      %1271 = vmatpush1.msra.mxu0 0.0
      %1272 = vmatprep.subr.mxu0 0.0
      %1273 = vmatpush1.msra.mxu0 0.0
      %1274 = vmatprep.subr.mxu0 0.0
      %1275 = vmatpush1.msra.mxu0 0.0
      %1276 = vmatprep.subr.mxu0 0.0
      %1277 = vmatpush1.msra.mxu0 0.0
      %1278 = vmatprep.subr.mxu0 0.0
      %1279 = vmatpush1.msra.mxu0 0.0
      %1280 = vmatprep.subr.mxu0 0.0
      %1281 = vmatpush1.msra.mxu0 0.0
      %1282 = vmatprep.subr.mxu0 0.0
      %1283 = vmatpush1.msra.mxu0 0.0
      %1284 = vmatprep.subr.mxu0 0.0
      %1285 = vmatpush1.msra.mxu0 0.0
      %1286 = vmatprep.subr.mxu0 0.0
      %1287 = vmatpush1.msra.mxu0 0.0
      %1288 = vmatprep.subr.mxu0 0.0
      %1289 = vmatpush1.msra.mxu0 0.0
      %1290 = vmatprep.subr.mxu0 0.0
      %1291 = vmatpush1.msra.mxu0 0.0
      %1292 = vmatprep.subr.mxu0 0.0
      %1293 = vmatpush1.msra.mxu0 0.0
      %1294 = vmatprep.subr.mxu0 0.0
      %1295 = vmatpush1.msra.mxu0 0.0
      %1296 = vmatprep.subr.mxu0 0.0
      %1297 = vmatpush1.msra.mxu0 0.0
      %1298 = vmatprep.subr.mxu0 0.0
      %1299 = vmatpush1.msra.mxu0 0.0
      %1300 = vmatprep.subr.mxu0 0.0
      %1301 = vmatpush1.msra.mxu0 0.0
      %1302 = vmatprep.mubr.f32.mxu0 0.0
      %1303 = vmatmul.mubr.f32.gmra.mrb[0].mxu0 %v1233
      %v1304 = vpop.f32.mrb[0].mxu0
      %v1305 = vadd.f32 %v1225, %v1304
      %v1306 = vpop.f32.mrb[0].mxu0
      %1307 = vmatprep.mubr.f32.mxu0 0.0
      %1308 = vmatmul.mubr.f32.gmra.mrb[0].mxu0 %v1236
      %v1309 = vpop.f32.mrb[0].mxu0
      %v1310 = vadd.f32 %v1230, %v1309
      %v1311 = vpop.f32.mrb[0].mxu0
      %1312 = vdwg.mxu0
      %v1313 = vmax.f32 %v1305, 0.0
      %v1314 = vmax.f32 %v1310, 0.0
      %v1315 = vmin.f32 %v1313, 6.0
      %v1316 = vmin.f32 %v1314, 6.0
      %s1317 = scalar_lea.vmem %s5, 48
      %v1318 = vld [vmem:[%s1317] sm:$0xff]
      %v1319 = vld [vmem:[%s1317 + $0x8] sm:$0xff]
      %s1320 = scalar_lea.vmem %s6, 48
      %v1321 = vld [vmem:[%s1320] sm:$0xff]
      %v1322 = vld [vmem:[%s1320 + $0x8] sm:$0xff]
      %1324 = vset.pattern.permute.xlu0 0
      %1325 = vperm.xlu0 %1324, %v1321
      %v1326 = vpop.permute.xlu0 %1325
      %1329 = vset.pattern.permute.xlu0 0
      %1330 = vperm.xlu0 %1329, %v1322
      %v1331 = vpop.permute.xlu0 %1330
      %v1334 = vsel %vm1130, %v1318, 0
      %v1337 = vsel %vm1130, %v1319, 0
      %1339 = vmatprep.subr.mxu0 0.0
      %1340 = vmatpush1.msra.mxu0 %v1315
      %1341 = vmatprep.subr.mxu0 0.0
      %1342 = vmatpush1.msra.mxu0 %v1316
      %1343 = vmatprep.subr.mxu0 0.0
      %1344 = vmatpush1.msra.mxu0 0.0
      %1345 = vmatprep.subr.mxu0 0.0
      %1346 = vmatpush1.msra.mxu0 0.0
      %1347 = vmatprep.subr.mxu0 0.0
      %1348 = vmatpush1.msra.mxu0 0.0
      %1349 = vmatprep.subr.mxu0 0.0
      %1350 = vmatpush1.msra.mxu0 0.0
      %1351 = vmatprep.subr.mxu0 0.0
      %1352 = vmatpush1.msra.mxu0 0.0
      %1353 = vmatprep.subr.mxu0 0.0
      %1354 = vmatpush1.msra.mxu0 0.0
      %1355 = vmatprep.subr.mxu0 0.0
      %1356 = vmatpush1.msra.mxu0 0.0
      %1357 = vmatprep.subr.mxu0 0.0
      %1358 = vmatpush1.msra.mxu0 0.0
      %1359 = vmatprep.subr.mxu0 0.0
      %1360 = vmatpush1.msra.mxu0 0.0
      %1361 = vmatprep.subr.mxu0 0.0
      %1362 = vmatpush1.msra.mxu0 0.0
      %1363 = vmatprep.subr.mxu0 0.0
      %1364 = vmatpush1.msra.mxu0 0.0
      %1365 = vmatprep.subr.mxu0 0.0
      %1366 = vmatpush1.msra.mxu0 0.0
      %1367 = vmatprep.subr.mxu0 0.0
      %1368 = vmatpush1.msra.mxu0 0.0
      %1369 = vmatprep.subr.mxu0 0.0
      %1370 = vmatpush1.msra.mxu0 0.0
      %1371 = vmatprep.subr.mxu0 0.0
      %1372 = vmatpush1.msra.mxu0 0.0
      %1373 = vmatprep.subr.mxu0 0.0
      %1374 = vmatpush1.msra.mxu0 0.0
      %1375 = vmatprep.subr.mxu0 0.0
      %1376 = vmatpush1.msra.mxu0 0.0
      %1377 = vmatprep.subr.mxu0 0.0
      %1378 = vmatpush1.msra.mxu0 0.0
      %1379 = vmatprep.subr.mxu0 0.0
      %1380 = vmatpush1.msra.mxu0 0.0
      %1381 = vmatprep.subr.mxu0 0.0
      %1382 = vmatpush1.msra.mxu0 0.0
      %1383 = vmatprep.subr.mxu0 0.0
      %1384 = vmatpush1.msra.mxu0 0.0
      %1385 = vmatprep.subr.mxu0 0.0
      %1386 = vmatpush1.msra.mxu0 0.0
      %1387 = vmatprep.subr.mxu0 0.0
      %1388 = vmatpush1.msra.mxu0 0.0
      %1389 = vmatprep.subr.mxu0 0.0
      %1390 = vmatpush1.msra.mxu0 0.0
      %1391 = vmatprep.subr.mxu0 0.0
      %1392 = vmatpush1.msra.mxu0 0.0
      %1393 = vmatprep.subr.mxu0 0.0
      %1394 = vmatpush1.msra.mxu0 0.0
      %1395 = vmatprep.subr.mxu0 0.0
      %1396 = vmatpush1.msra.mxu0 0.0
      %1397 = vmatprep.subr.mxu0 0.0
      %1398 = vmatpush1.msra.mxu0 0.0
      %1399 = vmatprep.subr.mxu0 0.0
      %1400 = vmatpush1.msra.mxu0 0.0
      %1401 = vmatprep.subr.mxu0 0.0
      %1402 = vmatpush1.msra.mxu0 0.0
      %1403 = vmatprep.mubr.f32.mxu0 0.0
      %1404 = vmatmul.mubr.f32.gmra.mrb[0].mxu0 %v1334
      %v1405 = vpop.f32.mrb[0].mxu0
      %v1406 = vadd.f32 %v1326, %v1405
      %v1407 = vpop.f32.mrb[0].mxu0
      %1408 = vmatprep.mubr.f32.mxu0 0.0
      %1409 = vmatmul.mubr.f32.gmra.mrb[0].mxu0 %v1337
      %v1410 = vpop.f32.mrb[0].mxu0
      %v1411 = vadd.f32 %v1331, %v1410
      %v1412 = vpop.f32.mrb[0].mxu0
      %1413 = vdwg.mxu0
      %v1414 = vmax.f32 %v1406, 0.0
      %v1415 = vmax.f32 %v1411, 0.0
      %v1416 = vmin.f32 %v1414, 6.0
      %v1417 = vmin.f32 %v1415, 6.0
      %s1418 = scalar_lea.vmem %s5, 64
      %v1419 = vld [vmem:[%s1418] sm:$0xff]
      %v1420 = vld [vmem:[%s1418 + $0x8] sm:$0xff]
      %s1421 = scalar_lea.vmem %s6, 64
      %v1422 = vld [vmem:[%s1421] sm:$0xff]
      %v1423 = vld [vmem:[%s1421 + $0x8] sm:$0xff]
      %1425 = vset.pattern.permute.xlu0 0
      %1426 = vperm.xlu0 %1425, %v1422
      %v1427 = vpop.permute.xlu0 %1426
      %1430 = vset.pattern.permute.xlu0 0
      %1431 = vperm.xlu0 %1430, %v1423
      %v1432 = vpop.permute.xlu0 %1431
      %v1435 = vsel %vm1130, %v1419, 0
      %v1438 = vsel %vm1130, %v1420, 0
      %1440 = vmatprep.subr.mxu0 0.0
      %1441 = vmatpush1.msra.mxu0 %v1416
      %1442 = vmatprep.subr.mxu0 0.0
      %1443 = vmatpush1.msra.mxu0 %v1417
      %1444 = vmatprep.subr.mxu0 0.0
      %1445 = vmatpush1.msra.mxu0 0.0
      %1446 = vmatprep.subr.mxu0 0.0
      %1447 = vmatpush1.msra.mxu0 0.0
      %1448 = vmatprep.subr.mxu0 0.0
      %1449 = vmatpush1.msra.mxu0 0.0
      %1450 = vmatprep.subr.mxu0 0.0
      %1451 = vmatpush1.msra.mxu0 0.0
      %1452 = vmatprep.subr.mxu0 0.0
      %1453 = vmatpush1.msra.mxu0 0.0
      %1454 = vmatprep.subr.mxu0 0.0
      %1455 = vmatpush1.msra.mxu0 0.0
      %1456 = vmatprep.subr.mxu0 0.0
      %1457 = vmatpush1.msra.mxu0 0.0
      %1458 = vmatprep.subr.mxu0 0.0
      %1459 = vmatpush1.msra.mxu0 0.0
      %1460 = vmatprep.subr.mxu0 0.0
      %1461 = vmatpush1.msra.mxu0 0.0
      %1462 = vmatprep.subr.mxu0 0.0
      %1463 = vmatpush1.msra.mxu0 0.0
      %1464 = vmatprep.subr.mxu0 0.0
      %1465 = vmatpush1.msra.mxu0 0.0
      %1466 = vmatprep.subr.mxu0 0.0
      %1467 = vmatpush1.msra.mxu0 0.0
      %1468 = vmatprep.subr.mxu0 0.0
      %1469 = vmatpush1.msra.mxu0 0.0
      %1470 = vmatprep.subr.mxu0 0.0
      %1471 = vmatpush1.msra.mxu0 0.0
      %1472 = vmatprep.subr.mxu0 0.0
      %1473 = vmatpush1.msra.mxu0 0.0
      %1474 = vmatprep.subr.mxu0 0.0
      %1475 = vmatpush1.msra.mxu0 0.0
      %1476 = vmatprep.subr.mxu0 0.0
      %1477 = vmatpush1.msra.mxu0 0.0
      %1478 = vmatprep.subr.mxu0 0.0
      %1479 = vmatpush1.msra.mxu0 0.0
      %1480 = vmatprep.subr.mxu0 0.0
      %1481 = vmatpush1.msra.mxu0 0.0
      %1482 = vmatprep.subr.mxu0 0.0
      %1483 = vmatpush1.msra.mxu0 0.0
      %1484 = vmatprep.subr.mxu0 0.0
      %1485 = vmatpush1.msra.mxu0 0.0
      %1486 = vmatprep.subr.mxu0 0.0
      %1487 = vmatpush1.msra.mxu0 0.0
      %1488 = vmatprep.subr.mxu0 0.0
      %1489 = vmatpush1.msra.mxu0 0.0
      %1490 = vmatprep.subr.mxu0 0.0
      %1491 = vmatpush1.msra.mxu0 0.0
      %1492 = vmatprep.subr.mxu0 0.0
      %1493 = vmatpush1.msra.mxu0 0.0
      %1494 = vmatprep.subr.mxu0 0.0
      %1495 = vmatpush1.msra.mxu0 0.0
      %1496 = vmatprep.subr.mxu0 0.0
      %1497 = vmatpush1.msra.mxu0 0.0
      %1498 = vmatprep.subr.mxu0 0.0
      %1499 = vmatpush1.msra.mxu0 0.0
      %1500 = vmatprep.subr.mxu0 0.0
      %1501 = vmatpush1.msra.mxu0 0.0
      %1502 = vmatprep.subr.mxu0 0.0
      %1503 = vmatpush1.msra.mxu0 0.0
      %1504 = vmatprep.mubr.f32.mxu0 0.0
      %1505 = vmatmul.mubr.f32.gmra.mrb[0].mxu0 %v1435
      %v1506 = vpop.f32.mrb[0].mxu0
      %v1507 = vadd.f32 %v1427, %v1506
      %v1508 = vpop.f32.mrb[0].mxu0
      %1509 = vmatprep.mubr.f32.mxu0 0.0
      %1510 = vmatmul.mubr.f32.gmra.mrb[0].mxu0 %v1438
      %v1511 = vpop.f32.mrb[0].mxu0
      %v1512 = vadd.f32 %v1432, %v1511
      %v1513 = vpop.f32.mrb[0].mxu0
      %1514 = vdwg.mxu0
      %v1515 = vmax.f32 %v1507, 0.0
      %v1516 = vmax.f32 %v1512, 0.0
      %v1517 = vmin.f32 %v1515, 6.0
      %v1518 = vmin.f32 %v1516, 6.0
      %s1519 = scalar_lea.vmem %s5, 80
      %v1520 = vld [vmem:[%s1519] sm:$0xff]
      %v1521 = vld [vmem:[%s1519 + $0x8] sm:$0xff]
      %s1522 = scalar_lea.vmem %s6, 80
      %v1523 = vld [vmem:[%s1522] sm:$0xff]
      %v1524 = vld [vmem:[%s1522 + $0x8] sm:$0xff]
      %1526 = vset.pattern.permute.xlu0 0
      %1527 = vperm.xlu0 %1526, %v1523
      %v1528 = vpop.permute.xlu0 %1527
      %1531 = vset.pattern.permute.xlu0 0
      %1532 = vperm.xlu0 %1531, %v1524
      %v1533 = vpop.permute.xlu0 %1532
      %v1536 = vsel %vm1130, %v1520, 0
      %v1539 = vsel %vm1130, %v1521, 0
      %1541 = vmatprep.subr.mxu0 0.0
      %1542 = vmatpush1.msra.mxu0 %v1517
      %1543 = vmatprep.subr.mxu0 0.0
      %1544 = vmatpush1.msra.mxu0 %v1518
      %1545 = vmatprep.subr.mxu0 0.0
      %1546 = vmatpush1.msra.mxu0 0.0
      %1547 = vmatprep.subr.mxu0 0.0
      %1548 = vmatpush1.msra.mxu0 0.0
      %1549 = vmatprep.subr.mxu0 0.0
      %1550 = vmatpush1.msra.mxu0 0.0
      %1551 = vmatprep.subr.mxu0 0.0
      %1552 = vmatpush1.msra.mxu0 0.0
      %1553 = vmatprep.subr.mxu0 0.0
      %1554 = vmatpush1.msra.mxu0 0.0
      %1555 = vmatprep.subr.mxu0 0.0
      %1556 = vmatpush1.msra.mxu0 0.0
      %1557 = vmatprep.subr.mxu0 0.0
      %1558 = vmatpush1.msra.mxu0 0.0
      %1559 = vmatprep.subr.mxu0 0.0
      %1560 = vmatpush1.msra.mxu0 0.0
      %1561 = vmatprep.subr.mxu0 0.0
      %1562 = vmatpush1.msra.mxu0 0.0
      %1563 = vmatprep.subr.mxu0 0.0
      %1564 = vmatpush1.msra.mxu0 0.0
      %1565 = vmatprep.subr.mxu0 0.0
      %1566 = vmatpush1.msra.mxu0 0.0
      %1567 = vmatprep.subr.mxu0 0.0
      %1568 = vmatpush1.msra.mxu0 0.0
      %1569 = vmatprep.subr.mxu0 0.0
      %1570 = vmatpush1.msra.mxu0 0.0
      %1571 = vmatprep.subr.mxu0 0.0
      %1572 = vmatpush1.msra.mxu0 0.0
      %1573 = vmatprep.subr.mxu0 0.0
      %1574 = vmatpush1.msra.mxu0 0.0
      %1575 = vmatprep.subr.mxu0 0.0
      %1576 = vmatpush1.msra.mxu0 0.0
      %1577 = vmatprep.subr.mxu0 0.0
      %1578 = vmatpush1.msra.mxu0 0.0
      %1579 = vmatprep.subr.mxu0 0.0
      %1580 = vmatpush1.msra.mxu0 0.0
      %1581 = vmatprep.subr.mxu0 0.0
      %1582 = vmatpush1.msra.mxu0 0.0
      %1583 = vmatprep.subr.mxu0 0.0
      %1584 = vmatpush1.msra.mxu0 0.0
      %1585 = vmatprep.subr.mxu0 0.0
      %1586 = vmatpush1.msra.mxu0 0.0
      %1587 = vmatprep.subr.mxu0 0.0
      %1588 = vmatpush1.msra.mxu0 0.0
      %1589 = vmatprep.subr.mxu0 0.0
      %1590 = vmatpush1.msra.mxu0 0.0
      %1591 = vmatprep.subr.mxu0 0.0
      %1592 = vmatpush1.msra.mxu0 0.0
      %1593 = vmatprep.subr.mxu0 0.0
      %1594 = vmatpush1.msra.mxu0 0.0
      %1595 = vmatprep.subr.mxu0 0.0
      %1596 = vmatpush1.msra.mxu0 0.0
      %1597 = vmatprep.subr.mxu0 0.0
      %1598 = vmatpush1.msra.mxu0 0.0
      %1599 = vmatprep.subr.mxu0 0.0
      %1600 = vmatpush1.msra.mxu0 0.0
      %1601 = vmatprep.subr.mxu0 0.0
      %1602 = vmatpush1.msra.mxu0 0.0
      %1603 = vmatprep.subr.mxu0 0.0
      %1604 = vmatpush1.msra.mxu0 0.0
      %1605 = vmatprep.mubr.f32.mxu0 0.0
      %1606 = vmatmul.mubr.f32.gmra.mrb[0].mxu0 %v1536
      %v1607 = vpop.f32.mrb[0].mxu0
      %v1608 = vadd.f32 %v1528, %v1607
      %v1609 = vpop.f32.mrb[0].mxu0
      %1610 = vmatprep.mubr.f32.mxu0 0.0
      %1611 = vmatmul.mubr.f32.gmra.mrb[0].mxu0 %v1539
      %v1612 = vpop.f32.mrb[0].mxu0
      %v1613 = vadd.f32 %v1533, %v1612
      %v1614 = vpop.f32.mrb[0].mxu0
      %1615 = vdwg.mxu0
      %v1616 = vmax.f32 %v1608, 0.0
      %v1617 = vmax.f32 %v1613, 0.0
      %v1618 = vmin.f32 %v1616, 6.0
      %v1619 = vmin.f32 %v1617, 6.0
      %s1620 = scalar_lea.vmem %s5, 96
      %v1621 = vld [vmem:[%s1620] sm:$0xff]
      %v1622 = vld [vmem:[%s1620 + $0x8] sm:$0xff]
      %s1623 = scalar_lea.vmem %s6, 96
      %v1624 = vld [vmem:[%s1623] sm:$0xff]
      %v1625 = vld [vmem:[%s1623 + $0x8] sm:$0xff]
      %1627 = vset.pattern.permute.xlu0 0
      %1628 = vperm.xlu0 %1627, %v1624
      %v1629 = vpop.permute.xlu0 %1628
      %1632 = vset.pattern.permute.xlu0 0
      %1633 = vperm.xlu0 %1632, %v1625
      %v1634 = vpop.permute.xlu0 %1633
      %v1637 = vsel %vm1130, %v1621, 0
      %v1640 = vsel %vm1130, %v1622, 0
      %1642 = vmatprep.subr.mxu0 0.0
      %1643 = vmatpush1.msra.mxu0 %v1618
      %1644 = vmatprep.subr.mxu0 0.0
      %1645 = vmatpush1.msra.mxu0 %v1619
      %1646 = vmatprep.subr.mxu0 0.0
      %1647 = vmatpush1.msra.mxu0 0.0
      %1648 = vmatprep.subr.mxu0 0.0
      %1649 = vmatpush1.msra.mxu0 0.0
      %1650 = vmatprep.subr.mxu0 0.0
      %1651 = vmatpush1.msra.mxu0 0.0
      %1652 = vmatprep.subr.mxu0 0.0
      %1653 = vmatpush1.msra.mxu0 0.0
      %1654 = vmatprep.subr.mxu0 0.0
      %1655 = vmatpush1.msra.mxu0 0.0
      %1656 = vmatprep.subr.mxu0 0.0
      %1657 = vmatpush1.msra.mxu0 0.0
      %1658 = vmatprep.subr.mxu0 0.0
      %1659 = vmatpush1.msra.mxu0 0.0
      %1660 = vmatprep.subr.mxu0 0.0
      %1661 = vmatpush1.msra.mxu0 0.0
      %1662 = vmatprep.subr.mxu0 0.0
      %1663 = vmatpush1.msra.mxu0 0.0
      %1664 = vmatprep.subr.mxu0 0.0
      %1665 = vmatpush1.msra.mxu0 0.0
      %1666 = vmatprep.subr.mxu0 0.0
      %1667 = vmatpush1.msra.mxu0 0.0
      %1668 = vmatprep.subr.mxu0 0.0
      %1669 = vmatpush1.msra.mxu0 0.0
      %1670 = vmatprep.subr.mxu0 0.0
      %1671 = vmatpush1.msra.mxu0 0.0
      %1672 = vmatprep.subr.mxu0 0.0
      %1673 = vmatpush1.msra.mxu0 0.0
      %1674 = vmatprep.subr.mxu0 0.0
      %1675 = vmatpush1.msra.mxu0 0.0
      %1676 = vmatprep.subr.mxu0 0.0
      %1677 = vmatpush1.msra.mxu0 0.0
      %1678 = vmatprep.subr.mxu0 0.0
      %1679 = vmatpush1.msra.mxu0 0.0
      %1680 = vmatprep.subr.mxu0 0.0
      %1681 = vmatpush1.msra.mxu0 0.0
      %1682 = vmatprep.subr.mxu0 0.0
      %1683 = vmatpush1.msra.mxu0 0.0
      %1684 = vmatprep.subr.mxu0 0.0
      %1685 = vmatpush1.msra.mxu0 0.0
      %1686 = vmatprep.subr.mxu0 0.0
      %1687 = vmatpush1.msra.mxu0 0.0
      %1688 = vmatprep.subr.mxu0 0.0
      %1689 = vmatpush1.msra.mxu0 0.0
      %1690 = vmatprep.subr.mxu0 0.0
      %1691 = vmatpush1.msra.mxu0 0.0
      %1692 = vmatprep.subr.mxu0 0.0
      %1693 = vmatpush1.msra.mxu0 0.0
      %1694 = vmatprep.subr.mxu0 0.0
      %1695 = vmatpush1.msra.mxu0 0.0
      %1696 = vmatprep.subr.mxu0 0.0
      %1697 = vmatpush1.msra.mxu0 0.0
      %1698 = vmatprep.subr.mxu0 0.0
      %1699 = vmatpush1.msra.mxu0 0.0
      %1700 = vmatprep.subr.mxu0 0.0
      %1701 = vmatpush1.msra.mxu0 0.0
      %1702 = vmatprep.subr.mxu0 0.0
      %1703 = vmatpush1.msra.mxu0 0.0
      %1704 = vmatprep.subr.mxu0 0.0
      %1705 = vmatpush1.msra.mxu0 0.0
      %1706 = vmatprep.mubr.f32.mxu0 0.0
      %1707 = vmatmul.mubr.f32.gmra.mrb[0].mxu0 %v1637
      %v1708 = vpop.f32.mrb[0].mxu0
      %v1709 = vadd.f32 %v1629, %v1708
      %v1710 = vpop.f32.mrb[0].mxu0
      %1711 = vmatprep.mubr.f32.mxu0 0.0
      %1712 = vmatmul.mubr.f32.gmra.mrb[0].mxu0 %v1640
      %v1713 = vpop.f32.mrb[0].mxu0
      %v1714 = vadd.f32 %v1634, %v1713
      %v1715 = vpop.f32.mrb[0].mxu0
      %1716 = vdwg.mxu0
      %v1717 = vmax.f32 %v1709, 0.0
      %v1718 = vmax.f32 %v1714, 0.0
      %v1719 = vmin.f32 %v1717, 6.0
      %v1720 = vmin.f32 %v1718, 6.0
      %s1721 = scalar_lea.vmem %s5, 112
      %v1722 = vld [vmem:[%s1721] sm:$0xff]
      %v1723 = vld [vmem:[%s1721 + $0x8] sm:$0xff]
      %s1724 = scalar_lea.vmem %s6, 112
      %v1725 = vld [vmem:[%s1724] sm:$0xff]
      %v1726 = vld [vmem:[%s1724 + $0x8] sm:$0xff]
      %1728 = vset.pattern.permute.xlu0 0
      %1729 = vperm.xlu0 %1728, %v1725
      %v1730 = vpop.permute.xlu0 %1729
      %1733 = vset.pattern.permute.xlu0 0
      %1734 = vperm.xlu0 %1733, %v1726
      %v1735 = vpop.permute.xlu0 %1734
      %v1737 = vsel %vm1130, %v1722, 0
      %v1740 = vsel %vm1130, %v1723, 0
      %1742 = vmatprep.subr.mxu0 0.0
      %1743 = vmatpush1.msra.mxu0 %v1719
      %1744 = vmatprep.subr.mxu0 0.0
      %1745 = vmatpush1.msra.mxu0 %v1720
      %1746 = vmatprep.subr.mxu0 0.0
      %1747 = vmatpush1.msra.mxu0 0.0
      %1748 = vmatprep.subr.mxu0 0.0
      %1749 = vmatpush1.msra.mxu0 0.0
      %1750 = vmatprep.subr.mxu0 0.0
      %1751 = vmatpush1.msra.mxu0 0.0
      %1752 = vmatprep.subr.mxu0 0.0
      %1753 = vmatpush1.msra.mxu0 0.0
      %1754 = vmatprep.subr.mxu0 0.0
      %1755 = vmatpush1.msra.mxu0 0.0
      %1756 = vmatprep.subr.mxu0 0.0
      %1757 = vmatpush1.msra.mxu0 0.0
      %1758 = vmatprep.subr.mxu0 0.0
      %1759 = vmatpush1.msra.mxu0 0.0
      %1760 = vmatprep.subr.mxu0 0.0
      %1761 = vmatpush1.msra.mxu0 0.0
      %1762 = vmatprep.subr.mxu0 0.0
      %1763 = vmatpush1.msra.mxu0 0.0
      %1764 = vmatprep.subr.mxu0 0.0
      %1765 = vmatpush1.msra.mxu0 0.0
      %1766 = vmatprep.subr.mxu0 0.0
      %1767 = vmatpush1.msra.mxu0 0.0
      %1768 = vmatprep.subr.mxu0 0.0
      %1769 = vmatpush1.msra.mxu0 0.0
      %1770 = vmatprep.subr.mxu0 0.0
      %1771 = vmatpush1.msra.mxu0 0.0
      %1772 = vmatprep.subr.mxu0 0.0
      %1773 = vmatpush1.msra.mxu0 0.0
      %1774 = vmatprep.subr.mxu0 0.0
      %1775 = vmatpush1.msra.mxu0 0.0
      %1776 = vmatprep.subr.mxu0 0.0
      %1777 = vmatpush1.msra.mxu0 0.0
      %1778 = vmatprep.subr.mxu0 0.0
      %1779 = vmatpush1.msra.mxu0 0.0
      %1780 = vmatprep.subr.mxu0 0.0
      %1781 = vmatpush1.msra.mxu0 0.0
      %1782 = vmatprep.subr.mxu0 0.0
      %1783 = vmatpush1.msra.mxu0 0.0
      %1784 = vmatprep.subr.mxu0 0.0
      %1785 = vmatpush1.msra.mxu0 0.0
      %1786 = vmatprep.subr.mxu0 0.0
      %1787 = vmatpush1.msra.mxu0 0.0
      %1788 = vmatprep.subr.mxu0 0.0
      %1789 = vmatpush1.msra.mxu0 0.0
      %1790 = vmatprep.subr.mxu0 0.0
      %1791 = vmatpush1.msra.mxu0 0.0
      %1792 = vmatprep.subr.mxu0 0.0
      %1793 = vmatpush1.msra.mxu0 0.0
      %1794 = vmatprep.subr.mxu0 0.0
      %1795 = vmatpush1.msra.mxu0 0.0
      %1796 = vmatprep.subr.mxu0 0.0
      %1797 = vmatpush1.msra.mxu0 0.0
      %1798 = vmatprep.subr.mxu0 0.0
      %1799 = vmatpush1.msra.mxu0 0.0
      %1800 = vmatprep.subr.mxu0 0.0
      %1801 = vmatpush1.msra.mxu0 0.0
      %1802 = vmatprep.subr.mxu0 0.0
      %1803 = vmatpush1.msra.mxu0 0.0
      %1804 = vmatprep.subr.mxu0 0.0
      %1805 = vmatpush1.msra.mxu0 0.0
      %1806 = vmatprep.mubr.f32.mxu0 0.0
      %1807 = vmatmul.mubr.f32.gmra.mrb[0].mxu0 %v1737
      %v1808 = vpop.f32.mrb[0].mxu0
      %v1809 = vadd.f32 %v1730, %v1808
      %v1810 = vpop.f32.mrb[0].mxu0
      %1811 = vmatprep.mubr.f32.mxu0 0.0
      %1812 = vmatmul.mubr.f32.gmra.mrb[0].mxu0 %v1740
      %v1813 = vpop.f32.mrb[0].mxu0
      %v1814 = vpop.f32.mrb[0].mxu0
      %1815 = vdwg.mxu0
      %s1816 = scalar_lea.vmem %s3, 256
      %v1817 = vld [vmem:[%s1816] sm:$0xff]
      %s1818 = scalar_lea.vmem %s4, 8
      %v1819 = vld [vmem:[%s1818] sm:$0x1]
      %v1821 = vlaneseq
      %v1822 = vshrl.u32 %v1821, 7
      %v1823 = vsub.s32 0, %v1822
      %v1824 = vrot.slane %v1819, %v1823
      %1826 = vmatprep.subr.mxu0 0.0
      %1827 = vmatpush1.msra.mxu0 %v1817
      %1828 = vmatprep.subr.mxu0 0.0
      %1829 = vmatpush1.msra.mxu0 0.0
      %1830 = vmatprep.subr.mxu0 0.0
      %1831 = vmatpush1.msra.mxu0 0.0
      %1832 = vmatprep.subr.mxu0 0.0
      %1833 = vmatpush1.msra.mxu0 0.0
      %1834 = vmatprep.subr.mxu0 0.0
      %1835 = vmatpush1.msra.mxu0 0.0
      %1836 = vmatprep.subr.mxu0 0.0
      %1837 = vmatpush1.msra.mxu0 0.0
      %1838 = vmatprep.subr.mxu0 0.0
      %1839 = vmatpush1.msra.mxu0 0.0
      %1840 = vmatprep.subr.mxu0 0.0
      %1841 = vmatpush1.msra.mxu0 0.0
      %1842 = vmatprep.subr.mxu0 0.0
      %1843 = vmatpush1.msra.mxu0 0.0
      %1844 = vmatprep.subr.mxu0 0.0
      %1845 = vmatpush1.msra.mxu0 0.0
      %1846 = vmatprep.subr.mxu0 0.0
      %1847 = vmatpush1.msra.mxu0 0.0
      %1848 = vmatprep.subr.mxu0 0.0
      %1849 = vmatpush1.msra.mxu0 0.0
      %1850 = vmatprep.subr.mxu0 0.0
      %1851 = vmatpush1.msra.mxu0 0.0
      %1852 = vmatprep.subr.mxu0 0.0
      %1853 = vmatpush1.msra.mxu0 0.0
      %1854 = vmatprep.subr.mxu0 0.0
      %1855 = vmatpush1.msra.mxu0 0.0
      %1856 = vmatprep.subr.mxu0 0.0
      %1857 = vmatpush1.msra.mxu0 0.0
      %1858 = vmatprep.subr.mxu0 0.0
      %1859 = vmatpush1.msra.mxu0 0.0
      %1860 = vmatprep.subr.mxu0 0.0
      %1861 = vmatpush1.msra.mxu0 0.0
      %1862 = vmatprep.subr.mxu0 0.0
      %1863 = vmatpush1.msra.mxu0 0.0
      %1864 = vmatprep.subr.mxu0 0.0
      %1865 = vmatpush1.msra.mxu0 0.0
      %1866 = vmatprep.subr.mxu0 0.0
      %1867 = vmatpush1.msra.mxu0 0.0
      %1868 = vmatprep.subr.mxu0 0.0
      %1869 = vmatpush1.msra.mxu0 0.0
      %1870 = vmatprep.subr.mxu0 0.0
      %1871 = vmatpush1.msra.mxu0 0.0
      %1872 = vmatprep.subr.mxu0 0.0
      %1873 = vmatpush1.msra.mxu0 0.0
      %1874 = vmatprep.subr.mxu0 0.0
      %1875 = vmatpush1.msra.mxu0 0.0
      %1876 = vmatprep.subr.mxu0 0.0
      %1877 = vmatpush1.msra.mxu0 0.0
      %1878 = vmatprep.subr.mxu0 0.0
      %1879 = vmatpush1.msra.mxu0 0.0
      %1880 = vmatprep.subr.mxu0 0.0
      %1881 = vmatpush1.msra.mxu0 0.0
      %1882 = vmatprep.subr.mxu0 0.0
      %1883 = vmatpush1.msra.mxu0 0.0
      %1884 = vmatprep.subr.mxu0 0.0
      %1885 = vmatpush1.msra.mxu0 0.0
      %1886 = vmatprep.subr.mxu0 0.0
      %1887 = vmatpush1.msra.mxu0 0.0
      %1888 = vmatprep.subr.mxu0 0.0
      %1889 = vmatpush1.msra.mxu0 0.0
      %1890 = vmatprep.mubr.f32.mxu0 0.0
      %1891 = vmatmul.mubr.f32.gmra.mrb[0].mxu0 %v321
      %v1892 = vpop.f32.mrb[0].mxu0
      %v1893 = vadd.f32 %v1824, %v1892
      %v1894 = vpop.f32.mrb[0].mxu0
      %1895 = vdwg.mxu0
      %v1896 = vmax.f32 %v1893, 0.0
      %v1897 = vmin.f32 %v1896, 6.0
      %s1898 = scalar_lea.vmem %s3, 288
      %v1899 = vld [vmem:[%s1898] sm:$0xff]
      %v1900 = vld [vmem:[%s1898 + $0x8] sm:$0xff]
      %v1901 = vld [vmem:[%s1898 + $0x10] sm:$0xff]
      %v1902 = vld [vmem:[%s1898 + $0x18] sm:$0xff]
      %s1903 = scalar_lea.vmem %s4, 9
      %v1904 = vld [vmem:[%s1903] sm:$0x1]
      %v1906 = vlaneseq
      %v1907 = vshrl.u32 %v1906, 7
      %v1908 = vsub.s32 0, %v1907
      %v1909 = vrot.slane %v1904, %v1908
      %v1912 = vsel %vm408, %v1897, 0
      %1914 = vmatprep.subr.mxu0 0.0
      %1915 = vmatpush1.msra.mxu0 %v1899
      %1916 = vmatprep.subr.mxu0 0.0
      %1917 = vmatpush1.msra.mxu0 %v1900
      %1918 = vmatprep.subr.mxu0 0.0
      %1919 = vmatpush1.msra.mxu0 %v1901
      %1920 = vmatprep.subr.mxu0 0.0
      %1921 = vmatpush1.msra.mxu0 %v1902
      %1922 = vmatprep.subr.mxu0 0.0
      %1923 = vmatpush1.msra.mxu0 0.0
      %1924 = vmatprep.subr.mxu0 0.0
      %1925 = vmatpush1.msra.mxu0 0.0
      %1926 = vmatprep.subr.mxu0 0.0
      %1927 = vmatpush1.msra.mxu0 0.0
      %1928 = vmatprep.subr.mxu0 0.0
      %1929 = vmatpush1.msra.mxu0 0.0
      %1930 = vmatprep.subr.mxu0 0.0
      %1931 = vmatpush1.msra.mxu0 0.0
      %1932 = vmatprep.subr.mxu0 0.0
      %1933 = vmatpush1.msra.mxu0 0.0
      %1934 = vmatprep.subr.mxu0 0.0
      %1935 = vmatpush1.msra.mxu0 0.0
      %1936 = vmatprep.subr.mxu0 0.0
      %1937 = vmatpush1.msra.mxu0 0.0
      %1938 = vmatprep.subr.mxu0 0.0
      %1939 = vmatpush1.msra.mxu0 0.0
      %1940 = vmatprep.subr.mxu0 0.0
      %1941 = vmatpush1.msra.mxu0 0.0
      %1942 = vmatprep.subr.mxu0 0.0
      %1943 = vmatpush1.msra.mxu0 0.0
      %1944 = vmatprep.subr.mxu0 0.0
      %1945 = vmatpush1.msra.mxu0 0.0
      %1946 = vmatprep.subr.mxu0 0.0
      %1947 = vmatpush1.msra.mxu0 0.0
      %1948 = vmatprep.subr.mxu0 0.0
      %1949 = vmatpush1.msra.mxu0 0.0
      %1950 = vmatprep.subr.mxu0 0.0
      %1951 = vmatpush1.msra.mxu0 0.0
      %1952 = vmatprep.subr.mxu0 0.0
      %1953 = vmatpush1.msra.mxu0 0.0
      %1954 = vmatprep.subr.mxu0 0.0
      %1955 = vmatpush1.msra.mxu0 0.0
      %1956 = vmatprep.subr.mxu0 0.0
      %1957 = vmatpush1.msra.mxu0 0.0
      %1958 = vmatprep.subr.mxu0 0.0
      %1959 = vmatpush1.msra.mxu0 0.0
      %1960 = vmatprep.subr.mxu0 0.0
      %1961 = vmatpush1.msra.mxu0 0.0
      %1962 = vmatprep.subr.mxu0 0.0
      %1963 = vmatpush1.msra.mxu0 0.0
      %1964 = vmatprep.subr.mxu0 0.0
      %1965 = vmatpush1.msra.mxu0 0.0
      %1966 = vmatprep.subr.mxu0 0.0
      %1967 = vmatpush1.msra.mxu0 0.0
      %1968 = vmatprep.subr.mxu0 0.0
      %1969 = vmatpush1.msra.mxu0 0.0
      %1970 = vmatprep.subr.mxu0 0.0
      %1971 = vmatpush1.msra.mxu0 0.0
      %1972 = vmatprep.subr.mxu0 0.0
      %1973 = vmatpush1.msra.mxu0 0.0
      %1974 = vmatprep.subr.mxu0 0.0
      %1975 = vmatpush1.msra.mxu0 0.0
      %1976 = vmatprep.subr.mxu0 0.0
      %1977 = vmatpush1.msra.mxu0 0.0
      %1978 = vmatprep.mubr.f32.mxu0 0.0
      %1979 = vmatmul.mubr.f32.gmra.mrb[0].mxu0 %v1912
      %v1980 = vpop.f32.mrb[0].mxu0
      %v1981 = vadd.f32 %v1909, %v1980
      %v1982 = vpop.f32.mrb[0].mxu0
      %1983 = vdwg.mxu0
      %v1984 = vmax.f32 %v1981, 0.0
      %v1985 = vmin.f32 %v1984, 6.0
      %s1986 = scalar_lea.vmem %s3, 320
      %v1987 = vld [vmem:[%s1986] sm:$0xff]
      %v1988 = vld [vmem:[%s1986 + $0x8] sm:$0xff]
      %v1989 = vld [vmem:[%s1986 + $0x10] sm:$0xff]
      %v1990 = vld [vmem:[%s1986 + $0x18] sm:$0xff]
      %s1991 = scalar_lea.vmem %s4, 10
      %v1992 = vld [vmem:[%s1991] sm:$0x1]
      %v1994 = vlaneseq
      %v1995 = vshrl.u32 %v1994, 7
      %v1996 = vsub.s32 0, %v1995
      %v1997 = vrot.slane %v1992, %v1996
      %v2000 = vsel %vm408, %v1985, 0
      %2002 = vmatprep.subr.mxu0 0.0
      %2003 = vmatpush1.msra.mxu0 %v1987
      %2004 = vmatprep.subr.mxu0 0.0
      %2005 = vmatpush1.msra.mxu0 %v1988
      %2006 = vmatprep.subr.mxu0 0.0
      %2007 = vmatpush1.msra.mxu0 %v1989
      %2008 = vmatprep.subr.mxu0 0.0
      %2009 = vmatpush1.msra.mxu0 %v1990
      %2010 = vmatprep.subr.mxu0 0.0
      %2011 = vmatpush1.msra.mxu0 0.0
      %2012 = vmatprep.subr.mxu0 0.0
      %2013 = vmatpush1.msra.mxu0 0.0
      %2014 = vmatprep.subr.mxu0 0.0
      %2015 = vmatpush1.msra.mxu0 0.0
      %2016 = vmatprep.subr.mxu0 0.0
      %2017 = vmatpush1.msra.mxu0 0.0
      %2018 = vmatprep.subr.mxu0 0.0
      %2019 = vmatpush1.msra.mxu0 0.0
      %2020 = vmatprep.subr.mxu0 0.0
      %2021 = vmatpush1.msra.mxu0 0.0
      %2022 = vmatprep.subr.mxu0 0.0
      %2023 = vmatpush1.msra.mxu0 0.0
      %2024 = vmatprep.subr.mxu0 0.0
      %2025 = vmatpush1.msra.mxu0 0.0
      %2026 = vmatprep.subr.mxu0 0.0
      %2027 = vmatpush1.msra.mxu0 0.0
      %2028 = vmatprep.subr.mxu0 0.0
      %2029 = vmatpush1.msra.mxu0 0.0
      %2030 = vmatprep.subr.mxu0 0.0
      %2031 = vmatpush1.msra.mxu0 0.0
      %2032 = vmatprep.subr.mxu0 0.0
      %2033 = vmatpush1.msra.mxu0 0.0
      %2034 = vmatprep.subr.mxu0 0.0
      %2035 = vmatpush1.msra.mxu0 0.0
      %2036 = vmatprep.subr.mxu0 0.0
      %2037 = vmatpush1.msra.mxu0 0.0
      %2038 = vmatprep.subr.mxu0 0.0
      %2039 = vmatpush1.msra.mxu0 0.0
      %2040 = vmatprep.subr.mxu0 0.0
      %2041 = vmatpush1.msra.mxu0 0.0
      %2042 = vmatprep.subr.mxu0 0.0
      %2043 = vmatpush1.msra.mxu0 0.0
      %2044 = vmatprep.subr.mxu0 0.0
      %2045 = vmatpush1.msra.mxu0 0.0
      %2046 = vmatprep.subr.mxu0 0.0
      %2047 = vmatpush1.msra.mxu0 0.0
      %2048 = vmatprep.subr.mxu0 0.0
      %2049 = vmatpush1.msra.mxu0 0.0
      %2050 = vmatprep.subr.mxu0 0.0
      %2051 = vmatpush1.msra.mxu0 0.0
      %2052 = vmatprep.subr.mxu0 0.0
      %2053 = vmatpush1.msra.mxu0 0.0
      %2054 = vmatprep.subr.mxu0 0.0
      %2055 = vmatpush1.msra.mxu0 0.0
      %2056 = vmatprep.subr.mxu0 0.0
      %2057 = vmatpush1.msra.mxu0 0.0
      %2058 = vmatprep.subr.mxu0 0.0
      %2059 = vmatpush1.msra.mxu0 0.0
      %2060 = vmatprep.subr.mxu0 0.0
      %2061 = vmatpush1.msra.mxu0 0.0
      %2062 = vmatprep.subr.mxu0 0.0
      %2063 = vmatpush1.msra.mxu0 0.0
      %2064 = vmatprep.subr.mxu0 0.0
      %2065 = vmatpush1.msra.mxu0 0.0
      %2066 = vmatprep.mubr.f32.mxu0 0.0
      %2067 = vmatmul.mubr.f32.gmra.mrb[0].mxu0 %v2000
      %v2068 = vpop.f32.mrb[0].mxu0
      %v2069 = vadd.f32 %v1997, %v2068
      %v2070 = vpop.f32.mrb[0].mxu0
      %2071 = vdwg.mxu0
      %v2072 = vmax.f32 %v2069, 0.0
      %v2073 = vmin.f32 %v2072, 6.0
      %s2074 = scalar_lea.vmem %s3, 352
      %v2075 = vld [vmem:[%s2074] sm:$0xff]
      %v2076 = vld [vmem:[%s2074 + $0x8] sm:$0xff]
      %v2077 = vld [vmem:[%s2074 + $0x10] sm:$0xff]
      %v2078 = vld [vmem:[%s2074 + $0x18] sm:$0xff]
      %s2079 = scalar_lea.vmem %s4, 11
      %v2080 = vld [vmem:[%s2079] sm:$0x1]
      %v2082 = vlaneseq
      %v2083 = vshrl.u32 %v2082, 7
      %v2084 = vsub.s32 0, %v2083
      %v2085 = vrot.slane %v2080, %v2084
      %v2088 = vsel %vm408, %v2073, 0
      %2090 = vmatprep.subr.mxu0 0.0
      %2091 = vmatpush1.msra.mxu0 %v2075
      %2092 = vmatprep.subr.mxu0 0.0
      %2093 = vmatpush1.msra.mxu0 %v2076
      %2094 = vmatprep.subr.mxu0 0.0
      %2095 = vmatpush1.msra.mxu0 %v2077
      %2096 = vmatprep.subr.mxu0 0.0
      %2097 = vmatpush1.msra.mxu0 %v2078
      %2098 = vmatprep.subr.mxu0 0.0
      %2099 = vmatpush1.msra.mxu0 0.0
      %2100 = vmatprep.subr.mxu0 0.0
      %2101 = vmatpush1.msra.mxu0 0.0
      %2102 = vmatprep.subr.mxu0 0.0
      %2103 = vmatpush1.msra.mxu0 0.0
      %2104 = vmatprep.subr.mxu0 0.0
      %2105 = vmatpush1.msra.mxu0 0.0
      %2106 = vmatprep.subr.mxu0 0.0
      %2107 = vmatpush1.msra.mxu0 0.0
      %2108 = vmatprep.subr.mxu0 0.0
      %2109 = vmatpush1.msra.mxu0 0.0
      %2110 = vmatprep.subr.mxu0 0.0
      %2111 = vmatpush1.msra.mxu0 0.0
      %2112 = vmatprep.subr.mxu0 0.0
      %2113 = vmatpush1.msra.mxu0 0.0
      %2114 = vmatprep.subr.mxu0 0.0
      %2115 = vmatpush1.msra.mxu0 0.0
      %2116 = vmatprep.subr.mxu0 0.0
      %2117 = vmatpush1.msra.mxu0 0.0
      %2118 = vmatprep.subr.mxu0 0.0
      %2119 = vmatpush1.msra.mxu0 0.0
      %2120 = vmatprep.subr.mxu0 0.0
      %2121 = vmatpush1.msra.mxu0 0.0
      %2122 = vmatprep.subr.mxu0 0.0
      %2123 = vmatpush1.msra.mxu0 0.0
      %2124 = vmatprep.subr.mxu0 0.0
      %2125 = vmatpush1.msra.mxu0 0.0
      %2126 = vmatprep.subr.mxu0 0.0
      %2127 = vmatpush1.msra.mxu0 0.0
      %2128 = vmatprep.subr.mxu0 0.0
      %2129 = vmatpush1.msra.mxu0 0.0
      %2130 = vmatprep.subr.mxu0 0.0
      %2131 = vmatpush1.msra.mxu0 0.0
      %2132 = vmatprep.subr.mxu0 0.0
      %2133 = vmatpush1.msra.mxu0 0.0
      %2134 = vmatprep.subr.mxu0 0.0
      %2135 = vmatpush1.msra.mxu0 0.0
      %2136 = vmatprep.subr.mxu0 0.0
      %2137 = vmatpush1.msra.mxu0 0.0
      %2138 = vmatprep.subr.mxu0 0.0
      %2139 = vmatpush1.msra.mxu0 0.0
      %2140 = vmatprep.subr.mxu0 0.0
      %2141 = vmatpush1.msra.mxu0 0.0
      %2142 = vmatprep.subr.mxu0 0.0
      %2143 = vmatpush1.msra.mxu0 0.0
      %2144 = vmatprep.subr.mxu0 0.0
      %2145 = vmatpush1.msra.mxu0 0.0
      %2146 = vmatprep.subr.mxu0 0.0
      %2147 = vmatpush1.msra.mxu0 0.0
      %2148 = vmatprep.subr.mxu0 0.0
      %2149 = vmatpush1.msra.mxu0 0.0
      %2150 = vmatprep.subr.mxu0 0.0
      %2151 = vmatpush1.msra.mxu0 0.0
      %2152 = vmatprep.subr.mxu0 0.0
      %2153 = vmatpush1.msra.mxu0 0.0
      %2154 = vmatprep.mubr.f32.mxu0 0.0
      %2155 = vmatmul.mubr.f32.gmra.mrb[0].mxu0 %v2088
      %v2156 = vpop.f32.mrb[0].mxu0
      %v2157 = vadd.f32 %v2085, %v2156
      %v2158 = vpop.f32.mrb[0].mxu0
      %2159 = vdwg.mxu0
      %v2160 = vmax.f32 %v2157, 0.0
      %v2161 = vmin.f32 %v2160, 6.0
      %s2162 = scalar_lea.vmem %s3, 384
      %v2163 = vld [vmem:[%s2162] sm:$0xff]
      %v2164 = vld [vmem:[%s2162 + $0x8] sm:$0xff]
      %v2165 = vld [vmem:[%s2162 + $0x10] sm:$0xff]
      %v2166 = vld [vmem:[%s2162 + $0x18] sm:$0xff]
      %s2167 = scalar_lea.vmem %s4, 12
      %v2168 = vld [vmem:[%s2167] sm:$0x1]
      %v2170 = vlaneseq
      %v2171 = vshrl.u32 %v2170, 7
      %v2172 = vsub.s32 0, %v2171
      %v2173 = vrot.slane %v2168, %v2172
      %v2176 = vsel %vm408, %v2161, 0
      %2178 = vmatprep.subr.mxu0 0.0
      %2179 = vmatpush1.msra.mxu0 %v2163
      %2180 = vmatprep.subr.mxu0 0.0
      %2181 = vmatpush1.msra.mxu0 %v2164
      %2182 = vmatprep.subr.mxu0 0.0
      %2183 = vmatpush1.msra.mxu0 %v2165
      %2184 = vmatprep.subr.mxu0 0.0
      %2185 = vmatpush1.msra.mxu0 %v2166
      %2186 = vmatprep.subr.mxu0 0.0
      %2187 = vmatpush1.msra.mxu0 0.0
      %2188 = vmatprep.subr.mxu0 0.0
      %2189 = vmatpush1.msra.mxu0 0.0
      %2190 = vmatprep.subr.mxu0 0.0
      %2191 = vmatpush1.msra.mxu0 0.0
      %2192 = vmatprep.subr.mxu0 0.0
      %2193 = vmatpush1.msra.mxu0 0.0
      %2194 = vmatprep.subr.mxu0 0.0
      %2195 = vmatpush1.msra.mxu0 0.0
      %2196 = vmatprep.subr.mxu0 0.0
      %2197 = vmatpush1.msra.mxu0 0.0
      %2198 = vmatprep.subr.mxu0 0.0
      %2199 = vmatpush1.msra.mxu0 0.0
      %2200 = vmatprep.subr.mxu0 0.0
      %2201 = vmatpush1.msra.mxu0 0.0
      %2202 = vmatprep.subr.mxu0 0.0
      %2203 = vmatpush1.msra.mxu0 0.0
      %2204 = vmatprep.subr.mxu0 0.0
      %2205 = vmatpush1.msra.mxu0 0.0
      %2206 = vmatprep.subr.mxu0 0.0
      %2207 = vmatpush1.msra.mxu0 0.0
      %2208 = vmatprep.subr.mxu0 0.0
      %2209 = vmatpush1.msra.mxu0 0.0
      %2210 = vmatprep.subr.mxu0 0.0
      %2211 = vmatpush1.msra.mxu0 0.0
      %2212 = vmatprep.subr.mxu0 0.0
      %2213 = vmatpush1.msra.mxu0 0.0
      %2214 = vmatprep.subr.mxu0 0.0
      %2215 = vmatpush1.msra.mxu0 0.0
      %2216 = vmatprep.subr.mxu0 0.0
      %2217 = vmatpush1.msra.mxu0 0.0
      %2218 = vmatprep.subr.mxu0 0.0
      %2219 = vmatpush1.msra.mxu0 0.0
      %2220 = vmatprep.subr.mxu0 0.0
      %2221 = vmatpush1.msra.mxu0 0.0
      %2222 = vmatprep.subr.mxu0 0.0
      %2223 = vmatpush1.msra.mxu0 0.0
      %2224 = vmatprep.subr.mxu0 0.0
      %2225 = vmatpush1.msra.mxu0 0.0
      %2226 = vmatprep.subr.mxu0 0.0
      %2227 = vmatpush1.msra.mxu0 0.0
      %2228 = vmatprep.subr.mxu0 0.0
      %2229 = vmatpush1.msra.mxu0 0.0
      %2230 = vmatprep.subr.mxu0 0.0
      %2231 = vmatpush1.msra.mxu0 0.0
      %2232 = vmatprep.subr.mxu0 0.0
      %2233 = vmatpush1.msra.mxu0 0.0
      %2234 = vmatprep.subr.mxu0 0.0
      %2235 = vmatpush1.msra.mxu0 0.0
      %2236 = vmatprep.subr.mxu0 0.0
      %2237 = vmatpush1.msra.mxu0 0.0
      %2238 = vmatprep.subr.mxu0 0.0
      %2239 = vmatpush1.msra.mxu0 0.0
      %2240 = vmatprep.subr.mxu0 0.0
      %2241 = vmatpush1.msra.mxu0 0.0
      %2242 = vmatprep.mubr.f32.mxu0 0.0
      %2243 = vmatmul.mubr.f32.gmra.mrb[0].mxu0 %v2176
      %v2244 = vpop.f32.mrb[0].mxu0
      %v2245 = vadd.f32 %v2173, %v2244
      %v2246 = vpop.f32.mrb[0].mxu0
      %2247 = vdwg.mxu0
      %v2248 = vmax.f32 %v2245, 0.0
      %v2249 = vmin.f32 %v2248, 6.0
      %s2250 = scalar_lea.vmem %s3, 416
      %v2251 = vld [vmem:[%s2250] sm:$0xff]
      %v2252 = vld [vmem:[%s2250 + $0x8] sm:$0xff]
      %v2253 = vld [vmem:[%s2250 + $0x10] sm:$0xff]
      %v2254 = vld [vmem:[%s2250 + $0x18] sm:$0xff]
      %s2255 = scalar_lea.vmem %s4, 13
      %v2256 = vld [vmem:[%s2255] sm:$0x1]
      %v2258 = vlaneseq
      %v2259 = vshrl.u32 %v2258, 7
      %v2260 = vsub.s32 0, %v2259
      %v2261 = vrot.slane %v2256, %v2260
      %v2264 = vsel %vm408, %v2249, 0
      %2266 = vmatprep.subr.mxu0 0.0
      %2267 = vmatpush1.msra.mxu0 %v2251
      %2268 = vmatprep.subr.mxu0 0.0
      %2269 = vmatpush1.msra.mxu0 %v2252
      %2270 = vmatprep.subr.mxu0 0.0
      %2271 = vmatpush1.msra.mxu0 %v2253
      %2272 = vmatprep.subr.mxu0 0.0
      %2273 = vmatpush1.msra.mxu0 %v2254
      %2274 = vmatprep.subr.mxu0 0.0
      %2275 = vmatpush1.msra.mxu0 0.0
      %2276 = vmatprep.subr.mxu0 0.0
      %2277 = vmatpush1.msra.mxu0 0.0
      %2278 = vmatprep.subr.mxu0 0.0
      %2279 = vmatpush1.msra.mxu0 0.0
      %2280 = vmatprep.subr.mxu0 0.0
      %2281 = vmatpush1.msra.mxu0 0.0
      %2282 = vmatprep.subr.mxu0 0.0
      %2283 = vmatpush1.msra.mxu0 0.0
      %2284 = vmatprep.subr.mxu0 0.0
      %2285 = vmatpush1.msra.mxu0 0.0
      %2286 = vmatprep.subr.mxu0 0.0
      %2287 = vmatpush1.msra.mxu0 0.0
      %2288 = vmatprep.subr.mxu0 0.0
      %2289 = vmatpush1.msra.mxu0 0.0
      %2290 = vmatprep.subr.mxu0 0.0
      %2291 = vmatpush1.msra.mxu0 0.0
      %2292 = vmatprep.subr.mxu0 0.0
      %2293 = vmatpush1.msra.mxu0 0.0
      %2294 = vmatprep.subr.mxu0 0.0
      %2295 = vmatpush1.msra.mxu0 0.0
      %2296 = vmatprep.subr.mxu0 0.0
      %2297 = vmatpush1.msra.mxu0 0.0
      %2298 = vmatprep.subr.mxu0 0.0
      %2299 = vmatpush1.msra.mxu0 0.0
      %2300 = vmatprep.subr.mxu0 0.0
      %2301 = vmatpush1.msra.mxu0 0.0
      %2302 = vmatprep.subr.mxu0 0.0
      %2303 = vmatpush1.msra.mxu0 0.0
      %2304 = vmatprep.subr.mxu0 0.0
      %2305 = vmatpush1.msra.mxu0 0.0
      %2306 = vmatprep.subr.mxu0 0.0
      %2307 = vmatpush1.msra.mxu0 0.0
      %2308 = vmatprep.subr.mxu0 0.0
      %2309 = vmatpush1.msra.mxu0 0.0
      %2310 = vmatprep.subr.mxu0 0.0
      %2311 = vmatpush1.msra.mxu0 0.0
      %2312 = vmatprep.subr.mxu0 0.0
      %2313 = vmatpush1.msra.mxu0 0.0
      %2314 = vmatprep.subr.mxu0 0.0
      %2315 = vmatpush1.msra.mxu0 0.0
      %2316 = vmatprep.subr.mxu0 0.0
      %2317 = vmatpush1.msra.mxu0 0.0
      %2318 = vmatprep.subr.mxu0 0.0
      %2319 = vmatpush1.msra.mxu0 0.0
      %2320 = vmatprep.subr.mxu0 0.0
      %2321 = vmatpush1.msra.mxu0 0.0
      %2322 = vmatprep.subr.mxu0 0.0
      %2323 = vmatpush1.msra.mxu0 0.0
      %2324 = vmatprep.subr.mxu0 0.0
      %2325 = vmatpush1.msra.mxu0 0.0
      %2326 = vmatprep.subr.mxu0 0.0
      %2327 = vmatpush1.msra.mxu0 0.0
      %2328 = vmatprep.subr.mxu0 0.0
      %2329 = vmatpush1.msra.mxu0 0.0
      %2330 = vmatprep.mubr.f32.mxu0 0.0
      %2331 = vmatmul.mubr.f32.gmra.mrb[0].mxu0 %v2264
      %v2332 = vpop.f32.mrb[0].mxu0
      %v2333 = vadd.f32 %v2261, %v2332
      %v2334 = vpop.f32.mrb[0].mxu0
      %2335 = vdwg.mxu0
      %v2336 = vmax.f32 %v2333, 0.0
      %v2337 = vmin.f32 %v2336, 6.0
      %s2338 = scalar_lea.vmem %s3, 448
      %v2339 = vld [vmem:[%s2338] sm:$0xff]
      %v2340 = vld [vmem:[%s2338 + $0x8] sm:$0xff]
      %v2341 = vld [vmem:[%s2338 + $0x10] sm:$0xff]
      %v2342 = vld [vmem:[%s2338 + $0x18] sm:$0xff]
      %s2343 = scalar_lea.vmem %s4, 14
      %v2344 = vld [vmem:[%s2343] sm:$0x1]
      %v2346 = vlaneseq
      %v2347 = vshrl.u32 %v2346, 7
      %v2348 = vsub.s32 0, %v2347
      %v2349 = vrot.slane %v2344, %v2348
      %v2352 = vsel %vm408, %v2337, 0
      %2354 = vmatprep.subr.mxu0 0.0
      %2355 = vmatpush1.msra.mxu0 %v2339
      %2356 = vmatprep.subr.mxu0 0.0
      %2357 = vmatpush1.msra.mxu0 %v2340
      %2358 = vmatprep.subr.mxu0 0.0
      %2359 = vmatpush1.msra.mxu0 %v2341
      %2360 = vmatprep.subr.mxu0 0.0
      %2361 = vmatpush1.msra.mxu0 %v2342
      %2362 = vmatprep.subr.mxu0 0.0
      %2363 = vmatpush1.msra.mxu0 0.0
      %2364 = vmatprep.subr.mxu0 0.0
      %2365 = vmatpush1.msra.mxu0 0.0
      %2366 = vmatprep.subr.mxu0 0.0
      %2367 = vmatpush1.msra.mxu0 0.0
      %2368 = vmatprep.subr.mxu0 0.0
      %2369 = vmatpush1.msra.mxu0 0.0
      %2370 = vmatprep.subr.mxu0 0.0
      %2371 = vmatpush1.msra.mxu0 0.0
      %2372 = vmatprep.subr.mxu0 0.0
      %2373 = vmatpush1.msra.mxu0 0.0
      %2374 = vmatprep.subr.mxu0 0.0
      %2375 = vmatpush1.msra.mxu0 0.0
      %2376 = vmatprep.subr.mxu0 0.0
      %2377 = vmatpush1.msra.mxu0 0.0
      %2378 = vmatprep.subr.mxu0 0.0
      %2379 = vmatpush1.msra.mxu0 0.0
      %2380 = vmatprep.subr.mxu0 0.0
      %2381 = vmatpush1.msra.mxu0 0.0
      %2382 = vmatprep.subr.mxu0 0.0
      %2383 = vmatpush1.msra.mxu0 0.0
      %2384 = vmatprep.subr.mxu0 0.0
      %2385 = vmatpush1.msra.mxu0 0.0
      %2386 = vmatprep.subr.mxu0 0.0
      %2387 = vmatpush1.msra.mxu0 0.0
      %2388 = vmatprep.subr.mxu0 0.0
      %2389 = vmatpush1.msra.mxu0 0.0
      %2390 = vmatprep.subr.mxu0 0.0
      %2391 = vmatpush1.msra.mxu0 0.0
      %2392 = vmatprep.subr.mxu0 0.0
      %2393 = vmatpush1.msra.mxu0 0.0
      %2394 = vmatprep.subr.mxu0 0.0
      %2395 = vmatpush1.msra.mxu0 0.0
      %2396 = vmatprep.subr.mxu0 0.0
      %2397 = vmatpush1.msra.mxu0 0.0
      %2398 = vmatprep.subr.mxu0 0.0
      %2399 = vmatpush1.msra.mxu0 0.0
      %2400 = vmatprep.subr.mxu0 0.0
      %2401 = vmatpush1.msra.mxu0 0.0
      %2402 = vmatprep.subr.mxu0 0.0
      %2403 = vmatpush1.msra.mxu0 0.0
      %2404 = vmatprep.subr.mxu0 0.0
      %2405 = vmatpush1.msra.mxu0 0.0
      %2406 = vmatprep.subr.mxu0 0.0
      %2407 = vmatpush1.msra.mxu0 0.0
      %2408 = vmatprep.subr.mxu0 0.0
      %2409 = vmatpush1.msra.mxu0 0.0
      %2410 = vmatprep.subr.mxu0 0.0
      %2411 = vmatpush1.msra.mxu0 0.0
      %2412 = vmatprep.subr.mxu0 0.0
      %2413 = vmatpush1.msra.mxu0 0.0
      %2414 = vmatprep.subr.mxu0 0.0
      %2415 = vmatpush1.msra.mxu0 0.0
      %2416 = vmatprep.subr.mxu0 0.0
      %2417 = vmatpush1.msra.mxu0 0.0
      %2418 = vmatprep.mubr.f32.mxu0 0.0
      %2419 = vmatmul.mubr.f32.gmra.mrb[0].mxu0 %v2352
      %v2420 = vpop.f32.mrb[0].mxu0
      %v2421 = vadd.f32 %v2349, %v2420
      %v2422 = vpop.f32.mrb[0].mxu0
      %2423 = vdwg.mxu0
      %v2424 = vmax.f32 %v2421, 0.0
      %v2425 = vmin.f32 %v2424, 6.0
      %s2426 = scalar_lea.vmem %s3, 480
      %v2427 = vld [vmem:[%s2426] sm:$0xff]
      %v2428 = vld [vmem:[%s2426 + $0x8] sm:$0xff]
      %v2429 = vld [vmem:[%s2426 + $0x10] sm:$0xff]
      %v2430 = vld [vmem:[%s2426 + $0x18] sm:$0xff]
      %s2431 = scalar_lea.vmem %s4, 15
      %v2432 = vld [vmem:[%s2431] sm:$0x1]
      %v2434 = vlaneseq
      %v2435 = vshrl.u32 %v2434, 7
      %v2436 = vsub.s32 0, %v2435
      %v2437 = vrot.slane %v2432, %v2436
      %v2440 = vsel %vm408, %v2425, 0
      %2442 = vmatprep.subr.mxu0 0.0
      %2443 = vmatpush1.msra.mxu0 %v2427
      %2444 = vmatprep.subr.mxu0 0.0
      %2445 = vmatpush1.msra.mxu0 %v2428
      %2446 = vmatprep.subr.mxu0 0.0
      %2447 = vmatpush1.msra.mxu0 %v2429
      %2448 = vmatprep.subr.mxu0 0.0
      %2449 = vmatpush1.msra.mxu0 %v2430
      %2450 = vmatprep.subr.mxu0 0.0
      %2451 = vmatpush1.msra.mxu0 0.0
      %2452 = vmatprep.subr.mxu0 0.0
      %2453 = vmatpush1.msra.mxu0 0.0
      %2454 = vmatprep.subr.mxu0 0.0
      %2455 = vmatpush1.msra.mxu0 0.0
      %2456 = vmatprep.subr.mxu0 0.0
      %2457 = vmatpush1.msra.mxu0 0.0
      %2458 = vmatprep.subr.mxu0 0.0
      %2459 = vmatpush1.msra.mxu0 0.0
      %2460 = vmatprep.subr.mxu0 0.0
      %2461 = vmatpush1.msra.mxu0 0.0
      %2462 = vmatprep.subr.mxu0 0.0
      %2463 = vmatpush1.msra.mxu0 0.0
      %2464 = vmatprep.subr.mxu0 0.0
      %2465 = vmatpush1.msra.mxu0 0.0
      %2466 = vmatprep.subr.mxu0 0.0
      %2467 = vmatpush1.msra.mxu0 0.0
      %2468 = vmatprep.subr.mxu0 0.0
      %2469 = vmatpush1.msra.mxu0 0.0
      %2470 = vmatprep.subr.mxu0 0.0
      %2471 = vmatpush1.msra.mxu0 0.0
      %2472 = vmatprep.subr.mxu0 0.0
      %2473 = vmatpush1.msra.mxu0 0.0
      %2474 = vmatprep.subr.mxu0 0.0
      %2475 = vmatpush1.msra.mxu0 0.0
      %2476 = vmatprep.subr.mxu0 0.0
      %2477 = vmatpush1.msra.mxu0 0.0
      %2478 = vmatprep.subr.mxu0 0.0
      %2479 = vmatpush1.msra.mxu0 0.0
      %2480 = vmatprep.subr.mxu0 0.0
      %2481 = vmatpush1.msra.mxu0 0.0
      %2482 = vmatprep.subr.mxu0 0.0
      %2483 = vmatpush1.msra.mxu0 0.0
      %2484 = vmatprep.subr.mxu0 0.0
      %2485 = vmatpush1.msra.mxu0 0.0
      %2486 = vmatprep.subr.mxu0 0.0
      %2487 = vmatpush1.msra.mxu0 0.0
      %2488 = vmatprep.subr.mxu0 0.0
      %2489 = vmatpush1.msra.mxu0 0.0
      %2490 = vmatprep.subr.mxu0 0.0
      %2491 = vmatpush1.msra.mxu0 0.0
      %2492 = vmatprep.subr.mxu0 0.0
      %2493 = vmatpush1.msra.mxu0 0.0
      %2494 = vmatprep.subr.mxu0 0.0
      %2495 = vmatpush1.msra.mxu0 0.0
      %2496 = vmatprep.subr.mxu0 0.0
      %2497 = vmatpush1.msra.mxu0 0.0
      %2498 = vmatprep.subr.mxu0 0.0
      %2499 = vmatpush1.msra.mxu0 0.0
      %2500 = vmatprep.subr.mxu0 0.0
      %2501 = vmatpush1.msra.mxu0 0.0
      %2502 = vmatprep.subr.mxu0 0.0
      %2503 = vmatpush1.msra.mxu0 0.0
      %2504 = vmatprep.subr.mxu0 0.0
      %2505 = vmatpush1.msra.mxu0 0.0
      %2506 = vmatprep.mubr.f32.mxu0 0.0
      %2507 = vmatmul.mubr.f32.gmra.mrb[0].mxu0 %v2440
      %v2508 = vpop.f32.mrb[0].mxu0
      %v2509 = vadd.f32 %v2437, %v2508
      %v2510 = vpop.f32.mrb[0].mxu0
      %2511 = vdwg.mxu0
      %s2512 = scalar_lea.vmem %s5, 128
      %v2513 = vld [vmem:[%s2512] sm:$0xff]
      %v2514 = vld [vmem:[%s2512 + $0x8] sm:$0xff]
      %s2515 = scalar_lea.vmem %s6, 128
      %v2516 = vld [vmem:[%s2515] sm:$0xff]
      %v2517 = vld [vmem:[%s2515 + $0x8] sm:$0xff]
      %2519 = vset.pattern.permute.xlu0 0
      %2520 = vperm.xlu0 %2519, %v2516
      %v2521 = vpop.permute.xlu0 %2520
      %2524 = vset.pattern.permute.xlu0 0
      %2525 = vperm.xlu0 %2524, %v2517
      %v2526 = vpop.permute.xlu0 %2525
      %v2529 = vsel %vm1024, %v2513, 0
      %v2532 = vsel %vm1024, %v2514, 0
      %v2535 = vsel %vm1031, %v2509, 0
      %2537 = vmatprep.subr.mxu0 0.0
      %2538 = vmatpush1.msra.mxu0 %v2535
      %2539 = vmatprep.subr.mxu0 0.0
      %2540 = vmatpush1.msra.mxu0 0.0
      %2541 = vmatprep.subr.mxu0 0.0
      %2542 = vmatpush1.msra.mxu0 0.0
      %2543 = vmatprep.subr.mxu0 0.0
      %2544 = vmatpush1.msra.mxu0 0.0
      %2545 = vmatprep.subr.mxu0 0.0
      %2546 = vmatpush1.msra.mxu0 0.0
      %2547 = vmatprep.subr.mxu0 0.0
      %2548 = vmatpush1.msra.mxu0 0.0
      %2549 = vmatprep.subr.mxu0 0.0
      %2550 = vmatpush1.msra.mxu0 0.0
      %2551 = vmatprep.subr.mxu0 0.0
      %2552 = vmatpush1.msra.mxu0 0.0
      %2553 = vmatprep.subr.mxu0 0.0
      %2554 = vmatpush1.msra.mxu0 0.0
      %2555 = vmatprep.subr.mxu0 0.0
      %2556 = vmatpush1.msra.mxu0 0.0
      %2557 = vmatprep.subr.mxu0 0.0
      %2558 = vmatpush1.msra.mxu0 0.0
      %2559 = vmatprep.subr.mxu0 0.0
      %2560 = vmatpush1.msra.mxu0 0.0
      %2561 = vmatprep.subr.mxu0 0.0
      %2562 = vmatpush1.msra.mxu0 0.0
      %2563 = vmatprep.subr.mxu0 0.0
      %2564 = vmatpush1.msra.mxu0 0.0
      %2565 = vmatprep.subr.mxu0 0.0
      %2566 = vmatpush1.msra.mxu0 0.0
      %2567 = vmatprep.subr.mxu0 0.0
      %2568 = vmatpush1.msra.mxu0 0.0
      %2569 = vmatprep.subr.mxu0 0.0
      %2570 = vmatpush1.msra.mxu0 0.0
      %2571 = vmatprep.subr.mxu0 0.0
      %2572 = vmatpush1.msra.mxu0 0.0
      %2573 = vmatprep.subr.mxu0 0.0
      %2574 = vmatpush1.msra.mxu0 0.0
      %2575 = vmatprep.subr.mxu0 0.0
      %2576 = vmatpush1.msra.mxu0 0.0
      %2577 = vmatprep.subr.mxu0 0.0
      %2578 = vmatpush1.msra.mxu0 0.0
      %2579 = vmatprep.subr.mxu0 0.0
      %2580 = vmatpush1.msra.mxu0 0.0
      %2581 = vmatprep.subr.mxu0 0.0
      %2582 = vmatpush1.msra.mxu0 0.0
      %2583 = vmatprep.subr.mxu0 0.0
      %2584 = vmatpush1.msra.mxu0 0.0
      %2585 = vmatprep.subr.mxu0 0.0
      %2586 = vmatpush1.msra.mxu0 0.0
      %2587 = vmatprep.subr.mxu0 0.0
      %2588 = vmatpush1.msra.mxu0 0.0
      %2589 = vmatprep.subr.mxu0 0.0
      %2590 = vmatpush1.msra.mxu0 0.0
      %2591 = vmatprep.subr.mxu0 0.0
      %2592 = vmatpush1.msra.mxu0 0.0
      %2593 = vmatprep.subr.mxu0 0.0
      %2594 = vmatpush1.msra.mxu0 0.0
      %2595 = vmatprep.subr.mxu0 0.0
      %2596 = vmatpush1.msra.mxu0 0.0
      %2597 = vmatprep.subr.mxu0 0.0
      %2598 = vmatpush1.msra.mxu0 0.0
      %2599 = vmatprep.subr.mxu0 0.0
      %2600 = vmatpush1.msra.mxu0 0.0
      %2601 = vmatprep.mubr.f32.mxu0 0.0
      %2602 = vmatmul.mubr.f32.gmra.mrb[0].mxu0 %v2529
      %v2603 = vpop.f32.mrb[0].mxu0
      %v2604 = vadd.f32 %v2521, %v2603
      %v2605 = vpop.f32.mrb[0].mxu0
      %2606 = vmatprep.mubr.f32.mxu0 0.0
      %2607 = vmatmul.mubr.f32.gmra.mrb[0].mxu0 %v2532
      %v2608 = vpop.f32.mrb[0].mxu0
      %v2609 = vadd.f32 %v2526, %v2608
      %v2610 = vpop.f32.mrb[0].mxu0
      %2611 = vdwg.mxu0
      %v2612 = vmax.f32 %v2604, 0.0
      %v2613 = vmax.f32 %v2609, 0.0
      %v2614 = vmin.f32 %v2612, 6.0
      %v2615 = vmin.f32 %v2613, 6.0
      %s2616 = scalar_lea.vmem %s5, 144
      %v2617 = vld [vmem:[%s2616] sm:$0xff]
      %v2618 = vld [vmem:[%s2616 + $0x8] sm:$0xff]
      %s2619 = scalar_lea.vmem %s6, 144
      %v2620 = vld [vmem:[%s2619] sm:$0xff]
      %v2621 = vld [vmem:[%s2619 + $0x8] sm:$0xff]
      %2623 = vset.pattern.permute.xlu0 0
      %2624 = vperm.xlu0 %2623, %v2620
      %v2625 = vpop.permute.xlu0 %2624
      %2628 = vset.pattern.permute.xlu0 0
      %2629 = vperm.xlu0 %2628, %v2621
      %v2630 = vpop.permute.xlu0 %2629
      %v2633 = vsel %vm1130, %v2617, 0
      %v2636 = vsel %vm1130, %v2618, 0
      %2638 = vmatprep.subr.mxu0 0.0
      %2639 = vmatpush1.msra.mxu0 %v2614
      %2640 = vmatprep.subr.mxu0 0.0
      %2641 = vmatpush1.msra.mxu0 %v2615
      %2642 = vmatprep.subr.mxu0 0.0
      %2643 = vmatpush1.msra.mxu0 0.0
      %2644 = vmatprep.subr.mxu0 0.0
      %2645 = vmatpush1.msra.mxu0 0.0
      %2646 = vmatprep.subr.mxu0 0.0
      %2647 = vmatpush1.msra.mxu0 0.0
      %2648 = vmatprep.subr.mxu0 0.0
      %2649 = vmatpush1.msra.mxu0 0.0
      %2650 = vmatprep.subr.mxu0 0.0
      %2651 = vmatpush1.msra.mxu0 0.0
      %2652 = vmatprep.subr.mxu0 0.0
      %2653 = vmatpush1.msra.mxu0 0.0
      %2654 = vmatprep.subr.mxu0 0.0
      %2655 = vmatpush1.msra.mxu0 0.0
      %2656 = vmatprep.subr.mxu0 0.0
      %2657 = vmatpush1.msra.mxu0 0.0
      %2658 = vmatprep.subr.mxu0 0.0
      %2659 = vmatpush1.msra.mxu0 0.0
      %2660 = vmatprep.subr.mxu0 0.0
      %2661 = vmatpush1.msra.mxu0 0.0
      %2662 = vmatprep.subr.mxu0 0.0
      %2663 = vmatpush1.msra.mxu0 0.0
      %2664 = vmatprep.subr.mxu0 0.0
      %2665 = vmatpush1.msra.mxu0 0.0
      %2666 = vmatprep.subr.mxu0 0.0
      %2667 = vmatpush1.msra.mxu0 0.0
      %2668 = vmatprep.subr.mxu0 0.0
      %2669 = vmatpush1.msra.mxu0 0.0
      %2670 = vmatprep.subr.mxu0 0.0
      %2671 = vmatpush1.msra.mxu0 0.0
      %2672 = vmatprep.subr.mxu0 0.0
      %2673 = vmatpush1.msra.mxu0 0.0
      %2674 = vmatprep.subr.mxu0 0.0
      %2675 = vmatpush1.msra.mxu0 0.0
      %2676 = vmatprep.subr.mxu0 0.0
      %2677 = vmatpush1.msra.mxu0 0.0
      %2678 = vmatprep.subr.mxu0 0.0
      %2679 = vmatpush1.msra.mxu0 0.0
      %2680 = vmatprep.subr.mxu0 0.0
      %2681 = vmatpush1.msra.mxu0 0.0
      %2682 = vmatprep.subr.mxu0 0.0
      %2683 = vmatpush1.msra.mxu0 0.0
      %2684 = vmatprep.subr.mxu0 0.0
      %2685 = vmatpush1.msra.mxu0 0.0
      %2686 = vmatprep.subr.mxu0 0.0
      %2687 = vmatpush1.msra.mxu0 0.0
      %2688 = vmatprep.subr.mxu0 0.0
      %2689 = vmatpush1.msra.mxu0 0.0
      %2690 = vmatprep.subr.mxu0 0.0
      %2691 = vmatpush1.msra.mxu0 0.0
      %2692 = vmatprep.subr.mxu0 0.0
      %2693 = vmatpush1.msra.mxu0 0.0
      %2694 = vmatprep.subr.mxu0 0.0
      %2695 = vmatpush1.msra.mxu0 0.0
      %2696 = vmatprep.subr.mxu0 0.0
      %2697 = vmatpush1.msra.mxu0 0.0
      %2698 = vmatprep.subr.mxu0 0.0
      %2699 = vmatpush1.msra.mxu0 0.0
      %2700 = vmatprep.subr.mxu0 0.0
      %2701 = vmatpush1.msra.mxu0 0.0
      %2702 = vmatprep.mubr.f32.mxu0 0.0
      %2703 = vmatmul.mubr.f32.gmra.mrb[0].mxu0 %v2633
      %v2704 = vpop.f32.mrb[0].mxu0
      %v2705 = vadd.f32 %v2625, %v2704
      %v2706 = vpop.f32.mrb[0].mxu0
      %2707 = vmatprep.mubr.f32.mxu0 0.0
      %2708 = vmatmul.mubr.f32.gmra.mrb[0].mxu0 %v2636
      %v2709 = vpop.f32.mrb[0].mxu0
      %v2710 = vadd.f32 %v2630, %v2709
      %v2711 = vpop.f32.mrb[0].mxu0
      %2712 = vdwg.mxu0
      %v2713 = vmax.f32 %v2705, 0.0
      %v2714 = vmax.f32 %v2710, 0.0
      %v2715 = vmin.f32 %v2713, 6.0
      %v2716 = vmin.f32 %v2714, 6.0
      %s2717 = scalar_lea.vmem %s5, 160
      %v2718 = vld [vmem:[%s2717] sm:$0xff]
      %v2719 = vld [vmem:[%s2717 + $0x8] sm:$0xff]
      %s2720 = scalar_lea.vmem %s6, 160
      %v2721 = vld [vmem:[%s2720] sm:$0xff]
      %v2722 = vld [vmem:[%s2720 + $0x8] sm:$0xff]
      %2724 = vset.pattern.permute.xlu0 0
      %2725 = vperm.xlu0 %2724, %v2721
      %v2726 = vpop.permute.xlu0 %2725
      %2729 = vset.pattern.permute.xlu0 0
      %2730 = vperm.xlu0 %2729, %v2722
      %v2731 = vpop.permute.xlu0 %2730
      %v2734 = vsel %vm1130, %v2718, 0
      %v2737 = vsel %vm1130, %v2719, 0
      %2739 = vmatprep.subr.mxu0 0.0
      %2740 = vmatpush1.msra.mxu0 %v2715
      %2741 = vmatprep.subr.mxu0 0.0
      %2742 = vmatpush1.msra.mxu0 %v2716
      %2743 = vmatprep.subr.mxu0 0.0
      %2744 = vmatpush1.msra.mxu0 0.0
      %2745 = vmatprep.subr.mxu0 0.0
      %2746 = vmatpush1.msra.mxu0 0.0
      %2747 = vmatprep.subr.mxu0 0.0
      %2748 = vmatpush1.msra.mxu0 0.0
      %2749 = vmatprep.subr.mxu0 0.0
      %2750 = vmatpush1.msra.mxu0 0.0
      %2751 = vmatprep.subr.mxu0 0.0
      %2752 = vmatpush1.msra.mxu0 0.0
      %2753 = vmatprep.subr.mxu0 0.0
      %2754 = vmatpush1.msra.mxu0 0.0
      %2755 = vmatprep.subr.mxu0 0.0
      %2756 = vmatpush1.msra.mxu0 0.0
      %2757 = vmatprep.subr.mxu0 0.0
      %2758 = vmatpush1.msra.mxu0 0.0
      %2759 = vmatprep.subr.mxu0 0.0
      %2760 = vmatpush1.msra.mxu0 0.0
      %2761 = vmatprep.subr.mxu0 0.0
      %2762 = vmatpush1.msra.mxu0 0.0
      %2763 = vmatprep.subr.mxu0 0.0
      %2764 = vmatpush1.msra.mxu0 0.0
      %2765 = vmatprep.subr.mxu0 0.0
      %2766 = vmatpush1.msra.mxu0 0.0
      %2767 = vmatprep.subr.mxu0 0.0
      %2768 = vmatpush1.msra.mxu0 0.0
      %2769 = vmatprep.subr.mxu0 0.0
      %2770 = vmatpush1.msra.mxu0 0.0
      %2771 = vmatprep.subr.mxu0 0.0
      %2772 = vmatpush1.msra.mxu0 0.0
      %2773 = vmatprep.subr.mxu0 0.0
      %2774 = vmatpush1.msra.mxu0 0.0
      %2775 = vmatprep.subr.mxu0 0.0
      %2776 = vmatpush1.msra.mxu0 0.0
      %2777 = vmatprep.subr.mxu0 0.0
      %2778 = vmatpush1.msra.mxu0 0.0
      %2779 = vmatprep.subr.mxu0 0.0
      %2780 = vmatpush1.msra.mxu0 0.0
      %2781 = vmatprep.subr.mxu0 0.0
      %2782 = vmatpush1.msra.mxu0 0.0
      %2783 = vmatprep.subr.mxu0 0.0
      %2784 = vmatpush1.msra.mxu0 0.0
      %2785 = vmatprep.subr.mxu0 0.0
      %2786 = vmatpush1.msra.mxu0 0.0
      %2787 = vmatprep.subr.mxu0 0.0
      %2788 = vmatpush1.msra.mxu0 0.0
      %2789 = vmatprep.subr.mxu0 0.0
      %2790 = vmatpush1.msra.mxu0 0.0
      %2791 = vmatprep.subr.mxu0 0.0
      %2792 = vmatpush1.msra.mxu0 0.0
      %2793 = vmatprep.subr.mxu0 0.0
      %2794 = vmatpush1.msra.mxu0 0.0
      %2795 = vmatprep.subr.mxu0 0.0
      %2796 = vmatpush1.msra.mxu0 0.0
      %2797 = vmatprep.subr.mxu0 0.0
      %2798 = vmatpush1.msra.mxu0 0.0
      %2799 = vmatprep.subr.mxu0 0.0
      %2800 = vmatpush1.msra.mxu0 0.0
      %2801 = vmatprep.subr.mxu0 0.0
      %2802 = vmatpush1.msra.mxu0 0.0
      %2803 = vmatprep.mubr.f32.mxu0 0.0
      %2804 = vmatmul.mubr.f32.gmra.mrb[0].mxu0 %v2734
      %v2805 = vpop.f32.mrb[0].mxu0
      %v2806 = vadd.f32 %v2726, %v2805
      %v2807 = vpop.f32.mrb[0].mxu0
      %2808 = vmatprep.mubr.f32.mxu0 0.0
      %2809 = vmatmul.mubr.f32.gmra.mrb[0].mxu0 %v2737
      %v2810 = vpop.f32.mrb[0].mxu0
      %v2811 = vadd.f32 %v2731, %v2810
      %v2812 = vpop.f32.mrb[0].mxu0
      %2813 = vdwg.mxu0
      %v2814 = vmax.f32 %v2806, 0.0
      %v2815 = vmax.f32 %v2811, 0.0
      %v2816 = vmin.f32 %v2814, 6.0
      %v2817 = vmin.f32 %v2815, 6.0
      %s2818 = scalar_lea.vmem %s5, 176
      %v2819 = vld [vmem:[%s2818] sm:$0xff]
      %v2820 = vld [vmem:[%s2818 + $0x8] sm:$0xff]
      %s2821 = scalar_lea.vmem %s6, 176
      %v2822 = vld [vmem:[%s2821] sm:$0xff]
      %v2823 = vld [vmem:[%s2821 + $0x8] sm:$0xff]
      %2825 = vset.pattern.permute.xlu0 0
      %2826 = vperm.xlu0 %2825, %v2822
      %v2827 = vpop.permute.xlu0 %2826
      %2830 = vset.pattern.permute.xlu0 0
      %2831 = vperm.xlu0 %2830, %v2823
      %v2832 = vpop.permute.xlu0 %2831
      %v2835 = vsel %vm1130, %v2819, 0
      %v2838 = vsel %vm1130, %v2820, 0
      %2840 = vmatprep.subr.mxu0 0.0
      %2841 = vmatpush1.msra.mxu0 %v2816
      %2842 = vmatprep.subr.mxu0 0.0
      %2843 = vmatpush1.msra.mxu0 %v2817
      %2844 = vmatprep.subr.mxu0 0.0
      %2845 = vmatpush1.msra.mxu0 0.0
      %2846 = vmatprep.subr.mxu0 0.0
      %2847 = vmatpush1.msra.mxu0 0.0
      %2848 = vmatprep.subr.mxu0 0.0
      %2849 = vmatpush1.msra.mxu0 0.0
      %2850 = vmatprep.subr.mxu0 0.0
      %2851 = vmatpush1.msra.mxu0 0.0
      %2852 = vmatprep.subr.mxu0 0.0
      %2853 = vmatpush1.msra.mxu0 0.0
      %2854 = vmatprep.subr.mxu0 0.0
      %2855 = vmatpush1.msra.mxu0 0.0
      %2856 = vmatprep.subr.mxu0 0.0
      %2857 = vmatpush1.msra.mxu0 0.0
      %2858 = vmatprep.subr.mxu0 0.0
      %2859 = vmatpush1.msra.mxu0 0.0
      %2860 = vmatprep.subr.mxu0 0.0
      %2861 = vmatpush1.msra.mxu0 0.0
      %2862 = vmatprep.subr.mxu0 0.0
      %2863 = vmatpush1.msra.mxu0 0.0
      %2864 = vmatprep.subr.mxu0 0.0
      %2865 = vmatpush1.msra.mxu0 0.0
      %2866 = vmatprep.subr.mxu0 0.0
      %2867 = vmatpush1.msra.mxu0 0.0
      %2868 = vmatprep.subr.mxu0 0.0
      %2869 = vmatpush1.msra.mxu0 0.0
      %2870 = vmatprep.subr.mxu0 0.0
      %2871 = vmatpush1.msra.mxu0 0.0
      %2872 = vmatprep.subr.mxu0 0.0
      %2873 = vmatpush1.msra.mxu0 0.0
      %2874 = vmatprep.subr.mxu0 0.0
      %2875 = vmatpush1.msra.mxu0 0.0
      %2876 = vmatprep.subr.mxu0 0.0
      %2877 = vmatpush1.msra.mxu0 0.0
      %2878 = vmatprep.subr.mxu0 0.0
      %2879 = vmatpush1.msra.mxu0 0.0
      %2880 = vmatprep.subr.mxu0 0.0
      %2881 = vmatpush1.msra.mxu0 0.0
      %2882 = vmatprep.subr.mxu0 0.0
      %2883 = vmatpush1.msra.mxu0 0.0
      %2884 = vmatprep.subr.mxu0 0.0
      %2885 = vmatpush1.msra.mxu0 0.0
      %2886 = vmatprep.subr.mxu0 0.0
      %2887 = vmatpush1.msra.mxu0 0.0
      %2888 = vmatprep.subr.mxu0 0.0
      %2889 = vmatpush1.msra.mxu0 0.0
      %2890 = vmatprep.subr.mxu0 0.0
      %2891 = vmatpush1.msra.mxu0 0.0
      %2892 = vmatprep.subr.mxu0 0.0
      %2893 = vmatpush1.msra.mxu0 0.0
      %2894 = vmatprep.subr.mxu0 0.0
      %2895 = vmatpush1.msra.mxu0 0.0
      %2896 = vmatprep.subr.mxu0 0.0
      %2897 = vmatpush1.msra.mxu0 0.0
      %2898 = vmatprep.subr.mxu0 0.0
      %2899 = vmatpush1.msra.mxu0 0.0
      %2900 = vmatprep.subr.mxu0 0.0
      %2901 = vmatpush1.msra.mxu0 0.0
      %2902 = vmatprep.subr.mxu0 0.0
      %2903 = vmatpush1.msra.mxu0 0.0
      %2904 = vmatprep.mubr.f32.mxu0 0.0
      %2905 = vmatmul.mubr.f32.gmra.mrb[0].mxu0 %v2835
      %v2906 = vpop.f32.mrb[0].mxu0
      %v2907 = vadd.f32 %v2827, %v2906
      %v2908 = vpop.f32.mrb[0].mxu0
      %2909 = vmatprep.mubr.f32.mxu0 0.0
      %2910 = vmatmul.mubr.f32.gmra.mrb[0].mxu0 %v2838
      %v2911 = vpop.f32.mrb[0].mxu0
      %v2912 = vadd.f32 %v2832, %v2911
      %v2913 = vpop.f32.mrb[0].mxu0
      %2914 = vdwg.mxu0
      %v2915 = vmax.f32 %v2907, 0.0
      %v2916 = vmax.f32 %v2912, 0.0
      %v2917 = vmin.f32 %v2915, 6.0
      %v2918 = vmin.f32 %v2916, 6.0
      %s2919 = scalar_lea.vmem %s5, 192
      %v2920 = vld [vmem:[%s2919] sm:$0xff]
      %v2921 = vld [vmem:[%s2919 + $0x8] sm:$0xff]
      %s2922 = scalar_lea.vmem %s6, 192
      %v2923 = vld [vmem:[%s2922] sm:$0xff]
      %v2924 = vld [vmem:[%s2922 + $0x8] sm:$0xff]
      %2926 = vset.pattern.permute.xlu0 0
      %2927 = vperm.xlu0 %2926, %v2923
      %v2928 = vpop.permute.xlu0 %2927
      %2931 = vset.pattern.permute.xlu0 0
      %2932 = vperm.xlu0 %2931, %v2924
      %v2933 = vpop.permute.xlu0 %2932
      %v2936 = vsel %vm1130, %v2920, 0
      %v2939 = vsel %vm1130, %v2921, 0
      %2941 = vmatprep.subr.mxu0 0.0
      %2942 = vmatpush1.msra.mxu0 %v2917
      %2943 = vmatprep.subr.mxu0 0.0
      %2944 = vmatpush1.msra.mxu0 %v2918
      %2945 = vmatprep.subr.mxu0 0.0
      %2946 = vmatpush1.msra.mxu0 0.0
      %2947 = vmatprep.subr.mxu0 0.0
      %2948 = vmatpush1.msra.mxu0 0.0
      %2949 = vmatprep.subr.mxu0 0.0
      %2950 = vmatpush1.msra.mxu0 0.0
      %2951 = vmatprep.subr.mxu0 0.0
      %2952 = vmatpush1.msra.mxu0 0.0
      %2953 = vmatprep.subr.mxu0 0.0
      %2954 = vmatpush1.msra.mxu0 0.0
      %2955 = vmatprep.subr.mxu0 0.0
      %2956 = vmatpush1.msra.mxu0 0.0
      %2957 = vmatprep.subr.mxu0 0.0
      %2958 = vmatpush1.msra.mxu0 0.0
      %2959 = vmatprep.subr.mxu0 0.0
      %2960 = vmatpush1.msra.mxu0 0.0
      %2961 = vmatprep.subr.mxu0 0.0
      %2962 = vmatpush1.msra.mxu0 0.0
      %2963 = vmatprep.subr.mxu0 0.0
      %2964 = vmatpush1.msra.mxu0 0.0
      %2965 = vmatprep.subr.mxu0 0.0
      %2966 = vmatpush1.msra.mxu0 0.0
      %2967 = vmatprep.subr.mxu0 0.0
      %2968 = vmatpush1.msra.mxu0 0.0
      %2969 = vmatprep.subr.mxu0 0.0
      %2970 = vmatpush1.msra.mxu0 0.0
      %2971 = vmatprep.subr.mxu0 0.0
      %2972 = vmatpush1.msra.mxu0 0.0
      %2973 = vmatprep.subr.mxu0 0.0
      %2974 = vmatpush1.msra.mxu0 0.0
      %2975 = vmatprep.subr.mxu0 0.0
      %2976 = vmatpush1.msra.mxu0 0.0
      %2977 = vmatprep.subr.mxu0 0.0
      %2978 = vmatpush1.msra.mxu0 0.0
      %2979 = vmatprep.subr.mxu0 0.0
      %2980 = vmatpush1.msra.mxu0 0.0
      %2981 = vmatprep.subr.mxu0 0.0
      %2982 = vmatpush1.msra.mxu0 0.0
      %2983 = vmatprep.subr.mxu0 0.0
      %2984 = vmatpush1.msra.mxu0 0.0
      %2985 = vmatprep.subr.mxu0 0.0
      %2986 = vmatpush1.msra.mxu0 0.0
      %2987 = vmatprep.subr.mxu0 0.0
      %2988 = vmatpush1.msra.mxu0 0.0
      %2989 = vmatprep.subr.mxu0 0.0
      %2990 = vmatpush1.msra.mxu0 0.0
      %2991 = vmatprep.subr.mxu0 0.0
      %2992 = vmatpush1.msra.mxu0 0.0
      %2993 = vmatprep.subr.mxu0 0.0
      %2994 = vmatpush1.msra.mxu0 0.0
      %2995 = vmatprep.subr.mxu0 0.0
      %2996 = vmatpush1.msra.mxu0 0.0
      %2997 = vmatprep.subr.mxu0 0.0
      %2998 = vmatpush1.msra.mxu0 0.0
      %2999 = vmatprep.subr.mxu0 0.0
      %3000 = vmatpush1.msra.mxu0 0.0
      %3001 = vmatprep.subr.mxu0 0.0
      %3002 = vmatpush1.msra.mxu0 0.0
      %3003 = vmatprep.subr.mxu0 0.0
      %3004 = vmatpush1.msra.mxu0 0.0
      %3005 = vmatprep.mubr.f32.mxu0 0.0
      %3006 = vmatmul.mubr.f32.gmra.mrb[0].mxu0 %v2936
      %v3007 = vpop.f32.mrb[0].mxu0
      %v3008 = vadd.f32 %v2928, %v3007
      %v3009 = vpop.f32.mrb[0].mxu0
      %3010 = vmatprep.mubr.f32.mxu0 0.0
      %3011 = vmatmul.mubr.f32.gmra.mrb[0].mxu0 %v2939
      %v3012 = vpop.f32.mrb[0].mxu0
      %v3013 = vadd.f32 %v2933, %v3012
      %v3014 = vpop.f32.mrb[0].mxu0
      %3015 = vdwg.mxu0
      %v3016 = vmax.f32 %v3008, 0.0
      %v3017 = vmax.f32 %v3013, 0.0
      %v3018 = vmin.f32 %v3016, 6.0
      %v3019 = vmin.f32 %v3017, 6.0
      %s3020 = scalar_lea.vmem %s5, 208
      %v3021 = vld [vmem:[%s3020] sm:$0xff]
      %v3022 = vld [vmem:[%s3020 + $0x8] sm:$0xff]
      %s3023 = scalar_lea.vmem %s6, 208
      %v3024 = vld [vmem:[%s3023] sm:$0xff]
      %v3025 = vld [vmem:[%s3023 + $0x8] sm:$0xff]
      %3027 = vset.pattern.permute.xlu0 0
      %3028 = vperm.xlu0 %3027, %v3024
      %v3029 = vpop.permute.xlu0 %3028
      %3032 = vset.pattern.permute.xlu0 0
      %3033 = vperm.xlu0 %3032, %v3025
      %v3034 = vpop.permute.xlu0 %3033
      %v3037 = vsel %vm1130, %v3021, 0
      %v3040 = vsel %vm1130, %v3022, 0
      %3042 = vmatprep.subr.mxu0 0.0
      %3043 = vmatpush1.msra.mxu0 %v3018
      %3044 = vmatprep.subr.mxu0 0.0
      %3045 = vmatpush1.msra.mxu0 %v3019
      %3046 = vmatprep.subr.mxu0 0.0
      %3047 = vmatpush1.msra.mxu0 0.0
      %3048 = vmatprep.subr.mxu0 0.0
      %3049 = vmatpush1.msra.mxu0 0.0
      %3050 = vmatprep.subr.mxu0 0.0
      %3051 = vmatpush1.msra.mxu0 0.0
      %3052 = vmatprep.subr.mxu0 0.0
      %3053 = vmatpush1.msra.mxu0 0.0
      %3054 = vmatprep.subr.mxu0 0.0
      %3055 = vmatpush1.msra.mxu0 0.0
      %3056 = vmatprep.subr.mxu0 0.0
      %3057 = vmatpush1.msra.mxu0 0.0
      %3058 = vmatprep.subr.mxu0 0.0
      %3059 = vmatpush1.msra.mxu0 0.0
      %3060 = vmatprep.subr.mxu0 0.0
      %3061 = vmatpush1.msra.mxu0 0.0
      %3062 = vmatprep.subr.mxu0 0.0
      %3063 = vmatpush1.msra.mxu0 0.0
      %3064 = vmatprep.subr.mxu0 0.0
      %3065 = vmatpush1.msra.mxu0 0.0
      %3066 = vmatprep.subr.mxu0 0.0
      %3067 = vmatpush1.msra.mxu0 0.0
      %3068 = vmatprep.subr.mxu0 0.0
      %3069 = vmatpush1.msra.mxu0 0.0
      %3070 = vmatprep.subr.mxu0 0.0
      %3071 = vmatpush1.msra.mxu0 0.0
      %3072 = vmatprep.subr.mxu0 0.0
      %3073 = vmatpush1.msra.mxu0 0.0
      %3074 = vmatprep.subr.mxu0 0.0
      %3075 = vmatpush1.msra.mxu0 0.0
      %3076 = vmatprep.subr.mxu0 0.0
      %3077 = vmatpush1.msra.mxu0 0.0
      %3078 = vmatprep.subr.mxu0 0.0
      %3079 = vmatpush1.msra.mxu0 0.0
      %3080 = vmatprep.subr.mxu0 0.0
      %3081 = vmatpush1.msra.mxu0 0.0
      %3082 = vmatprep.subr.mxu0 0.0
      %3083 = vmatpush1.msra.mxu0 0.0
      %3084 = vmatprep.subr.mxu0 0.0
      %3085 = vmatpush1.msra.mxu0 0.0
      %3086 = vmatprep.subr.mxu0 0.0
      %3087 = vmatpush1.msra.mxu0 0.0
      %3088 = vmatprep.subr.mxu0 0.0
      %3089 = vmatpush1.msra.mxu0 0.0
      %3090 = vmatprep.subr.mxu0 0.0
      %3091 = vmatpush1.msra.mxu0 0.0
      %3092 = vmatprep.subr.mxu0 0.0
      %3093 = vmatpush1.msra.mxu0 0.0
      %3094 = vmatprep.subr.mxu0 0.0
      %3095 = vmatpush1.msra.mxu0 0.0
      %3096 = vmatprep.subr.mxu0 0.0
      %3097 = vmatpush1.msra.mxu0 0.0
      %3098 = vmatprep.subr.mxu0 0.0
      %3099 = vmatpush1.msra.mxu0 0.0
      %3100 = vmatprep.subr.mxu0 0.0
      %3101 = vmatpush1.msra.mxu0 0.0
      %3102 = vmatprep.subr.mxu0 0.0
      %3103 = vmatpush1.msra.mxu0 0.0
      %3104 = vmatprep.subr.mxu0 0.0
      %3105 = vmatpush1.msra.mxu0 0.0
      %3106 = vmatprep.mubr.f32.mxu0 0.0
      %3107 = vmatmul.mubr.f32.gmra.mrb[0].mxu0 %v3037
      %v3108 = vpop.f32.mrb[0].mxu0
      %v3109 = vadd.f32 %v3029, %v3108
      %v3110 = vpop.f32.mrb[0].mxu0
      %3111 = vmatprep.mubr.f32.mxu0 0.0
      %3112 = vmatmul.mubr.f32.gmra.mrb[0].mxu0 %v3040
      %v3113 = vpop.f32.mrb[0].mxu0
      %v3114 = vadd.f32 %v3034, %v3113
      %v3115 = vpop.f32.mrb[0].mxu0
      %3116 = vdwg.mxu0
      %v3117 = vmax.f32 %v3109, 0.0
      %v3118 = vmax.f32 %v3114, 0.0
      %v3119 = vmin.f32 %v3117, 6.0
      %v3120 = vmin.f32 %v3118, 6.0
      %s3121 = scalar_lea.vmem %s5, 224
      %v3122 = vld [vmem:[%s3121] sm:$0xff]
      %v3123 = vld [vmem:[%s3121 + $0x8] sm:$0xff]
      %s3124 = scalar_lea.vmem %s6, 224
      %v3125 = vld [vmem:[%s3124] sm:$0xff]
      %v3126 = vld [vmem:[%s3124 + $0x8] sm:$0xff]
      %3128 = vset.pattern.permute.xlu0 0
      %3129 = vperm.xlu0 %3128, %v3125
      %v3130 = vpop.permute.xlu0 %3129
      %3133 = vset.pattern.permute.xlu0 0
      %3134 = vperm.xlu0 %3133, %v3126
      %v3135 = vpop.permute.xlu0 %3134
      %v3138 = vsel %vm1130, %v3122, 0
      %v3141 = vsel %vm1130, %v3123, 0
      %3143 = vmatprep.subr.mxu0 0.0
      %3144 = vmatpush1.msra.mxu0 %v3119
      %3145 = vmatprep.subr.mxu0 0.0
      %3146 = vmatpush1.msra.mxu0 %v3120
      %3147 = vmatprep.subr.mxu0 0.0
      %3148 = vmatpush1.msra.mxu0 0.0
      %3149 = vmatprep.subr.mxu0 0.0
      %3150 = vmatpush1.msra.mxu0 0.0
      %3151 = vmatprep.subr.mxu0 0.0
      %3152 = vmatpush1.msra.mxu0 0.0
      %3153 = vmatprep.subr.mxu0 0.0
      %3154 = vmatpush1.msra.mxu0 0.0
      %3155 = vmatprep.subr.mxu0 0.0
      %3156 = vmatpush1.msra.mxu0 0.0
      %3157 = vmatprep.subr.mxu0 0.0
      %3158 = vmatpush1.msra.mxu0 0.0
      %3159 = vmatprep.subr.mxu0 0.0
      %3160 = vmatpush1.msra.mxu0 0.0
      %3161 = vmatprep.subr.mxu0 0.0
      %3162 = vmatpush1.msra.mxu0 0.0
      %3163 = vmatprep.subr.mxu0 0.0
      %3164 = vmatpush1.msra.mxu0 0.0
      %3165 = vmatprep.subr.mxu0 0.0
      %3166 = vmatpush1.msra.mxu0 0.0
      %3167 = vmatprep.subr.mxu0 0.0
      %3168 = vmatpush1.msra.mxu0 0.0
      %3169 = vmatprep.subr.mxu0 0.0
      %3170 = vmatpush1.msra.mxu0 0.0
      %3171 = vmatprep.subr.mxu0 0.0
      %3172 = vmatpush1.msra.mxu0 0.0
      %3173 = vmatprep.subr.mxu0 0.0
      %3174 = vmatpush1.msra.mxu0 0.0
      %3175 = vmatprep.subr.mxu0 0.0
      %3176 = vmatpush1.msra.mxu0 0.0
      %3177 = vmatprep.subr.mxu0 0.0
      %3178 = vmatpush1.msra.mxu0 0.0
      %3179 = vmatprep.subr.mxu0 0.0
      %3180 = vmatpush1.msra.mxu0 0.0
      %3181 = vmatprep.subr.mxu0 0.0
      %3182 = vmatpush1.msra.mxu0 0.0
      %3183 = vmatprep.subr.mxu0 0.0
      %3184 = vmatpush1.msra.mxu0 0.0
      %3185 = vmatprep.subr.mxu0 0.0
      %3186 = vmatpush1.msra.mxu0 0.0
      %3187 = vmatprep.subr.mxu0 0.0
      %3188 = vmatpush1.msra.mxu0 0.0
      %3189 = vmatprep.subr.mxu0 0.0
      %3190 = vmatpush1.msra.mxu0 0.0
      %3191 = vmatprep.subr.mxu0 0.0
      %3192 = vmatpush1.msra.mxu0 0.0
      %3193 = vmatprep.subr.mxu0 0.0
      %3194 = vmatpush1.msra.mxu0 0.0
      %3195 = vmatprep.subr.mxu0 0.0
      %3196 = vmatpush1.msra.mxu0 0.0
      %3197 = vmatprep.subr.mxu0 0.0
      %3198 = vmatpush1.msra.mxu0 0.0
      %3199 = vmatprep.subr.mxu0 0.0
      %3200 = vmatpush1.msra.mxu0 0.0
      %3201 = vmatprep.subr.mxu0 0.0
      %3202 = vmatpush1.msra.mxu0 0.0
      %3203 = vmatprep.subr.mxu0 0.0
      %3204 = vmatpush1.msra.mxu0 0.0
      %3205 = vmatprep.subr.mxu0 0.0
      %3206 = vmatpush1.msra.mxu0 0.0
      %3207 = vmatprep.mubr.f32.mxu0 0.0
      %3208 = vmatmul.mubr.f32.gmra.mrb[0].mxu0 %v3138
      %v3209 = vpop.f32.mrb[0].mxu0
      %v3210 = vadd.f32 %v3130, %v3209
      %v3211 = vpop.f32.mrb[0].mxu0
      %3212 = vmatprep.mubr.f32.mxu0 0.0
      %3213 = vmatmul.mubr.f32.gmra.mrb[0].mxu0 %v3141
      %v3214 = vpop.f32.mrb[0].mxu0
      %v3215 = vadd.f32 %v3135, %v3214
      %v3216 = vpop.f32.mrb[0].mxu0
      %3217 = vdwg.mxu0
      %v3218 = vmax.f32 %v3210, 0.0
      %v3219 = vmax.f32 %v3215, 0.0
      %v3220 = vmin.f32 %v3218, 6.0
      %v3221 = vmin.f32 %v3219, 6.0
      %s3222 = scalar_lea.vmem %s5, 240
      %v3223 = vld [vmem:[%s3222] sm:$0xff]
      %v3224 = vld [vmem:[%s3222 + $0x8] sm:$0xff]
      %s3225 = scalar_lea.vmem %s6, 240
      %v3226 = vld [vmem:[%s3225] sm:$0xff]
      %v3227 = vld [vmem:[%s3225 + $0x8] sm:$0xff]
      %3229 = vset.pattern.permute.xlu0 0
      %3230 = vperm.xlu0 %3229, %v3226
      %v3231 = vpop.permute.xlu0 %3230
      %3234 = vset.pattern.permute.xlu0 0
      %3235 = vperm.xlu0 %3234, %v3227
      %v3236 = vpop.permute.xlu0 %3235
      %v3239 = vsel %vm1130, %v3223, 0
      %v3242 = vsel %vm1130, %v3224, 0
      %3244 = vmatprep.subr.mxu0 0.0
      %3245 = vmatpush1.msra.mxu0 %v3220
      %3246 = vmatprep.subr.mxu0 0.0
      %3247 = vmatpush1.msra.mxu0 %v3221
      %3248 = vmatprep.subr.mxu0 0.0
      %3249 = vmatpush1.msra.mxu0 0.0
      %3250 = vmatprep.subr.mxu0 0.0
      %3251 = vmatpush1.msra.mxu0 0.0
      %3252 = vmatprep.subr.mxu0 0.0
      %3253 = vmatpush1.msra.mxu0 0.0
      %3254 = vmatprep.subr.mxu0 0.0
      %3255 = vmatpush1.msra.mxu0 0.0
      %3256 = vmatprep.subr.mxu0 0.0
      %3257 = vmatpush1.msra.mxu0 0.0
      %3258 = vmatprep.subr.mxu0 0.0
      %3259 = vmatpush1.msra.mxu0 0.0
      %3260 = vmatprep.subr.mxu0 0.0
      %3261 = vmatpush1.msra.mxu0 0.0
      %3262 = vmatprep.subr.mxu0 0.0
      %3263 = vmatpush1.msra.mxu0 0.0
      %3264 = vmatprep.subr.mxu0 0.0
      %3265 = vmatpush1.msra.mxu0 0.0
      %3266 = vmatprep.subr.mxu0 0.0
      %3267 = vmatpush1.msra.mxu0 0.0
      %3268 = vmatprep.subr.mxu0 0.0
      %3269 = vmatpush1.msra.mxu0 0.0
      %3270 = vmatprep.subr.mxu0 0.0
      %3271 = vmatpush1.msra.mxu0 0.0
      %3272 = vmatprep.subr.mxu0 0.0
      %3273 = vmatpush1.msra.mxu0 0.0
      %3274 = vmatprep.subr.mxu0 0.0
      %3275 = vmatpush1.msra.mxu0 0.0
      %3276 = vmatprep.subr.mxu0 0.0
      %3277 = vmatpush1.msra.mxu0 0.0
      %3278 = vmatprep.subr.mxu0 0.0
      %3279 = vmatpush1.msra.mxu0 0.0
      %3280 = vmatprep.subr.mxu0 0.0
      %3281 = vmatpush1.msra.mxu0 0.0
      %3282 = vmatprep.subr.mxu0 0.0
      %3283 = vmatpush1.msra.mxu0 0.0
      %3284 = vmatprep.subr.mxu0 0.0
      %3285 = vmatpush1.msra.mxu0 0.0
      %3286 = vmatprep.subr.mxu0 0.0
      %3287 = vmatpush1.msra.mxu0 0.0
      %3288 = vmatprep.subr.mxu0 0.0
      %3289 = vmatpush1.msra.mxu0 0.0
      %3290 = vmatprep.subr.mxu0 0.0
      %3291 = vmatpush1.msra.mxu0 0.0
      %3292 = vmatprep.subr.mxu0 0.0
      %3293 = vmatpush1.msra.mxu0 0.0
      %3294 = vmatprep.subr.mxu0 0.0
      %3295 = vmatpush1.msra.mxu0 0.0
      %3296 = vmatprep.subr.mxu0 0.0
      %3297 = vmatpush1.msra.mxu0 0.0
      %3298 = vmatprep.subr.mxu0 0.0
      %3299 = vmatpush1.msra.mxu0 0.0
      %3300 = vmatprep.subr.mxu0 0.0
      %3301 = vmatpush1.msra.mxu0 0.0
      %3302 = vmatprep.subr.mxu0 0.0
      %3303 = vmatpush1.msra.mxu0 0.0
      %3304 = vmatprep.subr.mxu0 0.0
      %3305 = vmatpush1.msra.mxu0 0.0
      %3306 = vmatprep.subr.mxu0 0.0
      %3307 = vmatpush1.msra.mxu0 0.0
      %3308 = vmatprep.mubr.f32.mxu0 0.0
      %3309 = vmatmul.mubr.f32.gmra.mrb[0].mxu0 %v3239
      %v3310 = vpop.f32.mrb[0].mxu0
      %v3311 = vadd.f32 %v3231, %v3310
      %v3312 = vpop.f32.mrb[0].mxu0
      %3313 = vmatprep.mubr.f32.mxu0 0.0
      %3314 = vmatmul.mubr.f32.gmra.mrb[0].mxu0 %v3242
      %v3315 = vpop.f32.mrb[0].mxu0
      %v3316 = vadd.f32 %v3236, %v3315
      %v3317 = vpop.f32.mrb[0].mxu0
      %3318 = vdwg.mxu0
      %s3319 = scalar_lea.vmem %s3, 512
      %v3320 = vld [vmem:[%s3319] sm:$0xff]
      %s3321 = scalar_lea.vmem %s4, 16
      %v3322 = vld [vmem:[%s3321] sm:$0x1]
      %v3324 = vlaneseq
      %v3325 = vshrl.u32 %v3324, 7
      %v3326 = vsub.s32 0, %v3325
      %v3327 = vrot.slane %v3322, %v3326
      %3329 = vmatprep.subr.mxu0 0.0
      %3330 = vmatpush1.msra.mxu0 %v3320
      %3331 = vmatprep.subr.mxu0 0.0
      %3332 = vmatpush1.msra.mxu0 0.0
      %3333 = vmatprep.subr.mxu0 0.0
      %3334 = vmatpush1.msra.mxu0 0.0
      %3335 = vmatprep.subr.mxu0 0.0
      %3336 = vmatpush1.msra.mxu0 0.0
      %3337 = vmatprep.subr.mxu0 0.0
      %3338 = vmatpush1.msra.mxu0 0.0
      %3339 = vmatprep.subr.mxu0 0.0
      %3340 = vmatpush1.msra.mxu0 0.0
      %3341 = vmatprep.subr.mxu0 0.0
      %3342 = vmatpush1.msra.mxu0 0.0
      %3343 = vmatprep.subr.mxu0 0.0
      %3344 = vmatpush1.msra.mxu0 0.0
      %3345 = vmatprep.subr.mxu0 0.0
      %3346 = vmatpush1.msra.mxu0 0.0
      %3347 = vmatprep.subr.mxu0 0.0
      %3348 = vmatpush1.msra.mxu0 0.0
      %3349 = vmatprep.subr.mxu0 0.0
      %3350 = vmatpush1.msra.mxu0 0.0
      %3351 = vmatprep.subr.mxu0 0.0
      %3352 = vmatpush1.msra.mxu0 0.0
      %3353 = vmatprep.subr.mxu0 0.0
      %3354 = vmatpush1.msra.mxu0 0.0
      %3355 = vmatprep.subr.mxu0 0.0
      %3356 = vmatpush1.msra.mxu0 0.0
      %3357 = vmatprep.subr.mxu0 0.0
      %3358 = vmatpush1.msra.mxu0 0.0
      %3359 = vmatprep.subr.mxu0 0.0
      %3360 = vmatpush1.msra.mxu0 0.0
      %3361 = vmatprep.subr.mxu0 0.0
      %3362 = vmatpush1.msra.mxu0 0.0
      %3363 = vmatprep.subr.mxu0 0.0
      %3364 = vmatpush1.msra.mxu0 0.0
      %3365 = vmatprep.subr.mxu0 0.0
      %3366 = vmatpush1.msra.mxu0 0.0
      %3367 = vmatprep.subr.mxu0 0.0
      %3368 = vmatpush1.msra.mxu0 0.0
      %3369 = vmatprep.subr.mxu0 0.0
      %3370 = vmatpush1.msra.mxu0 0.0
      %3371 = vmatprep.subr.mxu0 0.0
      %3372 = vmatpush1.msra.mxu0 0.0
      %3373 = vmatprep.subr.mxu0 0.0
      %3374 = vmatpush1.msra.mxu0 0.0
      %3375 = vmatprep.subr.mxu0 0.0
      %3376 = vmatpush1.msra.mxu0 0.0
      %3377 = vmatprep.subr.mxu0 0.0
      %3378 = vmatpush1.msra.mxu0 0.0
      %3379 = vmatprep.subr.mxu0 0.0
      %3380 = vmatpush1.msra.mxu0 0.0
      %3381 = vmatprep.subr.mxu0 0.0
      %3382 = vmatpush1.msra.mxu0 0.0
      %3383 = vmatprep.subr.mxu0 0.0
      %3384 = vmatpush1.msra.mxu0 0.0
      %3385 = vmatprep.subr.mxu0 0.0
      %3386 = vmatpush1.msra.mxu0 0.0
      %3387 = vmatprep.subr.mxu0 0.0
      %3388 = vmatpush1.msra.mxu0 0.0
      %3389 = vmatprep.subr.mxu0 0.0
      %3390 = vmatpush1.msra.mxu0 0.0
      %3391 = vmatprep.subr.mxu0 0.0
      %3392 = vmatpush1.msra.mxu0 0.0
      %3393 = vmatprep.mubr.f32.mxu0 0.0
      %3394 = vmatmul.mubr.f32.gmra.mrb[0].mxu0 %v321
      %v3395 = vpop.f32.mrb[0].mxu0
      %v3396 = vadd.f32 %v3327, %v3395
      %v3397 = vpop.f32.mrb[0].mxu0
      %3398 = vdwg.mxu0
      %v3399 = vmax.f32 %v3396, 0.0
      %v3400 = vmin.f32 %v3399, 6.0
      %s3401 = scalar_lea.vmem %s3, 544
      %v3402 = vld [vmem:[%s3401] sm:$0xff]
      %v3403 = vld [vmem:[%s3401 + $0x8] sm:$0xff]
      %v3404 = vld [vmem:[%s3401 + $0x10] sm:$0xff]
      %v3405 = vld [vmem:[%s3401 + $0x18] sm:$0xff]
      %s3406 = scalar_lea.vmem %s4, 17
      %v3407 = vld [vmem:[%s3406] sm:$0x1]
      %v3409 = vlaneseq
      %v3410 = vshrl.u32 %v3409, 7
      %v3411 = vsub.s32 0, %v3410
      %v3412 = vrot.slane %v3407, %v3411
      %v3415 = vsel %vm408, %v3400, 0
      %3417 = vmatprep.subr.mxu0 0.0
      %3418 = vmatpush1.msra.mxu0 %v3402
      %3419 = vmatprep.subr.mxu0 0.0
      %3420 = vmatpush1.msra.mxu0 %v3403
      %3421 = vmatprep.subr.mxu0 0.0
      %3422 = vmatpush1.msra.mxu0 %v3404
      %3423 = vmatprep.subr.mxu0 0.0
      %3424 = vmatpush1.msra.mxu0 %v3405
      %3425 = vmatprep.subr.mxu0 0.0
      %3426 = vmatpush1.msra.mxu0 0.0
      %3427 = vmatprep.subr.mxu0 0.0
      %3428 = vmatpush1.msra.mxu0 0.0
      %3429 = vmatprep.subr.mxu0 0.0
      %3430 = vmatpush1.msra.mxu0 0.0
      %3431 = vmatprep.subr.mxu0 0.0
      %3432 = vmatpush1.msra.mxu0 0.0
      %3433 = vmatprep.subr.mxu0 0.0
      %3434 = vmatpush1.msra.mxu0 0.0
      %3435 = vmatprep.subr.mxu0 0.0
      %3436 = vmatpush1.msra.mxu0 0.0
      %3437 = vmatprep.subr.mxu0 0.0
      %3438 = vmatpush1.msra.mxu0 0.0
      %3439 = vmatprep.subr.mxu0 0.0
      %3440 = vmatpush1.msra.mxu0 0.0
      %3441 = vmatprep.subr.mxu0 0.0
      %3442 = vmatpush1.msra.mxu0 0.0
      %3443 = vmatprep.subr.mxu0 0.0
      %3444 = vmatpush1.msra.mxu0 0.0
      %3445 = vmatprep.subr.mxu0 0.0
      %3446 = vmatpush1.msra.mxu0 0.0
      %3447 = vmatprep.subr.mxu0 0.0
      %3448 = vmatpush1.msra.mxu0 0.0
      %3449 = vmatprep.subr.mxu0 0.0
      %3450 = vmatpush1.msra.mxu0 0.0
      %3451 = vmatprep.subr.mxu0 0.0
      %3452 = vmatpush1.msra.mxu0 0.0
      %3453 = vmatprep.subr.mxu0 0.0
      %3454 = vmatpush1.msra.mxu0 0.0
      %3455 = vmatprep.subr.mxu0 0.0
      %3456 = vmatpush1.msra.mxu0 0.0
      %3457 = vmatprep.subr.mxu0 0.0
      %3458 = vmatpush1.msra.mxu0 0.0
      %3459 = vmatprep.subr.mxu0 0.0
      %3460 = vmatpush1.msra.mxu0 0.0
      %3461 = vmatprep.subr.mxu0 0.0
      %3462 = vmatpush1.msra.mxu0 0.0
      %3463 = vmatprep.subr.mxu0 0.0
      %3464 = vmatpush1.msra.mxu0 0.0
      %3465 = vmatprep.subr.mxu0 0.0
      %3466 = vmatpush1.msra.mxu0 0.0
      %3467 = vmatprep.subr.mxu0 0.0
      %3468 = vmatpush1.msra.mxu0 0.0
      %3469 = vmatprep.subr.mxu0 0.0
      %3470 = vmatpush1.msra.mxu0 0.0
      %3471 = vmatprep.subr.mxu0 0.0
      %3472 = vmatpush1.msra.mxu0 0.0
      %3473 = vmatprep.subr.mxu0 0.0
      %3474 = vmatpush1.msra.mxu0 0.0
      %3475 = vmatprep.subr.mxu0 0.0
      %3476 = vmatpush1.msra.mxu0 0.0
      %3477 = vmatprep.subr.mxu0 0.0
      %3478 = vmatpush1.msra.mxu0 0.0
      %3479 = vmatprep.subr.mxu0 0.0
      %3480 = vmatpush1.msra.mxu0 0.0
      %3481 = vmatprep.mubr.f32.mxu0 0.0
      %3482 = vmatmul.mubr.f32.gmra.mrb[0].mxu0 %v3415
      %v3483 = vpop.f32.mrb[0].mxu0
      %v3484 = vadd.f32 %v3412, %v3483
      %v3485 = vpop.f32.mrb[0].mxu0
      %3486 = vdwg.mxu0
      %v3487 = vmax.f32 %v3484, 0.0
      %v3488 = vmin.f32 %v3487, 6.0
      %s3489 = scalar_lea.vmem %s3, 576
      %v3490 = vld [vmem:[%s3489] sm:$0xff]
      %v3491 = vld [vmem:[%s3489 + $0x8] sm:$0xff]
      %v3492 = vld [vmem:[%s3489 + $0x10] sm:$0xff]
      %v3493 = vld [vmem:[%s3489 + $0x18] sm:$0xff]
      %s3494 = scalar_lea.vmem %s4, 18
      %v3495 = vld [vmem:[%s3494] sm:$0x1]
      %v3497 = vlaneseq
      %v3498 = vshrl.u32 %v3497, 7
      %v3499 = vsub.s32 0, %v3498
      %v3500 = vrot.slane %v3495, %v3499
      %v3503 = vsel %vm408, %v3488, 0
      %3505 = vmatprep.subr.mxu0 0.0
      %3506 = vmatpush1.msra.mxu0 %v3490
      %3507 = vmatprep.subr.mxu0 0.0
      %3508 = vmatpush1.msra.mxu0 %v3491
      %3509 = vmatprep.subr.mxu0 0.0
      %3510 = vmatpush1.msra.mxu0 %v3492
      %3511 = vmatprep.subr.mxu0 0.0
      %3512 = vmatpush1.msra.mxu0 %v3493
      %3513 = vmatprep.subr.mxu0 0.0
      %3514 = vmatpush1.msra.mxu0 0.0
      %3515 = vmatprep.subr.mxu0 0.0
      %3516 = vmatpush1.msra.mxu0 0.0
      %3517 = vmatprep.subr.mxu0 0.0
      %3518 = vmatpush1.msra.mxu0 0.0
      %3519 = vmatprep.subr.mxu0 0.0
      %3520 = vmatpush1.msra.mxu0 0.0
      %3521 = vmatprep.subr.mxu0 0.0
      %3522 = vmatpush1.msra.mxu0 0.0
      %3523 = vmatprep.subr.mxu0 0.0
      %3524 = vmatpush1.msra.mxu0 0.0
      %3525 = vmatprep.subr.mxu0 0.0
      %3526 = vmatpush1.msra.mxu0 0.0
      %3527 = vmatprep.subr.mxu0 0.0
      %3528 = vmatpush1.msra.mxu0 0.0
      %3529 = vmatprep.subr.mxu0 0.0
      %3530 = vmatpush1.msra.mxu0 0.0
      %3531 = vmatprep.subr.mxu0 0.0
      %3532 = vmatpush1.msra.mxu0 0.0
      %3533 = vmatprep.subr.mxu0 0.0
      %3534 = vmatpush1.msra.mxu0 0.0
      %3535 = vmatprep.subr.mxu0 0.0
      %3536 = vmatpush1.msra.mxu0 0.0
      %3537 = vmatprep.subr.mxu0 0.0
      %3538 = vmatpush1.msra.mxu0 0.0
      %3539 = vmatprep.subr.mxu0 0.0
      %3540 = vmatpush1.msra.mxu0 0.0
      %3541 = vmatprep.subr.mxu0 0.0
      %3542 = vmatpush1.msra.mxu0 0.0
      %3543 = vmatprep.subr.mxu0 0.0
      %3544 = vmatpush1.msra.mxu0 0.0
      %3545 = vmatprep.subr.mxu0 0.0
      %3546 = vmatpush1.msra.mxu0 0.0
      %3547 = vmatprep.subr.mxu0 0.0
      %3548 = vmatpush1.msra.mxu0 0.0
      %3549 = vmatprep.subr.mxu0 0.0
      %3550 = vmatpush1.msra.mxu0 0.0
      %3551 = vmatprep.subr.mxu0 0.0
      %3552 = vmatpush1.msra.mxu0 0.0
      %3553 = vmatprep.subr.mxu0 0.0
      %3554 = vmatpush1.msra.mxu0 0.0
      %3555 = vmatprep.subr.mxu0 0.0
      %3556 = vmatpush1.msra.mxu0 0.0
      %3557 = vmatprep.subr.mxu0 0.0
      %3558 = vmatpush1.msra.mxu0 0.0
      %3559 = vmatprep.subr.mxu0 0.0
      %3560 = vmatpush1.msra.mxu0 0.0
      %3561 = vmatprep.subr.mxu0 0.0
      %3562 = vmatpush1.msra.mxu0 0.0
      %3563 = vmatprep.subr.mxu0 0.0
      %3564 = vmatpush1.msra.mxu0 0.0
      %3565 = vmatprep.subr.mxu0 0.0
      %3566 = vmatpush1.msra.mxu0 0.0
      %3567 = vmatprep.subr.mxu0 0.0
      %3568 = vmatpush1.msra.mxu0 0.0
      %3569 = vmatprep.mubr.f32.mxu0 0.0
      %3570 = vmatmul.mubr.f32.gmra.mrb[0].mxu0 %v3503
      %v3571 = vpop.f32.mrb[0].mxu0
      %v3572 = vadd.f32 %v3500, %v3571
      %v3573 = vpop.f32.mrb[0].mxu0
      %3574 = vdwg.mxu0
      %s3575 = scalar_lea.vmem %s5, 256
      %v3576 = vld [vmem:[%s3575] sm:$0xff]
      %v3577 = vld [vmem:[%s3575 + $0x8] sm:$0xff]
      %s3578 = scalar_lea.vmem %s6, 256
      %v3579 = vld [vmem:[%s3578] sm:$0xff]
      %v3580 = vld [vmem:[%s3578 + $0x8] sm:$0xff]
      %3582 = vset.pattern.permute.xlu0 0
      %3583 = vperm.xlu0 %3582, %v3579
      %v3584 = vpop.permute.xlu0 %3583
      %3587 = vset.pattern.permute.xlu0 0
      %3588 = vperm.xlu0 %3587, %v3580
      %v3589 = vpop.permute.xlu0 %3588
      %v3592 = vsel %vm1024, %v3576, 0
      %v3595 = vsel %vm1024, %v3577, 0
      %v3598 = vsel %vm1031, %v3572, 0
      %3600 = vmatprep.subr.mxu0 0.0
      %3601 = vmatpush1.msra.mxu0 %v3598
      %3602 = vmatprep.subr.mxu0 0.0
      %3603 = vmatpush1.msra.mxu0 0.0
      %3604 = vmatprep.subr.mxu0 0.0
      %3605 = vmatpush1.msra.mxu0 0.0
      %3606 = vmatprep.subr.mxu0 0.0
      %3607 = vmatpush1.msra.mxu0 0.0
      %3608 = vmatprep.subr.mxu0 0.0
      %3609 = vmatpush1.msra.mxu0 0.0
      %3610 = vmatprep.subr.mxu0 0.0
      %3611 = vmatpush1.msra.mxu0 0.0
      %3612 = vmatprep.subr.mxu0 0.0
      %3613 = vmatpush1.msra.mxu0 0.0
      %3614 = vmatprep.subr.mxu0 0.0
      %3615 = vmatpush1.msra.mxu0 0.0
      %3616 = vmatprep.subr.mxu0 0.0
      %3617 = vmatpush1.msra.mxu0 0.0
      %3618 = vmatprep.subr.mxu0 0.0
      %3619 = vmatpush1.msra.mxu0 0.0
      %3620 = vmatprep.subr.mxu0 0.0
      %3621 = vmatpush1.msra.mxu0 0.0
      %3622 = vmatprep.subr.mxu0 0.0
      %3623 = vmatpush1.msra.mxu0 0.0
      %3624 = vmatprep.subr.mxu0 0.0
      %3625 = vmatpush1.msra.mxu0 0.0
      %3626 = vmatprep.subr.mxu0 0.0
      %3627 = vmatpush1.msra.mxu0 0.0
      %3628 = vmatprep.subr.mxu0 0.0
      %3629 = vmatpush1.msra.mxu0 0.0
      %3630 = vmatprep.subr.mxu0 0.0
      %3631 = vmatpush1.msra.mxu0 0.0
      %3632 = vmatprep.subr.mxu0 0.0
      %3633 = vmatpush1.msra.mxu0 0.0
      %3634 = vmatprep.subr.mxu0 0.0
      %3635 = vmatpush1.msra.mxu0 0.0
      %3636 = vmatprep.subr.mxu0 0.0
      %3637 = vmatpush1.msra.mxu0 0.0
      %3638 = vmatprep.subr.mxu0 0.0
      %3639 = vmatpush1.msra.mxu0 0.0
      %3640 = vmatprep.subr.mxu0 0.0
      %3641 = vmatpush1.msra.mxu0 0.0
      %3642 = vmatprep.subr.mxu0 0.0
      %3643 = vmatpush1.msra.mxu0 0.0
      %3644 = vmatprep.subr.mxu0 0.0
      %3645 = vmatpush1.msra.mxu0 0.0
      %3646 = vmatprep.subr.mxu0 0.0
      %3647 = vmatpush1.msra.mxu0 0.0
      %3648 = vmatprep.subr.mxu0 0.0
      %3649 = vmatpush1.msra.mxu0 0.0
      %3650 = vmatprep.subr.mxu0 0.0
      %3651 = vmatpush1.msra.mxu0 0.0
      %3652 = vmatprep.subr.mxu0 0.0
      %3653 = vmatpush1.msra.mxu0 0.0
      %3654 = vmatprep.subr.mxu0 0.0
      %3655 = vmatpush1.msra.mxu0 0.0
      %3656 = vmatprep.subr.mxu0 0.0
      %3657 = vmatpush1.msra.mxu0 0.0
      %3658 = vmatprep.subr.mxu0 0.0
      %3659 = vmatpush1.msra.mxu0 0.0
      %3660 = vmatprep.subr.mxu0 0.0
      %3661 = vmatpush1.msra.mxu0 0.0
      %3662 = vmatprep.subr.mxu0 0.0
      %3663 = vmatpush1.msra.mxu0 0.0
      %3664 = vmatprep.mubr.f32.mxu0 0.0
      %3665 = vmatmul.mubr.f32.gmra.mrb[0].mxu0 %v3592
      %v3666 = vpop.f32.mrb[0].mxu0
      %v3667 = vadd.f32 %v3584, %v3666
      %v3668 = vpop.f32.mrb[0].mxu0
      %3669 = vmatprep.mubr.f32.mxu0 0.0
      %3670 = vmatmul.mubr.f32.gmra.mrb[0].mxu0 %v3595
      %v3671 = vpop.f32.mrb[0].mxu0
      %v3672 = vadd.f32 %v3589, %v3671
      %v3673 = vpop.f32.mrb[0].mxu0
      %3674 = vdwg.mxu0
      %v3675 = vmax.f32 %v3667, 0.0
      %v3676 = vmax.f32 %v3672, 0.0
      %v3677 = vmin.f32 %v3675, 6.0
      %v3678 = vmin.f32 %v3676, 6.0
      %s3679 = scalar_lea.vmem %s5, 272
      %v3680 = vld [vmem:[%s3679] sm:$0xff]
      %v3681 = vld [vmem:[%s3679 + $0x8] sm:$0xff]
      %s3682 = scalar_lea.vmem %s6, 272
      %v3683 = vld [vmem:[%s3682] sm:$0xff]
      %v3684 = vld [vmem:[%s3682 + $0x8] sm:$0xff]
      %3686 = vset.pattern.permute.xlu0 0
      %3687 = vperm.xlu0 %3686, %v3683
      %v3688 = vpop.permute.xlu0 %3687
      %3691 = vset.pattern.permute.xlu0 0
      %3692 = vperm.xlu0 %3691, %v3684
      %v3693 = vpop.permute.xlu0 %3692
      %v3696 = vsel %vm1130, %v3680, 0
      %v3699 = vsel %vm1130, %v3681, 0
      %3701 = vmatprep.subr.mxu0 0.0
      %3702 = vmatpush1.msra.mxu0 %v3677
      %3703 = vmatprep.subr.mxu0 0.0
      %3704 = vmatpush1.msra.mxu0 %v3678
      %3705 = vmatprep.subr.mxu0 0.0
      %3706 = vmatpush1.msra.mxu0 0.0
      %3707 = vmatprep.subr.mxu0 0.0
      %3708 = vmatpush1.msra.mxu0 0.0
      %3709 = vmatprep.subr.mxu0 0.0
      %3710 = vmatpush1.msra.mxu0 0.0
      %3711 = vmatprep.subr.mxu0 0.0
      %3712 = vmatpush1.msra.mxu0 0.0
      %3713 = vmatprep.subr.mxu0 0.0
      %3714 = vmatpush1.msra.mxu0 0.0
      %3715 = vmatprep.subr.mxu0 0.0
      %3716 = vmatpush1.msra.mxu0 0.0
      %3717 = vmatprep.subr.mxu0 0.0
      %3718 = vmatpush1.msra.mxu0 0.0
      %3719 = vmatprep.subr.mxu0 0.0
      %3720 = vmatpush1.msra.mxu0 0.0
      %3721 = vmatprep.subr.mxu0 0.0
      %3722 = vmatpush1.msra.mxu0 0.0
      %3723 = vmatprep.subr.mxu0 0.0
      %3724 = vmatpush1.msra.mxu0 0.0
      %3725 = vmatprep.subr.mxu0 0.0
      %3726 = vmatpush1.msra.mxu0 0.0
      %3727 = vmatprep.subr.mxu0 0.0
      %3728 = vmatpush1.msra.mxu0 0.0
      %3729 = vmatprep.subr.mxu0 0.0
      %3730 = vmatpush1.msra.mxu0 0.0
      %3731 = vmatprep.subr.mxu0 0.0
      %3732 = vmatpush1.msra.mxu0 0.0
      %3733 = vmatprep.subr.mxu0 0.0
      %3734 = vmatpush1.msra.mxu0 0.0
      %3735 = vmatprep.subr.mxu0 0.0
      %3736 = vmatpush1.msra.mxu0 0.0
      %3737 = vmatprep.subr.mxu0 0.0
      %3738 = vmatpush1.msra.mxu0 0.0
      %3739 = vmatprep.subr.mxu0 0.0
      %3740 = vmatpush1.msra.mxu0 0.0
      %3741 = vmatprep.subr.mxu0 0.0
      %3742 = vmatpush1.msra.mxu0 0.0
      %3743 = vmatprep.subr.mxu0 0.0
      %3744 = vmatpush1.msra.mxu0 0.0
      %3745 = vmatprep.subr.mxu0 0.0
      %3746 = vmatpush1.msra.mxu0 0.0
      %3747 = vmatprep.subr.mxu0 0.0
      %3748 = vmatpush1.msra.mxu0 0.0
      %3749 = vmatprep.subr.mxu0 0.0
      %3750 = vmatpush1.msra.mxu0 0.0
      %3751 = vmatprep.subr.mxu0 0.0
      %3752 = vmatpush1.msra.mxu0 0.0
      %3753 = vmatprep.subr.mxu0 0.0
      %3754 = vmatpush1.msra.mxu0 0.0
      %3755 = vmatprep.subr.mxu0 0.0
      %3756 = vmatpush1.msra.mxu0 0.0
      %3757 = vmatprep.subr.mxu0 0.0
      %3758 = vmatpush1.msra.mxu0 0.0
      %3759 = vmatprep.subr.mxu0 0.0
      %3760 = vmatpush1.msra.mxu0 0.0
      %3761 = vmatprep.subr.mxu0 0.0
      %3762 = vmatpush1.msra.mxu0 0.0
      %3763 = vmatprep.subr.mxu0 0.0
      %3764 = vmatpush1.msra.mxu0 0.0
      %3765 = vmatprep.mubr.f32.mxu0 0.0
      %3766 = vmatmul.mubr.f32.gmra.mrb[0].mxu0 %v3696
      %v3767 = vpop.f32.mrb[0].mxu0
      %v3768 = vadd.f32 %v3688, %v3767
      %v3769 = vpop.f32.mrb[0].mxu0
      %3770 = vmatprep.mubr.f32.mxu0 0.0
      %3771 = vmatmul.mubr.f32.gmra.mrb[0].mxu0 %v3699
      %v3772 = vpop.f32.mrb[0].mxu0
      %v3773 = vadd.f32 %v3693, %v3772
      %v3774 = vpop.f32.mrb[0].mxu0
      %3775 = vdwg.mxu0
      %v3776 = vmax.f32 %v3768, 0.0
      %v3777 = vmax.f32 %v3773, 0.0
      %v3778 = vmin.f32 %v3776, 6.0
      %v3779 = vmin.f32 %v3777, 6.0
      %s3780 = scalar_lea.vmem %s5, 288
      %v3781 = vld [vmem:[%s3780] sm:$0xff]
      %v3782 = vld [vmem:[%s3780 + $0x8] sm:$0xff]
      %s3783 = scalar_lea.vmem %s6, 288
      %v3784 = vld [vmem:[%s3783] sm:$0xff]
      %v3785 = vld [vmem:[%s3783 + $0x8] sm:$0xff]
      %3787 = vset.pattern.permute.xlu0 0
      %3788 = vperm.xlu0 %3787, %v3784
      %v3789 = vpop.permute.xlu0 %3788
      %3792 = vset.pattern.permute.xlu0 0
      %3793 = vperm.xlu0 %3792, %v3785
      %v3794 = vpop.permute.xlu0 %3793
      %v3796 = vsel %vm1130, %v3781, 0
      %v3799 = vsel %vm1130, %v3782, 0
      %3801 = vmatprep.subr.mxu0 0.0
      %3802 = vmatpush1.msra.mxu0 %v3778
      %3803 = vmatprep.subr.mxu0 0.0
      %3804 = vmatpush1.msra.mxu0 %v3779
      %3805 = vmatprep.subr.mxu0 0.0
      %3806 = vmatpush1.msra.mxu0 0.0
      %3807 = vmatprep.subr.mxu0 0.0
      %3808 = vmatpush1.msra.mxu0 0.0
      %3809 = vmatprep.subr.mxu0 0.0
      %3810 = vmatpush1.msra.mxu0 0.0
      %3811 = vmatprep.subr.mxu0 0.0
      %3812 = vmatpush1.msra.mxu0 0.0
      %3813 = vmatprep.subr.mxu0 0.0
      %3814 = vmatpush1.msra.mxu0 0.0
      %3815 = vmatprep.subr.mxu0 0.0
      %3816 = vmatpush1.msra.mxu0 0.0
      %3817 = vmatprep.subr.mxu0 0.0
      %3818 = vmatpush1.msra.mxu0 0.0
      %3819 = vmatprep.subr.mxu0 0.0
      %3820 = vmatpush1.msra.mxu0 0.0
      %3821 = vmatprep.subr.mxu0 0.0
      %3822 = vmatpush1.msra.mxu0 0.0
      %3823 = vmatprep.subr.mxu0 0.0
      %3824 = vmatpush1.msra.mxu0 0.0
      %3825 = vmatprep.subr.mxu0 0.0
      %3826 = vmatpush1.msra.mxu0 0.0
      %3827 = vmatprep.subr.mxu0 0.0
      %3828 = vmatpush1.msra.mxu0 0.0
      %3829 = vmatprep.subr.mxu0 0.0
      %3830 = vmatpush1.msra.mxu0 0.0
      %3831 = vmatprep.subr.mxu0 0.0
      %3832 = vmatpush1.msra.mxu0 0.0
      %3833 = vmatprep.subr.mxu0 0.0
      %3834 = vmatpush1.msra.mxu0 0.0
      %3835 = vmatprep.subr.mxu0 0.0
      %3836 = vmatpush1.msra.mxu0 0.0
      %3837 = vmatprep.subr.mxu0 0.0
      %3838 = vmatpush1.msra.mxu0 0.0
      %3839 = vmatprep.subr.mxu0 0.0
      %3840 = vmatpush1.msra.mxu0 0.0
      %3841 = vmatprep.subr.mxu0 0.0
      %3842 = vmatpush1.msra.mxu0 0.0
      %3843 = vmatprep.subr.mxu0 0.0
      %3844 = vmatpush1.msra.mxu0 0.0
      %3845 = vmatprep.subr.mxu0 0.0
      %3846 = vmatpush1.msra.mxu0 0.0
      %3847 = vmatprep.subr.mxu0 0.0
      %3848 = vmatpush1.msra.mxu0 0.0
      %3849 = vmatprep.subr.mxu0 0.0
      %3850 = vmatpush1.msra.mxu0 0.0
      %3851 = vmatprep.subr.mxu0 0.0
      %3852 = vmatpush1.msra.mxu0 0.0
      %3853 = vmatprep.subr.mxu0 0.0
      %3854 = vmatpush1.msra.mxu0 0.0
      %3855 = vmatprep.subr.mxu0 0.0
      %3856 = vmatpush1.msra.mxu0 0.0
      %3857 = vmatprep.subr.mxu0 0.0
      %3858 = vmatpush1.msra.mxu0 0.0
      %3859 = vmatprep.subr.mxu0 0.0
      %3860 = vmatpush1.msra.mxu0 0.0
      %3861 = vmatprep.subr.mxu0 0.0
      %3862 = vmatpush1.msra.mxu0 0.0
      %3863 = vmatprep.subr.mxu0 0.0
      %3864 = vmatpush1.msra.mxu0 0.0
      %3865 = vmatprep.mubr.f32.mxu0 0.0
      %3866 = vmatmul.mubr.f32.gmra.mrb[0].mxu0 %v3796
      %v3867 = vpop.f32.mrb[0].mxu0
      %v3868 = vadd.f32 %v3789, %v3867
      %v3869 = vpop.f32.mrb[0].mxu0
      %3870 = vmatprep.mubr.f32.mxu0 0.0
      %3871 = vmatmul.mubr.f32.gmra.mrb[0].mxu0 %v3799
      %v3872 = vpop.f32.mrb[0].mxu0
      %v3873 = vpop.f32.mrb[0].mxu0
      %3874 = vdwg.mxu0
      %v3875 = vld [vmem:[%s301] sm:$0xff]
      %v3876 = vld [vmem:[%s301 + $0x8] sm:$0xff]
      %v3877 = vlaneseq
      %v3878 = vshrl.u32 %v3877, 7
      %v3879 = vsub.s32 0, %v3878
      %v3880 = vrot.slane %v3868, %v3879
      %v3882 = vsel %vm1024, %v3875, 0
      %v3885 = vsel %vm1024, %v3876, 0
      %v3888 = vsel %vm1031, %v1809, 0
      %3890 = vmatprep.subr.mxu0 0.0
      %3891 = vmatpush1.msra.mxu0 %v3888
      %3892 = vmatprep.subr.mxu0 0.0
      %3893 = vmatpush1.msra.mxu0 0.0
      %3894 = vmatprep.subr.mxu0 0.0
      %3895 = vmatpush1.msra.mxu0 0.0
      %3896 = vmatprep.subr.mxu0 0.0
      %3897 = vmatpush1.msra.mxu0 0.0
      %3898 = vmatprep.subr.mxu0 0.0
      %3899 = vmatpush1.msra.mxu0 0.0
      %3900 = vmatprep.subr.mxu0 0.0
      %3901 = vmatpush1.msra.mxu0 0.0
      %3902 = vmatprep.subr.mxu0 0.0
      %3903 = vmatpush1.msra.mxu0 0.0
      %3904 = vmatprep.subr.mxu0 0.0
      %3905 = vmatpush1.msra.mxu0 0.0
      %3906 = vmatprep.subr.mxu0 0.0
      %3907 = vmatpush1.msra.mxu0 0.0
      %3908 = vmatprep.subr.mxu0 0.0
      %3909 = vmatpush1.msra.mxu0 0.0
      %3910 = vmatprep.subr.mxu0 0.0
      %3911 = vmatpush1.msra.mxu0 0.0
      %3912 = vmatprep.subr.mxu0 0.0
      %3913 = vmatpush1.msra.mxu0 0.0
      %3914 = vmatprep.subr.mxu0 0.0
      %3915 = vmatpush1.msra.mxu0 0.0
      %3916 = vmatprep.subr.mxu0 0.0
      %3917 = vmatpush1.msra.mxu0 0.0
      %3918 = vmatprep.subr.mxu0 0.0
      %3919 = vmatpush1.msra.mxu0 0.0
      %3920 = vmatprep.subr.mxu0 0.0
      %3921 = vmatpush1.msra.mxu0 0.0
      %3922 = vmatprep.subr.mxu0 0.0
      %3923 = vmatpush1.msra.mxu0 0.0
      %3924 = vmatprep.subr.mxu0 0.0
      %3925 = vmatpush1.msra.mxu0 0.0
      %3926 = vmatprep.subr.mxu0 0.0
      %3927 = vmatpush1.msra.mxu0 0.0
      %3928 = vmatprep.subr.mxu0 0.0
      %3929 = vmatpush1.msra.mxu0 0.0
      %3930 = vmatprep.subr.mxu0 0.0
      %3931 = vmatpush1.msra.mxu0 0.0
      %3932 = vmatprep.subr.mxu0 0.0
      %3933 = vmatpush1.msra.mxu0 0.0
      %3934 = vmatprep.subr.mxu0 0.0
      %3935 = vmatpush1.msra.mxu0 0.0
      %3936 = vmatprep.subr.mxu0 0.0
      %3937 = vmatpush1.msra.mxu0 0.0
      %3938 = vmatprep.subr.mxu0 0.0
      %3939 = vmatpush1.msra.mxu0 0.0
      %3940 = vmatprep.subr.mxu0 0.0
      %3941 = vmatpush1.msra.mxu0 0.0
      %3942 = vmatprep.subr.mxu0 0.0
      %3943 = vmatpush1.msra.mxu0 0.0
      %3944 = vmatprep.subr.mxu0 0.0
      %3945 = vmatpush1.msra.mxu0 0.0
      %3946 = vmatprep.subr.mxu0 0.0
      %3947 = vmatpush1.msra.mxu0 0.0
      %3948 = vmatprep.subr.mxu0 0.0
      %3949 = vmatpush1.msra.mxu0 0.0
      %3950 = vmatprep.subr.mxu0 0.0
      %3951 = vmatpush1.msra.mxu0 0.0
      %3952 = vmatprep.subr.mxu0 0.0
      %3953 = vmatpush1.msra.mxu0 0.0
      %3954 = vmatprep.mubr.f32.mxu0 0.0
      %3955 = vmatmul.mubr.f32.gmra.mrb[0].mxu0 %v3882
      %v3956 = vpop.f32.mrb[0].mxu0
      %v3957 = vadd.f32 %v3880, %v3956
      %v3958 = vpop.f32.mrb[0].mxu0
      %3959 = vmatprep.mubr.f32.mxu0 0.0
      %3960 = vmatmul.mubr.f32.gmra.mrb[0].mxu0 %v3885
      %v3961 = vpop.f32.mrb[0].mxu0
      %v3962 = vadd.f32 %v3880, %v3961
      %v3963 = vpop.f32.mrb[0].mxu0
      %3964 = vdwg.mxu0
      %3965 = vst.msk [vmem:[#allocation2] sm:$0xff] %vm1130, %v3957
      %3966 = vst.msk [vmem:[#allocation2 + $0x8] sm:$0xff] %vm1130, %v3962
      %v3967 = vld [vmem:[%s304] sm:$0x1]
      %v3969 = vsel %vm1130, %v3967, 0
      %3971 = vmatprep.subr.mxu0 0.0
      %3972 = vmatpush1.msra.mxu0 %v3311
      %3973 = vmatprep.subr.mxu0 0.0
      %3974 = vmatpush1.msra.mxu0 %v3316
      %3975 = vmatprep.subr.mxu0 0.0
      %3976 = vmatpush1.msra.mxu0 0.0
      %3977 = vmatprep.subr.mxu0 0.0
      %3978 = vmatpush1.msra.mxu0 0.0
      %3979 = vmatprep.subr.mxu0 0.0
      %3980 = vmatpush1.msra.mxu0 0.0
      %3981 = vmatprep.subr.mxu0 0.0
      %3982 = vmatpush1.msra.mxu0 0.0
      %3983 = vmatprep.subr.mxu0 0.0
      %3984 = vmatpush1.msra.mxu0 0.0
      %3985 = vmatprep.subr.mxu0 0.0
      %3986 = vmatpush1.msra.mxu0 0.0
      %3987 = vmatprep.subr.mxu0 0.0
      %3988 = vmatpush1.msra.mxu0 0.0
      %3989 = vmatprep.subr.mxu0 0.0
      %3990 = vmatpush1.msra.mxu0 0.0
      %3991 = vmatprep.subr.mxu0 0.0
      %3992 = vmatpush1.msra.mxu0 0.0
      %3993 = vmatprep.subr.mxu0 0.0
      %3994 = vmatpush1.msra.mxu0 0.0
      %3995 = vmatprep.subr.mxu0 0.0
      %3996 = vmatpush1.msra.mxu0 0.0
      %3997 = vmatprep.subr.mxu0 0.0
      %3998 = vmatpush1.msra.mxu0 0.0
      %3999 = vmatprep.subr.mxu0 0.0
      %4000 = vmatpush1.msra.mxu0 0.0
      %4001 = vmatprep.subr.mxu0 0.0
      %4002 = vmatpush1.msra.mxu0 0.0
      %4003 = vmatprep.subr.mxu0 0.0
      %4004 = vmatpush1.msra.mxu0 0.0
      %4005 = vmatprep.subr.mxu0 0.0
      %4006 = vmatpush1.msra.mxu0 0.0
      %4007 = vmatprep.subr.mxu0 0.0
      %4008 = vmatpush1.msra.mxu0 0.0
      %4009 = vmatprep.subr.mxu0 0.0
      %4010 = vmatpush1.msra.mxu0 0.0
      %4011 = vmatprep.subr.mxu0 0.0
      %4012 = vmatpush1.msra.mxu0 0.0
      %4013 = vmatprep.subr.mxu0 0.0
      %4014 = vmatpush1.msra.mxu0 0.0
      %4015 = vmatprep.subr.mxu0 0.0
      %4016 = vmatpush1.msra.mxu0 0.0
      %4017 = vmatprep.subr.mxu0 0.0
      %4018 = vmatpush1.msra.mxu0 0.0
      %4019 = vmatprep.subr.mxu0 0.0
      %4020 = vmatpush1.msra.mxu0 0.0
      %4021 = vmatprep.subr.mxu0 0.0
      %4022 = vmatpush1.msra.mxu0 0.0
      %4023 = vmatprep.subr.mxu0 0.0
      %4024 = vmatpush1.msra.mxu0 0.0
      %4025 = vmatprep.subr.mxu0 0.0
      %4026 = vmatpush1.msra.mxu0 0.0
      %4027 = vmatprep.subr.mxu0 0.0
      %4028 = vmatpush1.msra.mxu0 0.0
      %4029 = vmatprep.subr.mxu0 0.0
      %4030 = vmatpush1.msra.mxu0 0.0
      %4031 = vmatprep.subr.mxu0 0.0
      %4032 = vmatpush1.msra.mxu0 0.0
      %4033 = vmatprep.subr.mxu0 0.0
      %4034 = vmatpush1.msra.mxu0 0.0
      %4035 = vmatprep.mubr.f32.mxu0 0.0
      %4036 = vmatmul.mubr.f32.gmra.mrb[0].mxu0 %v3969
      %v4037 = vpop.f32.mrb[0].mxu0
      %v4038 = vadd.f32 0.0, %v4037
      %v4039 = vpop.f32.mrb[0].mxu0
      %4040 = vdwg.mxu0
      %v4041 = vld [vmem:[#allocation2] sm:$0x1]
      %v4042 = vadd.f32 %v4041, %v4038
      %v4043 = vtanh.pop %v4042
      %vm4044 = vcmask 122880
      %4045 = vst.msk [vmem:[%s309] sm:$0x1] %vm4044, %v4043
      %v4047 = vsel %vm1130, %v4043, 0
      %4049 = vmatprep.subr.mxu0 0.0
      %4050 = vmatpush1.msra.mxu0 %v3311
      %4051 = vmatprep.subr.mxu0 0.0
      %4052 = vmatpush1.msra.mxu0 %v3316
      %4053 = vmatprep.subr.mxu0 0.0
      %4054 = vmatpush1.msra.mxu0 0.0
      %4055 = vmatprep.subr.mxu0 0.0
      %4056 = vmatpush1.msra.mxu0 0.0
      %4057 = vmatprep.subr.mxu0 0.0
      %4058 = vmatpush1.msra.mxu0 0.0
      %4059 = vmatprep.subr.mxu0 0.0
      %4060 = vmatpush1.msra.mxu0 0.0
      %4061 = vmatprep.subr.mxu0 0.0
      %4062 = vmatpush1.msra.mxu0 0.0
      %4063 = vmatprep.subr.mxu0 0.0
      %4064 = vmatpush1.msra.mxu0 0.0
      %4065 = vmatprep.subr.mxu0 0.0
      %4066 = vmatpush1.msra.mxu0 0.0
      %4067 = vmatprep.subr.mxu0 0.0
      %4068 = vmatpush1.msra.mxu0 0.0
      %4069 = vmatprep.subr.mxu0 0.0
      %4070 = vmatpush1.msra.mxu0 0.0
      %4071 = vmatprep.subr.mxu0 0.0
      %4072 = vmatpush1.msra.mxu0 0.0
      %4073 = vmatprep.subr.mxu0 0.0
      %4074 = vmatpush1.msra.mxu0 0.0
      %4075 = vmatprep.subr.mxu0 0.0
      %4076 = vmatpush1.msra.mxu0 0.0
      %4077 = vmatprep.subr.mxu0 0.0
      %4078 = vmatpush1.msra.mxu0 0.0
      %4079 = vmatprep.subr.mxu0 0.0
      %4080 = vmatpush1.msra.mxu0 0.0
      %4081 = vmatprep.subr.mxu0 0.0
      %4082 = vmatpush1.msra.mxu0 0.0
      %4083 = vmatprep.subr.mxu0 0.0
      %4084 = vmatpush1.msra.mxu0 0.0
      %4085 = vmatprep.subr.mxu0 0.0
      %4086 = vmatpush1.msra.mxu0 0.0
      %4087 = vmatprep.subr.mxu0 0.0
      %4088 = vmatpush1.msra.mxu0 0.0
      %4089 = vmatprep.subr.mxu0 0.0
      %4090 = vmatpush1.msra.mxu0 0.0
      %4091 = vmatprep.subr.mxu0 0.0
      %4092 = vmatpush1.msra.mxu0 0.0
      %4093 = vmatprep.subr.mxu0 0.0
      %4094 = vmatpush1.msra.mxu0 0.0
      %4095 = vmatprep.subr.mxu0 0.0
      %4096 = vmatpush1.msra.mxu0 0.0
      %4097 = vmatprep.subr.mxu0 0.0
      %4098 = vmatpush1.msra.mxu0 0.0
      %4099 = vmatprep.subr.mxu0 0.0
      %4100 = vmatpush1.msra.mxu0 0.0
      %4101 = vmatprep.subr.mxu0 0.0
      %4102 = vmatpush1.msra.mxu0 0.0
      %4103 = vmatprep.subr.mxu0 0.0
      %4104 = vmatpush1.msra.mxu0 0.0
      %4105 = vmatprep.subr.mxu0 0.0
      %4106 = vmatpush1.msra.mxu0 0.0
      %4107 = vmatprep.subr.mxu0 0.0
      %4108 = vmatpush1.msra.mxu0 0.0
      %4109 = vmatprep.subr.mxu0 0.0
      %4110 = vmatpush1.msra.mxu0 0.0
      %4111 = vmatprep.subr.mxu0 0.0
      %4112 = vmatpush1.msra.mxu0 0.0
      %4113 = vmatprep.mubr.f32.mxu0 0.0
      %4114 = vmatmul.mubr.f32.gmra.mrb[0].mxu0 %v4047
      %v4115 = vpop.f32.mrb[0].mxu0
      %v4116 = vadd.f32 0.0, %v4115
      %v4117 = vpop.f32.mrb[0].mxu0
      %4118 = vdwg.mxu0
      %v4119 = vld [vmem:[#allocation2 + $0x1] sm:$0x1]
      %v4120 = vadd.f32 %v4119, %v4116
      %v4121 = vtanh.pop %v4120
      %4122 = vst.msk [vmem:[%s309 + $0x1] sm:$0x1] %vm4044, %v4121
      %v4124 = vsel %vm1130, %v4121, 0
      %4126 = vmatprep.subr.mxu0 0.0
      %4127 = vmatpush1.msra.mxu0 %v3311
      %4128 = vmatprep.subr.mxu0 0.0
      %4129 = vmatpush1.msra.mxu0 %v3316
      %4130 = vmatprep.subr.mxu0 0.0
      %4131 = vmatpush1.msra.mxu0 0.0
      %4132 = vmatprep.subr.mxu0 0.0
      %4133 = vmatpush1.msra.mxu0 0.0
      %4134 = vmatprep.subr.mxu0 0.0
      %4135 = vmatpush1.msra.mxu0 0.0
      %4136 = vmatprep.subr.mxu0 0.0
      %4137 = vmatpush1.msra.mxu0 0.0
      %4138 = vmatprep.subr.mxu0 0.0
      %4139 = vmatpush1.msra.mxu0 0.0
      %4140 = vmatprep.subr.mxu0 0.0
      %4141 = vmatpush1.msra.mxu0 0.0
      %4142 = vmatprep.subr.mxu0 0.0
      %4143 = vmatpush1.msra.mxu0 0.0
      %4144 = vmatprep.subr.mxu0 0.0
      %4145 = vmatpush1.msra.mxu0 0.0
      %4146 = vmatprep.subr.mxu0 0.0
      %4147 = vmatpush1.msra.mxu0 0.0
      %4148 = vmatprep.subr.mxu0 0.0
      %4149 = vmatpush1.msra.mxu0 0.0
      %4150 = vmatprep.subr.mxu0 0.0
      %4151 = vmatpush1.msra.mxu0 0.0
      %4152 = vmatprep.subr.mxu0 0.0
      %4153 = vmatpush1.msra.mxu0 0.0
      %4154 = vmatprep.subr.mxu0 0.0
      %4155 = vmatpush1.msra.mxu0 0.0
      %4156 = vmatprep.subr.mxu0 0.0
      %4157 = vmatpush1.msra.mxu0 0.0
      %4158 = vmatprep.subr.mxu0 0.0
      %4159 = vmatpush1.msra.mxu0 0.0
      %4160 = vmatprep.subr.mxu0 0.0
      %4161 = vmatpush1.msra.mxu0 0.0
      %4162 = vmatprep.subr.mxu0 0.0
      %4163 = vmatpush1.msra.mxu0 0.0
      %4164 = vmatprep.subr.mxu0 0.0
      %4165 = vmatpush1.msra.mxu0 0.0
      %4166 = vmatprep.subr.mxu0 0.0
      %4167 = vmatpush1.msra.mxu0 0.0
      %4168 = vmatprep.subr.mxu0 0.0
      %4169 = vmatpush1.msra.mxu0 0.0
      %4170 = vmatprep.subr.mxu0 0.0
      %4171 = vmatpush1.msra.mxu0 0.0
      %4172 = vmatprep.subr.mxu0 0.0
      %4173 = vmatpush1.msra.mxu0 0.0
      %4174 = vmatprep.subr.mxu0 0.0
      %4175 = vmatpush1.msra.mxu0 0.0
      %4176 = vmatprep.subr.mxu0 0.0
      %4177 = vmatpush1.msra.mxu0 0.0
      %4178 = vmatprep.subr.mxu0 0.0
      %4179 = vmatpush1.msra.mxu0 0.0
      %4180 = vmatprep.subr.mxu0 0.0
      %4181 = vmatpush1.msra.mxu0 0.0
      %4182 = vmatprep.subr.mxu0 0.0
      %4183 = vmatpush1.msra.mxu0 0.0
      %4184 = vmatprep.subr.mxu0 0.0
      %4185 = vmatpush1.msra.mxu0 0.0
      %4186 = vmatprep.subr.mxu0 0.0
      %4187 = vmatpush1.msra.mxu0 0.0
      %4188 = vmatprep.subr.mxu0 0.0
      %4189 = vmatpush1.msra.mxu0 0.0
      %4190 = vmatprep.mubr.f32.mxu0 0.0
      %4191 = vmatmul.mubr.f32.gmra.mrb[0].mxu0 %v4124
      %v4192 = vpop.f32.mrb[0].mxu0
      %v4193 = vadd.f32 0.0, %v4192
      %v4194 = vpop.f32.mrb[0].mxu0
      %4195 = vdwg.mxu0
      %v4196 = vld [vmem:[#allocation2 + $0x2] sm:$0x1]
      %v4197 = vadd.f32 %v4196, %v4193
      %v4198 = vtanh.pop %v4197
      %4199 = vst.msk [vmem:[%s309 + $0x2] sm:$0x1] %vm4044, %v4198
      %v4201 = vsel %vm1130, %v4198, 0
      %4203 = vmatprep.subr.mxu0 0.0
      %4204 = vmatpush1.msra.mxu0 %v3311
      %4205 = vmatprep.subr.mxu0 0.0
      %4206 = vmatpush1.msra.mxu0 %v3316
      %4207 = vmatprep.subr.mxu0 0.0
      %4208 = vmatpush1.msra.mxu0 0.0
      %4209 = vmatprep.subr.mxu0 0.0
      %4210 = vmatpush1.msra.mxu0 0.0
      %4211 = vmatprep.subr.mxu0 0.0
      %4212 = vmatpush1.msra.mxu0 0.0
      %4213 = vmatprep.subr.mxu0 0.0
      %4214 = vmatpush1.msra.mxu0 0.0
      %4215 = vmatprep.subr.mxu0 0.0
      %4216 = vmatpush1.msra.mxu0 0.0
      %4217 = vmatprep.subr.mxu0 0.0
      %4218 = vmatpush1.msra.mxu0 0.0
      %4219 = vmatprep.subr.mxu0 0.0
      %4220 = vmatpush1.msra.mxu0 0.0
      %4221 = vmatprep.subr.mxu0 0.0
      %4222 = vmatpush1.msra.mxu0 0.0
      %4223 = vmatprep.subr.mxu0 0.0
      %4224 = vmatpush1.msra.mxu0 0.0
      %4225 = vmatprep.subr.mxu0 0.0
      %4226 = vmatpush1.msra.mxu0 0.0
      %4227 = vmatprep.subr.mxu0 0.0
      %4228 = vmatpush1.msra.mxu0 0.0
      %4229 = vmatprep.subr.mxu0 0.0
      %4230 = vmatpush1.msra.mxu0 0.0
      %4231 = vmatprep.subr.mxu0 0.0
      %4232 = vmatpush1.msra.mxu0 0.0
      %4233 = vmatprep.subr.mxu0 0.0
      %4234 = vmatpush1.msra.mxu0 0.0
      %4235 = vmatprep.subr.mxu0 0.0
      %4236 = vmatpush1.msra.mxu0 0.0
      %4237 = vmatprep.subr.mxu0 0.0
      %4238 = vmatpush1.msra.mxu0 0.0
      %4239 = vmatprep.subr.mxu0 0.0
      %4240 = vmatpush1.msra.mxu0 0.0
      %4241 = vmatprep.subr.mxu0 0.0
      %4242 = vmatpush1.msra.mxu0 0.0
      %4243 = vmatprep.subr.mxu0 0.0
      %4244 = vmatpush1.msra.mxu0 0.0
      %4245 = vmatprep.subr.mxu0 0.0
      %4246 = vmatpush1.msra.mxu0 0.0
      %4247 = vmatprep.subr.mxu0 0.0
      %4248 = vmatpush1.msra.mxu0 0.0
      %4249 = vmatprep.subr.mxu0 0.0
      %4250 = vmatpush1.msra.mxu0 0.0
      %4251 = vmatprep.subr.mxu0 0.0
      %4252 = vmatpush1.msra.mxu0 0.0
      %4253 = vmatprep.subr.mxu0 0.0
      %4254 = vmatpush1.msra.mxu0 0.0
      %4255 = vmatprep.subr.mxu0 0.0
      %4256 = vmatpush1.msra.mxu0 0.0
      %4257 = vmatprep.subr.mxu0 0.0
      %4258 = vmatpush1.msra.mxu0 0.0
      %4259 = vmatprep.subr.mxu0 0.0
      %4260 = vmatpush1.msra.mxu0 0.0
      %4261 = vmatprep.subr.mxu0 0.0
      %4262 = vmatpush1.msra.mxu0 0.0
      %4263 = vmatprep.subr.mxu0 0.0
      %4264 = vmatpush1.msra.mxu0 0.0
      %4265 = vmatprep.subr.mxu0 0.0
      %4266 = vmatpush1.msra.mxu0 0.0
      %4267 = vmatprep.mubr.f32.mxu0 0.0
      %4268 = vmatmul.mubr.f32.gmra.mrb[0].mxu0 %v4201
      %v4269 = vpop.f32.mrb[0].mxu0
      %v4270 = vadd.f32 0.0, %v4269
      %v4271 = vpop.f32.mrb[0].mxu0
      %4272 = vdwg.mxu0
      %v4273 = vld [vmem:[#allocation2 + $0x3] sm:$0x1]
      %v4274 = vadd.f32 %v4273, %v4270
      %v4275 = vtanh.pop %v4274
      %4276 = vst.msk [vmem:[%s309 + $0x3] sm:$0x1] %vm4044, %v4275
      %v4278 = vsel %vm1130, %v4275, 0
      %4280 = vmatprep.subr.mxu0 0.0
      %4281 = vmatpush1.msra.mxu0 %v3311
      %4282 = vmatprep.subr.mxu0 0.0
      %4283 = vmatpush1.msra.mxu0 %v3316
      %4284 = vmatprep.subr.mxu0 0.0
      %4285 = vmatpush1.msra.mxu0 0.0
      %4286 = vmatprep.subr.mxu0 0.0
      %4287 = vmatpush1.msra.mxu0 0.0
      %4288 = vmatprep.subr.mxu0 0.0
      %4289 = vmatpush1.msra.mxu0 0.0
      %4290 = vmatprep.subr.mxu0 0.0
      %4291 = vmatpush1.msra.mxu0 0.0
      %4292 = vmatprep.subr.mxu0 0.0
      %4293 = vmatpush1.msra.mxu0 0.0
      %4294 = vmatprep.subr.mxu0 0.0
      %4295 = vmatpush1.msra.mxu0 0.0
      %4296 = vmatprep.subr.mxu0 0.0
      %4297 = vmatpush1.msra.mxu0 0.0
      %4298 = vmatprep.subr.mxu0 0.0
      %4299 = vmatpush1.msra.mxu0 0.0
      %4300 = vmatprep.subr.mxu0 0.0
      %4301 = vmatpush1.msra.mxu0 0.0
      %4302 = vmatprep.subr.mxu0 0.0
      %4303 = vmatpush1.msra.mxu0 0.0
      %4304 = vmatprep.subr.mxu0 0.0
      %4305 = vmatpush1.msra.mxu0 0.0
      %4306 = vmatprep.subr.mxu0 0.0
      %4307 = vmatpush1.msra.mxu0 0.0
      %4308 = vmatprep.subr.mxu0 0.0
      %4309 = vmatpush1.msra.mxu0 0.0
      %4310 = vmatprep.subr.mxu0 0.0
      %4311 = vmatpush1.msra.mxu0 0.0
      %4312 = vmatprep.subr.mxu0 0.0
      %4313 = vmatpush1.msra.mxu0 0.0
      %4314 = vmatprep.subr.mxu0 0.0
      %4315 = vmatpush1.msra.mxu0 0.0
      %4316 = vmatprep.subr.mxu0 0.0
      %4317 = vmatpush1.msra.mxu0 0.0
      %4318 = vmatprep.subr.mxu0 0.0
      %4319 = vmatpush1.msra.mxu0 0.0
      %4320 = vmatprep.subr.mxu0 0.0
      %4321 = vmatpush1.msra.mxu0 0.0
      %4322 = vmatprep.subr.mxu0 0.0
      %4323 = vmatpush1.msra.mxu0 0.0
      %4324 = vmatprep.subr.mxu0 0.0
      %4325 = vmatpush1.msra.mxu0 0.0
      %4326 = vmatprep.subr.mxu0 0.0
      %4327 = vmatpush1.msra.mxu0 0.0
      %4328 = vmatprep.subr.mxu0 0.0
      %4329 = vmatpush1.msra.mxu0 0.0
      %4330 = vmatprep.subr.mxu0 0.0
      %4331 = vmatpush1.msra.mxu0 0.0
      %4332 = vmatprep.subr.mxu0 0.0
      %4333 = vmatpush1.msra.mxu0 0.0
      %4334 = vmatprep.subr.mxu0 0.0
      %4335 = vmatpush1.msra.mxu0 0.0
      %4336 = vmatprep.subr.mxu0 0.0
      %4337 = vmatpush1.msra.mxu0 0.0
      %4338 = vmatprep.subr.mxu0 0.0
      %4339 = vmatpush1.msra.mxu0 0.0
      %4340 = vmatprep.subr.mxu0 0.0
      %4341 = vmatpush1.msra.mxu0 0.0
      %4342 = vmatprep.subr.mxu0 0.0
      %4343 = vmatpush1.msra.mxu0 0.0
      %4344 = vmatprep.mubr.f32.mxu0 0.0
      %4345 = vmatmul.mubr.f32.gmra.mrb[0].mxu0 %v4278
      %v4346 = vpop.f32.mrb[0].mxu0
      %v4347 = vadd.f32 0.0, %v4346
      %v4348 = vpop.f32.mrb[0].mxu0
      %4349 = vdwg.mxu0
      %v4350 = vld [vmem:[#allocation2 + $0x4] sm:$0x1]
      %v4351 = vadd.f32 %v4350, %v4347
      %v4352 = vtanh.pop %v4351
      %4353 = vst.msk [vmem:[%s309 + $0x4] sm:$0x1] %vm4044, %v4352
      %v4355 = vsel %vm1130, %v4352, 0
      %4357 = vmatprep.subr.mxu0 0.0
      %4358 = vmatpush1.msra.mxu0 %v3311
      %4359 = vmatprep.subr.mxu0 0.0
      %4360 = vmatpush1.msra.mxu0 %v3316
      %4361 = vmatprep.subr.mxu0 0.0
      %4362 = vmatpush1.msra.mxu0 0.0
      %4363 = vmatprep.subr.mxu0 0.0
      %4364 = vmatpush1.msra.mxu0 0.0
      %4365 = vmatprep.subr.mxu0 0.0
      %4366 = vmatpush1.msra.mxu0 0.0
      %4367 = vmatprep.subr.mxu0 0.0
      %4368 = vmatpush1.msra.mxu0 0.0
      %4369 = vmatprep.subr.mxu0 0.0
      %4370 = vmatpush1.msra.mxu0 0.0
      %4371 = vmatprep.subr.mxu0 0.0
      %4372 = vmatpush1.msra.mxu0 0.0
      %4373 = vmatprep.subr.mxu0 0.0
      %4374 = vmatpush1.msra.mxu0 0.0
      %4375 = vmatprep.subr.mxu0 0.0
      %4376 = vmatpush1.msra.mxu0 0.0
      %4377 = vmatprep.subr.mxu0 0.0
      %4378 = vmatpush1.msra.mxu0 0.0
      %4379 = vmatprep.subr.mxu0 0.0
      %4380 = vmatpush1.msra.mxu0 0.0
      %4381 = vmatprep.subr.mxu0 0.0
      %4382 = vmatpush1.msra.mxu0 0.0
      %4383 = vmatprep.subr.mxu0 0.0
      %4384 = vmatpush1.msra.mxu0 0.0
      %4385 = vmatprep.subr.mxu0 0.0
      %4386 = vmatpush1.msra.mxu0 0.0
      %4387 = vmatprep.subr.mxu0 0.0
      %4388 = vmatpush1.msra.mxu0 0.0
      %4389 = vmatprep.subr.mxu0 0.0
      %4390 = vmatpush1.msra.mxu0 0.0
      %4391 = vmatprep.subr.mxu0 0.0
      %4392 = vmatpush1.msra.mxu0 0.0
      %4393 = vmatprep.subr.mxu0 0.0
      %4394 = vmatpush1.msra.mxu0 0.0
      %4395 = vmatprep.subr.mxu0 0.0
      %4396 = vmatpush1.msra.mxu0 0.0
      %4397 = vmatprep.subr.mxu0 0.0
      %4398 = vmatpush1.msra.mxu0 0.0
      %4399 = vmatprep.subr.mxu0 0.0
      %4400 = vmatpush1.msra.mxu0 0.0
      %4401 = vmatprep.subr.mxu0 0.0
      %4402 = vmatpush1.msra.mxu0 0.0
      %4403 = vmatprep.subr.mxu0 0.0
      %4404 = vmatpush1.msra.mxu0 0.0
      %4405 = vmatprep.subr.mxu0 0.0
      %4406 = vmatpush1.msra.mxu0 0.0
      %4407 = vmatprep.subr.mxu0 0.0
      %4408 = vmatpush1.msra.mxu0 0.0
      %4409 = vmatprep.subr.mxu0 0.0
      %4410 = vmatpush1.msra.mxu0 0.0
      %4411 = vmatprep.subr.mxu0 0.0
      %4412 = vmatpush1.msra.mxu0 0.0
      %4413 = vmatprep.subr.mxu0 0.0
      %4414 = vmatpush1.msra.mxu0 0.0
      %4415 = vmatprep.subr.mxu0 0.0
      %4416 = vmatpush1.msra.mxu0 0.0
      %4417 = vmatprep.subr.mxu0 0.0
      %4418 = vmatpush1.msra.mxu0 0.0
      %4419 = vmatprep.subr.mxu0 0.0
      %4420 = vmatpush1.msra.mxu0 0.0
      %4421 = vmatprep.mubr.f32.mxu0 0.0
      %4422 = vmatmul.mubr.f32.gmra.mrb[0].mxu0 %v4355
      %v4423 = vpop.f32.mrb[0].mxu0
      %v4424 = vadd.f32 0.0, %v4423
      %v4425 = vpop.f32.mrb[0].mxu0
      %4426 = vdwg.mxu0
      %v4427 = vld [vmem:[#allocation2 + $0x5] sm:$0x1]
      %v4428 = vadd.f32 %v4427, %v4424
      %v4429 = vtanh.pop %v4428
      %4430 = vst.msk [vmem:[%s309 + $0x5] sm:$0x1] %vm4044, %v4429
      %v4432 = vsel %vm1130, %v4429, 0
      %4434 = vmatprep.subr.mxu0 0.0
      %4435 = vmatpush1.msra.mxu0 %v3311
      %4436 = vmatprep.subr.mxu0 0.0
      %4437 = vmatpush1.msra.mxu0 %v3316
      %4438 = vmatprep.subr.mxu0 0.0
      %4439 = vmatpush1.msra.mxu0 0.0
      %4440 = vmatprep.subr.mxu0 0.0
      %4441 = vmatpush1.msra.mxu0 0.0
      %4442 = vmatprep.subr.mxu0 0.0
      %4443 = vmatpush1.msra.mxu0 0.0
      %4444 = vmatprep.subr.mxu0 0.0
      %4445 = vmatpush1.msra.mxu0 0.0
      %4446 = vmatprep.subr.mxu0 0.0
      %4447 = vmatpush1.msra.mxu0 0.0
      %4448 = vmatprep.subr.mxu0 0.0
      %4449 = vmatpush1.msra.mxu0 0.0
      %4450 = vmatprep.subr.mxu0 0.0
      %4451 = vmatpush1.msra.mxu0 0.0
      %4452 = vmatprep.subr.mxu0 0.0
      %4453 = vmatpush1.msra.mxu0 0.0
      %4454 = vmatprep.subr.mxu0 0.0
      %4455 = vmatpush1.msra.mxu0 0.0
      %4456 = vmatprep.subr.mxu0 0.0
      %4457 = vmatpush1.msra.mxu0 0.0
      %4458 = vmatprep.subr.mxu0 0.0
      %4459 = vmatpush1.msra.mxu0 0.0
      %4460 = vmatprep.subr.mxu0 0.0
      %4461 = vmatpush1.msra.mxu0 0.0
      %4462 = vmatprep.subr.mxu0 0.0
      %4463 = vmatpush1.msra.mxu0 0.0
      %4464 = vmatprep.subr.mxu0 0.0
      %4465 = vmatpush1.msra.mxu0 0.0
      %4466 = vmatprep.subr.mxu0 0.0
      %4467 = vmatpush1.msra.mxu0 0.0
      %4468 = vmatprep.subr.mxu0 0.0
      %4469 = vmatpush1.msra.mxu0 0.0
      %4470 = vmatprep.subr.mxu0 0.0
      %4471 = vmatpush1.msra.mxu0 0.0
      %4472 = vmatprep.subr.mxu0 0.0
      %4473 = vmatpush1.msra.mxu0 0.0
      %4474 = vmatprep.subr.mxu0 0.0
      %4475 = vmatpush1.msra.mxu0 0.0
      %4476 = vmatprep.subr.mxu0 0.0
      %4477 = vmatpush1.msra.mxu0 0.0
      %4478 = vmatprep.subr.mxu0 0.0
      %4479 = vmatpush1.msra.mxu0 0.0
      %4480 = vmatprep.subr.mxu0 0.0
      %4481 = vmatpush1.msra.mxu0 0.0
      %4482 = vmatprep.subr.mxu0 0.0
      %4483 = vmatpush1.msra.mxu0 0.0
      %4484 = vmatprep.subr.mxu0 0.0
      %4485 = vmatpush1.msra.mxu0 0.0
      %4486 = vmatprep.subr.mxu0 0.0
      %4487 = vmatpush1.msra.mxu0 0.0
      %4488 = vmatprep.subr.mxu0 0.0
      %4489 = vmatpush1.msra.mxu0 0.0
      %4490 = vmatprep.subr.mxu0 0.0
      %4491 = vmatpush1.msra.mxu0 0.0
      %4492 = vmatprep.subr.mxu0 0.0
      %4493 = vmatpush1.msra.mxu0 0.0
      %4494 = vmatprep.subr.mxu0 0.0
      %4495 = vmatpush1.msra.mxu0 0.0
      %4496 = vmatprep.subr.mxu0 0.0
      %4497 = vmatpush1.msra.mxu0 0.0
      %4498 = vmatprep.mubr.f32.mxu0 0.0
      %4499 = vmatmul.mubr.f32.gmra.mrb[0].mxu0 %v4432
      %v4500 = vpop.f32.mrb[0].mxu0
      %v4501 = vadd.f32 0.0, %v4500
      %v4502 = vpop.f32.mrb[0].mxu0
      %4503 = vdwg.mxu0
      %v4504 = vld [vmem:[#allocation2 + $0x6] sm:$0x1]
      %v4505 = vadd.f32 %v4504, %v4501
      %v4506 = vtanh.pop %v4505
      %4507 = vst.msk [vmem:[%s309 + $0x6] sm:$0x1] %vm4044, %v4506
      %v4509 = vsel %vm1130, %v4506, 0
      %4511 = vmatprep.subr.mxu0 0.0
      %4512 = vmatpush1.msra.mxu0 %v3311
      %4513 = vmatprep.subr.mxu0 0.0
      %4514 = vmatpush1.msra.mxu0 %v3316
      %4515 = vmatprep.subr.mxu0 0.0
      %4516 = vmatpush1.msra.mxu0 0.0
      %4517 = vmatprep.subr.mxu0 0.0
      %4518 = vmatpush1.msra.mxu0 0.0
      %4519 = vmatprep.subr.mxu0 0.0
      %4520 = vmatpush1.msra.mxu0 0.0
      %4521 = vmatprep.subr.mxu0 0.0
      %4522 = vmatpush1.msra.mxu0 0.0
      %4523 = vmatprep.subr.mxu0 0.0
      %4524 = vmatpush1.msra.mxu0 0.0
      %4525 = vmatprep.subr.mxu0 0.0
      %4526 = vmatpush1.msra.mxu0 0.0
      %4527 = vmatprep.subr.mxu0 0.0
      %4528 = vmatpush1.msra.mxu0 0.0
      %4529 = vmatprep.subr.mxu0 0.0
      %4530 = vmatpush1.msra.mxu0 0.0
      %4531 = vmatprep.subr.mxu0 0.0
      %4532 = vmatpush1.msra.mxu0 0.0
      %4533 = vmatprep.subr.mxu0 0.0
      %4534 = vmatpush1.msra.mxu0 0.0
      %4535 = vmatprep.subr.mxu0 0.0
      %4536 = vmatpush1.msra.mxu0 0.0
      %4537 = vmatprep.subr.mxu0 0.0
      %4538 = vmatpush1.msra.mxu0 0.0
      %4539 = vmatprep.subr.mxu0 0.0
      %4540 = vmatpush1.msra.mxu0 0.0
      %4541 = vmatprep.subr.mxu0 0.0
      %4542 = vmatpush1.msra.mxu0 0.0
      %4543 = vmatprep.subr.mxu0 0.0
      %4544 = vmatpush1.msra.mxu0 0.0
      %4545 = vmatprep.subr.mxu0 0.0
      %4546 = vmatpush1.msra.mxu0 0.0
      %4547 = vmatprep.subr.mxu0 0.0
      %4548 = vmatpush1.msra.mxu0 0.0
      %4549 = vmatprep.subr.mxu0 0.0
      %4550 = vmatpush1.msra.mxu0 0.0
      %4551 = vmatprep.subr.mxu0 0.0
      %4552 = vmatpush1.msra.mxu0 0.0
      %4553 = vmatprep.subr.mxu0 0.0
      %4554 = vmatpush1.msra.mxu0 0.0
      %4555 = vmatprep.subr.mxu0 0.0
      %4556 = vmatpush1.msra.mxu0 0.0
      %4557 = vmatprep.subr.mxu0 0.0
      %4558 = vmatpush1.msra.mxu0 0.0
      %4559 = vmatprep.subr.mxu0 0.0
      %4560 = vmatpush1.msra.mxu0 0.0
      %4561 = vmatprep.subr.mxu0 0.0
      %4562 = vmatpush1.msra.mxu0 0.0
      %4563 = vmatprep.subr.mxu0 0.0
      %4564 = vmatpush1.msra.mxu0 0.0
      %4565 = vmatprep.subr.mxu0 0.0
      %4566 = vmatpush1.msra.mxu0 0.0
      %4567 = vmatprep.subr.mxu0 0.0
      %4568 = vmatpush1.msra.mxu0 0.0
      %4569 = vmatprep.subr.mxu0 0.0
      %4570 = vmatpush1.msra.mxu0 0.0
      %4571 = vmatprep.subr.mxu0 0.0
      %4572 = vmatpush1.msra.mxu0 0.0
      %4573 = vmatprep.subr.mxu0 0.0
      %4574 = vmatpush1.msra.mxu0 0.0
      %4575 = vmatprep.mubr.f32.mxu0 0.0
      %4576 = vmatmul.mubr.f32.gmra.mrb[0].mxu0 %v4509
      %v4577 = vpop.f32.mrb[0].mxu0
      %v4578 = vadd.f32 0.0, %v4577
      %v4579 = vpop.f32.mrb[0].mxu0
      %4580 = vdwg.mxu0
      %v4581 = vld [vmem:[#allocation2 + $0x7] sm:$0x1]
      %v4582 = vadd.f32 %v4581, %v4578
      %v4583 = vtanh.pop %v4582
      %4584 = vst.msk [vmem:[%s309 + $0x7] sm:$0x1] %vm4044, %v4583
      %v4586 = vsel %vm1130, %v4583, 0
      %4588 = vmatprep.subr.mxu0 0.0
      %4589 = vmatpush1.msra.mxu0 %v3311
      %4590 = vmatprep.subr.mxu0 0.0
      %4591 = vmatpush1.msra.mxu0 %v3316
      %4592 = vmatprep.subr.mxu0 0.0
      %4593 = vmatpush1.msra.mxu0 0.0
      %4594 = vmatprep.subr.mxu0 0.0
      %4595 = vmatpush1.msra.mxu0 0.0
      %4596 = vmatprep.subr.mxu0 0.0
      %4597 = vmatpush1.msra.mxu0 0.0
      %4598 = vmatprep.subr.mxu0 0.0
      %4599 = vmatpush1.msra.mxu0 0.0
      %4600 = vmatprep.subr.mxu0 0.0
      %4601 = vmatpush1.msra.mxu0 0.0
      %4602 = vmatprep.subr.mxu0 0.0
      %4603 = vmatpush1.msra.mxu0 0.0
      %4604 = vmatprep.subr.mxu0 0.0
      %4605 = vmatpush1.msra.mxu0 0.0
      %4606 = vmatprep.subr.mxu0 0.0
      %4607 = vmatpush1.msra.mxu0 0.0
      %4608 = vmatprep.subr.mxu0 0.0
      %4609 = vmatpush1.msra.mxu0 0.0
      %4610 = vmatprep.subr.mxu0 0.0
      %4611 = vmatpush1.msra.mxu0 0.0
      %4612 = vmatprep.subr.mxu0 0.0
      %4613 = vmatpush1.msra.mxu0 0.0
      %4614 = vmatprep.subr.mxu0 0.0
      %4615 = vmatpush1.msra.mxu0 0.0
      %4616 = vmatprep.subr.mxu0 0.0
      %4617 = vmatpush1.msra.mxu0 0.0
      %4618 = vmatprep.subr.mxu0 0.0
      %4619 = vmatpush1.msra.mxu0 0.0
      %4620 = vmatprep.subr.mxu0 0.0
      %4621 = vmatpush1.msra.mxu0 0.0
      %4622 = vmatprep.subr.mxu0 0.0
      %4623 = vmatpush1.msra.mxu0 0.0
      %4624 = vmatprep.subr.mxu0 0.0
      %4625 = vmatpush1.msra.mxu0 0.0
      %4626 = vmatprep.subr.mxu0 0.0
      %4627 = vmatpush1.msra.mxu0 0.0
      %4628 = vmatprep.subr.mxu0 0.0
      %4629 = vmatpush1.msra.mxu0 0.0
      %4630 = vmatprep.subr.mxu0 0.0
      %4631 = vmatpush1.msra.mxu0 0.0
      %4632 = vmatprep.subr.mxu0 0.0
      %4633 = vmatpush1.msra.mxu0 0.0
      %4634 = vmatprep.subr.mxu0 0.0
      %4635 = vmatpush1.msra.mxu0 0.0
      %4636 = vmatprep.subr.mxu0 0.0
      %4637 = vmatpush1.msra.mxu0 0.0
      %4638 = vmatprep.subr.mxu0 0.0
      %4639 = vmatpush1.msra.mxu0 0.0
      %4640 = vmatprep.subr.mxu0 0.0
      %4641 = vmatpush1.msra.mxu0 0.0
      %4642 = vmatprep.subr.mxu0 0.0
      %4643 = vmatpush1.msra.mxu0 0.0
      %4644 = vmatprep.subr.mxu0 0.0
      %4645 = vmatpush1.msra.mxu0 0.0
      %4646 = vmatprep.subr.mxu0 0.0
      %4647 = vmatpush1.msra.mxu0 0.0
      %4648 = vmatprep.subr.mxu0 0.0
      %4649 = vmatpush1.msra.mxu0 0.0
      %4650 = vmatprep.subr.mxu0 0.0
      %4651 = vmatpush1.msra.mxu0 0.0
      %4652 = vmatprep.mubr.f32.mxu0 0.0
      %4653 = vmatmul.mubr.f32.gmra.mrb[0].mxu0 %v4586
      %v4654 = vpop.f32.mrb[0].mxu0
      %v4655 = vadd.f32 0.0, %v4654
      %v4656 = vpop.f32.mrb[0].mxu0
      %4657 = vdwg.mxu0
      %v4658 = vld [vmem:[#allocation2 + $0x8] sm:$0x1]
      %v4659 = vadd.f32 %v4658, %v4655
      %v4660 = vtanh.pop %v4659
      %4661 = vst.msk [vmem:[%s309 + $0x8] sm:$0x1] %vm4044, %v4660
      %v4663 = vsel %vm1130, %v4660, 0
      %4665 = vmatprep.subr.mxu0 0.0
      %4666 = vmatpush1.msra.mxu0 %v3311
      %4667 = vmatprep.subr.mxu0 0.0
      %4668 = vmatpush1.msra.mxu0 %v3316
      %4669 = vmatprep.subr.mxu0 0.0
      %4670 = vmatpush1.msra.mxu0 0.0
      %4671 = vmatprep.subr.mxu0 0.0
      %4672 = vmatpush1.msra.mxu0 0.0
      %4673 = vmatprep.subr.mxu0 0.0
      %4674 = vmatpush1.msra.mxu0 0.0
      %4675 = vmatprep.subr.mxu0 0.0
      %4676 = vmatpush1.msra.mxu0 0.0
      %4677 = vmatprep.subr.mxu0 0.0
      %4678 = vmatpush1.msra.mxu0 0.0
      %4679 = vmatprep.subr.mxu0 0.0
      %4680 = vmatpush1.msra.mxu0 0.0
      %4681 = vmatprep.subr.mxu0 0.0
      %4682 = vmatpush1.msra.mxu0 0.0
      %4683 = vmatprep.subr.mxu0 0.0
      %4684 = vmatpush1.msra.mxu0 0.0
      %4685 = vmatprep.subr.mxu0 0.0
      %4686 = vmatpush1.msra.mxu0 0.0
      %4687 = vmatprep.subr.mxu0 0.0
      %4688 = vmatpush1.msra.mxu0 0.0
      %4689 = vmatprep.subr.mxu0 0.0
      %4690 = vmatpush1.msra.mxu0 0.0
      %4691 = vmatprep.subr.mxu0 0.0
      %4692 = vmatpush1.msra.mxu0 0.0
      %4693 = vmatprep.subr.mxu0 0.0
      %4694 = vmatpush1.msra.mxu0 0.0
      %4695 = vmatprep.subr.mxu0 0.0
      %4696 = vmatpush1.msra.mxu0 0.0
      %4697 = vmatprep.subr.mxu0 0.0
      %4698 = vmatpush1.msra.mxu0 0.0
      %4699 = vmatprep.subr.mxu0 0.0
      %4700 = vmatpush1.msra.mxu0 0.0
      %4701 = vmatprep.subr.mxu0 0.0
      %4702 = vmatpush1.msra.mxu0 0.0
      %4703 = vmatprep.subr.mxu0 0.0
      %4704 = vmatpush1.msra.mxu0 0.0
      %4705 = vmatprep.subr.mxu0 0.0
      %4706 = vmatpush1.msra.mxu0 0.0
      %4707 = vmatprep.subr.mxu0 0.0
      %4708 = vmatpush1.msra.mxu0 0.0
      %4709 = vmatprep.subr.mxu0 0.0
      %4710 = vmatpush1.msra.mxu0 0.0
      %4711 = vmatprep.subr.mxu0 0.0
      %4712 = vmatpush1.msra.mxu0 0.0
      %4713 = vmatprep.subr.mxu0 0.0
      %4714 = vmatpush1.msra.mxu0 0.0
      %4715 = vmatprep.subr.mxu0 0.0
      %4716 = vmatpush1.msra.mxu0 0.0
      %4717 = vmatprep.subr.mxu0 0.0
      %4718 = vmatpush1.msra.mxu0 0.0
      %4719 = vmatprep.subr.mxu0 0.0
      %4720 = vmatpush1.msra.mxu0 0.0
      %4721 = vmatprep.subr.mxu0 0.0
      %4722 = vmatpush1.msra.mxu0 0.0
      %4723 = vmatprep.subr.mxu0 0.0
      %4724 = vmatpush1.msra.mxu0 0.0
      %4725 = vmatprep.subr.mxu0 0.0
      %4726 = vmatpush1.msra.mxu0 0.0
      %4727 = vmatprep.subr.mxu0 0.0
      %4728 = vmatpush1.msra.mxu0 0.0
      %4729 = vmatprep.mubr.f32.mxu0 0.0
      %4730 = vmatmul.mubr.f32.gmra.mrb[0].mxu0 %v4663
      %v4731 = vpop.f32.mrb[0].mxu0
      %v4732 = vadd.f32 0.0, %v4731
      %v4733 = vpop.f32.mrb[0].mxu0
      %4734 = vdwg.mxu0
      %v4735 = vld [vmem:[#allocation2 + $0x9] sm:$0x1]
      %v4736 = vadd.f32 %v4735, %v4732
      %v4737 = vtanh.pop %v4736
      %4738 = vst.msk [vmem:[%s309 + $0x9] sm:$0x1] %vm4044, %v4737
      %v4740 = vsel %vm1130, %v4737, 0
      %4742 = vmatprep.subr.mxu0 0.0
      %4743 = vmatpush1.msra.mxu0 %v3311
      %4744 = vmatprep.subr.mxu0 0.0
      %4745 = vmatpush1.msra.mxu0 %v3316
      %4746 = vmatprep.subr.mxu0 0.0
      %4747 = vmatpush1.msra.mxu0 0.0
      %4748 = vmatprep.subr.mxu0 0.0
      %4749 = vmatpush1.msra.mxu0 0.0
      %4750 = vmatprep.subr.mxu0 0.0
      %4751 = vmatpush1.msra.mxu0 0.0
      %4752 = vmatprep.subr.mxu0 0.0
      %4753 = vmatpush1.msra.mxu0 0.0
      %4754 = vmatprep.subr.mxu0 0.0
      %4755 = vmatpush1.msra.mxu0 0.0
      %4756 = vmatprep.subr.mxu0 0.0
      %4757 = vmatpush1.msra.mxu0 0.0
      %4758 = vmatprep.subr.mxu0 0.0
      %4759 = vmatpush1.msra.mxu0 0.0
      %4760 = vmatprep.subr.mxu0 0.0
      %4761 = vmatpush1.msra.mxu0 0.0
      %4762 = vmatprep.subr.mxu0 0.0
      %4763 = vmatpush1.msra.mxu0 0.0
      %4764 = vmatprep.subr.mxu0 0.0
      %4765 = vmatpush1.msra.mxu0 0.0
      %4766 = vmatprep.subr.mxu0 0.0
      %4767 = vmatpush1.msra.mxu0 0.0
      %4768 = vmatprep.subr.mxu0 0.0
      %4769 = vmatpush1.msra.mxu0 0.0
      %4770 = vmatprep.subr.mxu0 0.0
      %4771 = vmatpush1.msra.mxu0 0.0
      %4772 = vmatprep.subr.mxu0 0.0
      %4773 = vmatpush1.msra.mxu0 0.0
      %4774 = vmatprep.subr.mxu0 0.0
      %4775 = vmatpush1.msra.mxu0 0.0
      %4776 = vmatprep.subr.mxu0 0.0
      %4777 = vmatpush1.msra.mxu0 0.0
      %4778 = vmatprep.subr.mxu0 0.0
      %4779 = vmatpush1.msra.mxu0 0.0
      %4780 = vmatprep.subr.mxu0 0.0
      %4781 = vmatpush1.msra.mxu0 0.0
      %4782 = vmatprep.subr.mxu0 0.0
      %4783 = vmatpush1.msra.mxu0 0.0
      %4784 = vmatprep.subr.mxu0 0.0
      %4785 = vmatpush1.msra.mxu0 0.0
      %4786 = vmatprep.subr.mxu0 0.0
      %4787 = vmatpush1.msra.mxu0 0.0
      %4788 = vmatprep.subr.mxu0 0.0
      %4789 = vmatpush1.msra.mxu0 0.0
      %4790 = vmatprep.subr.mxu0 0.0
      %4791 = vmatpush1.msra.mxu0 0.0
      %4792 = vmatprep.subr.mxu0 0.0
      %4793 = vmatpush1.msra.mxu0 0.0
      %4794 = vmatprep.subr.mxu0 0.0
      %4795 = vmatpush1.msra.mxu0 0.0
      %4796 = vmatprep.subr.mxu0 0.0
      %4797 = vmatpush1.msra.mxu0 0.0
      %4798 = vmatprep.subr.mxu0 0.0
      %4799 = vmatpush1.msra.mxu0 0.0
      %4800 = vmatprep.subr.mxu0 0.0
      %4801 = vmatpush1.msra.mxu0 0.0
      %4802 = vmatprep.subr.mxu0 0.0
      %4803 = vmatpush1.msra.mxu0 0.0
      %4804 = vmatprep.subr.mxu0 0.0
      %4805 = vmatpush1.msra.mxu0 0.0
      %4806 = vmatprep.mubr.f32.mxu0 0.0
      %4807 = vmatmul.mubr.f32.gmra.mrb[0].mxu0 %v4740
      %v4808 = vpop.f32.mrb[0].mxu0
      %v4809 = vadd.f32 0.0, %v4808
      %v4810 = vpop.f32.mrb[0].mxu0
      %4811 = vdwg.mxu0
      %v4812 = vld [vmem:[#allocation2 + $0xa] sm:$0x1]
      %v4813 = vadd.f32 %v4812, %v4809
      %v4814 = vtanh.pop %v4813
      %4815 = vst.msk [vmem:[%s309 + $0xa] sm:$0x1] %vm4044, %v4814
      %v4817 = vsel %vm1130, %v4814, 0
      %4819 = vmatprep.subr.mxu0 0.0
      %4820 = vmatpush1.msra.mxu0 %v3311
      %4821 = vmatprep.subr.mxu0 0.0
      %4822 = vmatpush1.msra.mxu0 %v3316
      %4823 = vmatprep.subr.mxu0 0.0
      %4824 = vmatpush1.msra.mxu0 0.0
      %4825 = vmatprep.subr.mxu0 0.0
      %4826 = vmatpush1.msra.mxu0 0.0
      %4827 = vmatprep.subr.mxu0 0.0
      %4828 = vmatpush1.msra.mxu0 0.0
      %4829 = vmatprep.subr.mxu0 0.0
      %4830 = vmatpush1.msra.mxu0 0.0
      %4831 = vmatprep.subr.mxu0 0.0
      %4832 = vmatpush1.msra.mxu0 0.0
      %4833 = vmatprep.subr.mxu0 0.0
      %4834 = vmatpush1.msra.mxu0 0.0
      %4835 = vmatprep.subr.mxu0 0.0
      %4836 = vmatpush1.msra.mxu0 0.0
      %4837 = vmatprep.subr.mxu0 0.0
      %4838 = vmatpush1.msra.mxu0 0.0
      %4839 = vmatprep.subr.mxu0 0.0
      %4840 = vmatpush1.msra.mxu0 0.0
      %4841 = vmatprep.subr.mxu0 0.0
      %4842 = vmatpush1.msra.mxu0 0.0
      %4843 = vmatprep.subr.mxu0 0.0
      %4844 = vmatpush1.msra.mxu0 0.0
      %4845 = vmatprep.subr.mxu0 0.0
      %4846 = vmatpush1.msra.mxu0 0.0
      %4847 = vmatprep.subr.mxu0 0.0
      %4848 = vmatpush1.msra.mxu0 0.0
      %4849 = vmatprep.subr.mxu0 0.0
      %4850 = vmatpush1.msra.mxu0 0.0
      %4851 = vmatprep.subr.mxu0 0.0
      %4852 = vmatpush1.msra.mxu0 0.0
      %4853 = vmatprep.subr.mxu0 0.0
      %4854 = vmatpush1.msra.mxu0 0.0
      %4855 = vmatprep.subr.mxu0 0.0
      %4856 = vmatpush1.msra.mxu0 0.0
      %4857 = vmatprep.subr.mxu0 0.0
      %4858 = vmatpush1.msra.mxu0 0.0
      %4859 = vmatprep.subr.mxu0 0.0
      %4860 = vmatpush1.msra.mxu0 0.0
      %4861 = vmatprep.subr.mxu0 0.0
      %4862 = vmatpush1.msra.mxu0 0.0
      %4863 = vmatprep.subr.mxu0 0.0
      %4864 = vmatpush1.msra.mxu0 0.0
      %4865 = vmatprep.subr.mxu0 0.0
      %4866 = vmatpush1.msra.mxu0 0.0
      %4867 = vmatprep.subr.mxu0 0.0
      %4868 = vmatpush1.msra.mxu0 0.0
      %4869 = vmatprep.subr.mxu0 0.0
      %4870 = vmatpush1.msra.mxu0 0.0
      %4871 = vmatprep.subr.mxu0 0.0
      %4872 = vmatpush1.msra.mxu0 0.0
      %4873 = vmatprep.subr.mxu0 0.0
      %4874 = vmatpush1.msra.mxu0 0.0
      %4875 = vmatprep.subr.mxu0 0.0
      %4876 = vmatpush1.msra.mxu0 0.0
      %4877 = vmatprep.subr.mxu0 0.0
      %4878 = vmatpush1.msra.mxu0 0.0
      %4879 = vmatprep.subr.mxu0 0.0
      %4880 = vmatpush1.msra.mxu0 0.0
      %4881 = vmatprep.subr.mxu0 0.0
      %4882 = vmatpush1.msra.mxu0 0.0
      %4883 = vmatprep.mubr.f32.mxu0 0.0
      %4884 = vmatmul.mubr.f32.gmra.mrb[0].mxu0 %v4817
      %v4885 = vpop.f32.mrb[0].mxu0
      %v4886 = vadd.f32 0.0, %v4885
      %v4887 = vpop.f32.mrb[0].mxu0
      %4888 = vdwg.mxu0
      %v4889 = vld [vmem:[#allocation2 + $0xb] sm:$0x1]
      %v4890 = vadd.f32 %v4889, %v4886
      %v4891 = vtanh.pop %v4890
      %4892 = vst.msk [vmem:[%s309 + $0xb] sm:$0x1] %vm4044, %v4891
      %v4894 = vsel %vm1130, %v4891, 0
      %4896 = vmatprep.subr.mxu0 0.0
      %4897 = vmatpush1.msra.mxu0 %v3311
      %4898 = vmatprep.subr.mxu0 0.0
      %4899 = vmatpush1.msra.mxu0 %v3316
      %4900 = vmatprep.subr.mxu0 0.0
      %4901 = vmatpush1.msra.mxu0 0.0
      %4902 = vmatprep.subr.mxu0 0.0
      %4903 = vmatpush1.msra.mxu0 0.0
      %4904 = vmatprep.subr.mxu0 0.0
      %4905 = vmatpush1.msra.mxu0 0.0
      %4906 = vmatprep.subr.mxu0 0.0
      %4907 = vmatpush1.msra.mxu0 0.0
      %4908 = vmatprep.subr.mxu0 0.0
      %4909 = vmatpush1.msra.mxu0 0.0
      %4910 = vmatprep.subr.mxu0 0.0
      %4911 = vmatpush1.msra.mxu0 0.0
      %4912 = vmatprep.subr.mxu0 0.0
      %4913 = vmatpush1.msra.mxu0 0.0
      %4914 = vmatprep.subr.mxu0 0.0
      %4915 = vmatpush1.msra.mxu0 0.0
      %4916 = vmatprep.subr.mxu0 0.0
      %4917 = vmatpush1.msra.mxu0 0.0
      %4918 = vmatprep.subr.mxu0 0.0
      %4919 = vmatpush1.msra.mxu0 0.0
      %4920 = vmatprep.subr.mxu0 0.0
      %4921 = vmatpush1.msra.mxu0 0.0
      %4922 = vmatprep.subr.mxu0 0.0
      %4923 = vmatpush1.msra.mxu0 0.0
      %4924 = vmatprep.subr.mxu0 0.0
      %4925 = vmatpush1.msra.mxu0 0.0
      %4926 = vmatprep.subr.mxu0 0.0
      %4927 = vmatpush1.msra.mxu0 0.0
      %4928 = vmatprep.subr.mxu0 0.0
      %4929 = vmatpush1.msra.mxu0 0.0
      %4930 = vmatprep.subr.mxu0 0.0
      %4931 = vmatpush1.msra.mxu0 0.0
      %4932 = vmatprep.subr.mxu0 0.0
      %4933 = vmatpush1.msra.mxu0 0.0
      %4934 = vmatprep.subr.mxu0 0.0
      %4935 = vmatpush1.msra.mxu0 0.0
      %4936 = vmatprep.subr.mxu0 0.0
      %4937 = vmatpush1.msra.mxu0 0.0
      %4938 = vmatprep.subr.mxu0 0.0
      %4939 = vmatpush1.msra.mxu0 0.0
      %4940 = vmatprep.subr.mxu0 0.0
      %4941 = vmatpush1.msra.mxu0 0.0
      %4942 = vmatprep.subr.mxu0 0.0
      %4943 = vmatpush1.msra.mxu0 0.0
      %4944 = vmatprep.subr.mxu0 0.0
      %4945 = vmatpush1.msra.mxu0 0.0
      %4946 = vmatprep.subr.mxu0 0.0
      %4947 = vmatpush1.msra.mxu0 0.0
      %4948 = vmatprep.subr.mxu0 0.0
      %4949 = vmatpush1.msra.mxu0 0.0
      %4950 = vmatprep.subr.mxu0 0.0
      %4951 = vmatpush1.msra.mxu0 0.0
      %4952 = vmatprep.subr.mxu0 0.0
      %4953 = vmatpush1.msra.mxu0 0.0
      %4954 = vmatprep.subr.mxu0 0.0
      %4955 = vmatpush1.msra.mxu0 0.0
      %4956 = vmatprep.subr.mxu0 0.0
      %4957 = vmatpush1.msra.mxu0 0.0
      %4958 = vmatprep.subr.mxu0 0.0
      %4959 = vmatpush1.msra.mxu0 0.0
      %4960 = vmatprep.mubr.f32.mxu0 0.0
      %4961 = vmatmul.mubr.f32.gmra.mrb[0].mxu0 %v4894
      %v4962 = vpop.f32.mrb[0].mxu0
      %v4963 = vadd.f32 0.0, %v4962
      %v4964 = vpop.f32.mrb[0].mxu0
      %4965 = vdwg.mxu0
      %v4966 = vld [vmem:[#allocation2 + $0xc] sm:$0x1]
      %v4967 = vadd.f32 %v4966, %v4963
      %v4968 = vtanh.pop %v4967
      %4969 = vst.msk [vmem:[%s309 + $0xc] sm:$0x1] %vm4044, %v4968
      %v4971 = vsel %vm1130, %v4968, 0
      %4973 = vmatprep.subr.mxu0 0.0
      %4974 = vmatpush1.msra.mxu0 %v3311
      %4975 = vmatprep.subr.mxu0 0.0
      %4976 = vmatpush1.msra.mxu0 %v3316
      %4977 = vmatprep.subr.mxu0 0.0
      %4978 = vmatpush1.msra.mxu0 0.0
      %4979 = vmatprep.subr.mxu0 0.0
      %4980 = vmatpush1.msra.mxu0 0.0
      %4981 = vmatprep.subr.mxu0 0.0
      %4982 = vmatpush1.msra.mxu0 0.0
      %4983 = vmatprep.subr.mxu0 0.0
      %4984 = vmatpush1.msra.mxu0 0.0
      %4985 = vmatprep.subr.mxu0 0.0
      %4986 = vmatpush1.msra.mxu0 0.0
      %4987 = vmatprep.subr.mxu0 0.0
      %4988 = vmatpush1.msra.mxu0 0.0
      %4989 = vmatprep.subr.mxu0 0.0
      %4990 = vmatpush1.msra.mxu0 0.0
      %4991 = vmatprep.subr.mxu0 0.0
      %4992 = vmatpush1.msra.mxu0 0.0
      %4993 = vmatprep.subr.mxu0 0.0
      %4994 = vmatpush1.msra.mxu0 0.0
      %4995 = vmatprep.subr.mxu0 0.0
      %4996 = vmatpush1.msra.mxu0 0.0
      %4997 = vmatprep.subr.mxu0 0.0
      %4998 = vmatpush1.msra.mxu0 0.0
      %4999 = vmatprep.subr.mxu0 0.0
      %5000 = vmatpush1.msra.mxu0 0.0
      %5001 = vmatprep.subr.mxu0 0.0
      %5002 = vmatpush1.msra.mxu0 0.0
      %5003 = vmatprep.subr.mxu0 0.0
      %5004 = vmatpush1.msra.mxu0 0.0
      %5005 = vmatprep.subr.mxu0 0.0
      %5006 = vmatpush1.msra.mxu0 0.0
      %5007 = vmatprep.subr.mxu0 0.0
      %5008 = vmatpush1.msra.mxu0 0.0
      %5009 = vmatprep.subr.mxu0 0.0
      %5010 = vmatpush1.msra.mxu0 0.0
      %5011 = vmatprep.subr.mxu0 0.0
      %5012 = vmatpush1.msra.mxu0 0.0
      %5013 = vmatprep.subr.mxu0 0.0
      %5014 = vmatpush1.msra.mxu0 0.0
      %5015 = vmatprep.subr.mxu0 0.0
      %5016 = vmatpush1.msra.mxu0 0.0
      %5017 = vmatprep.subr.mxu0 0.0
      %5018 = vmatpush1.msra.mxu0 0.0
      %5019 = vmatprep.subr.mxu0 0.0
      %5020 = vmatpush1.msra.mxu0 0.0
      %5021 = vmatprep.subr.mxu0 0.0
      %5022 = vmatpush1.msra.mxu0 0.0
      %5023 = vmatprep.subr.mxu0 0.0
      %5024 = vmatpush1.msra.mxu0 0.0
      %5025 = vmatprep.subr.mxu0 0.0
      %5026 = vmatpush1.msra.mxu0 0.0
      %5027 = vmatprep.subr.mxu0 0.0
      %5028 = vmatpush1.msra.mxu0 0.0
      %5029 = vmatprep.subr.mxu0 0.0
      %5030 = vmatpush1.msra.mxu0 0.0
      %5031 = vmatprep.subr.mxu0 0.0
      %5032 = vmatpush1.msra.mxu0 0.0
      %5033 = vmatprep.subr.mxu0 0.0
      %5034 = vmatpush1.msra.mxu0 0.0
      %5035 = vmatprep.subr.mxu0 0.0
      %5036 = vmatpush1.msra.mxu0 0.0
      %5037 = vmatprep.mubr.f32.mxu0 0.0
      %5038 = vmatmul.mubr.f32.gmra.mrb[0].mxu0 %v4971
      %v5039 = vpop.f32.mrb[0].mxu0
      %v5040 = vadd.f32 0.0, %v5039
      %v5041 = vpop.f32.mrb[0].mxu0
      %5042 = vdwg.mxu0
      %v5043 = vld [vmem:[#allocation2 + $0xd] sm:$0x1]
      %v5044 = vadd.f32 %v5043, %v5040
      %v5045 = vtanh.pop %v5044
      %5046 = vst.msk [vmem:[%s309 + $0xd] sm:$0x1] %vm4044, %v5045
      %v5048 = vsel %vm1130, %v5045, 0
      %5050 = vmatprep.subr.mxu0 0.0
      %5051 = vmatpush1.msra.mxu0 %v3311
      %5052 = vmatprep.subr.mxu0 0.0
      %5053 = vmatpush1.msra.mxu0 %v3316
      %5054 = vmatprep.subr.mxu0 0.0
      %5055 = vmatpush1.msra.mxu0 0.0
      %5056 = vmatprep.subr.mxu0 0.0
      %5057 = vmatpush1.msra.mxu0 0.0
      %5058 = vmatprep.subr.mxu0 0.0
      %5059 = vmatpush1.msra.mxu0 0.0
      %5060 = vmatprep.subr.mxu0 0.0
      %5061 = vmatpush1.msra.mxu0 0.0
      %5062 = vmatprep.subr.mxu0 0.0
      %5063 = vmatpush1.msra.mxu0 0.0
      %5064 = vmatprep.subr.mxu0 0.0
      %5065 = vmatpush1.msra.mxu0 0.0
      %5066 = vmatprep.subr.mxu0 0.0
      %5067 = vmatpush1.msra.mxu0 0.0
      %5068 = vmatprep.subr.mxu0 0.0
      %5069 = vmatpush1.msra.mxu0 0.0
      %5070 = vmatprep.subr.mxu0 0.0
      %5071 = vmatpush1.msra.mxu0 0.0
      %5072 = vmatprep.subr.mxu0 0.0
      %5073 = vmatpush1.msra.mxu0 0.0
      %5074 = vmatprep.subr.mxu0 0.0
      %5075 = vmatpush1.msra.mxu0 0.0
      %5076 = vmatprep.subr.mxu0 0.0
      %5077 = vmatpush1.msra.mxu0 0.0
      %5078 = vmatprep.subr.mxu0 0.0
      %5079 = vmatpush1.msra.mxu0 0.0
      %5080 = vmatprep.subr.mxu0 0.0
      %5081 = vmatpush1.msra.mxu0 0.0
      %5082 = vmatprep.subr.mxu0 0.0
      %5083 = vmatpush1.msra.mxu0 0.0
      %5084 = vmatprep.subr.mxu0 0.0
      %5085 = vmatpush1.msra.mxu0 0.0
      %5086 = vmatprep.subr.mxu0 0.0
      %5087 = vmatpush1.msra.mxu0 0.0
      %5088 = vmatprep.subr.mxu0 0.0
      %5089 = vmatpush1.msra.mxu0 0.0
      %5090 = vmatprep.subr.mxu0 0.0
      %5091 = vmatpush1.msra.mxu0 0.0
      %5092 = vmatprep.subr.mxu0 0.0
      %5093 = vmatpush1.msra.mxu0 0.0
      %5094 = vmatprep.subr.mxu0 0.0
      %5095 = vmatpush1.msra.mxu0 0.0
      %5096 = vmatprep.subr.mxu0 0.0
      %5097 = vmatpush1.msra.mxu0 0.0
      %5098 = vmatprep.subr.mxu0 0.0
      %5099 = vmatpush1.msra.mxu0 0.0
      %5100 = vmatprep.subr.mxu0 0.0
      %5101 = vmatpush1.msra.mxu0 0.0
      %5102 = vmatprep.subr.mxu0 0.0
      %5103 = vmatpush1.msra.mxu0 0.0
      %5104 = vmatprep.subr.mxu0 0.0
      %5105 = vmatpush1.msra.mxu0 0.0
      %5106 = vmatprep.subr.mxu0 0.0
      %5107 = vmatpush1.msra.mxu0 0.0
      %5108 = vmatprep.subr.mxu0 0.0
      %5109 = vmatpush1.msra.mxu0 0.0
      %5110 = vmatprep.subr.mxu0 0.0
      %5111 = vmatpush1.msra.mxu0 0.0
      %5112 = vmatprep.subr.mxu0 0.0
      %5113 = vmatpush1.msra.mxu0 0.0
      %5114 = vmatprep.mubr.f32.mxu0 0.0
      %5115 = vmatmul.mubr.f32.gmra.mrb[0].mxu0 %v5048
      %v5116 = vpop.f32.mrb[0].mxu0
      %v5117 = vadd.f32 0.0, %v5116
      %v5118 = vpop.f32.mrb[0].mxu0
      %5119 = vdwg.mxu0
      %v5120 = vld [vmem:[#allocation2 + $0xe] sm:$0x1]
      %v5121 = vadd.f32 %v5120, %v5117
      %v5122 = vtanh.pop %v5121
      %5123 = vst.msk [vmem:[%s309 + $0xe] sm:$0x1] %vm4044, %v5122
      %v5125 = vsel %vm1130, %v5122, 0
      %5127 = vmatprep.subr.mxu0 0.0
      %5128 = vmatpush1.msra.mxu0 %v3311
      %5129 = vmatprep.subr.mxu0 0.0
      %5130 = vmatpush1.msra.mxu0 %v3316
      %5131 = vmatprep.subr.mxu0 0.0
      %5132 = vmatpush1.msra.mxu0 0.0
      %5133 = vmatprep.subr.mxu0 0.0
      %5134 = vmatpush1.msra.mxu0 0.0
      %5135 = vmatprep.subr.mxu0 0.0
      %5136 = vmatpush1.msra.mxu0 0.0
      %5137 = vmatprep.subr.mxu0 0.0
      %5138 = vmatpush1.msra.mxu0 0.0
      %5139 = vmatprep.subr.mxu0 0.0
      %5140 = vmatpush1.msra.mxu0 0.0
      %5141 = vmatprep.subr.mxu0 0.0
      %5142 = vmatpush1.msra.mxu0 0.0
      %5143 = vmatprep.subr.mxu0 0.0
      %5144 = vmatpush1.msra.mxu0 0.0
      %5145 = vmatprep.subr.mxu0 0.0
      %5146 = vmatpush1.msra.mxu0 0.0
      %5147 = vmatprep.subr.mxu0 0.0
      %5148 = vmatpush1.msra.mxu0 0.0
      %5149 = vmatprep.subr.mxu0 0.0
      %5150 = vmatpush1.msra.mxu0 0.0
      %5151 = vmatprep.subr.mxu0 0.0
      %5152 = vmatpush1.msra.mxu0 0.0
      %5153 = vmatprep.subr.mxu0 0.0
      %5154 = vmatpush1.msra.mxu0 0.0
      %5155 = vmatprep.subr.mxu0 0.0
      %5156 = vmatpush1.msra.mxu0 0.0
      %5157 = vmatprep.subr.mxu0 0.0
      %5158 = vmatpush1.msra.mxu0 0.0
      %5159 = vmatprep.subr.mxu0 0.0
      %5160 = vmatpush1.msra.mxu0 0.0
      %5161 = vmatprep.subr.mxu0 0.0
      %5162 = vmatpush1.msra.mxu0 0.0
      %5163 = vmatprep.subr.mxu0 0.0
      %5164 = vmatpush1.msra.mxu0 0.0
      %5165 = vmatprep.subr.mxu0 0.0
      %5166 = vmatpush1.msra.mxu0 0.0
      %5167 = vmatprep.subr.mxu0 0.0
      %5168 = vmatpush1.msra.mxu0 0.0
      %5169 = vmatprep.subr.mxu0 0.0
      %5170 = vmatpush1.msra.mxu0 0.0
      %5171 = vmatprep.subr.mxu0 0.0
      %5172 = vmatpush1.msra.mxu0 0.0
      %5173 = vmatprep.subr.mxu0 0.0
      %5174 = vmatpush1.msra.mxu0 0.0
      %5175 = vmatprep.subr.mxu0 0.0
      %5176 = vmatpush1.msra.mxu0 0.0
      %5177 = vmatprep.subr.mxu0 0.0
      %5178 = vmatpush1.msra.mxu0 0.0
      %5179 = vmatprep.subr.mxu0 0.0
      %5180 = vmatpush1.msra.mxu0 0.0
      %5181 = vmatprep.subr.mxu0 0.0
      %5182 = vmatpush1.msra.mxu0 0.0
      %5183 = vmatprep.subr.mxu0 0.0
      %5184 = vmatpush1.msra.mxu0 0.0
      %5185 = vmatprep.subr.mxu0 0.0
      %5186 = vmatpush1.msra.mxu0 0.0
      %5187 = vmatprep.subr.mxu0 0.0
      %5188 = vmatpush1.msra.mxu0 0.0
      %5189 = vmatprep.subr.mxu0 0.0
      %5190 = vmatpush1.msra.mxu0 0.0
      %5191 = vmatprep.mubr.f32.mxu0 0.0
      %5192 = vmatmul.mubr.f32.gmra.mrb[0].mxu0 %v5125
      %v5193 = vpop.f32.mrb[0].mxu0
      %v5194 = vadd.f32 0.0, %v5193
      %v5195 = vpop.f32.mrb[0].mxu0
      %5196 = vdwg.mxu0
      %v5197 = vld [vmem:[#allocation2 + $0xf] sm:$0x1]
      %v5198 = vadd.f32 %v5197, %v5194
      %v5199 = vtanh.pop %v5198
      %5200 = vst.msk [vmem:[%s309 + $0xf] sm:$0x1] %vm4044, %v5199
      %p5201 = scmp.lt.s32.totalorder %s18, 1
      %s5202 = scalar_select %p5201, %s18, 1
      %s5203 = smul.addr %s5202, 2
      %s5204 = smul.addr %s5203, 8
      %s5205 = scalar_lea.vmem %s7, %s5204
      // Predicated region
      $region49: #{_rnn_cell_forward.1} parent=47 // pred_check
        %p5206 = pneg %p198
      $region50: #{_rnn_cell_forward.1} parent=47 // pred_check_branch
        %5208 = sbr.rel (%p5206) target = $region52
      $region51: #{_rnn_cell_forward.1} parent=47 // pred_region
        _
      $region52: #{_rnn_cell_forward.1} parent=47 // pred_fallthru
        _
    $region48: #{_rnn_cell_forward.1} parent=5 // pred_fallthru
      _
    %p5209 = scmp.le.s32.totalorder 2, %s13
    // Predicated region
    $region53: #{_rnn_cell_forward.1} parent=5 // pred_check
      %p5210 = pneg %p5209
    $region54: #{_rnn_cell_forward.1} parent=5 // pred_check_branch
      %5212 = sbr.rel (%p5210) target = $region56
    $region55: #{_rnn_cell_forward.1} parent=5 // pred_region
      %s5213 = ssub.s32 %s13, 2
      // Predicated region
      $region57: #{_rnn_cell_forward.1} parent=55 // pred_check
        %p5214 = pneg %p204
      $region58: #{_rnn_cell_forward.1} parent=55 // pred_check_branch
        %5216 = sbr.rel (%p5214) target = $region60
      $region59: #{_rnn_cell_forward.1} parent=55 // pred_region
        %p5217 = scmp.lt.s32.totalorder %s19, 1
        %s5218 = scalar_select %p5217, %s19, 1
        %s5219 = smul.addr %s5218, 2
        %s5220 = smul.addr %s5219, 8
        %s5221 = scalar_lea.vmem %s7, %s5220
      $region60: #{_rnn_cell_forward.1} parent=55 // pred_fallthru
        _
    $region56: #{_rnn_cell_forward.1} parent=5 // pred_fallthru
      _
  $region6: #{_rnn_cell_forward.1} parent=0 // loop_footer
    %s17 = sadd.s32 1, %s13
  $region7: #{_rnn_cell_forward.1} parent=0 // loop_footer_branch
    %12 = sbr.rel target = $region3
  $region8: #{_rnn_cell_forward.1} parent=0 // loop_exit
    _

</llo_original>
